<compile_context>
chip_gen: v5e
topology: v5e:2x2
jax: 0.10.0
libtpu: 0.0.40
codegen_flags: <defaults>
</compile_context>

<pallas_src>
import functools

import jax
import jax.numpy as jnp
from jax import lax
from jax.experimental import pallas as pl
from jax.experimental.pallas import tpu as pltpu

EPS = 1e-5
MXU_DTYPE = jnp.bfloat16        # matmul inputs (accumulation stays float32)
ACC_CHUNK_ELEMS = 8 * 1024      # ~8 vregs of f32 per depthwise accumulation chunk


# ---------------------------------------------------------------------------
# helpers
# ---------------------------------------------------------------------------
def _nbytes(shape, dtype):
    n = 1
    for s in shape:
        n *= int(s)
    return n * jnp.dtype(dtype).itemsize


def _vmem_cap_bytes():
    """~85% of this generation's per-core VMEM (leave Mosaic headroom)."""
    try:
        cap = int(pltpu.get_tpu_info().vmem_capacity_bytes)
        if cap <= 0:
            raise ValueError("bad vmem capacity")
    except Exception:
        cap = 64 << 20              # conservative fallback: v7x per-TC VMEM
    return int(cap * 0.85)


def _vmem_limit_bytes(blocks, scratch_bytes, cap):
    # 2x for double buffering of every block + scratch + headroom, capped at
    # ~85% of the physical per-core VMEM for this TPU generation.
    est = 2 * sum(_nbytes(s, d) for s, d in blocks) + scratch_bytes + (4 << 20)
    return int(min(cap, max(32 << 20, est)))


def _choose_d_tile(D, pad, hw, target, N):
    """Largest D-tile <= target with clean halo blocks, 8-aligned row blocks,
    preferring >= 2 grid cells so both v7x TensorCores get work."""
    best = None
    for td in range(1, D + 1):
        if D % td:
            continue
        if D // td > 1 and pad > 0 and td % (2 * pad):
            continue                      # halo block (2*pad rows) must tile td
        if (td * hw) % 8:
            continue                      # 2-D (rows, C) blocks need rows % 8 == 0
        if td > target:
            continue
        if N * (D // td) < 2 and best is not None:
            continue                      # keep >= 2 grid cells when possible
        best = td
    if best is None:
        assert (D * hw) % 8 == 0, (
            "TODO(synk): D*H*W must be a multiple of 8 for the 2-D row layout")
        best = D
    return best


def _choose_row_tile(rows_per_batch, target, N):
    """Stage-3 row block: largest 8-aligned divisor of rows_per_batch <= target."""
    best = rows_per_batch
    for nblk in range(1, rows_per_batch + 1):
        if rows_per_batch % nblk:
            continue
        tm = rows_per_batch // nblk
        if tm % 8:
            continue
        if tm <= target:
            best = tm
            break
    if N == 1 and best == rows_per_batch and rows_per_batch % 16 == 0:
        best = rows_per_batch // 2        # >= 2 grid cells for 2-TC chips
    return best


def _fold_bn(bn, conv_bias):
    gamma, beta, mean, var = bn
    s = gamma / jnp.sqrt(var + EPS)
    b = beta - mean * s + conv_bias * s
    return s, b


# ---------------------------------------------------------------------------
# Stage 1: expand conv (+BN+SiLU) fused with depthwise conv (+BN+SiLU),
#          tiled over (batch, D-tiles) with a halo.
#          has_se  -> emits bf16 y and SE global-average-pool partials
#          !has_se -> also fuses project conv (+BN) and residual (no y in HBM)
# ---------------------------------------------------------------------------
def _make_stage1_kernel(*, ks, td, d_main, tdp, H, W, cm, cin, acc_chunk,
                        has_expand, has_halo, has_se, has_skip):
    n_chunks = td // acc_chunk

    def expand_piece(x_piece, expw_ref, expb_ref):
        dd, hp, wp, ck = x_piece.shape
        if not has_expand:
            return x_piece.astype(jnp.float32)
        x2 = x_piece.reshape(dd * hp * wp, ck)
        e = jnp.dot(x2.astype(MXU_DTYPE), expw_ref[...],
                    preferred_element_type=jnp.float32)
        # Folded BN bias applied in f32; the constant validity channel (last
        # column of x, 0 in the zero-padded border) masks the bias so padded
        # positions are exactly 0 after SiLU.
        e = (e + expb_ref[...]) * x2[:, cin:cin + 1]
        e = e * jax.nn.sigmoid(e)                     # SiLU
        return e.reshape(dd, hp, wp, cm)

    def kernel(*refs):
        i = 0
        xm_ref = refs[i]; i += 1
        xh_ref = None
        if has_halo:
            xh_ref = refs[i]; i += 1
        expw_ref = expb_ref = None
        if has_expand:
            expw_ref, expb_ref = refs[i], refs[i + 1]; i += 2
        dww_ref, dwb_ref = refs[i], refs[i + 1]; i += 2
        prw_ref = prb_ref = resid_ref = None
        if not has_se:
            prw_ref, prb_ref = refs[i], refs[i + 1]; i += 2
            if has_skip:
                resid_ref = refs[i]; i += 1
        if has_se:
            y_ref, pool_ref = refs[i], refs[i + 1]; i += 2
        else:
            o_ref = refs[i]; i += 1
        e_buf, e_sh, acc_ref = refs[i], refs[i + 1], refs[i + 2]

        # ---- expand 1x1x1 conv (+BN+SiLU) into the halo'd VMEM tile --------
        e_buf[0:d_main, :, :, :] = expand_piece(xm_ref[...], expw_ref, expb_ref)
        if has_halo:
            e_buf[d_main:tdp, :, :, :] = expand_piece(xh_ref[...],
                                                      expw_ref, expb_ref)

        # ---- depthwise ks^3 conv (+folded BN) -------------------------------
        # kw outermost with a single shared W-shift buffer (only the sublane
        # offset needs a relayout); the ks^2 taps of one kw accumulate in
        # vreg-sized row chunks, so acc makes only ks VMEM passes (not ks^3).
        for kw in range(ks):
            e_sh[...] = e_buf[:, :, kw:kw + W, :]
            for c in range(n_chunks):
                d0 = c * acc_chunk
                part = None
                for kd in range(ks):
                    for kh in range(ks):
                        widx = (kd * ks + kh) * ks + kw
                        tap = e_sh[d0 + kd:d0 + kd + acc_chunk, kh:kh + H, :, :]
                        term = tap * dww_ref[widx:widx + 1, :]
                        part = term if part is None else part + term
                if kw == 0:
                    # init with folded BN bias + first-kw taps (no zeros pass)
                    acc_ref[d0:d0 + acc_chunk] = part + dwb_ref[...]
                else:
                    acc_ref[d0:d0 + acc_chunk] += part

        y = acc_ref[...]
        y = y * jax.nn.sigmoid(y)                     # SiLU
        y2 = y.reshape(td * H * W, cm)

        if has_se:
            # Partial sum for the squeeze-excite global average pool.
            pool_ref[...] = jnp.broadcast_to(
                jnp.sum(y2, axis=0, keepdims=True), pool_ref.shape)
            y_ref[...] = y2.astype(y_ref.dtype)
        else:
            # No SE gate: fuse project conv (+BN) and residual here so the
            # wide activation never round-trips HBM.
            out = jnp.dot(y2.astype(MXU_DTYPE), prw_ref[...],
                          preferred_element_type=jnp.float32) + prb_ref[...]
            if has_skip:
                out = out + resid_ref[...]
            o_ref[...] = out

    return kernel


def _stage1(xp, exp_w, exp_b, dw_w, dw_b, pr_w, pr_b, resid2, *, ks, pad, td,
            D, H, W, cm, out_c, has_expand, has_se, has_skip, vmem_cap):
    N, DP, HP, WP, cin_k = xp.shape
    cin = cin_k - 1 if has_expand else cin_k
    T = D // td
    has_halo = T > 1 and pad > 0
    tdp = td + 2 * pad
    d_main = td if has_halo else tdp
    tm = td * H * W

    elems_per_d = H * W * cm
    acc_chunk = 1
    for cd in range(1, td + 1):
        if td % cd == 0 and cd * elems_per_d <= ACC_CHUNK_ELEMS:
            acc_chunk = cd

    in_specs = [pl.BlockSpec((None, d_main, HP, WP, cin_k),
                             lambda n, t: (n, t, 0, 0, 0))]
    inputs = [xp]
    blocks = [((d_main, HP, WP, cin_k), xp.dtype)]
    if has_halo:
        r = td // (2 * pad)
        in_specs.append(pl.BlockSpec((None, 2 * pad, HP, WP, cin_k),
                                     lambda n, t: (n, (t + 1) * r, 0, 0, 0)))
        inputs.append(xp)                              # same array, halo window
        blocks.append(((2 * pad, HP, WP, cin_k), xp.dtype))
    if has_expand:
        in_specs += [pl.BlockSpec((cin_k, cm), lambda n, t: (0, 0)),
                     pl.BlockSpec((1, cm), lambda n, t: (0, 0))]
        inputs += [exp_w, exp_b]
        blocks += [((cin_k, cm), exp_w.dtype), ((1, cm), exp_b.dtype)]
    in_specs += [pl.BlockSpec((ks ** 3, cm), lambda n, t: (0, 0)),
                 pl.BlockSpec((1, cm), lambda n, t: (0, 0))]
    inputs += [dw_w, dw_b]
    blocks += [((ks ** 3, cm), dw_w.dtype), ((1, cm), dw_b.dtype)]
    if not has_se:
        in_specs += [pl.BlockSpec((cm, out_c), lambda n, t: (0, 0)),
                     pl.BlockSpec((1, out_c), lambda n, t: (0, 0))]
        inputs += [pr_w, pr_b]
        blocks += [((cm, out_c), pr_w.dtype), ((1, out_c), pr_b.dtype)]
        if has_skip:
            in_specs.append(pl.BlockSpec((tm, out_c), lambda n, t: (n * T + t, 0)))
            inputs.append(resid2)
            blocks.append(((tm, out_c), resid2.dtype))

    if has_se:
        out_shape = (jax.ShapeDtypeStruct((N * D * H * W, cm), MXU_DTYPE),
                     jax.ShapeDtypeStruct((N, T, 8, cm), jnp.float32))
        out_specs = [pl.BlockSpec((tm, cm), lambda n, t: (n * T + t, 0)),
                     pl.BlockSpec((None, None, 8, cm), lambda n, t: (n, t, 0, 0))]
        blocks += [((tm, cm), MXU_DTYPE), ((8, cm), jnp.float32)]
    else:
        out_shape = jax.ShapeDtypeStruct((N * D * H * W, out_c), jnp.float32)
        out_specs = pl.BlockSpec((tm, out_c), lambda n, t: (n * T + t, 0))
        blocks.append(((tm, out_c), jnp.float32))

    scratch_defs = [((tdp, HP, WP, cm), jnp.float32),   # expanded tile (+halo)
                    ((tdp, HP, W, cm), jnp.float32),    # single W-shift buffer
                    ((td, H, W, cm), jnp.float32)]      # depthwise accumulator
    scratch = [pltpu.VMEM(s, d) for s, d in scratch_defs]
    scratch_bytes = sum(_nbytes(s, d) for s, d in scratch_defs)

    kernel = _make_stage1_kernel(ks=ks, td=td, d_main=d_main, tdp=tdp, H=H, W=W,
                                 cm=cm, cin=cin, acc_chunk=acc_chunk,
                                 has_expand=has_expand, has_halo=has_halo,
                                 has_se=has_se, has_skip=has_skip)
    return pl.pallas_call(
        kernel,
        out_shape=out_shape,
        grid_spec=pltpu.PrefetchScalarGridSpec(
            num_scalar_prefetch=0,
            grid=(N, T),
            in_specs=in_specs,
            out_specs=out_specs,
            scratch_shapes=scratch),
        compiler_params=pltpu.CompilerParams(
            dimension_semantics=("parallel", "parallel"),
            vmem_limit_bytes=_vmem_limit_bytes(blocks, scratch_bytes, vmem_cap)),
    )(*inputs)


# ---------------------------------------------------------------------------
# Stage 3 (only when SE is enabled): x*x*gate, project conv (+BN), residual.
# Pure streaming pass over large lane-dense row blocks (no halo -> decoupled
# from the stage-1 D-tile).
# ---------------------------------------------------------------------------
def _make_stage3_kernel(*, has_skip):
    def kernel(*refs):
        i = 0
        y_ref, gate_ref, prw_ref, prb_ref = refs[i:i + 4]; i += 4
        resid_ref = None
        if has_skip:
            resid_ref = refs[i]; i += 1
        o_ref = refs[i]

        y = y_ref[...].astype(jnp.float32)                     # (tm, cm)
        z = (y * y) * gate_ref[0:1, :]                         # x * SE(x)
        out = jnp.dot(z.astype(MXU_DTYPE), prw_ref[...],
                      preferred_element_type=jnp.float32) + prb_ref[...]
        if has_skip:
            out = out + resid_ref[...]
        o_ref[...] = out

    return kernel


def _stage3(y2, gate8, pr_w, pr_b, resid2, *, N, rows_per_batch, tm, cm, out_c,
            has_skip, vmem_cap):
    T = rows_per_batch // tm
    in_specs = [pl.BlockSpec((tm, cm), lambda n, t: (n * T + t, 0)),
                pl.BlockSpec((None, 8, cm), lambda n, t: (n, 0, 0)),
                pl.BlockSpec((cm, out_c), lambda n, t: (0, 0)),
                pl.BlockSpec((1, out_c), lambda n, t: (0, 0))]
    inputs = [y2, gate8, pr_w, pr_b]
    blocks = [((tm, cm), y2.dtype), ((8, cm), gate8.dtype),
              ((cm, out_c), pr_w.dtype), ((1, out_c), pr_b.dtype),
              ((tm, out_c), jnp.float32)]
    if has_skip:
        in_specs.append(pl.BlockSpec((tm, out_c), lambda n, t: (n * T + t, 0)))
        inputs.append(resid2)
        blocks.append(((tm, out_c), resid2.dtype))

    out_shape = jax.ShapeDtypeStruct((N * rows_per_batch, out_c), jnp.float32)
    out_specs = pl.BlockSpec((tm, out_c), lambda n, t: (n * T + t, 0))

    return pl.pallas_call(
        _make_stage3_kernel(has_skip=has_skip),
        out_shape=out_shape,
        grid_spec=pltpu.PrefetchScalarGridSpec(
            num_scalar_prefetch=0,
            grid=(N, T),
            in_specs=in_specs,
            out_specs=out_specs),
        compiler_params=pltpu.CompilerParams(
            dimension_semantics=("parallel", "parallel"),
            vmem_limit_bytes=_vmem_limit_bytes(blocks, 0, vmem_cap)),
    )(*inputs)


# ---------------------------------------------------------------------------
# Forward pass (eval-mode MBConvBlock)
# ---------------------------------------------------------------------------
def mbconv_forward(x_ncdhw, p, cfg, *, d_tile=None, row_tile=2048):
    ks, stride = cfg["ks"], cfg["stride"]
    assert ks % 2 == 1, "TODO(synk): even kernel ('auto' asymmetric pad) unsupported"
    assert stride == 1, "TODO(synk): depthwise stride > 1 unsupported"
    pad = ks // 2

    x = jnp.transpose(x_ncdhw, (0, 2, 3, 4, 1)).astype(jnp.float32)   # NCDHW->NDHWC
    N, D, H, W, cin = x.shape
    out_c = cfg["out_c"]
    has_expand = cfg["expand_ratio"] != 1
    cm = cin * cfg["expand_ratio"]
    has_se = cfg["se_ratio"] is not None and 0 < cfg["se_ratio"] <= 1
    has_skip = bool(cfg["id_skip"]) and stride == 1 and cfg["in_c"] == cfg["out_c"]

    vmem_cap = _vmem_cap_bytes()

    # Stage-1 D-tile: generation-aware (VMEM budget) and pushed toward the
    # >= 512-row regime; the chooser enforces halo divisibility / 8-alignment.
    if d_tile is None:
        HPe = H + 2 * pad
        WPe = W + 2 * pad
        WPe += (-WPe) % 8
        per_td = 4 * cm * (HPe * WPe + HPe * W + H * W)   # f32 scratch per D row
        d_tile = max(1, min(D, (vmem_cap // 3) // max(per_td, 1),
                            max(1, row_tile // (H * W))))
    td = _choose_d_tile(D, pad, H * W, d_tile, N)
    T = D // td

    # ---- fold eval-mode BatchNorm into the conv weights / biases -----------
    if has_expand:
        s, b = _fold_bn(p["exp_bn"], p["exp_b"])
        # BN scale folded into the bf16 matmul weight (zero row for the
        # validity channel); BN bias stays f32 and is masked in-kernel by the
        # validity channel so the zero-padded border is exactly 0 after SiLU.
        exp_w = jnp.concatenate([p["exp_w"] * s[None, :],
                                 jnp.zeros((1, cm), jnp.float32)],
                                axis=0).astype(MXU_DTYPE)          # (cin+1, cm)
        exp_b = b.reshape(1, cm).astype(jnp.float32)
        x_in = jnp.concatenate([x, jnp.ones((N, D, H, W, 1), x.dtype)], axis=-1)
        # TODO(synk): for production cin % 128 == 0, fold the validity channel
        #             into existing lane padding instead of appending one.
    else:
        exp_w = exp_b = None
        x_in = x

    dw_s, dw_bias = _fold_bn(p["dw_bn"], p["dw_b"])
    dw_w = (p["dw_w"] * dw_s[None, :]).astype(jnp.float32)          # (ks^3, cm)
    dw_bias = dw_bias.reshape(1, cm).astype(jnp.float32)

    pr_s, pr_bias = _fold_bn(p["pr_bn"], p["pr_b"])
    pr_w = (p["pr_w"] * pr_s[None, :]).astype(MXU_DTYPE)            # (cm, out_c)
    pr_bias = pr_bias.reshape(1, out_c).astype(jnp.float32)

    resid2 = x.reshape(N * D * H * W, cin) if has_skip else None

    # ---- stage 1: fused expand + depthwise (+ project/skip when no SE) -----
    # Extra right-pad on W up to a multiple of 8 keeps the in-kernel reshape
    # around the expand matmul a pure (free) layout reinterpretation.
    wp_pad = (-(W + 2 * pad)) % 8
    xp = jnp.pad(x_in, ((0, 0), (pad, pad), (pad, pad),
                        (pad, pad + wp_pad), (0, 0)))
    stage1_out = _stage1(xp, exp_w, exp_b, dw_w, dw_bias, pr_w, pr_bias, resid2,
                         ks=ks, pad=pad, td=td, D=D, H=H, W=W, cm=cm,
                         out_c=out_c, has_expand=has_expand, has_se=has_se,
                         has_skip=has_skip, vmem_cap=vmem_cap)

    if not has_se:
        out2 = stage1_out
    else:
        y2, pool_part = stage1_out
        # ---- stage 2: finish the pool + per-batch SE gate in plain JAX -----
        pooled = pool_part[:, :, 0, :].sum(axis=1) / float(D * H * W)   # (N, cm)
        s1 = pooled @ p["se_w1"] + p["se_b1"]
        s1 = s1 * jax.nn.sigmoid(s1)                                    # SiLU
        gate = jax.nn.sigmoid(s1 @ p["se_w2"] + p["se_b2"])             # (N, cm)
        gate8 = jnp.broadcast_to(gate[:, None, :], (N, 8, cm)).astype(jnp.float32)
        # ---- stage 3: x*x*gate, project conv (+BN), residual ---------------
        rows_per_batch = D * H * W
        tm3 = _choose_row_tile(rows_per_batch, row_tile, N)
        out2 = _stage3(y2, gate8, pr_w, pr_bias, resid2, N=N,
                       rows_per_batch=rows_per_batch, tm=tm3, cm=cm,
                       out_c=out_c, has_skip=has_skip, vmem_cap=vmem_cap)

    out = out2.reshape(N, D, H, W, out_c)
    return jnp.transpose(out, (0, 4, 1, 2, 3))                     # back to NCDHW


# ---------------------------------------------------------------------------
# Parameters (deterministic, synthetic)
# ---------------------------------------------------------------------------
def init_params(key, *, in_c, out_c, ks, expand_ratio, se_ratio):
    cm = in_c * expand_ratio
    csq = max(1, int(cm * se_ratio)) if se_ratio else 1
    keys = iter(jax.random.split(key, 32))

    def u(shape, lo=-0.5, hi=0.5):
        return jax.random.uniform(next(keys), shape, jnp.float32, lo, hi)

    def bn(c):  # nontrivial eval-mode BatchNorm stats/affine
        return (u((c,), 0.8, 1.2), u((c,), -0.1, 0.1),
                u((c,), -0.1, 0.1), u((c,), 0.7, 1.3))

    return {
        "exp_w": u((in_c, cm)), "exp_b": u((cm,)), "exp_bn": bn(cm),
        "dw_w": u((ks ** 3, cm)), "dw_b": u((cm,)), "dw_bn": bn(cm),
        "se_w1": u((cm, csq)), "se_b1": u((csq,)),
        "se_w2": u((csq, cm)), "se_b2": u((cm,)),
        "pr_w": u((cm, out_c)), "pr_b": u((out_c,)), "pr_bn": bn(out_c),
    }


# ---------------------------------------------------------------------------
# Pure-JAX reference (eval-mode PyTorch semantics) for verification
# ---------------------------------------------------------------------------
def mbconv_reference(x_ncdhw, p, cfg):
    x = jnp.transpose(x_ncdhw, (0, 2, 3, 4, 1)).astype(jnp.float32)
    inputs = x

    def bn(v, bnp):
        g, b, m, var = bnp
        return (v - m) / jnp.sqrt(var + EPS) * g + b

    if cfg["expand_ratio"] != 1:
        x = jnp.einsum("ndhwc,ce->ndhwe", x, p["exp_w"]) + p["exp_b"]
        x = jax.nn.silu(bn(x, p["exp_bn"]))
    ks = cfg["ks"]
    pad = ks // 2
    cm = x.shape[-1]
    w_dw = p["dw_w"].reshape(ks, ks, ks, cm)[:, :, :, None, :]   # DHWIO
    x = lax.conv_general_dilated(
        x, w_dw, (1, 1, 1), [(pad, pad)] * 3,
        dimension_numbers=("NDHWC", "DHWIO", "NDHWC"),
        feature_group_count=cm) + p["dw_b"]
    x = jax.nn.silu(bn(x, p["dw_bn"]))
    if cfg["se_ratio"] is not None and 0 < cfg["se_ratio"] <= 1:
        pooled = jnp.mean(x, axis=(1, 2, 3), keepdims=True)
        s = jax.nn.silu(jnp.einsum("ndhwc,ce->ndhwe", pooled, p["se_w1"]) + p["se_b1"])
        gate = jax.nn.sigmoid(jnp.einsum("ndhwc,ce->ndhwe", s, p["se_w2"]) + p["se_b2"])
        x = (x * gate) * x
    x = bn(jnp.einsum("ndhwc,ce->ndhwe", x, p["pr_w"]) + p["pr_b"], p["pr_bn"])
    if cfg["id_skip"] and cfg["stride"] == 1 and cfg["in_c"] == cfg["out_c"]:
        x = x + inputs
    return jnp.transpose(x, (0, 4, 1, 2, 3))


if __name__ == "__main__":
    key = jax.random.PRNGKey(0)
    k1, k2, k3, k4, k5, k6 = jax.random.split(key, 6)

    def check(cfg, kx, kp, d_tile=None):
        x = jax.random.normal(kx, (2, cfg["in_c"], 8, 8, 8), jnp.float32)  # NCDHW
        params = init_params(kp, in_c=cfg["in_c"], out_c=cfg["out_c"],
                             ks=cfg["ks"], expand_ratio=cfg["expand_ratio"],
                             se_ratio=cfg["se_ratio"])
        fwd = jax.jit(functools.partial(mbconv_forward, cfg=cfg, d_tile=d_tile))
        out = jax.block_until_ready(fwd(x, params))
        ref = mbconv_reference(x, params, cfg)
        assert out.shape == ref.shape == (2, cfg["out_c"], 8, 8, 8), (out.shape, ref.shape)
        err = float(jnp.max(jnp.abs(out - ref)))
        # bf16 MXU inputs (f32 accumulation) -> slightly looser tolerance.
        assert jnp.allclose(out, ref, rtol=2e-2, atol=2e-2), f"max abs err {err}"

    # expand conv + SE + identity skip; D split into two halo'd tiles.
    check(dict(in_c=4, out_c=4, ks=3, stride=1, se_ratio=0.25,
               id_skip=True, expand_ratio=2, drop_connect_rate=0.2),
          k1, k2, d_tile=4)
    # no expand conv, no skip (in_c != out_c); single D tile per batch item.
    check(dict(in_c=4, out_c=8, ks=3, stride=1, se_ratio=0.25,
               id_skip=True, expand_ratio=1, drop_connect_rate=0.2),
          k3, k4, d_tile=8)
    # no SE: project conv + residual fused into stage 1 (y never hits HBM);
    # D-tile auto-chosen from the generation-aware VMEM budget.
    check(dict(in_c=4, out_c=4, ks=3, stride=1, se_ratio=None,
               id_skip=True, expand_ratio=2, drop_connect_rate=0.2),
          k5, k6)

    print("KERNEL_OK")
</pallas_src>

<mosaic_0001>
module attributes {stable_mosaic.version = 11 : i64} {
  func.func @kernel(%arg0: i32, %arg1: i32, %arg2: memref<1x4x10x16x5xf32, #tpu.memory_space<vmem>>, %arg3: memref<1x2x10x16x5xf32, #tpu.memory_space<vmem>>, %arg4: memref<5x8xbf16, #tpu.memory_space<vmem>>, %arg5: memref<1x8xf32, #tpu.memory_space<vmem>>, %arg6: memref<27x8xf32, #tpu.memory_space<vmem>>, %arg7: memref<1x8xf32, #tpu.memory_space<vmem>>, %arg8: memref<256x8xbf16, #tpu.memory_space<vmem>>, %arg9: memref<1x1x8x8xf32, #tpu.memory_space<vmem>>, %arg10: memref<6x10x16x8xf32, #tpu.memory_space<vmem>>, %arg11: memref<6x10x8x8xf32, #tpu.memory_space<vmem>>, %arg12: memref<4x8x8x8xf32, #tpu.memory_space<vmem>>) attributes {dimension_semantics = [#tpu.dimension_semantics<parallel>, #tpu.dimension_semantics<parallel>], iteration_bounds = array<i64: 2, 2>, scalar_prefetch = 0 : i64, scratch_operands = 3 : i64, tpu.core_type = #tpu.core_type<tc>, window_params = [{transform_indices = @transform_0, window_bounds = array<i64: 1, 4, 10, 16, 5>}, {transform_indices = @transform_1, window_bounds = array<i64: 1, 2, 10, 16, 5>}, {pipeline_mode = #tpu.pipeline_mode<synchronous>, transform_indices = @transform_2, window_bounds = array<i64: 5, 8>}, {pipeline_mode = #tpu.pipeline_mode<synchronous>, transform_indices = @transform_3, window_bounds = array<i64: 1, 8>}, {pipeline_mode = #tpu.pipeline_mode<synchronous>, transform_indices = @transform_4, window_bounds = array<i64: 27, 8>}, {pipeline_mode = #tpu.pipeline_mode<synchronous>, transform_indices = @transform_5, window_bounds = array<i64: 1, 8>}, {transform_indices = @transform_6, window_bounds = array<i64: 256, 8>}, {transform_indices = @transform_7, window_bounds = array<i64: 1, 1, 8, 8>}]} {
    %c0 = arith.constant 0 : index
    %c0_0 = arith.constant 0 : index
    %c0_1 = arith.constant 0 : index
    %c0_2 = arith.constant 0 : index
    %c0_3 = arith.constant 0 : index
    %0 = vector.load %arg2[%c0, %c0_0, %c0_1, %c0_2, %c0_3] : memref<1x4x10x16x5xf32, #tpu.memory_space<vmem>>, vector<1x4x10x16x5xf32>
    %1 = vector.shape_cast %0 : vector<1x4x10x16x5xf32> to vector<4x10x16x5xf32>
    %2 = vector.shape_cast %1 : vector<4x10x16x5xf32> to vector<640x5xf32>
    %3 = arith.truncf %2 : vector<640x5xf32> to vector<640x5xbf16>
    %c0_4 = arith.constant 0 : index
    %c0_5 = arith.constant 0 : index
    %4 = vector.load %arg4[%c0_4, %c0_5] : memref<5x8xbf16, #tpu.memory_space<vmem>>, vector<5x8xbf16>
    %cst = arith.constant dense<0.000000e+00> : vector<640x8xf32>
    %5 = tpu.matmul %3, %4, %cst {dimension_numbers = #tpu.dot_dimension_numbers<[1], [0], [0], [1], [0, 0, 1, 1], [], []>} : vector<640x5xbf16>, vector<5x8xbf16>, vector<640x8xf32> -> vector<640x8xf32>
    %c0_6 = arith.constant 0 : index
    %c0_7 = arith.constant 0 : index
    %6 = vector.load %arg5[%c0_6, %c0_7] : memref<1x8xf32, #tpu.memory_space<vmem>>, vector<1x8xf32>
    %7 = vector.broadcast %6 : vector<1x8xf32> to vector<640x8xf32>
    %8 = arith.addf %5, %7 : vector<640x8xf32>
    %9 = vector.extract_strided_slice %2 {offsets = [0, 4], sizes = [640, 1], strides = [1, 1]} : vector<640x5xf32> to vector<640x1xf32>
    %10 = vector.broadcast %9 : vector<640x1xf32> to vector<640x8xf32>
    %11 = arith.mulf %8, %10 : vector<640x8xf32>
    %12 = arith.negf %11 : vector<640x8xf32>
    %13 = math.exp %12 : vector<640x8xf32>
    %cst_8 = arith.constant 1.000000e+00 : f32
    %14 = vector.broadcast %cst_8 : f32 to vector<640x8xf32>
    %15 = arith.addf %14, %13 : vector<640x8xf32>
    %16 = arith.divf %14, %15 : vector<640x8xf32>
    %17 = arith.mulf %11, %16 : vector<640x8xf32>
    %18 = vector.shape_cast %17 : vector<640x8xf32> to vector<4x10x16x8xf32>
    %c0_9 = arith.constant 0 : index
    %c0_10 = arith.constant 0 : index
    %c0_11 = arith.constant 0 : index
    %c0_12 = arith.constant 0 : index
    %19 = vector.load %arg10[%c0_9, %c0_10, %c0_11, %c0_12] : memref<6x10x16x8xf32, #tpu.memory_space<vmem>>, vector<4x10x16x8xf32>
    tpu.vector_store %arg10[%c0_9, %c0_10, %c0_11, %c0_12], %18 {strides = array<i32>} : memref<6x10x16x8xf32, #tpu.memory_space<vmem>>, vector<4x10x16x8xf32>,
    %c0_13 = arith.constant 0 : index
    %c0_14 = arith.constant 0 : index
    %c0_15 = arith.constant 0 : index
    %c0_16 = arith.constant 0 : index
    %c0_17 = arith.constant 0 : index
    %20 = vector.load %arg3[%c0_13, %c0_14, %c0_15, %c0_16, %c0_17] : memref<1x2x10x16x5xf32, #tpu.memory_space<vmem>>, vector<1x2x10x16x5xf32>
    %21 = vector.shape_cast %20 : vector<1x2x10x16x5xf32> to vector<2x10x16x5xf32>
    %22 = vector.shape_cast %21 : vector<2x10x16x5xf32> to vector<320x5xf32>
    %23 = arith.truncf %22 : vector<320x5xf32> to vector<320x5xbf16>
    %c0_18 = arith.constant 0 : index
    %c0_19 = arith.constant 0 : index
    %24 = vector.load %arg4[%c0_18, %c0_19] : memref<5x8xbf16, #tpu.memory_space<vmem>>, vector<5x8xbf16>
    %cst_20 = arith.constant dense<0.000000e+00> : vector<320x8xf32>
    %25 = tpu.matmul %23, %24, %cst_20 {dimension_numbers = #tpu.dot_dimension_numbers<[1], [0], [0], [1], [0, 0, 1, 1], [], []>} : vector<320x5xbf16>, vector<5x8xbf16>, vector<320x8xf32> -> vector<320x8xf32>
    %c0_21 = arith.constant 0 : index
    %c0_22 = arith.constant 0 : index
    %26 = vector.load %arg5[%c0_21, %c0_22] : memref<1x8xf32, #tpu.memory_space<vmem>>, vector<1x8xf32>
    %27 = vector.broadcast %26 : vector<1x8xf32> to vector<320x8xf32>
    %28 = arith.addf %25, %27 : vector<320x8xf32>
    %29 = vector.extract_strided_slice %22 {offsets = [0, 4], sizes = [320, 1], strides = [1, 1]} : vector<320x5xf32> to vector<320x1xf32>
    %30 = vector.broadcast %29 : vector<320x1xf32> to vector<320x8xf32>
    %31 = arith.mulf %28, %30 : vector<320x8xf32>
    %32 = arith.negf %31 : vector<320x8xf32>
    %33 = math.exp %32 : vector<320x8xf32>
    %cst_23 = arith.constant 1.000000e+00 : f32
    %34 = vector.broadcast %cst_23 : f32 to vector<320x8xf32>
    %35 = arith.addf %34, %33 : vector<320x8xf32>
    %36 = arith.divf %34, %35 : vector<320x8xf32>
    %37 = arith.mulf %31, %36 : vector<320x8xf32>
    %38 = vector.shape_cast %37 : vector<320x8xf32> to vector<2x10x16x8xf32>
    %c4 = arith.constant 4 : index
    %c0_24 = arith.constant 0 : index
    %c0_25 = arith.constant 0 : index
    %c0_26 = arith.constant 0 : index
    %39 = vector.load %arg10[%c4, %c0_24, %c0_25, %c0_26] : memref<6x10x16x8xf32, #tpu.memory_space<vmem>>, vector<2x10x16x8xf32>
    tpu.vector_store %arg10[%c4, %c0_24, %c0_25, %c0_26], %38 {strides = array<i32>} : memref<6x10x16x8xf32, #tpu.memory_space<vmem>>, vector<2x10x16x8xf32>,
    %c0_27 = arith.constant 0 : index
    %c0_28 = arith.constant 0 : index
    %c0_29 = arith.constant 0 : index
    %c0_30 = arith.constant 0 : index
    %40 = vector.load %arg10[%c0_27, %c0_28, %c0_29, %c0_30] : memref<6x10x16x8xf32, #tpu.memory_space<vmem>>, vector<6x10x8x8xf32>
    %c0_31 = arith.constant 0 : index
    %c0_32 = arith.constant 0 : index
    %c0_33 = arith.constant 0 : index
    %c0_34 = arith.constant 0 : index
    %41 = vector.load %arg11[%c0_31, %c0_32, %c0_33, %c0_34] : memref<6x10x8x8xf32, #tpu.memory_space<vmem>>, vector<6x10x8x8xf32>
    tpu.vector_store %arg11[%c0_31, %c0_32, %c0_33, %c0_34], %40 {strides = array<i32>} : memref<6x10x8x8xf32, #tpu.memory_space<vmem>>, vector<6x10x8x8xf32>,
    %c0_35 = arith.constant 0 : index
    %c0_36 = arith.constant 0 : index
    %c0_37 = arith.constant 0 : index
    %c0_38 = arith.constant 0 : index
    %42 = vector.load %arg11[%c0_35, %c0_36, %c0_37, %c0_38] : memref<6x10x8x8xf32, #tpu.memory_space<vmem>>, vector<4x8x8x8xf32>
    %c0_39 = arith.constant 0 : index
    %c0_40 = arith.constant 0 : index
    %43 = vector.load %arg6[%c0_39, %c0_40] : memref<27x8xf32, #tpu.memory_space<vmem>>, vector<1x8xf32>
    %44 = vector.shape_cast %43 : vector<1x8xf32> to vector<1x1x1x8xf32>
    %45 = vector.broadcast %44 : vector<1x1x1x8xf32> to vector<4x8x8x8xf32>
    %46 = arith.mulf %42, %45 : vector<4x8x8x8xf32>
    %c0_41 = arith.constant 0 : index
    %c1 = arith.constant 1 : index
    %c0_42 = arith.constant 0 : index
    %c0_43 = arith.constant 0 : index
    %47 = vector.load %arg11[%c0_41, %c1, %c0_42, %c0_43] : memref<6x10x8x8xf32, #tpu.memory_space<vmem>>, vector<4x8x8x8xf32>
    %c3 = arith.constant 3 : index
    %c0_44 = arith.constant 0 : index
    %48 = vector.load %arg6[%c3, %c0_44] : memref<27x8xf32, #tpu.memory_space<vmem>>, vector<1x8xf32>
    %49 = vector.shape_cast %48 : vector<1x8xf32> to vector<1x1x1x8xf32>
    %50 = vector.broadcast %49 : vector<1x1x1x8xf32> to vector<4x8x8x8xf32>
    %51 = arith.mulf %47, %50 : vector<4x8x8x8xf32>
    %52 = arith.addf %46, %51 : vector<4x8x8x8xf32>
    %c0_45 = arith.constant 0 : index
    %c2 = arith.constant 2 : index
    %c0_46 = arith.constant 0 : index
    %c0_47 = arith.constant 0 : index
    %53 = vector.load %arg11[%c0_45, %c2, %c0_46, %c0_47] : memref<6x10x8x8xf32, #tpu.memory_space<vmem>>, vector<4x8x8x8xf32>
    %c6 = arith.constant 6 : index
    %c0_48 = arith.constant 0 : index
    %54 = vector.load %arg6[%c6, %c0_48] : memref<27x8xf32, #tpu.memory_space<vmem>>, vector<1x8xf32>
    %55 = vector.shape_cast %54 : vector<1x8xf32> to vector<1x1x1x8xf32>
    %56 = vector.broadcast %55 : vector<1x1x1x8xf32> to vector<4x8x8x8xf32>
    %57 = arith.mulf %53, %56 : vector<4x8x8x8xf32>
    %58 = arith.addf %52, %57 : vector<4x8x8x8xf32>
    %c1_49 = arith.constant 1 : index
    %c0_50 = arith.constant 0 : index
    %c0_51 = arith.constant 0 : index
    %c0_52 = arith.constant 0 : index
    %59 = vector.load %arg11[%c1_49, %c0_50, %c0_51, %c0_52] : memref<6x10x8x8xf32, #tpu.memory_space<vmem>>, vector<4x8x8x8xf32>
    %c9 = arith.constant 9 : index
    %c0_53 = arith.constant 0 : index
    %60 = vector.load %arg6[%c9, %c0_53] : memref<27x8xf32, #tpu.memory_space<vmem>>, vector<1x8xf32>
    %61 = vector.shape_cast %60 : vector<1x8xf32> to vector<1x1x1x8xf32>
    %62 = vector.broadcast %61 : vector<1x1x1x8xf32> to vector<4x8x8x8xf32>
    %63 = arith.mulf %59, %62 : vector<4x8x8x8xf32>
    %64 = arith.addf %58, %63 : vector<4x8x8x8xf32>
    %c1_54 = arith.constant 1 : index
    %c1_55 = arith.constant 1 : index
    %c0_56 = arith.constant 0 : index
    %c0_57 = arith.constant 0 : index
    %65 = vector.load %arg11[%c1_54, %c1_55, %c0_56, %c0_57] : memref<6x10x8x8xf32, #tpu.memory_space<vmem>>, vector<4x8x8x8xf32>
    %c12 = arith.constant 12 : index
    %c0_58 = arith.constant 0 : index
    %66 = vector.load %arg6[%c12, %c0_58] : memref<27x8xf32, #tpu.memory_space<vmem>>, vector<1x8xf32>
    %67 = vector.shape_cast %66 : vector<1x8xf32> to vector<1x1x1x8xf32>
    %68 = vector.broadcast %67 : vector<1x1x1x8xf32> to vector<4x8x8x8xf32>
    %69 = arith.mulf %65, %68 : vector<4x8x8x8xf32>
    %70 = arith.addf %64, %69 : vector<4x8x8x8xf32>
    %c1_59 = arith.constant 1 : index
    %c2_60 = arith.constant 2 : index
    %c0_61 = arith.constant 0 : index
    %c0_62 = arith.constant 0 : index
    %71 = vector.load %arg11[%c1_59, %c2_60, %c0_61, %c0_62] : memref<6x10x8x8xf32, #tpu.memory_space<vmem>>, vector<4x8x8x8xf32>
    %c15 = arith.constant 15 : index
    %c0_63 = arith.constant 0 : index
    %72 = vector.load %arg6[%c15, %c0_63] : memref<27x8xf32, #tpu.memory_space<vmem>>, vector<1x8xf32>
    %73 = vector.shape_cast %72 : vector<1x8xf32> to vector<1x1x1x8xf32>
    %74 = vector.broadcast %73 : vector<1x1x1x8xf32> to vector<4x8x8x8xf32>
    %75 = arith.mulf %71, %74 : vector<4x8x8x8xf32>
    %76 = arith.addf %70, %75 : vector<4x8x8x8xf32>
    %c2_64 = arith.constant 2 : index
    %c0_65 = arith.constant 0 : index
    %c0_66 = arith.constant 0 : index
    %c0_67 = arith.constant 0 : index
    %77 = vector.load %arg11[%c2_64, %c0_65, %c0_66, %c0_67] : memref<6x10x8x8xf32, #tpu.memory_space<vmem>>, vector<4x8x8x8xf32>
    %c18 = arith.constant 18 : index
    %c0_68 = arith.constant 0 : index
    %78 = vector.load %arg6[%c18, %c0_68] : memref<27x8xf32, #tpu.memory_space<vmem>>, vector<1x8xf32>
    %79 = vector.shape_cast %78 : vector<1x8xf32> to vector<1x1x1x8xf32>
    %80 = vector.broadcast %79 : vector<1x1x1x8xf32> to vector<4x8x8x8xf32>
    %81 = arith.mulf %77, %80 : vector<4x8x8x8xf32>
    %82 = arith.addf %76, %81 : vector<4x8x8x8xf32>
    %c2_69 = arith.constant 2 : index
    %c1_70 = arith.constant 1 : index
    %c0_71 = arith.constant 0 : index
    %c0_72 = arith.constant 0 : index
    %83 = vector.load %arg11[%c2_69, %c1_70, %c0_71, %c0_72] : memref<6x10x8x8xf32, #tpu.memory_space<vmem>>, vector<4x8x8x8xf32>
    %c21 = arith.constant 21 : index
    %c0_73 = arith.constant 0 : index
    %84 = vector.load %arg6[%c21, %c0_73] : memref<27x8xf32, #tpu.memory_space<vmem>>, vector<1x8xf32>
    %85 = vector.shape_cast %84 : vector<1x8xf32> to vector<1x1x1x8xf32>
    %86 = vector.broadcast %85 : vector<1x1x1x8xf32> to vector<4x8x8x8xf32>
    %87 = arith.mulf %83, %86 : vector<4x8x8x8xf32>
    %88 = arith.addf %82, %87 : vector<4x8x8x8xf32>
    %c2_74 = arith.constant 2 : index
    %c2_75 = arith.constant 2 : index
    %c0_76 = arith.constant 0 : index
    %c0_77 = arith.constant 0 : index
    %89 = vector.load %arg11[%c2_74, %c2_75, %c0_76, %c0_77] : memref<6x10x8x8xf32, #tpu.memory_space<vmem>>, vector<4x8x8x8xf32>
    %c24 = arith.constant 24 : index
    %c0_78 = arith.constant 0 : index
    %90 = vector.load %arg6[%c24, %c0_78] : memref<27x8xf32, #tpu.memory_space<vmem>>, vector<1x8xf32>
    %91 = vector.shape_cast %90 : vector<1x8xf32> to vector<1x1x1x8xf32>
    %92 = vector.broadcast %91 : vector<1x1x1x8xf32> to vector<4x8x8x8xf32>
    %93 = arith.mulf %89, %92 : vector<4x8x8x8xf32>
    %94 = arith.addf %88, %93 : vector<4x8x8x8xf32>
    %c0_79 = arith.constant 0 : index
    %c0_80 = arith.constant 0 : index
    %95 = vector.load %arg7[%c0_79, %c0_80] : memref<1x8xf32, #tpu.memory_space<vmem>>, vector<1x8xf32>
    %96 = vector.shape_cast %95 : vector<1x8xf32> to vector<1x1x1x8xf32>
    %97 = vector.broadcast %96 : vector<1x1x1x8xf32> to vector<4x8x8x8xf32>
    %98 = arith.addf %94, %97 : vector<4x8x8x8xf32>
    %c0_81 = arith.constant 0 : index
    %c0_82 = arith.constant 0 : index
    %c0_83 = arith.constant 0 : index
    %c0_84 = arith.constant 0 : index
    %99 = vector.load %arg12[%c0_81, %c0_82, %c0_83, %c0_84] : memref<4x8x8x8xf32, #tpu.memory_space<vmem>>, vector<4x8x8x8xf32>
    tpu.vector_store %arg12[%c0_81, %c0_82, %c0_83, %c0_84], %98 {strides = array<i32>} : memref<4x8x8x8xf32, #tpu.memory_space<vmem>>, vector<4x8x8x8xf32>,
    %c0_85 = arith.constant 0 : index
    %c0_86 = arith.constant 0 : index
    %c1_87 = arith.constant 1 : index
    %c0_88 = arith.constant 0 : index
    %100 = vector.load %arg10[%c0_85, %c0_86, %c1_87, %c0_88] : memref<6x10x16x8xf32, #tpu.memory_space<vmem>>, vector<6x10x8x8xf32>
    %c0_89 = arith.constant 0 : index
    %c0_90 = arith.constant 0 : index
    %c0_91 = arith.constant 0 : index
    %c0_92 = arith.constant 0 : index
    %101 = vector.load %arg11[%c0_89, %c0_90, %c0_91, %c0_92] : memref<6x10x8x8xf32, #tpu.memory_space<vmem>>, vector<6x10x8x8xf32>
    tpu.vector_store %arg11[%c0_89, %c0_90, %c0_91, %c0_92], %100 {strides = array<i32>} : memref<6x10x8x8xf32, #tpu.memory_space<vmem>>, vector<6x10x8x8xf32>,
    %c0_93 = arith.constant 0 : index
    %c0_94 = arith.constant 0 : index
    %c0_95 = arith.constant 0 : index
    %c0_96 = arith.constant 0 : index
    %102 = vector.load %arg11[%c0_93, %c0_94, %c0_95, %c0_96] : memref<6x10x8x8xf32, #tpu.memory_space<vmem>>, vector<4x8x8x8xf32>
    %c1_97 = arith.constant 1 : index
    %c0_98 = arith.constant 0 : index
    %103 = vector.load %arg6[%c1_97, %c0_98] : memref<27x8xf32, #tpu.memory_space<vmem>>, vector<1x8xf32>
    %104 = vector.shape_cast %103 : vector<1x8xf32> to vector<1x1x1x8xf32>
    %105 = vector.broadcast %104 : vector<1x1x1x8xf32> to vector<4x8x8x8xf32>
    %106 = arith.mulf %102, %105 : vector<4x8x8x8xf32>
    %c0_99 = arith.constant 0 : index
    %c1_100 = arith.constant 1 : index
    %c0_101 = arith.constant 0 : index
    %c0_102 = arith.constant 0 : index
    %107 = vector.load %arg11[%c0_99, %c1_100, %c0_101, %c0_102] : memref<6x10x8x8xf32, #tpu.memory_space<vmem>>, vector<4x8x8x8xf32>
    %c4_103 = arith.constant 4 : index
    %c0_104 = arith.constant 0 : index
    %108 = vector.load %arg6[%c4_103, %c0_104] : memref<27x8xf32, #tpu.memory_space<vmem>>, vector<1x8xf32>
    %109 = vector.shape_cast %108 : vector<1x8xf32> to vector<1x1x1x8xf32>
    %110 = vector.broadcast %109 : vector<1x1x1x8xf32> to vector<4x8x8x8xf32>
    %111 = arith.mulf %107, %110 : vector<4x8x8x8xf32>
    %112 = arith.addf %106, %111 : vector<4x8x8x8xf32>
    %c0_105 = arith.constant 0 : index
    %c2_106 = arith.constant 2 : index
    %c0_107 = arith.constant 0 : index
    %c0_108 = arith.constant 0 : index
    %113 = vector.load %arg11[%c0_105, %c2_106, %c0_107, %c0_108] : memref<6x10x8x8xf32, #tpu.memory_space<vmem>>, vector<4x8x8x8xf32>
    %c7 = arith.constant 7 : index
    %c0_109 = arith.constant 0 : index
    %114 = vector.load %arg6[%c7, %c0_109] : memref<27x8xf32, #tpu.memory_space<vmem>>, vector<1x8xf32>
    %115 = vector.shape_cast %114 : vector<1x8xf32> to vector<1x1x1x8xf32>
    %116 = vector.broadcast %115 : vector<1x1x1x8xf32> to vector<4x8x8x8xf32>
    %117 = arith.mulf %113, %116 : vector<4x8x8x8xf32>
    %118 = arith.addf %112, %117 : vector<4x8x8x8xf32>
    %c1_110 = arith.constant 1 : index
    %c0_111 = arith.constant 0 : index
    %c0_112 = arith.constant 0 : index
    %c0_113 = arith.constant 0 : index
    %119 = vector.load %arg11[%c1_110, %c0_111, %c0_112, %c0_113] : memref<6x10x8x8xf32, #tpu.memory_space<vmem>>, vector<4x8x8x8xf32>
    %c10 = arith.constant 10 : index
    %c0_114 = arith.constant 0 : index
    %120 = vector.load %arg6[%c10, %c0_114] : memref<27x8xf32, #tpu.memory_space<vmem>>, vector<1x8xf32>
    %121 = vector.shape_cast %120 : vector<1x8xf32> to vector<1x1x1x8xf32>
    %122 = vector.broadcast %121 : vector<1x1x1x8xf32> to vector<4x8x8x8xf32>
    %123 = arith.mulf %119, %122 : vector<4x8x8x8xf32>
    %124 = arith.addf %118, %123 : vector<4x8x8x8xf32>
    %c1_115 = arith.constant 1 : index
    %c1_116 = arith.constant 1 : index
    %c0_117 = arith.constant 0 : index
    %c0_118 = arith.constant 0 : index
    %125 = vector.load %arg11[%c1_115, %c1_116, %c0_117, %c0_118] : memref<6x10x8x8xf32, #tpu.memory_space<vmem>>, vector<4x8x8x8xf32>
    %c13 = arith.constant 13 : index
    %c0_119 = arith.constant 0 : index
    %126 = vector.load %arg6[%c13, %c0_119] : memref<27x8xf32, #tpu.memory_space<vmem>>, vector<1x8xf32>
    %127 = vector.shape_cast %126 : vector<1x8xf32> to vector<1x1x1x8xf32>
    %128 = vector.broadcast %127 : vector<1x1x1x8xf32> to vector<4x8x8x8xf32>
    %129 = arith.mulf %125, %128 : vector<4x8x8x8xf32>
    %130 = arith.addf %124, %129 : vector<4x8x8x8xf32>
    %c1_120 = arith.constant 1 : index
    %c2_121 = arith.constant 2 : index
    %c0_122 = arith.constant 0 : index
    %c0_123 = arith.constant 0 : index
    %131 = vector.load %arg11[%c1_120, %c2_121, %c0_122, %c0_123] : memref<6x10x8x8xf32, #tpu.memory_space<vmem>>, vector<4x8x8x8xf32>
    %c16 = arith.constant 16 : index
    %c0_124 = arith.constant 0 : index
    %132 = vector.load %arg6[%c16, %c0_124] : memref<27x8xf32, #tpu.memory_space<vmem>>, vector<1x8xf32>
    %133 = vector.shape_cast %132 : vector<1x8xf32> to vector<1x1x1x8xf32>
    %134 = vector.broadcast %133 : vector<1x1x1x8xf32> to vector<4x8x8x8xf32>
    %135 = arith.mulf %131, %134 : vector<4x8x8x8xf32>
    %136 = arith.addf %130, %135 : vector<4x8x8x8xf32>
    %c2_125 = arith.constant 2 : index
    %c0_126 = arith.constant 0 : index
    %c0_127 = arith.constant 0 : index
    %c0_128 = arith.constant 0 : index
    %137 = vector.load %arg11[%c2_125, %c0_126, %c0_127, %c0_128] : memref<6x10x8x8xf32, #tpu.memory_space<vmem>>, vector<4x8x8x8xf32>
    %c19 = arith.constant 19 : index
    %c0_129 = arith.constant 0 : index
    %138 = vector.load %arg6[%c19, %c0_129] : memref<27x8xf32, #tpu.memory_space<vmem>>, vector<1x8xf32>
    %139 = vector.shape_cast %138 : vector<1x8xf32> to vector<1x1x1x8xf32>
    %140 = vector.broadcast %139 : vector<1x1x1x8xf32> to vector<4x8x8x8xf32>
    %141 = arith.mulf %137, %140 : vector<4x8x8x8xf32>
    %142 = arith.addf %136, %141 : vector<4x8x8x8xf32>
    %c2_130 = arith.constant 2 : index
    %c1_131 = arith.constant 1 : index
    %c0_132 = arith.constant 0 : index
    %c0_133 = arith.constant 0 : index
    %143 = vector.load %arg11[%c2_130, %c1_131, %c0_132, %c0_133] : memref<6x10x8x8xf32, #tpu.memory_space<vmem>>, vector<4x8x8x8xf32>
    %c22 = arith.constant 22 : index
    %c0_134 = arith.constant 0 : index
    %144 = vector.load %arg6[%c22, %c0_134] : memref<27x8xf32, #tpu.memory_space<vmem>>, vector<1x8xf32>
    %145 = vector.shape_cast %144 : vector<1x8xf32> to vector<1x1x1x8xf32>
    %146 = vector.broadcast %145 : vector<1x1x1x8xf32> to vector<4x8x8x8xf32>
    %147 = arith.mulf %143, %146 : vector<4x8x8x8xf32>
    %148 = arith.addf %142, %147 : vector<4x8x8x8xf32>
    %c2_135 = arith.constant 2 : index
    %c2_136 = arith.constant 2 : index
    %c0_137 = arith.constant 0 : index
    %c0_138 = arith.constant 0 : index
    %149 = vector.load %arg11[%c2_135, %c2_136, %c0_137, %c0_138] : memref<6x10x8x8xf32, #tpu.memory_space<vmem>>, vector<4x8x8x8xf32>
    %c25 = arith.constant 25 : index
    %c0_139 = arith.constant 0 : index
    %150 = vector.load %arg6[%c25, %c0_139] : memref<27x8xf32, #tpu.memory_space<vmem>>, vector<1x8xf32>
    %151 = vector.shape_cast %150 : vector<1x8xf32> to vector<1x1x1x8xf32>
    %152 = vector.broadcast %151 : vector<1x1x1x8xf32> to vector<4x8x8x8xf32>
    %153 = arith.mulf %149, %152 : vector<4x8x8x8xf32>
    %154 = arith.addf %148, %153 : vector<4x8x8x8xf32>
    %c0_140 = arith.constant 0 : index
    %c0_141 = arith.constant 0 : index
    %c0_142 = arith.constant 0 : index
    %c0_143 = arith.constant 0 : index
    %155 = vector.load %arg12[%c0_140, %c0_141, %c0_142, %c0_143] : memref<4x8x8x8xf32, #tpu.memory_space<vmem>>, vector<4x8x8x8xf32>
    %156 = arith.addf %155, %154 : vector<4x8x8x8xf32>
    %c0_144 = arith.constant 0 : index
    %c0_145 = arith.constant 0 : index
    %c0_146 = arith.constant 0 : index
    %c0_147 = arith.constant 0 : index
    %157 = vector.load %arg12[%c0_144, %c0_145, %c0_146, %c0_147] : memref<4x8x8x8xf32, #tpu.memory_space<vmem>>, vector<4x8x8x8xf32>
    tpu.vector_store %arg12[%c0_144, %c0_145, %c0_146, %c0_147], %156 {strides = array<i32>} : memref<4x8x8x8xf32, #tpu.memory_space<vmem>>, vector<4x8x8x8xf32>,
    %c0_148 = arith.constant 0 : index
    %c0_149 = arith.constant 0 : index
    %c2_150 = arith.constant 2 : index
    %c0_151 = arith.constant 0 : index
    %158 = vector.load %arg10[%c0_148, %c0_149, %c2_150, %c0_151] : memref<6x10x16x8xf32, #tpu.memory_space<vmem>>, vector<6x10x8x8xf32>
    %c0_152 = arith.constant 0 : index
    %c0_153 = arith.constant 0 : index
    %c0_154 = arith.constant 0 : index
    %c0_155 = arith.constant 0 : index
    %159 = vector.load %arg11[%c0_152, %c0_153, %c0_154, %c0_155] : memref<6x10x8x8xf32, #tpu.memory_space<vmem>>, vector<6x10x8x8xf32>
    tpu.vector_store %arg11[%c0_152, %c0_153, %c0_154, %c0_155], %158 {strides = array<i32>} : memref<6x10x8x8xf32, #tpu.memory_space<vmem>>, vector<6x10x8x8xf32>,
    %c0_156 = arith.constant 0 : index
    %c0_157 = arith.constant 0 : index
    %c0_158 = arith.constant 0 : index
    %c0_159 = arith.constant 0 : index
    %160 = vector.load %arg11[%c0_156, %c0_157, %c0_158, %c0_159] : memref<6x10x8x8xf32, #tpu.memory_space<vmem>>, vector<4x8x8x8xf32>
    %c2_160 = arith.constant 2 : index
    %c0_161 = arith.constant 0 : index
    %161 = vector.load %arg6[%c2_160, %c0_161] : memref<27x8xf32, #tpu.memory_space<vmem>>, vector<1x8xf32>
    %162 = vector.shape_cast %161 : vector<1x8xf32> to vector<1x1x1x8xf32>
    %163 = vector.broadcast %162 : vector<1x1x1x8xf32> to vector<4x8x8x8xf32>
    %164 = arith.mulf %160, %163 : vector<4x8x8x8xf32>
    %c0_162 = arith.constant 0 : index
    %c1_163 = arith.constant 1 : index
    %c0_164 = arith.constant 0 : index
    %c0_165 = arith.constant 0 : index
    %165 = vector.load %arg11[%c0_162, %c1_163, %c0_164, %c0_165] : memref<6x10x8x8xf32, #tpu.memory_space<vmem>>, vector<4x8x8x8xf32>
    %c5 = arith.constant 5 : index
    %c0_166 = arith.constant 0 : index
    %166 = vector.load %arg6[%c5, %c0_166] : memref<27x8xf32, #tpu.memory_space<vmem>>, vector<1x8xf32>
    %167 = vector.shape_cast %166 : vector<1x8xf32> to vector<1x1x1x8xf32>
    %168 = vector.broadcast %167 : vector<1x1x1x8xf32> to vector<4x8x8x8xf32>
    %169 = arith.mulf %165, %168 : vector<4x8x8x8xf32>
    %170 = arith.addf %164, %169 : vector<4x8x8x8xf32>
    %c0_167 = arith.constant 0 : index
    %c2_168 = arith.constant 2 : index
    %c0_169 = arith.constant 0 : index
    %c0_170 = arith.constant 0 : index
    %171 = vector.load %arg11[%c0_167, %c2_168, %c0_169, %c0_170] : memref<6x10x8x8xf32, #tpu.memory_space<vmem>>, vector<4x8x8x8xf32>
    %c8 = arith.constant 8 : index
    %c0_171 = arith.constant 0 : index
    %172 = vector.load %arg6[%c8, %c0_171] : memref<27x8xf32, #tpu.memory_space<vmem>>, vector<1x8xf32>
    %173 = vector.shape_cast %172 : vector<1x8xf32> to vector<1x1x1x8xf32>
    %174 = vector.broadcast %173 : vector<1x1x1x8xf32> to vector<4x8x8x8xf32>
    %175 = arith.mulf %171, %174 : vector<4x8x8x8xf32>
    %176 = arith.addf %170, %175 : vector<4x8x8x8xf32>
    %c1_172 = arith.constant 1 : index
    %c0_173 = arith.constant 0 : index
    %c0_174 = arith.constant 0 : index
    %c0_175 = arith.constant 0 : index
    %177 = vector.load %arg11[%c1_172, %c0_173, %c0_174, %c0_175] : memref<6x10x8x8xf32, #tpu.memory_space<vmem>>, vector<4x8x8x8xf32>
    %c11 = arith.constant 11 : index
    %c0_176 = arith.constant 0 : index
    %178 = vector.load %arg6[%c11, %c0_176] : memref<27x8xf32, #tpu.memory_space<vmem>>, vector<1x8xf32>
    %179 = vector.shape_cast %178 : vector<1x8xf32> to vector<1x1x1x8xf32>
    %180 = vector.broadcast %179 : vector<1x1x1x8xf32> to vector<4x8x8x8xf32>
    %181 = arith.mulf %177, %180 : vector<4x8x8x8xf32>
    %182 = arith.addf %176, %181 : vector<4x8x8x8xf32>
    %c1_177 = arith.constant 1 : index
    %c1_178 = arith.constant 1 : index
    %c0_179 = arith.constant 0 : index
    %c0_180 = arith.constant 0 : index
    %183 = vector.load %arg11[%c1_177, %c1_178, %c0_179, %c0_180] : memref<6x10x8x8xf32, #tpu.memory_space<vmem>>, vector<4x8x8x8xf32>
    %c14 = arith.constant 14 : index
    %c0_181 = arith.constant 0 : index
    %184 = vector.load %arg6[%c14, %c0_181] : memref<27x8xf32, #tpu.memory_space<vmem>>, vector<1x8xf32>
    %185 = vector.shape_cast %184 : vector<1x8xf32> to vector<1x1x1x8xf32>
    %186 = vector.broadcast %185 : vector<1x1x1x8xf32> to vector<4x8x8x8xf32>
    %187 = arith.mulf %183, %186 : vector<4x8x8x8xf32>
    %188 = arith.addf %182, %187 : vector<4x8x8x8xf32>
    %c1_182 = arith.constant 1 : index
    %c2_183 = arith.constant 2 : index
    %c0_184 = arith.constant 0 : index
    %c0_185 = arith.constant 0 : index
    %189 = vector.load %arg11[%c1_182, %c2_183, %c0_184, %c0_185] : memref<6x10x8x8xf32, #tpu.memory_space<vmem>>, vector<4x8x8x8xf32>
    %c17 = arith.constant 17 : index
    %c0_186 = arith.constant 0 : index
    %190 = vector.load %arg6[%c17, %c0_186] : memref<27x8xf32, #tpu.memory_space<vmem>>, vector<1x8xf32>
    %191 = vector.shape_cast %190 : vector<1x8xf32> to vector<1x1x1x8xf32>
    %192 = vector.broadcast %191 : vector<1x1x1x8xf32> to vector<4x8x8x8xf32>
    %193 = arith.mulf %189, %192 : vector<4x8x8x8xf32>
    %194 = arith.addf %188, %193 : vector<4x8x8x8xf32>
    %c2_187 = arith.constant 2 : index
    %c0_188 = arith.constant 0 : index
    %c0_189 = arith.constant 0 : index
    %c0_190 = arith.constant 0 : index
    %195 = vector.load %arg11[%c2_187, %c0_188, %c0_189, %c0_190] : memref<6x10x8x8xf32, #tpu.memory_space<vmem>>, vector<4x8x8x8xf32>
    %c20 = arith.constant 20 : index
    %c0_191 = arith.constant 0 : index
    %196 = vector.load %arg6[%c20, %c0_191] : memref<27x8xf32, #tpu.memory_space<vmem>>, vector<1x8xf32>
    %197 = vector.shape_cast %196 : vector<1x8xf32> to vector<1x1x1x8xf32>
    %198 = vector.broadcast %197 : vector<1x1x1x8xf32> to vector<4x8x8x8xf32>
    %199 = arith.mulf %195, %198 : vector<4x8x8x8xf32>
    %200 = arith.addf %194, %199 : vector<4x8x8x8xf32>
    %c2_192 = arith.constant 2 : index
    %c1_193 = arith.constant 1 : index
    %c0_194 = arith.constant 0 : index
    %c0_195 = arith.constant 0 : index
    %201 = vector.load %arg11[%c2_192, %c1_193, %c0_194, %c0_195] : memref<6x10x8x8xf32, #tpu.memory_space<vmem>>, vector<4x8x8x8xf32>
    %c23 = arith.constant 23 : index
    %c0_196 = arith.constant 0 : index
    %202 = vector.load %arg6[%c23, %c0_196] : memref<27x8xf32, #tpu.memory_space<vmem>>, vector<1x8xf32>
    %203 = vector.shape_cast %202 : vector<1x8xf32> to vector<1x1x1x8xf32>
    %204 = vector.broadcast %203 : vector<1x1x1x8xf32> to vector<4x8x8x8xf32>
    %205 = arith.mulf %201, %204 : vector<4x8x8x8xf32>
    %206 = arith.addf %200, %205 : vector<4x8x8x8xf32>
    %c2_197 = arith.constant 2 : index
    %c2_198 = arith.constant 2 : index
    %c0_199 = arith.constant 0 : index
    %c0_200 = arith.constant 0 : index
    %207 = vector.load %arg11[%c2_197, %c2_198, %c0_199, %c0_200] : memref<6x10x8x8xf32, #tpu.memory_space<vmem>>, vector<4x8x8x8xf32>
    %c26 = arith.constant 26 : index
    %c0_201 = arith.constant 0 : index
    %208 = vector.load %arg6[%c26, %c0_201] : memref<27x8xf32, #tpu.memory_space<vmem>>, vector<1x8xf32>
    %209 = vector.shape_cast %208 : vector<1x8xf32> to vector<1x1x1x8xf32>
    %210 = vector.broadcast %209 : vector<1x1x1x8xf32> to vector<4x8x8x8xf32>
    %211 = arith.mulf %207, %210 : vector<4x8x8x8xf32>
    %212 = arith.addf %206, %211 : vector<4x8x8x8xf32>
    %c0_202 = arith.constant 0 : index
    %c0_203 = arith.constant 0 : index
    %c0_204 = arith.constant 0 : index
    %c0_205 = arith.constant 0 : index
    %213 = vector.load %arg12[%c0_202, %c0_203, %c0_204, %c0_205] : memref<4x8x8x8xf32, #tpu.memory_space<vmem>>, vector<4x8x8x8xf32>
    %214 = arith.addf %213, %212 : vector<4x8x8x8xf32>
    %c0_206 = arith.constant 0 : index
    %c0_207 = arith.constant 0 : index
    %c0_208 = arith.constant 0 : index
    %c0_209 = arith.constant 0 : index
    %215 = vector.load %arg12[%c0_206, %c0_207, %c0_208, %c0_209] : memref<4x8x8x8xf32, #tpu.memory_space<vmem>>, vector<4x8x8x8xf32>
    tpu.vector_store %arg12[%c0_206, %c0_207, %c0_208, %c0_209], %214 {strides = array<i32>} : memref<4x8x8x8xf32, #tpu.memory_space<vmem>>, vector<4x8x8x8xf32>,
    %c0_210 = arith.constant 0 : index
    %c0_211 = arith.constant 0 : index
    %c0_212 = arith.constant 0 : index
    %c0_213 = arith.constant 0 : index
    %216 = vector.load %arg12[%c0_210, %c0_211, %c0_212, %c0_213] : memref<4x8x8x8xf32, #tpu.memory_space<vmem>>, vector<4x8x8x8xf32>
    %217 = arith.negf %216 : vector<4x8x8x8xf32>
    %218 = math.exp %217 : vector<4x8x8x8xf32>
    %cst_214 = arith.constant 1.000000e+00 : f32
    %219 = vector.broadcast %cst_214 : f32 to vector<4x8x8x8xf32>
    %220 = arith.addf %219, %218 : vector<4x8x8x8xf32>
    %221 = arith.divf %219, %220 : vector<4x8x8x8xf32>
    %222 = arith.mulf %216, %221 : vector<4x8x8x8xf32>
    %223 = vector.shape_cast %222 : vector<4x8x8x8xf32> to vector<256x8xf32>
    %cst_215 = arith.constant dense<0.000000e+00> : vector<8xf32>
    %224 = vector.multi_reduction <add>, %223, %cst_215 [0] : vector<256x8xf32> to vector<8xf32>
    %225 = vector.shape_cast %224 : vector<8xf32> to vector<1x8xf32>
    %226 = vector.shape_cast %225 : vector<1x8xf32> to vector<1x8xf32>
    %227 = vector.broadcast %226 : vector<1x8xf32> to vector<8x8xf32>
    %c0_216 = arith.constant 0 : index
    %c0_217 = arith.constant 0 : index
    %c0_218 = arith.constant 0 : index
    %c0_219 = arith.constant 0 : index
    %228 = vector.load %arg9[%c0_216, %c0_217, %c0_218, %c0_219] : memref<1x1x8x8xf32, #tpu.memory_space<vmem>>, vector<1x1x8x8xf32>
    %229 = vector.shape_cast %228 : vector<1x1x8x8xf32> to vector<8x8xf32>
    %230 = vector.shape_cast %227 : vector<8x8xf32> to vector<1x1x8x8xf32>
    tpu.vector_store %arg9[%c0_216, %c0_217, %c0_218, %c0_219], %230 {strides = array<i32>} : memref<1x1x8x8xf32, #tpu.memory_space<vmem>>, vector<1x1x8x8xf32>,
    %231 = arith.truncf %223 : vector<256x8xf32> to vector<256x8xbf16>
    %c0_220 = arith.constant 0 : index
    %c0_221 = arith.constant 0 : index
    %232 = vector.load %arg8[%c0_220, %c0_221] : memref<256x8xbf16, #tpu.memory_space<vmem>>, vector<256x8xbf16>
    tpu.vector_store %arg8[%c0_220, %c0_221], %231 {strides = array<i32>} : memref<256x8xbf16, #tpu.memory_space<vmem>>, vector<256x8xbf16>,
    return
  }
  func.func @transform_0(%arg0: i32, %arg1: i32) -> (i32, i32, i32, i32, i32) {
    %c0_i32 = arith.constant 0 : i32
    %c0_i32_0 = arith.constant 0 : i32
    %c0_i32_1 = arith.constant 0 : i32
    %c0_i32_2 = arith.constant 0 : i32
    return %arg0, %arg1, %c0_i32, %c0_i32_0, %c0_i32_1 : i32, i32, i32, i32, i32
  }
  func.func @transform_1(%arg0: i32, %arg1: i32) -> (i32, i32, i32, i32, i32) {
    %c1_i32 = arith.constant 1 : i32
    %0 = arith.addi %arg1, %c1_i32 : i32
    %c2_i32 = arith.constant 2 : i32
    %1 = arith.muli %0, %c2_i32 : i32
    %c0_i32 = arith.constant 0 : i32
    %c0_i32_0 = arith.constant 0 : i32
    %c0_i32_1 = arith.constant 0 : i32
    %c0_i32_2 = arith.constant 0 : i32
    return %arg0, %1, %c0_i32, %c0_i32_0, %c0_i32_1 : i32, i32, i32, i32, i32
  }
  func.func @transform_2(%arg0: i32, %arg1: i32) -> (i32, i32) {
    %c0_i32 = arith.constant 0 : i32
    %c0_i32_0 = arith.constant 0 : i32
    %c0_i32_1 = arith.constant 0 : i32
    return %c0_i32, %c0_i32_0 : i32, i32
  }
  func.func @transform_3(%arg0: i32, %arg1: i32) -> (i32, i32) {
    %c0_i32 = arith.constant 0 : i32
    %c0_i32_0 = arith.constant 0 : i32
    %c0_i32_1 = arith.constant 0 : i32
    return %c0_i32, %c0_i32_0 : i32, i32
  }
  func.func @transform_4(%arg0: i32, %arg1: i32) -> (i32, i32) {
    %c0_i32 = arith.constant 0 : i32
    %c0_i32_0 = arith.constant 0 : i32
    %c0_i32_1 = arith.constant 0 : i32
    return %c0_i32, %c0_i32_0 : i32, i32
  }
  func.func @transform_5(%arg0: i32, %arg1: i32) -> (i32, i32) {
    %c0_i32 = arith.constant 0 : i32
    %c0_i32_0 = arith.constant 0 : i32
    %c0_i32_1 = arith.constant 0 : i32
    return %c0_i32, %c0_i32_0 : i32, i32
  }
  func.func @transform_6(%arg0: i32, %arg1: i32) -> (i32, i32) {
    %c2_i32 = arith.constant 2 : i32
    %0 = arith.muli %arg0, %c2_i32 : i32
    %1 = arith.addi %0, %arg1 : i32
    %c0_i32 = arith.constant 0 : i32
    %c0_i32_0 = arith.constant 0 : i32
    return %1, %c0_i32 : i32, i32
  }
  func.func @transform_7(%arg0: i32, %arg1: i32) -> (i32, i32, i32, i32) {
    %c0_i32 = arith.constant 0 : i32
    %c0_i32_0 = arith.constant 0 : i32
    %c0_i32_1 = arith.constant 0 : i32
    return %arg0, %arg1, %c0_i32, %c0_i32_0 : i32, i32, i32, i32
  }
}

module attributes {stable_mosaic.version = 11 : i64} {
  func.func @kernel(%arg0: i32, %arg1: i32, %arg2: memref<512x8xbf16, #tpu.memory_space<vmem>>, %arg3: memref<1x8x8xf32, #tpu.memory_space<vmem>>, %arg4: memref<8x4xbf16, #tpu.memory_space<vmem>>, %arg5: memref<1x4xf32, #tpu.memory_space<vmem>>, %arg6: memref<512x4xf32, #tpu.memory_space<vmem>>, %arg7: memref<512x4xf32, #tpu.memory_space<vmem>>) attributes {dimension_semantics = [#tpu.dimension_semantics<parallel>, #tpu.dimension_semantics<parallel>], iteration_bounds = array<i64: 2, 1>, scalar_prefetch = 0 : i64, scratch_operands = 0 : i64, tpu.core_type = #tpu.core_type<tc>, window_params = [{transform_indices = @transform_0, window_bounds = array<i64: 512, 8>}, {transform_indices = @transform_1, window_bounds = array<i64: 1, 8, 8>}, {pipeline_mode = #tpu.pipeline_mode<synchronous>, transform_indices = @transform_2, window_bounds = array<i64: 8, 4>}, {pipeline_mode = #tpu.pipeline_mode<synchronous>, transform_indices = @transform_3, window_bounds = array<i64: 1, 4>}, {transform_indices = @transform_4, window_bounds = array<i64: 512, 4>}, {transform_indices = @transform_5, window_bounds = array<i64: 512, 4>}]} {
    %c0 = arith.constant 0 : index
    %c0_0 = arith.constant 0 : index
    %0 = vector.load %arg2[%c0, %c0_0] : memref<512x8xbf16, #tpu.memory_space<vmem>>, vector<512x8xbf16>
    %1 = arith.extf %0 : vector<512x8xbf16> to vector<512x8xf32>
    %2 = arith.mulf %1, %1 : vector<512x8xf32>
    %c0_1 = arith.constant 0 : index
    %c0_2 = arith.constant 0 : index
    %c0_3 = arith.constant 0 : index
    %3 = vector.load %arg3[%c0_1, %c0_2, %c0_3] : memref<1x8x8xf32, #tpu.memory_space<vmem>>, vector<1x1x8xf32>
    %4 = vector.shape_cast %3 : vector<1x1x8xf32> to vector<1x8xf32>
    %5 = vector.broadcast %4 : vector<1x8xf32> to vector<512x8xf32>
    %6 = arith.mulf %2, %5 : vector<512x8xf32>
    %7 = arith.truncf %6 : vector<512x8xf32> to vector<512x8xbf16>
    %c0_4 = arith.constant 0 : index
    %c0_5 = arith.constant 0 : index
    %8 = vector.load %arg4[%c0_4, %c0_5] : memref<8x4xbf16, #tpu.memory_space<vmem>>, vector<8x4xbf16>
    %cst = arith.constant dense<0.000000e+00> : vector<512x4xf32>
    %9 = tpu.matmul %7, %8, %cst {dimension_numbers = #tpu.dot_dimension_numbers<[1], [0], [0], [1], [0, 0, 1, 1], [], []>} : vector<512x8xbf16>, vector<8x4xbf16>, vector<512x4xf32> -> vector<512x4xf32>
    %c0_6 = arith.constant 0 : index
    %c0_7 = arith.constant 0 : index
    %10 = vector.load %arg5[%c0_6, %c0_7] : memref<1x4xf32, #tpu.memory_space<vmem>>, vector<1x4xf32>
    %11 = vector.broadcast %10 : vector<1x4xf32> to vector<512x4xf32>
    %12 = arith.addf %9, %11 : vector<512x4xf32>
    %c0_8 = arith.constant 0 : index
    %c0_9 = arith.constant 0 : index
    %13 = vector.load %arg6[%c0_8, %c0_9] : memref<512x4xf32, #tpu.memory_space<vmem>>, vector<512x4xf32>
    %14 = arith.addf %12, %13 : vector<512x4xf32>
    %c0_10 = arith.constant 0 : index
    %c0_11 = arith.constant 0 : index
    %15 = vector.load %arg7[%c0_10, %c0_11] : memref<512x4xf32, #tpu.memory_space<vmem>>, vector<512x4xf32>
    tpu.vector_store %arg7[%c0_10, %c0_11], %14 {strides = array<i32>} : memref<512x4xf32, #tpu.memory_space<vmem>>, vector<512x4xf32>,
    return
  }
  func.func @transform_0(%arg0: i32, %arg1: i32) -> (i32, i32) {
    %c1_i32 = arith.constant 1 : i32
    %0 = arith.muli %arg0, %c1_i32 : i32
    %1 = arith.addi %0, %arg1 : i32
    %c0_i32 = arith.constant 0 : i32
    %c0_i32_0 = arith.constant 0 : i32
    return %1, %c0_i32 : i32, i32
  }
  func.func @transform_1(%arg0: i32, %arg1: i32) -> (i32, i32, i32) {
    %c0_i32 = arith.constant 0 : i32
    %c0_i32_0 = arith.constant 0 : i32
    %c0_i32_1 = arith.constant 0 : i32
    return %arg0, %c0_i32, %c0_i32_0 : i32, i32, i32
  }
  func.func @transform_2(%arg0: i32, %arg1: i32) -> (i32, i32) {
    %c0_i32 = arith.constant 0 : i32
    %c0_i32_0 = arith.constant 0 : i32
    %c0_i32_1 = arith.constant 0 : i32
    return %c0_i32, %c0_i32_0 : i32, i32
  }
  func.func @transform_3(%arg0: i32, %arg1: i32) -> (i32, i32) {
    %c0_i32 = arith.constant 0 : i32
    %c0_i32_0 = arith.constant 0 : i32
    %c0_i32_1 = arith.constant 0 : i32
    return %c0_i32, %c0_i32_0 : i32, i32
  }
  func.func @transform_4(%arg0: i32, %arg1: i32) -> (i32, i32) {
    %c1_i32 = arith.constant 1 : i32
    %0 = arith.muli %arg0, %c1_i32 : i32
    %1 = arith.addi %0, %arg1 : i32
    %c0_i32 = arith.constant 0 : i32
    %c0_i32_0 = arith.constant 0 : i32
    return %1, %c0_i32 : i32, i32
  }
  func.func @transform_5(%arg0: i32, %arg1: i32) -> (i32, i32) {
    %c1_i32 = arith.constant 1 : i32
    %0 = arith.muli %arg0, %c1_i32 : i32
    %1 = arith.addi %0, %arg1 : i32
    %c0_i32 = arith.constant 0 : i32
    %c0_i32_0 = arith.constant 0 : i32
    return %1, %c0_i32 : i32, i32
  }
}

</mosaic_0001>

<llo_original>
// kernel: mbconv_forward.3
$region0: #{mbconv_forward.3}
  #allocation0 [shape = 'u32[]', space=smem, size = 0x4, offset = 0x4, fixed_abs, tag = 'smem constant byte address 0x4 - core index']
  #allocation1 [shape = 'u32[72,128]{1,0:T(1,128)}', space=vmem, size = 0x9000, scoped, tag = 'internal scratch']
  %s0 = inlined_call_operand.vmem [shape: bf16[1024,8], index: 0, kind: input, shape index: {}]
  %s1 = inlined_call_operand.vmem [shape: f32[2,8,8], index: 1, kind: input, shape index: {}]
  %s2 = inlined_call_operand.vmem [shape: bf16[8,4], index: 2, kind: input, shape index: {}]
  %s3 = inlined_call_operand.vmem [shape: f32[1,4], index: 3, kind: input, shape index: {}]
  %s4 = inlined_call_operand.vmem [shape: f32[1024,4], index: 4, kind: input, shape index: {}]
  %s5 = inlined_call_operand.vmem [shape: f32[1024,4], index: 5, kind: output, shape index: {}]
  %s6 = sld [smem:[#allocation0]]
  $region53: #{mbconv_forward.3} parent=0
    _
  %s8 = ssub.s32 1, %s6
  %s9 = scalar_select 0, %s8, %s6
  loop: start=0, step=1, limit=4
  $region2: #{mbconv_forward.3} parent=0 // loop_pre_header
    _
  $region3: #{mbconv_forward.3} parent=0 // loop_header
    %s11 = sphi 0, %s15
    %p12 = scmp.ge.s32.totalorder %s11, 4
    %s18 = sphi 0, %s30
    %s19 = sphi 0, %s26
    %s20 = sphi 0, %s18
    %s21 = sphi 0, %s19
    %s22 = sphi 0, %s20
    %s23 = sphi 0, %s21
    %s35 = sphi 0, %s37
    %s38 = sphi 0, %s35
    %s39 = sphi 0, %s38
    %s55 = sphi 0, %s39
    %s61 = sphi 0, %s63
    %s64 = sphi 0, %s61
    %s65 = sphi 0, %s64
    %s81 = sphi 0, %s65
    %s85 = sphi 0, %s85
    %s87 = sphi 0, %s85
    %s88 = sphi 0, %s87
    %s102 = sphi 0, %s88
    %s106 = sphi 0, %s106
    %s108 = sphi 0, %s106
    %s109 = sphi 0, %s108
    %s123 = sphi 0, %s109
    %s131 = sphi 0, %s133
    %s134 = sphi 0, %s131
    %s135 = sphi 0, %s134
    %s151 = sphi 0, %s135
    %s159 = sphi 0, %s161
    %s162 = sphi 0, %s159
    %s163 = sphi 0, %s162
    %s179 = sphi 0, %s163
  $region4: #{mbconv_forward.3} parent=0 // loop_header_branch
    %14 = sbr.rel (%p12) target = $region8
  $region5: #{mbconv_forward.3} parent=0 // loop_body
    %s16 = ssub.s32 %s11, 1
    %s17 = ssub.s32 %s11, 2
    %s24 = sadd.s32 1, %s19
    %p25 = scmp.ge.s32.totalorder %s24, 1
    %s26 = scalar_select %p25, 0, %s24
    %s27 = sadd.s32 1, %s18
    %s28 = scalar_select %p25, %s27, %s18
    %p29 = scmp.ge.s32.totalorder %s28, 2
    %s30 = scalar_select %p29, 0, %s28
    %s31 = sadd.s32 %s18, %s19
    %s32 = sadd.s32 %s30, %s26
    %s33 = ssub.s32 %s31, %s32
    %p34 = scmp.eq.s32.totalorder %s33, 0
    %s36 = sadd.s32 %s35, 1
    %s37 = scalar_select %p34, %s35, %s36
    %p40 = pneg %p34
    %p41 = scmp.eq.s32.totalorder %s11, 1
    %p42 = por %p40, %p41
    %p43 = scmp.ne.s32.totalorder %s35, %s38
    %p44 = scmp.eq.s32.totalorder %s11, 0
    %p45 = por %p43, %p44
    %p46 = scmp.ne.s32.totalorder %s35, %s38
    %p47 = scmp.eq.s32.totalorder %s16, 1
    %p48 = por %p46, %p47
    %p49 = scmp.ne.s32.totalorder %s38, %s39
    %p50 = scmp.eq.s32.totalorder %s16, 0
    %p51 = por %p49, %p50
    %p52 = scmp.ne.s32.totalorder %s38, %s39
    %p53 = scmp.eq.s32.totalorder %s17, 1
    %p54 = por %p52, %p53
    %p56 = scmp.ne.s32.totalorder %s39, %s55
    %p57 = scmp.eq.s32.totalorder %s17, 0
    %p58 = por %p56, %p57
    %s59 = ssub.s32 %s18, %s30
    %p60 = scmp.eq.s32.totalorder %s59, 0
    %s62 = sadd.s32 %s61, 1
    %s63 = scalar_select %p60, %s61, %s62
    %p66 = pneg %p60
    %p67 = scmp.eq.s32.totalorder %s11, 1
    %p68 = por %p66, %p67
    %p69 = scmp.ne.s32.totalorder %s61, %s64
    %p70 = scmp.eq.s32.totalorder %s11, 0
    %p71 = por %p69, %p70
    %p72 = scmp.ne.s32.totalorder %s61, %s64
    %p73 = scmp.eq.s32.totalorder %s16, 1
    %p74 = por %p72, %p73
    %p75 = scmp.ne.s32.totalorder %s64, %s65
    %p76 = scmp.eq.s32.totalorder %s16, 0
    %p77 = por %p75, %p76
    %p78 = scmp.ne.s32.totalorder %s64, %s65
    %p79 = scmp.eq.s32.totalorder %s17, 1
    %p80 = por %p78, %p79
    %p82 = scmp.ne.s32.totalorder %s65, %s81
    %p83 = scmp.eq.s32.totalorder %s17, 0
    %p84 = por %p82, %p83
    %s86 = sadd.s32 %s85, 1
    %p89 = scmp.eq.s32.totalorder %s11, 1
    %p90 = scmp.ne.s32.totalorder %s85, %s87
    %p91 = scmp.eq.s32.totalorder %s11, 0
    %p92 = por %p90, %p91
    %p93 = scmp.ne.s32.totalorder %s85, %s87
    %p94 = scmp.eq.s32.totalorder %s16, 1
    %p95 = por %p93, %p94
    %p96 = scmp.ne.s32.totalorder %s87, %s88
    %p97 = scmp.eq.s32.totalorder %s16, 0
    %p98 = por %p96, %p97
    %p99 = scmp.ne.s32.totalorder %s87, %s88
    %p100 = scmp.eq.s32.totalorder %s17, 1
    %p101 = por %p99, %p100
    %p103 = scmp.ne.s32.totalorder %s88, %s102
    %p104 = scmp.eq.s32.totalorder %s17, 0
    %p105 = por %p103, %p104
    %s107 = sadd.s32 %s106, 1
    %p110 = scmp.eq.s32.totalorder %s11, 1
    %p111 = scmp.ne.s32.totalorder %s106, %s108
    %p112 = scmp.eq.s32.totalorder %s11, 0
    %p113 = por %p111, %p112
    %p114 = scmp.ne.s32.totalorder %s106, %s108
    %p115 = scmp.eq.s32.totalorder %s16, 1
    %p116 = por %p114, %p115
    %p117 = scmp.ne.s32.totalorder %s108, %s109
    %p118 = scmp.eq.s32.totalorder %s16, 0
    %p119 = por %p117, %p118
    %p120 = scmp.ne.s32.totalorder %s108, %s109
    %p121 = scmp.eq.s32.totalorder %s17, 1
    %p122 = por %p120, %p121
    %p124 = scmp.ne.s32.totalorder %s109, %s123
    %p125 = scmp.eq.s32.totalorder %s17, 0
    %p126 = por %p124, %p125
    %s127 = sadd.s32 %s18, %s19
    %s128 = sadd.s32 %s30, %s26
    %s129 = ssub.s32 %s127, %s128
    %p130 = scmp.eq.s32.totalorder %s129, 0
    %s132 = sadd.s32 %s131, 1
    %s133 = scalar_select %p130, %s131, %s132
    %p136 = pneg %p130
    %p137 = scmp.eq.s32.totalorder %s11, 1
    %p138 = por %p136, %p137
    %p139 = scmp.ne.s32.totalorder %s131, %s134
    %p140 = scmp.eq.s32.totalorder %s11, 0
    %p141 = por %p139, %p140
    %p142 = scmp.ne.s32.totalorder %s131, %s134
    %p143 = scmp.eq.s32.totalorder %s16, 1
    %p144 = por %p142, %p143
    %p145 = scmp.ne.s32.totalorder %s134, %s135
    %p146 = scmp.eq.s32.totalorder %s16, 0
    %p147 = por %p145, %p146
    %p148 = scmp.ne.s32.totalorder %s134, %s135
    %p149 = scmp.eq.s32.totalorder %s17, 1
    %p150 = por %p148, %p149
    %p152 = scmp.ne.s32.totalorder %s135, %s151
    %p153 = scmp.eq.s32.totalorder %s17, 0
    %p154 = por %p152, %p153
    %s155 = sadd.s32 %s18, %s19
    %s156 = sadd.s32 %s30, %s26
    %s157 = ssub.s32 %s155, %s156
    %p158 = scmp.eq.s32.totalorder %s157, 0
    %s160 = sadd.s32 %s159, 1
    %s161 = scalar_select %p158, %s159, %s160
    %p164 = pneg %p158
    %p165 = scmp.eq.s32.totalorder %s11, 1
    %p166 = por %p164, %p165
    %p167 = scmp.ne.s32.totalorder %s159, %s162
    %p168 = scmp.eq.s32.totalorder %s11, 0
    %p169 = por %p167, %p168
    %p170 = scmp.ne.s32.totalorder %s159, %s162
    %p171 = scmp.eq.s32.totalorder %s16, 1
    %p172 = por %p170, %p171
    %p173 = scmp.ne.s32.totalorder %s162, %s163
    %p174 = scmp.eq.s32.totalorder %s16, 0
    %p175 = por %p173, %p174
    %p176 = scmp.ne.s32.totalorder %s162, %s163
    %p177 = scmp.eq.s32.totalorder %s17, 1
    %p178 = por %p176, %p177
    %p180 = scmp.ne.s32.totalorder %s163, %s179
    %p181 = scmp.eq.s32.totalorder %s17, 0
    %p182 = por %p180, %p181
    %p183 = scmp.le.s32.totalorder 1, %s11
    %p184 = scmp.lt.s32.totalorder %s11, 3
    %p185 = pnand %p183, %p184
    %p186 = pneg %p185
    // Predicated region
    $region9: #{mbconv_forward.3} parent=5 // pred_check
      _
    $region10: #{mbconv_forward.3} parent=5 // pred_check_branch
      %188 = sbr.rel (%p185) target = $region12
    $region11: #{mbconv_forward.3} parent=5 // pred_region
      %s189 = ssub.s32 %s11, 1
      // Predicated region
      $region13: #{mbconv_forward.3} parent=11 // pred_check
        %p190 = pneg %p98
      $region14: #{mbconv_forward.3} parent=11 // pred_check_branch
        %192 = sbr.rel (%p190) target = $region16
      $region15: #{mbconv_forward.3} parent=11 // pred_region
        _
      $region16: #{mbconv_forward.3} parent=11 // pred_fallthru
        _
      // Predicated region
      $region17: #{mbconv_forward.3} parent=11 // pred_check
        %p193 = pneg %p119
      $region18: #{mbconv_forward.3} parent=11 // pred_check_branch
        %195 = sbr.rel (%p193) target = $region20
      $region19: #{mbconv_forward.3} parent=11 // pred_region
        _
      $region20: #{mbconv_forward.3} parent=11 // pred_fallthru
        _
    $region12: #{mbconv_forward.3} parent=5 // pred_fallthru
      _
    %p196 = scmp.lt.s32.totalorder %s11, 2
    // Predicated region
    $region21: #{mbconv_forward.3} parent=5 // pred_check
      %p197 = pneg %p196
    $region22: #{mbconv_forward.3} parent=5 // pred_check_branch
      %199 = sbr.rel (%p197) target = $region24
    $region23: #{mbconv_forward.3} parent=5 // pred_region
      // Predicated region
      $region25: #{mbconv_forward.3} parent=23 // pred_check
        %p200 = pneg %p45
      $region26: #{mbconv_forward.3} parent=23 // pred_check_branch
        %202 = sbr.rel (%p200) target = $region28
      $region27: #{mbconv_forward.3} parent=23 // pred_region
        %s203 = sadd.s32 %s18, %s19
        %s204 = smul.u32 64, %s203
        %p205 = scmp.lt.s32.totalorder %s204, 127
        %s206 = scalar_select %p205, %s204, 127
        %s207 = smul.addr %s206, 4
        %s208 = scalar_lea.vmem %s0, %s207
        %s209 = sadd.s32 %s18, %s19
        %s210 = smul.u32 64, %s209
      $region28: #{mbconv_forward.3} parent=23 // pred_fallthru
        _
      // Predicated region
      $region29: #{mbconv_forward.3} parent=23 // pred_check
        %p211 = pneg %p71
      $region30: #{mbconv_forward.3} parent=23 // pred_check_branch
        %213 = sbr.rel (%p211) target = $region32
      $region31: #{mbconv_forward.3} parent=23 // pred_region
        %p214 = scmp.lt.s32.totalorder %s18, 1
        %s215 = scalar_select %p214, %s18, 1
        %s216 = smul.addr %s215, 8
        %s217 = scalar_lea.vmem %s1, %s216
      $region32: #{mbconv_forward.3} parent=23 // pred_fallthru
        _
      // Predicated region
      $region33: #{mbconv_forward.3} parent=23 // pred_check
        %p218 = pneg %p141
      $region34: #{mbconv_forward.3} parent=23 // pred_check_branch
        %220 = sbr.rel (%p218) target = $region36
      $region35: #{mbconv_forward.3} parent=23 // pred_region
        %s221 = sadd.s32 %s18, %s19
        %s222 = smul.u32 64, %s221
        %p223 = scmp.lt.s32.totalorder %s222, 127
        %s224 = scalar_select %p223, %s222, 127
        %s225 = smul.addr %s224, 8
        %s226 = scalar_lea.vmem %s4, %s225
        %s227 = sadd.s32 %s18, %s19
        %s228 = smul.u32 64, %s227
      $region36: #{mbconv_forward.3} parent=23 // pred_fallthru
        _
    $region24: #{mbconv_forward.3} parent=5 // pred_fallthru
      _
    %p229 = scmp.le.s32.totalorder 1, %s11
    %p230 = scmp.lt.s32.totalorder %s11, 3
    %p231 = pnand %p229, %p230
    %p232 = pneg %p231
    // Predicated region
    $region37: #{mbconv_forward.3} parent=5 // pred_check
      _
    $region38: #{mbconv_forward.3} parent=5 // pred_check_branch
      %234 = sbr.rel (%p231) target = $region40
    $region39: #{mbconv_forward.3} parent=5 // pred_region
      %s235 = ssub.s32 %s11, 1
      %s236 = sadd.s32 %s20, %s21
      %s237 = smul.u32 64, %s236
      %p238 = scmp.lt.s32.totalorder %s237, 127
      %s239 = scalar_select %p238, %s237, 127
      %s240 = smul.addr %s239, 4
      %s241 = scalar_lea.vmem %s0, %s240
      %p242 = pneg %p51
      %p243 = pneg %p48
      %p244 = scmp.lt.s32.totalorder %s20, 1
      %s245 = scalar_select %p244, %s20, 1
      %s246 = smul.addr %s245, 8
      %s247 = scalar_lea.vmem %s1, %s246
      %p248 = pneg %p77
      %p249 = pneg %p74
      %p250 = pneg %p98
      %p251 = pneg %p95
      %p252 = pneg %p119
      %p253 = pneg %p116
      %s254 = sadd.s32 %s20, %s21
      %s255 = smul.u32 64, %s254
      %p256 = scmp.lt.s32.totalorder %s255, 127
      %s257 = scalar_select %p256, %s255, 127
      %s258 = smul.addr %s257, 8
      %s259 = scalar_lea.vmem %s4, %s258
      %p260 = pneg %p147
      %p261 = pneg %p144
      %p262 = pneg %p175
      %p263 = pneg %p172
      %s264 = sadd.s32 %s20, %s21
      %s265 = smul.u32 64, %s264
      %p266 = scmp.lt.s32.totalorder %s265, 127
      %s267 = scalar_select %p266, %s265, 127
      %s268 = smul.addr %s267, 8
      %s269 = scalar_lea.vmem %s5, %s268
      %s270 = sadd.s32 %s20, %s21
      %s271 = smul.u32 64, %s270
      %p272 = scmp.lt.s32.totalorder %s271, 127
      %s273 = scalar_select %p272, %s271, 127
      %s274 = smul.addr %s273, 4
      %s275 = scalar_lea.vmem %s0, %s274
      %s276 = sadd.s32 %s20, %s21
      %s277 = smul.u32 64, %s276
      %p278 = scmp.lt.s32.totalorder %s20, 1
      %s279 = scalar_select %p278, %s20, 1
      %s280 = smul.addr %s279, 8
      %s281 = scalar_lea.vmem %s1, %s280
      %s282 = sadd.s32 %s20, %s21
      %s283 = smul.u32 64, %s282
      %p284 = scmp.lt.s32.totalorder %s283, 127
      %s285 = scalar_select %p284, %s283, 127
      %s286 = smul.addr %s285, 8
      %s287 = scalar_lea.vmem %s4, %s286
      %s288 = sadd.s32 %s20, %s21
      %s289 = smul.u32 64, %s288
      %s290 = sadd.s32 %s20, %s21
      %s291 = smul.u32 64, %s290
      %p292 = scmp.lt.s32.totalorder %s291, 127
      %s293 = scalar_select %p292, %s291, 127
      %s294 = smul.addr %s293, 8
      %s295 = scalar_lea.vmem %s5, %s294
      %s296 = sadd.s32 %s20, %s21
      %s297 = smul.u32 64, %s296
      %v299 = vld [vmem:[%s275] sm:$0xf]
      %v300 = vld [vmem:[%s275 + $0x4] sm:$0xf]
      %v301 = vld [vmem:[%s275 + $0x8] sm:$0xf]
      %v302 = vld [vmem:[%s275 + $0xc] sm:$0xf]
      %v303 = vld [vmem:[%s275 + $0x10] sm:$0xf]
      %v304 = vld [vmem:[%s275 + $0x14] sm:$0xf]
      %v305 = vld [vmem:[%s275 + $0x18] sm:$0xf]
      %v306 = vld [vmem:[%s275 + $0x1c] sm:$0xf]
      %v307 = vld [vmem:[%s275 + $0x20] sm:$0xf]
      %v308 = vld [vmem:[%s275 + $0x24] sm:$0xf]
      %v309 = vld [vmem:[%s275 + $0x28] sm:$0xf]
      %v310 = vld [vmem:[%s275 + $0x2c] sm:$0xf]
      %v311 = vld [vmem:[%s275 + $0x30] sm:$0xf]
      %v312 = vld [vmem:[%s275 + $0x34] sm:$0xf]
      %v313 = vld [vmem:[%s275 + $0x38] sm:$0xf]
      %v314 = vld [vmem:[%s275 + $0x3c] sm:$0xf]
      %v315 = vld [vmem:[%s275 + $0x40] sm:$0xf]
      %v316 = vld [vmem:[%s275 + $0x44] sm:$0xf]
      %v317 = vld [vmem:[%s275 + $0x48] sm:$0xf]
      %v318 = vld [vmem:[%s275 + $0x4c] sm:$0xf]
      %v319 = vld [vmem:[%s275 + $0x50] sm:$0xf]
      %v320 = vld [vmem:[%s275 + $0x54] sm:$0xf]
      %v321 = vld [vmem:[%s275 + $0x58] sm:$0xf]
      %v322 = vld [vmem:[%s275 + $0x5c] sm:$0xf]
      %v323 = vld [vmem:[%s275 + $0x60] sm:$0xf]
      %v324 = vld [vmem:[%s275 + $0x64] sm:$0xf]
      %v325 = vld [vmem:[%s275 + $0x68] sm:$0xf]
      %v326 = vld [vmem:[%s275 + $0x6c] sm:$0xf]
      %v327 = vld [vmem:[%s275 + $0x70] sm:$0xf]
      %v328 = vld [vmem:[%s275 + $0x74] sm:$0xf]
      %v329 = vld [vmem:[%s275 + $0x78] sm:$0xf]
      %v330 = vld [vmem:[%s275 + $0x7c] sm:$0xf]
      %v331 = vld [vmem:[%s275 + $0x80] sm:$0xf]
      %v332 = vld [vmem:[%s275 + $0x84] sm:$0xf]
      %v333 = vld [vmem:[%s275 + $0x88] sm:$0xf]
      %v334 = vld [vmem:[%s275 + $0x8c] sm:$0xf]
      %v335 = vld [vmem:[%s275 + $0x90] sm:$0xf]
      %v336 = vld [vmem:[%s275 + $0x94] sm:$0xf]
      %v337 = vld [vmem:[%s275 + $0x98] sm:$0xf]
      %v338 = vld [vmem:[%s275 + $0x9c] sm:$0xf]
      %v339 = vld [vmem:[%s275 + $0xa0] sm:$0xf]
      %v340 = vld [vmem:[%s275 + $0xa4] sm:$0xf]
      %v341 = vld [vmem:[%s275 + $0xa8] sm:$0xf]
      %v342 = vld [vmem:[%s275 + $0xac] sm:$0xf]
      %v343 = vld [vmem:[%s275 + $0xb0] sm:$0xf]
      %v344 = vld [vmem:[%s275 + $0xb4] sm:$0xf]
      %v345 = vld [vmem:[%s275 + $0xb8] sm:$0xf]
      %v346 = vld [vmem:[%s275 + $0xbc] sm:$0xf]
      %v347 = vld [vmem:[%s275 + $0xc0] sm:$0xf]
      %v348 = vld [vmem:[%s275 + $0xc4] sm:$0xf]
      %v349 = vld [vmem:[%s275 + $0xc8] sm:$0xf]
      %v350 = vld [vmem:[%s275 + $0xcc] sm:$0xf]
      %v351 = vld [vmem:[%s275 + $0xd0] sm:$0xf]
      %v352 = vld [vmem:[%s275 + $0xd4] sm:$0xf]
      %v353 = vld [vmem:[%s275 + $0xd8] sm:$0xf]
      %v354 = vld [vmem:[%s275 + $0xdc] sm:$0xf]
      %v355 = vld [vmem:[%s275 + $0xe0] sm:$0xf]
      %v356 = vld [vmem:[%s275 + $0xe4] sm:$0xf]
      %v357 = vld [vmem:[%s275 + $0xe8] sm:$0xf]
      %v358 = vld [vmem:[%s275 + $0xec] sm:$0xf]
      %v359 = vld [vmem:[%s275 + $0xf0] sm:$0xf]
      %v360 = vld [vmem:[%s275 + $0xf4] sm:$0xf]
      %v361 = vld [vmem:[%s275 + $0xf8] sm:$0xf]
      %v362 = vld [vmem:[%s275 + $0xfc] sm:$0xf]
      %v363 = vunpack.c.l.bf16 %v299
      %v364 = vunpack.c.l.bf16 %v300
      %v365 = vunpack.c.l.bf16 %v301
      %v366 = vunpack.c.l.bf16 %v302
      %v367 = vunpack.c.l.bf16 %v303
      %v368 = vunpack.c.l.bf16 %v304
      %v369 = vunpack.c.l.bf16 %v305
      %v370 = vunpack.c.l.bf16 %v306
      %v371 = vunpack.c.l.bf16 %v307
      %v372 = vunpack.c.l.bf16 %v308
      %v373 = vunpack.c.l.bf16 %v309
      %v374 = vunpack.c.l.bf16 %v310
      %v375 = vunpack.c.l.bf16 %v311
      %v376 = vunpack.c.l.bf16 %v312
      %v377 = vunpack.c.l.bf16 %v313
      %v378 = vunpack.c.l.bf16 %v314
      %v379 = vunpack.c.l.bf16 %v315
      %v380 = vunpack.c.l.bf16 %v316
      %v381 = vunpack.c.l.bf16 %v317
      %v382 = vunpack.c.l.bf16 %v318
      %v383 = vunpack.c.l.bf16 %v319
      %v384 = vunpack.c.l.bf16 %v320
      %v385 = vunpack.c.l.bf16 %v321
      %v386 = vunpack.c.l.bf16 %v322
      %v387 = vunpack.c.l.bf16 %v323
      %v388 = vunpack.c.l.bf16 %v324
      %v389 = vunpack.c.l.bf16 %v325
      %v390 = vunpack.c.l.bf16 %v326
      %v391 = vunpack.c.l.bf16 %v327
      %v392 = vunpack.c.l.bf16 %v328
      %v393 = vunpack.c.l.bf16 %v329
      %v394 = vunpack.c.l.bf16 %v330
      %v395 = vunpack.c.l.bf16 %v331
      %v396 = vunpack.c.l.bf16 %v332
      %v397 = vunpack.c.l.bf16 %v333
      %v398 = vunpack.c.l.bf16 %v334
      %v399 = vunpack.c.l.bf16 %v335
      %v400 = vunpack.c.l.bf16 %v336
      %v401 = vunpack.c.l.bf16 %v337
      %v402 = vunpack.c.l.bf16 %v338
      %v403 = vunpack.c.l.bf16 %v339
      %v404 = vunpack.c.l.bf16 %v340
      %v405 = vunpack.c.l.bf16 %v341
      %v406 = vunpack.c.l.bf16 %v342
      %v407 = vunpack.c.l.bf16 %v343
      %v408 = vunpack.c.l.bf16 %v344
      %v409 = vunpack.c.l.bf16 %v345
      %v410 = vunpack.c.l.bf16 %v346
      %v411 = vunpack.c.l.bf16 %v347
      %v412 = vunpack.c.l.bf16 %v348
      %v413 = vunpack.c.l.bf16 %v349
      %v414 = vunpack.c.l.bf16 %v350
      %v415 = vunpack.c.l.bf16 %v351
      %v416 = vunpack.c.l.bf16 %v352
      %v417 = vunpack.c.l.bf16 %v353
      %v418 = vunpack.c.l.bf16 %v354
      %v419 = vunpack.c.l.bf16 %v355
      %v420 = vunpack.c.l.bf16 %v356
      %v421 = vunpack.c.l.bf16 %v357
      %v422 = vunpack.c.l.bf16 %v358
      %v423 = vunpack.c.l.bf16 %v359
      %v424 = vunpack.c.l.bf16 %v360
      %v425 = vunpack.c.l.bf16 %v361
      %v426 = vunpack.c.l.bf16 %v362
      %v427 = vmul.f32 %v363, %v363
      %v428 = vmul.f32 %v364, %v364
      %v429 = vmul.f32 %v365, %v365
      %v430 = vmul.f32 %v366, %v366
      %v431 = vmul.f32 %v367, %v367
      %v432 = vmul.f32 %v368, %v368
      %v433 = vmul.f32 %v369, %v369
      %v434 = vmul.f32 %v370, %v370
      %v435 = vmul.f32 %v371, %v371
      %v436 = vmul.f32 %v372, %v372
      %v437 = vmul.f32 %v373, %v373
      %v438 = vmul.f32 %v374, %v374
      %v439 = vmul.f32 %v375, %v375
      %v440 = vmul.f32 %v376, %v376
      %v441 = vmul.f32 %v377, %v377
      %v442 = vmul.f32 %v378, %v378
      %v443 = vmul.f32 %v379, %v379
      %v444 = vmul.f32 %v380, %v380
      %v445 = vmul.f32 %v381, %v381
      %v446 = vmul.f32 %v382, %v382
      %v447 = vmul.f32 %v383, %v383
      %v448 = vmul.f32 %v384, %v384
      %v449 = vmul.f32 %v385, %v385
      %v450 = vmul.f32 %v386, %v386
      %v451 = vmul.f32 %v387, %v387
      %v452 = vmul.f32 %v388, %v388
      %v453 = vmul.f32 %v389, %v389
      %v454 = vmul.f32 %v390, %v390
      %v455 = vmul.f32 %v391, %v391
      %v456 = vmul.f32 %v392, %v392
      %v457 = vmul.f32 %v393, %v393
      %v458 = vmul.f32 %v394, %v394
      %v459 = vmul.f32 %v395, %v395
      %v460 = vmul.f32 %v396, %v396
      %v461 = vmul.f32 %v397, %v397
      %v462 = vmul.f32 %v398, %v398
      %v463 = vmul.f32 %v399, %v399
      %v464 = vmul.f32 %v400, %v400
      %v465 = vmul.f32 %v401, %v401
      %v466 = vmul.f32 %v402, %v402
      %v467 = vmul.f32 %v403, %v403
      %v468 = vmul.f32 %v404, %v404
      %v469 = vmul.f32 %v405, %v405
      %v470 = vmul.f32 %v406, %v406
      %v471 = vmul.f32 %v407, %v407
      %v472 = vmul.f32 %v408, %v408
      %v473 = vmul.f32 %v409, %v409
      %v474 = vmul.f32 %v410, %v410
      %v475 = vmul.f32 %v411, %v411
      %v476 = vmul.f32 %v412, %v412
      %v477 = vmul.f32 %v413, %v413
      %v478 = vmul.f32 %v414, %v414
      %v479 = vmul.f32 %v415, %v415
      %v480 = vmul.f32 %v416, %v416
      %v481 = vmul.f32 %v417, %v417
      %v482 = vmul.f32 %v418, %v418
      %v483 = vmul.f32 %v419, %v419
      %v484 = vmul.f32 %v420, %v420
      %v485 = vmul.f32 %v421, %v421
      %v486 = vmul.f32 %v422, %v422
      %v487 = vmul.f32 %v423, %v423
      %v488 = vmul.f32 %v424, %v424
      %v489 = vmul.f32 %v425, %v425
      %v490 = vmul.f32 %v426, %v426
      %v491 = vld [vmem:[%s281] sm:$0x1]
      %v492 = vperm.slane %v491, 0
      %v493 = vmul.f32 %v427, %v492
      %v494 = vmul.f32 %v428, %v492
      %v495 = vmul.f32 %v429, %v492
      %v496 = vmul.f32 %v430, %v492
      %v497 = vmul.f32 %v431, %v492
      %v498 = vmul.f32 %v432, %v492
      %v499 = vmul.f32 %v433, %v492
      %v500 = vmul.f32 %v434, %v492
      %v501 = vmul.f32 %v435, %v492
      %v502 = vmul.f32 %v436, %v492
      %v503 = vmul.f32 %v437, %v492
      %v504 = vmul.f32 %v438, %v492
      %v505 = vmul.f32 %v439, %v492
      %v506 = vmul.f32 %v440, %v492
      %v507 = vmul.f32 %v441, %v492
      %v508 = vmul.f32 %v442, %v492
      %v509 = vmul.f32 %v443, %v492
      %v510 = vmul.f32 %v444, %v492
      %v511 = vmul.f32 %v445, %v492
      %v512 = vmul.f32 %v446, %v492
      %v513 = vmul.f32 %v447, %v492
      %v514 = vmul.f32 %v448, %v492
      %v515 = vmul.f32 %v449, %v492
      %v516 = vmul.f32 %v450, %v492
      %v517 = vmul.f32 %v451, %v492
      %v518 = vmul.f32 %v452, %v492
      %v519 = vmul.f32 %v453, %v492
      %v520 = vmul.f32 %v454, %v492
      %v521 = vmul.f32 %v455, %v492
      %v522 = vmul.f32 %v456, %v492
      %v523 = vmul.f32 %v457, %v492
      %v524 = vmul.f32 %v458, %v492
      %v525 = vmul.f32 %v459, %v492
      %v526 = vmul.f32 %v460, %v492
      %v527 = vmul.f32 %v461, %v492
      %v528 = vmul.f32 %v462, %v492
      %v529 = vmul.f32 %v463, %v492
      %v530 = vmul.f32 %v464, %v492
      %v531 = vmul.f32 %v465, %v492
      %v532 = vmul.f32 %v466, %v492
      %v533 = vmul.f32 %v467, %v492
      %v534 = vmul.f32 %v468, %v492
      %v535 = vmul.f32 %v469, %v492
      %v536 = vmul.f32 %v470, %v492
      %v537 = vmul.f32 %v471, %v492
      %v538 = vmul.f32 %v472, %v492
      %v539 = vmul.f32 %v473, %v492
      %v540 = vmul.f32 %v474, %v492
      %v541 = vmul.f32 %v475, %v492
      %v542 = vmul.f32 %v476, %v492
      %v543 = vmul.f32 %v477, %v492
      %v544 = vmul.f32 %v478, %v492
      %v545 = vmul.f32 %v479, %v492
      %v546 = vmul.f32 %v480, %v492
      %v547 = vmul.f32 %v481, %v492
      %v548 = vmul.f32 %v482, %v492
      %v549 = vmul.f32 %v483, %v492
      %v550 = vmul.f32 %v484, %v492
      %v551 = vmul.f32 %v485, %v492
      %v552 = vmul.f32 %v486, %v492
      %v553 = vmul.f32 %v487, %v492
      %v554 = vmul.f32 %v488, %v492
      %v555 = vmul.f32 %v489, %v492
      %v556 = vmul.f32 %v490, %v492
      %v557 = vpack.c.bf16 %v494, %v493
      %v558 = vpack.c.bf16 %v496, %v495
      %v559 = vpack.c.bf16 %v498, %v497
      %v560 = vpack.c.bf16 %v500, %v499
      %v561 = vpack.c.bf16 %v502, %v501
      %v562 = vpack.c.bf16 %v504, %v503
      %v563 = vpack.c.bf16 %v506, %v505
      %v564 = vpack.c.bf16 %v508, %v507
      %v565 = vpack.c.bf16 %v510, %v509
      %v566 = vpack.c.bf16 %v512, %v511
      %v567 = vpack.c.bf16 %v514, %v513
      %v568 = vpack.c.bf16 %v516, %v515
      %v569 = vpack.c.bf16 %v518, %v517
      %v570 = vpack.c.bf16 %v520, %v519
      %v571 = vpack.c.bf16 %v522, %v521
      %v572 = vpack.c.bf16 %v524, %v523
      %v573 = vpack.c.bf16 %v526, %v525
      %v574 = vpack.c.bf16 %v528, %v527
      %v575 = vpack.c.bf16 %v530, %v529
      %v576 = vpack.c.bf16 %v532, %v531
      %v577 = vpack.c.bf16 %v534, %v533
      %v578 = vpack.c.bf16 %v536, %v535
      %v579 = vpack.c.bf16 %v538, %v537
      %v580 = vpack.c.bf16 %v540, %v539
      %v581 = vpack.c.bf16 %v542, %v541
      %v582 = vpack.c.bf16 %v544, %v543
      %v583 = vpack.c.bf16 %v546, %v545
      %v584 = vpack.c.bf16 %v548, %v547
      %v585 = vpack.c.bf16 %v550, %v549
      %v586 = vpack.c.bf16 %v552, %v551
      %v587 = vpack.c.bf16 %v554, %v553
      %v588 = vpack.c.bf16 %v556, %v555
      %v589 = vld [vmem:[%s2] sm:$0xf]
      %v590 = vld [vmem:[%s3] sm:$0x1]
      %v592 = vperm.slane %v590, 0
      %vm594 = vcmask 64512
      %v596 = vsel %vm594, %v557, 0
      %v599 = vsel %vm594, %v558, 0
      %v602 = vsel %vm594, %v559, 0
      %v605 = vsel %vm594, %v560, 0
      %v608 = vsel %vm594, %v561, 0
      %v611 = vsel %vm594, %v562, 0
      %v614 = vsel %vm594, %v563, 0
      %v617 = vsel %vm594, %v564, 0
      %v620 = vsel %vm594, %v565, 0
      %v623 = vsel %vm594, %v566, 0
      %v626 = vsel %vm594, %v567, 0
      %v629 = vsel %vm594, %v568, 0
      %v632 = vsel %vm594, %v569, 0
      %v635 = vsel %vm594, %v570, 0
      %v638 = vsel %vm594, %v571, 0
      %v641 = vsel %vm594, %v572, 0
      %v644 = vsel %vm594, %v573, 0
      %v647 = vsel %vm594, %v574, 0
      %v650 = vsel %vm594, %v575, 0
      %v653 = vsel %vm594, %v576, 0
      %v656 = vsel %vm594, %v577, 0
      %v659 = vsel %vm594, %v578, 0
      %v662 = vsel %vm594, %v579, 0
      %v665 = vsel %vm594, %v580, 0
      %v668 = vsel %vm594, %v581, 0
      %v671 = vsel %vm594, %v582, 0
      %v674 = vsel %vm594, %v583, 0
      %v677 = vsel %vm594, %v584, 0
      %v680 = vsel %vm594, %v585, 0
      %v683 = vsel %vm594, %v586, 0
      %v686 = vsel %vm594, %v587, 0
      %v689 = vsel %vm594, %v588, 0
      %vm691 = vcmask 1043456
      %v693 = vsel %vm691, %v589, 0
      %695 = vmatpush.bf16.msra.mxu0 0
      %696 = vmatpush.bf16.msra.mxu0 0
      %697 = vmatpush.bf16.msra.mxu0 0
      %698 = vmatpush.bf16.msra.mxu0 0
      %699 = vmatpush.bf16.msra.mxu0 0
      %700 = vmatpush.bf16.msra.mxu0 0
      %701 = vmatpush.bf16.msra.mxu0 0
      %702 = vmatpush.bf16.msra.mxu0 %v693
      %703 = vmatmul.bf16.gmra.mxu0 %v596
      %v704 = vpop.f32.mrf.mxu0
      %v705 = vadd.f32 %v592, %v704
      %v706 = vpop.f32.mrf.mxu0
      %v707 = vadd.f32 %v592, %v706
      %708 = vmatmul.bf16.gmra.mxu0 %v599
      %v709 = vpop.f32.mrf.mxu0
      %v710 = vadd.f32 %v592, %v709
      %v711 = vpop.f32.mrf.mxu0
      %v712 = vadd.f32 %v592, %v711
      %713 = vmatmul.bf16.gmra.mxu0 %v602
      %v714 = vpop.f32.mrf.mxu0
      %v715 = vadd.f32 %v592, %v714
      %v716 = vpop.f32.mrf.mxu0
      %v717 = vadd.f32 %v592, %v716
      %718 = vmatmul.bf16.gmra.mxu0 %v605
      %v719 = vpop.f32.mrf.mxu0
      %v720 = vadd.f32 %v592, %v719
      %v721 = vpop.f32.mrf.mxu0
      %v722 = vadd.f32 %v592, %v721
      %723 = vmatmul.bf16.gmra.mxu0 %v608
      %v724 = vpop.f32.mrf.mxu0
      %v725 = vadd.f32 %v592, %v724
      %v726 = vpop.f32.mrf.mxu0
      %v727 = vadd.f32 %v592, %v726
      %728 = vmatmul.bf16.gmra.mxu0 %v611
      %v729 = vpop.f32.mrf.mxu0
      %v730 = vadd.f32 %v592, %v729
      %v731 = vpop.f32.mrf.mxu0
      %v732 = vadd.f32 %v592, %v731
      %733 = vmatmul.bf16.gmra.mxu0 %v614
      %v734 = vpop.f32.mrf.mxu0
      %v735 = vadd.f32 %v592, %v734
      %v736 = vpop.f32.mrf.mxu0
      %v737 = vadd.f32 %v592, %v736
      %738 = vmatmul.bf16.gmra.mxu0 %v617
      %v739 = vpop.f32.mrf.mxu0
      %v740 = vadd.f32 %v592, %v739
      %v741 = vpop.f32.mrf.mxu0
      %v742 = vadd.f32 %v592, %v741
      %743 = vmatmul.bf16.gmra.mxu0 %v620
      %v744 = vpop.f32.mrf.mxu0
      %v745 = vadd.f32 %v592, %v744
      %v746 = vpop.f32.mrf.mxu0
      %v747 = vadd.f32 %v592, %v746
      %748 = vmatmul.bf16.gmra.mxu0 %v623
      %v749 = vpop.f32.mrf.mxu0
      %v750 = vadd.f32 %v592, %v749
      %v751 = vpop.f32.mrf.mxu0
      %v752 = vadd.f32 %v592, %v751
      %753 = vmatmul.bf16.gmra.mxu0 %v626
      %v754 = vpop.f32.mrf.mxu0
      %v755 = vadd.f32 %v592, %v754
      %v756 = vpop.f32.mrf.mxu0
      %v757 = vadd.f32 %v592, %v756
      %758 = vmatmul.bf16.gmra.mxu0 %v629
      %v759 = vpop.f32.mrf.mxu0
      %v760 = vadd.f32 %v592, %v759
      %v761 = vpop.f32.mrf.mxu0
      %v762 = vadd.f32 %v592, %v761
      %763 = vmatmul.bf16.gmra.mxu0 %v632
      %v764 = vpop.f32.mrf.mxu0
      %v765 = vadd.f32 %v592, %v764
      %v766 = vpop.f32.mrf.mxu0
      %v767 = vadd.f32 %v592, %v766
      %768 = vmatmul.bf16.gmra.mxu0 %v635
      %v769 = vpop.f32.mrf.mxu0
      %v770 = vadd.f32 %v592, %v769
      %v771 = vpop.f32.mrf.mxu0
      %v772 = vadd.f32 %v592, %v771
      %773 = vmatmul.bf16.gmra.mxu0 %v638
      %v774 = vpop.f32.mrf.mxu0
      %v775 = vadd.f32 %v592, %v774
      %v776 = vpop.f32.mrf.mxu0
      %v777 = vadd.f32 %v592, %v776
      %778 = vmatmul.bf16.gmra.mxu0 %v641
      %v779 = vpop.f32.mrf.mxu0
      %v780 = vadd.f32 %v592, %v779
      %v781 = vpop.f32.mrf.mxu0
      %v782 = vadd.f32 %v592, %v781
      %783 = vmatmul.bf16.gmra.mxu0 %v644
      %v784 = vpop.f32.mrf.mxu0
      %v785 = vadd.f32 %v592, %v784
      %v786 = vpop.f32.mrf.mxu0
      %v787 = vadd.f32 %v592, %v786
      %788 = vmatmul.bf16.gmra.mxu0 %v647
      %v789 = vpop.f32.mrf.mxu0
      %v790 = vadd.f32 %v592, %v789
      %v791 = vpop.f32.mrf.mxu0
      %v792 = vadd.f32 %v592, %v791
      %793 = vmatmul.bf16.gmra.mxu0 %v650
      %v794 = vpop.f32.mrf.mxu0
      %v795 = vadd.f32 %v592, %v794
      %v796 = vpop.f32.mrf.mxu0
      %v797 = vadd.f32 %v592, %v796
      %798 = vmatmul.bf16.gmra.mxu0 %v653
      %v799 = vpop.f32.mrf.mxu0
      %v800 = vadd.f32 %v592, %v799
      %v801 = vpop.f32.mrf.mxu0
      %v802 = vadd.f32 %v592, %v801
      %803 = vmatmul.bf16.gmra.mxu0 %v656
      %v804 = vpop.f32.mrf.mxu0
      %v805 = vadd.f32 %v592, %v804
      %v806 = vpop.f32.mrf.mxu0
      %v807 = vadd.f32 %v592, %v806
      %808 = vmatmul.bf16.gmra.mxu0 %v659
      %v809 = vpop.f32.mrf.mxu0
      %v810 = vadd.f32 %v592, %v809
      %v811 = vpop.f32.mrf.mxu0
      %v812 = vadd.f32 %v592, %v811
      %813 = vmatmul.bf16.gmra.mxu0 %v662
      %v814 = vpop.f32.mrf.mxu0
      %v815 = vadd.f32 %v592, %v814
      %v816 = vpop.f32.mrf.mxu0
      %v817 = vadd.f32 %v592, %v816
      %818 = vmatmul.bf16.gmra.mxu0 %v665
      %v819 = vpop.f32.mrf.mxu0
      %v820 = vadd.f32 %v592, %v819
      %v821 = vpop.f32.mrf.mxu0
      %v822 = vadd.f32 %v592, %v821
      %823 = vmatmul.bf16.gmra.mxu0 %v668
      %v824 = vpop.f32.mrf.mxu0
      %v825 = vadd.f32 %v592, %v824
      %v826 = vpop.f32.mrf.mxu0
      %v827 = vadd.f32 %v592, %v826
      %828 = vmatmul.bf16.gmra.mxu0 %v671
      %v829 = vpop.f32.mrf.mxu0
      %v830 = vadd.f32 %v592, %v829
      %v831 = vpop.f32.mrf.mxu0
      %v832 = vadd.f32 %v592, %v831
      %833 = vmatmul.bf16.gmra.mxu0 %v674
      %v834 = vpop.f32.mrf.mxu0
      %v835 = vadd.f32 %v592, %v834
      %v836 = vpop.f32.mrf.mxu0
      %v837 = vadd.f32 %v592, %v836
      %838 = vmatmul.bf16.gmra.mxu0 %v677
      %v839 = vpop.f32.mrf.mxu0
      %v840 = vadd.f32 %v592, %v839
      %v841 = vpop.f32.mrf.mxu0
      %v842 = vadd.f32 %v592, %v841
      %843 = vmatmul.bf16.gmra.mxu0 %v680
      %v844 = vpop.f32.mrf.mxu0
      %v845 = vadd.f32 %v592, %v844
      %v846 = vpop.f32.mrf.mxu0
      %v847 = vadd.f32 %v592, %v846
      %848 = vmatmul.bf16.gmra.mxu0 %v683
      %v849 = vpop.f32.mrf.mxu0
      %v850 = vadd.f32 %v592, %v849
      %v851 = vpop.f32.mrf.mxu0
      %v852 = vadd.f32 %v592, %v851
      %853 = vmatmul.bf16.gmra.mxu0 %v686
      %v854 = vpop.f32.mrf.mxu0
      %v855 = vadd.f32 %v592, %v854
      %v856 = vpop.f32.mrf.mxu0
      %v857 = vadd.f32 %v592, %v856
      %858 = vmatmul.bf16.gmra.mxu0 %v689
      %v859 = vpop.f32.mrf.mxu0
      %v860 = vadd.f32 %v592, %v859
      %v861 = vpop.f32.mrf.mxu0
      %v862 = vadd.f32 %v592, %v861
      %863 = vdwg.mxu0
      %v864 = vld [vmem:[%s287] sm:$0xff]
      %v865 = vld [vmem:[%s287 + $0x8] sm:$0xff]
      %v866 = vld [vmem:[%s287 + $0x10] sm:$0xff]
      %v867 = vld [vmem:[%s287 + $0x18] sm:$0xff]
      %v868 = vld [vmem:[%s287 + $0x20] sm:$0xff]
      %v869 = vld [vmem:[%s287 + $0x28] sm:$0xff]
      %v870 = vld [vmem:[%s287 + $0x30] sm:$0xff]
      %v871 = vld [vmem:[%s287 + $0x38] sm:$0xff]
      %v872 = vld [vmem:[%s287 + $0x40] sm:$0xff]
      %v873 = vld [vmem:[%s287 + $0x48] sm:$0xff]
      %v874 = vld [vmem:[%s287 + $0x50] sm:$0xff]
      %v875 = vld [vmem:[%s287 + $0x58] sm:$0xff]
      %v876 = vld [vmem:[%s287 + $0x60] sm:$0xff]
      %v877 = vld [vmem:[%s287 + $0x68] sm:$0xff]
      %v878 = vld [vmem:[%s287 + $0x70] sm:$0xff]
      %v879 = vld [vmem:[%s287 + $0x78] sm:$0xff]
      %v880 = vld [vmem:[%s287 + $0x80] sm:$0xff]
      %v881 = vld [vmem:[%s287 + $0x88] sm:$0xff]
      %v882 = vld [vmem:[%s287 + $0x90] sm:$0xff]
      %v883 = vld [vmem:[%s287 + $0x98] sm:$0xff]
      %v884 = vld [vmem:[%s287 + $0xa0] sm:$0xff]
      %v885 = vld [vmem:[%s287 + $0xa8] sm:$0xff]
      %v886 = vld [vmem:[%s287 + $0xb0] sm:$0xff]
      %v887 = vld [vmem:[%s287 + $0xb8] sm:$0xff]
      %v888 = vld [vmem:[%s287 + $0xc0] sm:$0xff]
      %v889 = vld [vmem:[%s287 + $0xc8] sm:$0xff]
      %v890 = vld [vmem:[%s287 + $0xd0] sm:$0xff]
      %v891 = vld [vmem:[%s287 + $0xd8] sm:$0xff]
      %v892 = vld [vmem:[%s287 + $0xe0] sm:$0xff]
      %v893 = vld [vmem:[%s287 + $0xe8] sm:$0xff]
      %v894 = vld [vmem:[%s287 + $0xf0] sm:$0xff]
      %v895 = vld [vmem:[%s287 + $0xf8] sm:$0xff]
      %v896 = vld [vmem:[%s287 + $0x100] sm:$0xff]
      %v897 = vld [vmem:[%s287 + $0x108] sm:$0xff]
      %v898 = vld [vmem:[%s287 + $0x110] sm:$0xff]
      %v899 = vld [vmem:[%s287 + $0x118] sm:$0xff]
      %v900 = vld [vmem:[%s287 + $0x120] sm:$0xff]
      %v901 = vld [vmem:[%s287 + $0x128] sm:$0xff]
      %v902 = vld [vmem:[%s287 + $0x130] sm:$0xff]
      %v903 = vld [vmem:[%s287 + $0x138] sm:$0xff]
      %v904 = vld [vmem:[%s287 + $0x140] sm:$0xff]
      %v905 = vld [vmem:[%s287 + $0x148] sm:$0xff]
      %v906 = vld [vmem:[%s287 + $0x150] sm:$0xff]
      %v907 = vld [vmem:[%s287 + $0x158] sm:$0xff]
      %v908 = vld [vmem:[%s287 + $0x160] sm:$0xff]
      %v909 = vld [vmem:[%s287 + $0x168] sm:$0xff]
      %v910 = vld [vmem:[%s287 + $0x170] sm:$0xff]
      %v911 = vld [vmem:[%s287 + $0x178] sm:$0xff]
      %v912 = vld [vmem:[%s287 + $0x180] sm:$0xff]
      %v913 = vld [vmem:[%s287 + $0x188] sm:$0xff]
      %v914 = vld [vmem:[%s287 + $0x190] sm:$0xff]
      %v915 = vld [vmem:[%s287 + $0x198] sm:$0xff]
      %v916 = vld [vmem:[%s287 + $0x1a0] sm:$0xff]
      %v917 = vld [vmem:[%s287 + $0x1a8] sm:$0xff]
      %v918 = vld [vmem:[%s287 + $0x1b0] sm:$0xff]
      %v919 = vld [vmem:[%s287 + $0x1b8] sm:$0xff]
      %v920 = vld [vmem:[%s287 + $0x1c0] sm:$0xff]
      %v921 = vld [vmem:[%s287 + $0x1c8] sm:$0xff]
      %v922 = vld [vmem:[%s287 + $0x1d0] sm:$0xff]
      %v923 = vld [vmem:[%s287 + $0x1d8] sm:$0xff]
      %v924 = vld [vmem:[%s287 + $0x1e0] sm:$0xff]
      %v925 = vld [vmem:[%s287 + $0x1e8] sm:$0xff]
      %v926 = vld [vmem:[%s287 + $0x1f0] sm:$0xff]
      %v927 = vld [vmem:[%s287 + $0x1f8] sm:$0xff]
      %v928 = vadd.f32 %v705, %v864
      %v929 = vadd.f32 %v707, %v865
      %v930 = vadd.f32 %v710, %v866
      %v931 = vadd.f32 %v712, %v867
      %v932 = vadd.f32 %v715, %v868
      %v933 = vadd.f32 %v717, %v869
      %v934 = vadd.f32 %v720, %v870
      %v935 = vadd.f32 %v722, %v871
      %v936 = vadd.f32 %v725, %v872
      %v937 = vadd.f32 %v727, %v873
      %v938 = vadd.f32 %v730, %v874
      %v939 = vadd.f32 %v732, %v875
      %v940 = vadd.f32 %v735, %v876
      %v941 = vadd.f32 %v737, %v877
      %v942 = vadd.f32 %v740, %v878
      %v943 = vadd.f32 %v742, %v879
      %v944 = vadd.f32 %v745, %v880
      %v945 = vadd.f32 %v747, %v881
      %v946 = vadd.f32 %v750, %v882
      %v947 = vadd.f32 %v752, %v883
      %v948 = vadd.f32 %v755, %v884
      %v949 = vadd.f32 %v757, %v885
      %v950 = vadd.f32 %v760, %v886
      %v951 = vadd.f32 %v762, %v887
      %v952 = vadd.f32 %v765, %v888
      %v953 = vadd.f32 %v767, %v889
      %v954 = vadd.f32 %v770, %v890
      %v955 = vadd.f32 %v772, %v891
      %v956 = vadd.f32 %v775, %v892
      %v957 = vadd.f32 %v777, %v893
      %v958 = vadd.f32 %v780, %v894
      %v959 = vadd.f32 %v782, %v895
      %v960 = vadd.f32 %v785, %v896
      %v961 = vadd.f32 %v787, %v897
      %v962 = vadd.f32 %v790, %v898
      %v963 = vadd.f32 %v792, %v899
      %v964 = vadd.f32 %v795, %v900
      %v965 = vadd.f32 %v797, %v901
      %v966 = vadd.f32 %v800, %v902
      %v967 = vadd.f32 %v802, %v903
      %v968 = vadd.f32 %v805, %v904
      %v969 = vadd.f32 %v807, %v905
      %v970 = vadd.f32 %v810, %v906
      %v971 = vadd.f32 %v812, %v907
      %v972 = vadd.f32 %v815, %v908
      %v973 = vadd.f32 %v817, %v909
      %v974 = vadd.f32 %v820, %v910
      %v975 = vadd.f32 %v822, %v911
      %v976 = vadd.f32 %v825, %v912
      %v977 = vadd.f32 %v827, %v913
      %v978 = vadd.f32 %v830, %v914
      %v979 = vadd.f32 %v832, %v915
      %v980 = vadd.f32 %v835, %v916
      %v981 = vadd.f32 %v837, %v917
      %v982 = vadd.f32 %v840, %v918
      %v983 = vadd.f32 %v842, %v919
      %v984 = vadd.f32 %v845, %v920
      %v985 = vadd.f32 %v847, %v921
      %v986 = vadd.f32 %v850, %v922
      %v987 = vadd.f32 %v852, %v923
      %v988 = vadd.f32 %v855, %v924
      %v989 = vadd.f32 %v857, %v925
      %v990 = vadd.f32 %v860, %v926
      %v991 = vadd.f32 %v862, %v927
      %vm992 = vcmask 31744
      %993 = vst.msk [vmem:[%s295] sm:$0xff] %vm992, %v928
      %994 = vst.msk [vmem:[%s295 + $0x8] sm:$0xff] %vm992, %v929
      %995 = vst.msk [vmem:[%s295 + $0x10] sm:$0xff] %vm992, %v930
      %996 = vst.msk [vmem:[%s295 + $0x18] sm:$0xff] %vm992, %v931
      %997 = vst.msk [vmem:[%s295 + $0x20] sm:$0xff] %vm992, %v932
      %998 = vst.msk [vmem:[%s295 + $0x28] sm:$0xff] %vm992, %v933
      %999 = vst.msk [vmem:[%s295 + $0x30] sm:$0xff] %vm992, %v934
      %1000 = vst.msk [vmem:[%s295 + $0x38] sm:$0xff] %vm992, %v935
      %1001 = vst.msk [vmem:[%s295 + $0x40] sm:$0xff] %vm992, %v936
      %1002 = vst.msk [vmem:[%s295 + $0x48] sm:$0xff] %vm992, %v937
      %1003 = vst.msk [vmem:[%s295 + $0x50] sm:$0xff] %vm992, %v938
      %1004 = vst.msk [vmem:[%s295 + $0x58] sm:$0xff] %vm992, %v939
      %1005 = vst.msk [vmem:[%s295 + $0x60] sm:$0xff] %vm992, %v940
      %1006 = vst.msk [vmem:[%s295 + $0x68] sm:$0xff] %vm992, %v941
      %1007 = vst.msk [vmem:[%s295 + $0x70] sm:$0xff] %vm992, %v942
      %1008 = vst.msk [vmem:[%s295 + $0x78] sm:$0xff] %vm992, %v943
      %1009 = vst.msk [vmem:[%s295 + $0x80] sm:$0xff] %vm992, %v944
      %1010 = vst.msk [vmem:[%s295 + $0x88] sm:$0xff] %vm992, %v945
      %1011 = vst.msk [vmem:[%s295 + $0x90] sm:$0xff] %vm992, %v946
      %1012 = vst.msk [vmem:[%s295 + $0x98] sm:$0xff] %vm992, %v947
      %1013 = vst.msk [vmem:[%s295 + $0xa0] sm:$0xff] %vm992, %v948
      %1014 = vst.msk [vmem:[%s295 + $0xa8] sm:$0xff] %vm992, %v949
      %1015 = vst.msk [vmem:[%s295 + $0xb0] sm:$0xff] %vm992, %v950
      %1016 = vst.msk [vmem:[%s295 + $0xb8] sm:$0xff] %vm992, %v951
      %1017 = vst.msk [vmem:[%s295 + $0xc0] sm:$0xff] %vm992, %v952
      %1018 = vst.msk [vmem:[%s295 + $0xc8] sm:$0xff] %vm992, %v953
      %1019 = vst.msk [vmem:[%s295 + $0xd0] sm:$0xff] %vm992, %v954
      %1020 = vst.msk [vmem:[%s295 + $0xd8] sm:$0xff] %vm992, %v955
      %1021 = vst.msk [vmem:[%s295 + $0xe0] sm:$0xff] %vm992, %v956
      %1022 = vst.msk [vmem:[%s295 + $0xe8] sm:$0xff] %vm992, %v957
      %1023 = vst.msk [vmem:[%s295 + $0xf0] sm:$0xff] %vm992, %v958
      %1024 = vst.msk [vmem:[%s295 + $0xf8] sm:$0xff] %vm992, %v959
      %1025 = vst.msk [vmem:[%s295 + $0x100] sm:$0xff] %vm992, %v960
      %1026 = vst.msk [vmem:[%s295 + $0x108] sm:$0xff] %vm992, %v961
      %1027 = vst.msk [vmem:[%s295 + $0x110] sm:$0xff] %vm992, %v962
      %1028 = vst.msk [vmem:[%s295 + $0x118] sm:$0xff] %vm992, %v963
      %1029 = vst.msk [vmem:[%s295 + $0x120] sm:$0xff] %vm992, %v964
      %1030 = vst.msk [vmem:[%s295 + $0x128] sm:$0xff] %vm992, %v965
      %1031 = vst.msk [vmem:[%s295 + $0x130] sm:$0xff] %vm992, %v966
      %1032 = vst.msk [vmem:[%s295 + $0x138] sm:$0xff] %vm992, %v967
      %1033 = vst.msk [vmem:[%s295 + $0x140] sm:$0xff] %vm992, %v968
      %1034 = vst.msk [vmem:[%s295 + $0x148] sm:$0xff] %vm992, %v969
      %1035 = vst.msk [vmem:[%s295 + $0x150] sm:$0xff] %vm992, %v970
      %1036 = vst.msk [vmem:[%s295 + $0x158] sm:$0xff] %vm992, %v971
      %1037 = vst.msk [vmem:[%s295 + $0x160] sm:$0xff] %vm992, %v972
      %1038 = vst.msk [vmem:[%s295 + $0x168] sm:$0xff] %vm992, %v973
      %1039 = vst.msk [vmem:[%s295 + $0x170] sm:$0xff] %vm992, %v974
      %1040 = vst.msk [vmem:[%s295 + $0x178] sm:$0xff] %vm992, %v975
      %1041 = vst.msk [vmem:[%s295 + $0x180] sm:$0xff] %vm992, %v976
      %1042 = vst.msk [vmem:[%s295 + $0x188] sm:$0xff] %vm992, %v977
      %1043 = vst.msk [vmem:[%s295 + $0x190] sm:$0xff] %vm992, %v978
      %1044 = vst.msk [vmem:[%s295 + $0x198] sm:$0xff] %vm992, %v979
      %1045 = vst.msk [vmem:[%s295 + $0x1a0] sm:$0xff] %vm992, %v980
      %1046 = vst.msk [vmem:[%s295 + $0x1a8] sm:$0xff] %vm992, %v981
      %1047 = vst.msk [vmem:[%s295 + $0x1b0] sm:$0xff] %vm992, %v982
      %1048 = vst.msk [vmem:[%s295 + $0x1b8] sm:$0xff] %vm992, %v983
      %1049 = vst.msk [vmem:[%s295 + $0x1c0] sm:$0xff] %vm992, %v984
      %1050 = vst.msk [vmem:[%s295 + $0x1c8] sm:$0xff] %vm992, %v985
      %1051 = vst.msk [vmem:[%s295 + $0x1d0] sm:$0xff] %vm992, %v986
      %1052 = vst.msk [vmem:[%s295 + $0x1d8] sm:$0xff] %vm992, %v987
      %1053 = vst.msk [vmem:[%s295 + $0x1e0] sm:$0xff] %vm992, %v988
      %1054 = vst.msk [vmem:[%s295 + $0x1e8] sm:$0xff] %vm992, %v989
      %1055 = vst.msk [vmem:[%s295 + $0x1f0] sm:$0xff] %vm992, %v990
      %1056 = vst.msk [vmem:[%s295 + $0x1f8] sm:$0xff] %vm992, %v991
      %s1057 = sadd.s32 %s20, %s21
      %s1058 = smul.u32 64, %s1057
      %p1059 = scmp.lt.s32.totalorder %s1058, 127
      %s1060 = scalar_select %p1059, %s1058, 127
      %s1061 = smul.addr %s1060, 8
      %s1062 = scalar_lea.vmem %s5, %s1061
      // Predicated region
      $region41: #{mbconv_forward.3} parent=39 // pred_check
        %p1063 = pneg %p172
      $region42: #{mbconv_forward.3} parent=39 // pred_check_branch
        %1065 = sbr.rel (%p1063) target = $region44
      $region43: #{mbconv_forward.3} parent=39 // pred_region
        %s1066 = sadd.s32 %s20, %s21
        %s1067 = smul.u32 64, %s1066
      $region44: #{mbconv_forward.3} parent=39 // pred_fallthru
        _
    $region40: #{mbconv_forward.3} parent=5 // pred_fallthru
      _
    %p1068 = scmp.le.s32.totalorder 2, %s11
    // Predicated region
    $region45: #{mbconv_forward.3} parent=5 // pred_check
      %p1069 = pneg %p1068
    $region46: #{mbconv_forward.3} parent=5 // pred_check_branch
      %1071 = sbr.rel (%p1069) target = $region48
    $region47: #{mbconv_forward.3} parent=5 // pred_region
      %s1072 = ssub.s32 %s11, 2
      // Predicated region
      $region49: #{mbconv_forward.3} parent=47 // pred_check
        %p1073 = pneg %p178
      $region50: #{mbconv_forward.3} parent=47 // pred_check_branch
        %1075 = sbr.rel (%p1073) target = $region52
      $region51: #{mbconv_forward.3} parent=47 // pred_region
        %s1076 = sadd.s32 %s22, %s23
        %s1077 = smul.u32 64, %s1076
        %p1078 = scmp.lt.s32.totalorder %s1077, 127
        %s1079 = scalar_select %p1078, %s1077, 127
        %s1080 = smul.addr %s1079, 8
        %s1081 = scalar_lea.vmem %s5, %s1080
      $region52: #{mbconv_forward.3} parent=47 // pred_fallthru
        _
    $region48: #{mbconv_forward.3} parent=5 // pred_fallthru
      _
  $region6: #{mbconv_forward.3} parent=0 // loop_footer
    %s15 = sadd.s32 1, %s11
  $region7: #{mbconv_forward.3} parent=0 // loop_footer_branch
    %10 = sbr.rel target = $region3
  $region8: #{mbconv_forward.3} parent=0 // loop_exit
    _

// kernel: mbconv_forward.2
$region0: #{mbconv_forward.2}
  #allocation0 [shape = 'u32[]', space=smem, size = 0x4, offset = 0x4, fixed_abs, tag = 'smem constant byte address 0x4 - core index']
  #allocation1 [shape = 'u32[72,128]{1,0:T(1,128)}', space=vmem, size = 0x9000, scoped, tag = 'internal scratch']
  #allocation2 [shape = 'f32[6,10,16,8]{3,2,1,0:T(8,128)}', space=vmem, size = 0x78000, scoped, tag = 'scratch operand']
  #allocation3 [shape = 'f32[6,10,8,8]{3,2,1,0:T(8,128)}', space=vmem, size = 0x3c000, scoped, tag = 'scratch operand']
  #allocation4 [shape = 'f32[4,8,8,8]{3,2,1,0:T(8,128)}', space=vmem, size = 0x20000, scoped, tag = 'scratch operand']
  %s0 = inlined_call_operand.vmem [shape: f32[2,10,10,16,5], index: 0, kind: input, shape index: {}, may-alias: {0,1}]
  %s1 = inlined_call_operand.vmem [shape: f32[2,10,10,16,5], index: 1, kind: input, shape index: {}, may-alias: {0,1}]
  %s2 = inlined_call_operand.vmem [shape: bf16[5,8], index: 2, kind: input, shape index: {}]
  %s3 = inlined_call_operand.vmem [shape: f32[1,8], index: 3, kind: input, shape index: {}]
  %s4 = inlined_call_operand.vmem [shape: f32[27,8], index: 4, kind: input, shape index: {}]
  %s5 = inlined_call_operand.vmem [shape: f32[1,8], index: 5, kind: input, shape index: {}]
  %s6 = inlined_call_operand.vmem [shape: bf16[1024,8], index: 6, kind: output, shape index: {0}]
  %s7 = inlined_call_operand.vmem [shape: f32[2,2,8,8], index: 7, kind: output, shape index: {1}]
  %8 = xla_tuple %s6, %s7
  %s9 = sld [smem:[#allocation0]]
  $region65: #{mbconv_forward.2} parent=0
    _
  %s11 = ssub.s32 1, %s9
  %s12 = scalar_select 0, %s11, %s9
  loop: start=0, step=1, limit=6
  $region2: #{mbconv_forward.2} parent=0 // loop_pre_header
    _
  $region3: #{mbconv_forward.2} parent=0 // loop_header
    %s14 = sphi 0, %s18
    %p15 = scmp.ge.s32.totalorder %s14, 6
    %s21 = sphi 0, %s33
    %s22 = sphi 0, %s29
    %s23 = sphi 0, %s21
    %s24 = sphi 0, %s22
    %s25 = sphi 0, %s23
    %s26 = sphi 0, %s24
    %s38 = sphi 0, %s40
    %s41 = sphi 0, %s38
    %s42 = sphi 0, %s41
    %s58 = sphi 0, %s42
    %s70 = sphi 0, %s72
    %s73 = sphi 0, %s70
    %s74 = sphi 0, %s73
    %s90 = sphi 0, %s74
    %s94 = sphi 0, %s94
    %s96 = sphi 0, %s94
    %s97 = sphi 0, %s96
    %s111 = sphi 0, %s97
    %s115 = sphi 0, %s115
    %s117 = sphi 0, %s115
    %s118 = sphi 0, %s117
    %s132 = sphi 0, %s118
    %s136 = sphi 0, %s136
    %s138 = sphi 0, %s136
    %s139 = sphi 0, %s138
    %s153 = sphi 0, %s139
    %s157 = sphi 0, %s157
    %s159 = sphi 0, %s157
    %s160 = sphi 0, %s159
    %s174 = sphi 0, %s160
    %s184 = sphi 0, %s186
    %s187 = sphi 0, %s184
    %s188 = sphi 0, %s187
    %s204 = sphi 0, %s188
    %s212 = sphi 0, %s214
    %s215 = sphi 0, %s212
    %s216 = sphi 0, %s215
    %s232 = sphi 0, %s216
  $region4: #{mbconv_forward.2} parent=0 // loop_header_branch
    %17 = sbr.rel (%p15) target = $region8
  $region5: #{mbconv_forward.2} parent=0 // loop_body
    %s19 = ssub.s32 %s14, 1
    %s20 = ssub.s32 %s14, 2
    %s27 = sadd.s32 1, %s22
    %p28 = scmp.ge.s32.totalorder %s27, 2
    %s29 = scalar_select %p28, 0, %s27
    %s30 = sadd.s32 1, %s21
    %s31 = scalar_select %p28, %s30, %s21
    %p32 = scmp.ge.s32.totalorder %s31, 2
    %s33 = scalar_select %p32, 0, %s31
    %s34 = ssub.s32 %s21, %s33
    %s35 = ssub.s32 %s22, %s29
    %s36 = sor.u32 %s34, %s35
    %p37 = scmp.eq.s32.totalorder %s36, 0
    %s39 = sadd.s32 %s38, 1
    %s40 = scalar_select %p37, %s38, %s39
    %p43 = pneg %p37
    %p44 = scmp.eq.s32.totalorder %s14, 3
    %p45 = por %p43, %p44
    %p46 = scmp.ne.s32.totalorder %s38, %s41
    %p47 = scmp.eq.s32.totalorder %s14, 0
    %p48 = por %p46, %p47
    %p49 = scmp.ne.s32.totalorder %s38, %s41
    %p50 = scmp.eq.s32.totalorder %s19, 3
    %p51 = por %p49, %p50
    %p52 = scmp.ne.s32.totalorder %s41, %s42
    %p53 = scmp.eq.s32.totalorder %s19, 0
    %p54 = por %p52, %p53
    %p55 = scmp.ne.s32.totalorder %s41, %s42
    %p56 = scmp.eq.s32.totalorder %s20, 3
    %p57 = por %p55, %p56
    %p59 = scmp.ne.s32.totalorder %s42, %s58
    %p60 = scmp.eq.s32.totalorder %s20, 0
    %p61 = por %p59, %p60
    %s62 = sadd.s32 %s22, 1
    %s63 = smul.u32 %s62, 2
    %s64 = sadd.s32 %s29, 1
    %s65 = smul.u32 %s64, 2
    %s66 = ssub.s32 %s21, %s33
    %s67 = ssub.s32 %s63, %s65
    %s68 = sor.u32 %s66, %s67
    %p69 = scmp.eq.s32.totalorder %s68, 0
    %s71 = sadd.s32 %s70, 1
    %s72 = scalar_select %p69, %s70, %s71
    %p75 = pneg %p69
    %p76 = scmp.eq.s32.totalorder %s14, 3
    %p77 = por %p75, %p76
    %p78 = scmp.ne.s32.totalorder %s70, %s73
    %p79 = scmp.eq.s32.totalorder %s14, 0
    %p80 = por %p78, %p79
    %p81 = scmp.ne.s32.totalorder %s70, %s73
    %p82 = scmp.eq.s32.totalorder %s19, 3
    %p83 = por %p81, %p82
    %p84 = scmp.ne.s32.totalorder %s73, %s74
    %p85 = scmp.eq.s32.totalorder %s19, 0
    %p86 = por %p84, %p85
    %p87 = scmp.ne.s32.totalorder %s73, %s74
    %p88 = scmp.eq.s32.totalorder %s20, 3
    %p89 = por %p87, %p88
    %p91 = scmp.ne.s32.totalorder %s74, %s90
    %p92 = scmp.eq.s32.totalorder %s20, 0
    %p93 = por %p91, %p92
    %s95 = sadd.s32 %s94, 1
    %p98 = scmp.eq.s32.totalorder %s14, 3
    %p99 = scmp.ne.s32.totalorder %s94, %s96
    %p100 = scmp.eq.s32.totalorder %s14, 0
    %p101 = por %p99, %p100
    %p102 = scmp.ne.s32.totalorder %s94, %s96
    %p103 = scmp.eq.s32.totalorder %s19, 3
    %p104 = por %p102, %p103
    %p105 = scmp.ne.s32.totalorder %s96, %s97
    %p106 = scmp.eq.s32.totalorder %s19, 0
    %p107 = por %p105, %p106
    %p108 = scmp.ne.s32.totalorder %s96, %s97
    %p109 = scmp.eq.s32.totalorder %s20, 3
    %p110 = por %p108, %p109
    %p112 = scmp.ne.s32.totalorder %s97, %s111
    %p113 = scmp.eq.s32.totalorder %s20, 0
    %p114 = por %p112, %p113
    %s116 = sadd.s32 %s115, 1
    %p119 = scmp.eq.s32.totalorder %s14, 3
    %p120 = scmp.ne.s32.totalorder %s115, %s117
    %p121 = scmp.eq.s32.totalorder %s14, 0
    %p122 = por %p120, %p121
    %p123 = scmp.ne.s32.totalorder %s115, %s117
    %p124 = scmp.eq.s32.totalorder %s19, 3
    %p125 = por %p123, %p124
    %p126 = scmp.ne.s32.totalorder %s117, %s118
    %p127 = scmp.eq.s32.totalorder %s19, 0
    %p128 = por %p126, %p127
    %p129 = scmp.ne.s32.totalorder %s117, %s118
    %p130 = scmp.eq.s32.totalorder %s20, 3
    %p131 = por %p129, %p130
    %p133 = scmp.ne.s32.totalorder %s118, %s132
    %p134 = scmp.eq.s32.totalorder %s20, 0
    %p135 = por %p133, %p134
    %s137 = sadd.s32 %s136, 1
    %p140 = scmp.eq.s32.totalorder %s14, 3
    %p141 = scmp.ne.s32.totalorder %s136, %s138
    %p142 = scmp.eq.s32.totalorder %s14, 0
    %p143 = por %p141, %p142
    %p144 = scmp.ne.s32.totalorder %s136, %s138
    %p145 = scmp.eq.s32.totalorder %s19, 3
    %p146 = por %p144, %p145
    %p147 = scmp.ne.s32.totalorder %s138, %s139
    %p148 = scmp.eq.s32.totalorder %s19, 0
    %p149 = por %p147, %p148
    %p150 = scmp.ne.s32.totalorder %s138, %s139
    %p151 = scmp.eq.s32.totalorder %s20, 3
    %p152 = por %p150, %p151
    %p154 = scmp.ne.s32.totalorder %s139, %s153
    %p155 = scmp.eq.s32.totalorder %s20, 0
    %p156 = por %p154, %p155
    %s158 = sadd.s32 %s157, 1
    %p161 = scmp.eq.s32.totalorder %s14, 3
    %p162 = scmp.ne.s32.totalorder %s157, %s159
    %p163 = scmp.eq.s32.totalorder %s14, 0
    %p164 = por %p162, %p163
    %p165 = scmp.ne.s32.totalorder %s157, %s159
    %p166 = scmp.eq.s32.totalorder %s19, 3
    %p167 = por %p165, %p166
    %p168 = scmp.ne.s32.totalorder %s159, %s160
    %p169 = scmp.eq.s32.totalorder %s19, 0
    %p170 = por %p168, %p169
    %p171 = scmp.ne.s32.totalorder %s159, %s160
    %p172 = scmp.eq.s32.totalorder %s20, 3
    %p173 = por %p171, %p172
    %p175 = scmp.ne.s32.totalorder %s160, %s174
    %p176 = scmp.eq.s32.totalorder %s20, 0
    %p177 = por %p175, %p176
    %s178 = smul.u32 %s21, 2
    %s179 = sadd.s32 %s178, %s22
    %s180 = smul.u32 %s33, 2
    %s181 = sadd.s32 %s180, %s29
    %s182 = ssub.s32 %s179, %s181
    %p183 = scmp.eq.s32.totalorder %s182, 0
    %s185 = sadd.s32 %s184, 1
    %s186 = scalar_select %p183, %s184, %s185
    %p189 = pneg %p183
    %p190 = scmp.eq.s32.totalorder %s14, 3
    %p191 = por %p189, %p190
    %p192 = scmp.ne.s32.totalorder %s184, %s187
    %p193 = scmp.eq.s32.totalorder %s14, 0
    %p194 = por %p192, %p193
    %p195 = scmp.ne.s32.totalorder %s184, %s187
    %p196 = scmp.eq.s32.totalorder %s19, 3
    %p197 = por %p195, %p196
    %p198 = scmp.ne.s32.totalorder %s187, %s188
    %p199 = scmp.eq.s32.totalorder %s19, 0
    %p200 = por %p198, %p199
    %p201 = scmp.ne.s32.totalorder %s187, %s188
    %p202 = scmp.eq.s32.totalorder %s20, 3
    %p203 = por %p201, %p202
    %p205 = scmp.ne.s32.totalorder %s188, %s204
    %p206 = scmp.eq.s32.totalorder %s20, 0
    %p207 = por %p205, %p206
    %s208 = ssub.s32 %s21, %s33
    %s209 = ssub.s32 %s22, %s29
    %s210 = sor.u32 %s208, %s209
    %p211 = scmp.eq.s32.totalorder %s210, 0
    %s213 = sadd.s32 %s212, 1
    %s214 = scalar_select %p211, %s212, %s213
    %p217 = pneg %p211
    %p218 = scmp.eq.s32.totalorder %s14, 3
    %p219 = por %p217, %p218
    %p220 = scmp.ne.s32.totalorder %s212, %s215
    %p221 = scmp.eq.s32.totalorder %s14, 0
    %p222 = por %p220, %p221
    %p223 = scmp.ne.s32.totalorder %s212, %s215
    %p224 = scmp.eq.s32.totalorder %s19, 3
    %p225 = por %p223, %p224
    %p226 = scmp.ne.s32.totalorder %s215, %s216
    %p227 = scmp.eq.s32.totalorder %s19, 0
    %p228 = por %p226, %p227
    %p229 = scmp.ne.s32.totalorder %s215, %s216
    %p230 = scmp.eq.s32.totalorder %s20, 3
    %p231 = por %p229, %p230
    %p233 = scmp.ne.s32.totalorder %s216, %s232
    %p234 = scmp.eq.s32.totalorder %s20, 0
    %p235 = por %p233, %p234
    %p236 = scmp.le.s32.totalorder 1, %s14
    %p237 = scmp.lt.s32.totalorder %s14, 5
    %p238 = pnand %p236, %p237
    %p239 = pneg %p238
    // Predicated region
    $region9: #{mbconv_forward.2} parent=5 // pred_check
      _
    $region10: #{mbconv_forward.2} parent=5 // pred_check_branch
      %241 = sbr.rel (%p238) target = $region12
    $region11: #{mbconv_forward.2} parent=5 // pred_region
      %s242 = ssub.s32 %s14, 1
      // Predicated region
      $region13: #{mbconv_forward.2} parent=11 // pred_check
        %p243 = pneg %p107
      $region14: #{mbconv_forward.2} parent=11 // pred_check_branch
        %245 = sbr.rel (%p243) target = $region16
      $region15: #{mbconv_forward.2} parent=11 // pred_region
        _
      $region16: #{mbconv_forward.2} parent=11 // pred_fallthru
        _
      // Predicated region
      $region17: #{mbconv_forward.2} parent=11 // pred_check
        %p246 = pneg %p128
      $region18: #{mbconv_forward.2} parent=11 // pred_check_branch
        %248 = sbr.rel (%p246) target = $region20
      $region19: #{mbconv_forward.2} parent=11 // pred_region
        _
      $region20: #{mbconv_forward.2} parent=11 // pred_fallthru
        _
      // Predicated region
      $region21: #{mbconv_forward.2} parent=11 // pred_check
        %p249 = pneg %p149
      $region22: #{mbconv_forward.2} parent=11 // pred_check_branch
        %251 = sbr.rel (%p249) target = $region24
      $region23: #{mbconv_forward.2} parent=11 // pred_region
        _
      $region24: #{mbconv_forward.2} parent=11 // pred_fallthru
        _
      // Predicated region
      $region25: #{mbconv_forward.2} parent=11 // pred_check
        %p252 = pneg %p170
      $region26: #{mbconv_forward.2} parent=11 // pred_check_branch
        %254 = sbr.rel (%p252) target = $region28
      $region27: #{mbconv_forward.2} parent=11 // pred_region
        _
      $region28: #{mbconv_forward.2} parent=11 // pred_fallthru
        _
    $region12: #{mbconv_forward.2} parent=5 // pred_fallthru
      _
    %p255 = scmp.lt.s32.totalorder %s14, 4
    // Predicated region
    $region29: #{mbconv_forward.2} parent=5 // pred_check
      %p256 = pneg %p255
    $region30: #{mbconv_forward.2} parent=5 // pred_check_branch
      %258 = sbr.rel (%p256) target = $region32
    $region31: #{mbconv_forward.2} parent=5 // pred_region
      // Predicated region
      $region33: #{mbconv_forward.2} parent=31 // pred_check
        %p259 = pneg %p48
      $region34: #{mbconv_forward.2} parent=31 // pred_check_branch
        %261 = sbr.rel (%p259) target = $region36
      $region35: #{mbconv_forward.2} parent=31 // pred_region
        %s262 = smul.u32 4, %s22
        %s263 = ssub.s32 10, %s262
        %p264 = scmp.lt.s32.totalorder %s263, 4
        %s265 = scalar_select %p264, %s263, 4
        %s266 = smul.u32 8, %s265
        %s267 = smul.u32 %s266, 10
        %s268 = smul.u32 %s267, 2
        %p269 = scmp.lt.s32.totalorder %s21, 1
        %s270 = scalar_select %p269, %s21, 1
        %p271 = scmp.lt.s32.totalorder %s262, 9
        %s272 = scalar_select %p271, %s262, 9
        %s273 = smul.addr %s272, 20
        %s274 = smul.addr %s270, 200
        %s275 = sadd.s32 %s273, %s274
        %s276 = smul.addr %s275, 8
        %s277 = scalar_lea.vmem %s0, %s276
        %s278 = smul.u32 4, %s22
        %s279 = ssub.s32 10, %s278
        %p280 = scmp.lt.s32.totalorder %s279, 4
        %s281 = scalar_select %p280, %s279, 4
        %s282 = smul.u32 8, %s281
        %s283 = smul.u32 %s282, 10
        %s284 = smul.u32 %s283, 2
      $region36: #{mbconv_forward.2} parent=31 // pred_fallthru
        _
      // Predicated region
      $region37: #{mbconv_forward.2} parent=31 // pred_check
        %p285 = pneg %p80
      $region38: #{mbconv_forward.2} parent=31 // pred_check_branch
        %287 = sbr.rel (%p285) target = $region40
      $region39: #{mbconv_forward.2} parent=31 // pred_region
        %s288 = sadd.s32 %s22, 1
        %s289 = smul.u32 %s288, 2
        %s290 = smul.u32 2, %s289
        %p291 = scmp.lt.s32.totalorder %s21, 1
        %s292 = scalar_select %p291, %s21, 1
        %p293 = scmp.lt.s32.totalorder %s290, 9
        %s294 = scalar_select %p293, %s290, 9
        %s295 = smul.addr %s294, 20
        %s296 = smul.addr %s292, 200
        %s297 = sadd.s32 %s295, %s296
        %s298 = smul.addr %s297, 8
        %s299 = scalar_lea.vmem %s1, %s298
        %s300 = sadd.s32 %s22, 1
        %s301 = smul.u32 %s300, 2
        %s302 = smul.u32 2, %s301
      $region40: #{mbconv_forward.2} parent=31 // pred_fallthru
        _
    $region32: #{mbconv_forward.2} parent=5 // pred_fallthru
      _
    %p303 = scmp.le.s32.totalorder 1, %s14
    %p304 = scmp.lt.s32.totalorder %s14, 5
    %p305 = pnand %p303, %p304
    %p306 = pneg %p305
    // Predicated region
    $region41: #{mbconv_forward.2} parent=5 // pred_check
      _
    $region42: #{mbconv_forward.2} parent=5 // pred_check_branch
      %308 = sbr.rel (%p305) target = $region44
    $region43: #{mbconv_forward.2} parent=5 // pred_region
      %s309 = ssub.s32 %s14, 1
      %s310 = smul.u32 4, %s24
      %s311 = ssub.s32 10, %s310
      %p312 = scmp.lt.s32.totalorder %s311, 4
      %s313 = scalar_select %p312, %s311, 4
      %s314 = smul.u32 8, %s313
      %s315 = smul.u32 %s314, 10
      %s316 = smul.u32 %s315, 2
      %p317 = scmp.lt.s32.totalorder %s23, 1
      %s318 = scalar_select %p317, %s23, 1
      %p319 = scmp.lt.s32.totalorder %s310, 9
      %s320 = scalar_select %p319, %s310, 9
      %s321 = smul.addr %s320, 20
      %s322 = smul.addr %s318, 200
      %s323 = sadd.s32 %s321, %s322
      %s324 = smul.addr %s323, 8
      %s325 = scalar_lea.vmem %s0, %s324
      %p326 = pneg %p54
      %p327 = pneg %p51
      %s328 = sadd.s32 %s24, 1
      %s329 = smul.u32 %s328, 2
      %s330 = smul.u32 2, %s329
      %p331 = scmp.lt.s32.totalorder %s23, 1
      %s332 = scalar_select %p331, %s23, 1
      %p333 = scmp.lt.s32.totalorder %s330, 9
      %s334 = scalar_select %p333, %s330, 9
      %s335 = smul.addr %s334, 20
      %s336 = smul.addr %s332, 200
      %s337 = sadd.s32 %s335, %s336
      %s338 = smul.addr %s337, 8
      %s339 = scalar_lea.vmem %s1, %s338
      %p340 = pneg %p86
      %p341 = pneg %p83
      %p342 = pneg %p107
      %p343 = pneg %p104
      %p344 = pneg %p128
      %p345 = pneg %p125
      %p346 = pneg %p149
      %p347 = pneg %p146
      %p348 = pneg %p170
      %p349 = pneg %p167
      %p350 = pneg %p200
      %p351 = pneg %p197
      %s352 = smul.u32 %s23, 2
      %s353 = sadd.s32 %s352, %s24
      %s354 = smul.u32 32, %s353
      %p355 = scmp.lt.s32.totalorder %s354, 127
      %s356 = scalar_select %p355, %s354, 127
      %s357 = smul.addr %s356, 4
      %s358 = scalar_lea.vmem %s6, %s357
      %p359 = pneg %p228
      %p360 = pneg %p225
      %p361 = scmp.lt.s32.totalorder %s23, 1
      %s362 = scalar_select %p361, %s23, 1
      %p363 = scmp.lt.s32.totalorder %s24, 1
      %s364 = scalar_select %p363, %s24, 1
      %s365 = smul.addr %s362, 2
      %s366 = sadd.s32 %s364, %s365
      %s367 = smul.addr %s366, 8
      %s368 = scalar_lea.vmem %s7, %s367
      %s369 = smul.u32 4, %s24
      %s370 = ssub.s32 10, %s369
      %p371 = scmp.lt.s32.totalorder %s370, 4
      %s372 = scalar_select %p371, %s370, 4
      %s373 = smul.u32 8, %s372
      %s374 = smul.u32 %s373, 10
      %s375 = smul.u32 %s374, 2
      %p376 = scmp.lt.s32.totalorder %s23, 1
      %s377 = scalar_select %p376, %s23, 1
      %p378 = scmp.lt.s32.totalorder %s369, 9
      %s379 = scalar_select %p378, %s369, 9
      %s380 = smul.addr %s379, 20
      %s381 = smul.addr %s377, 200
      %s382 = sadd.s32 %s380, %s381
      %s383 = smul.addr %s382, 8
      %s384 = scalar_lea.vmem %s0, %s383
      %s385 = smul.u32 4, %s24
      %s386 = ssub.s32 10, %s385
      %p387 = scmp.lt.s32.totalorder %s386, 4
      %s388 = scalar_select %p387, %s386, 4
      %s389 = smul.u32 8, %s388
      %s390 = smul.u32 %s389, 10
      %s391 = smul.u32 %s390, 2
      %s392 = sadd.s32 %s24, 1
      %s393 = smul.u32 %s392, 2
      %s394 = smul.u32 2, %s393
      %p395 = scmp.lt.s32.totalorder %s23, 1
      %s396 = scalar_select %p395, %s23, 1
      %p397 = scmp.lt.s32.totalorder %s394, 9
      %s398 = scalar_select %p397, %s394, 9
      %s399 = smul.addr %s398, 20
      %s400 = smul.addr %s396, 200
      %s401 = sadd.s32 %s399, %s400
      %s402 = smul.addr %s401, 8
      %s403 = scalar_lea.vmem %s1, %s402
      %s404 = sadd.s32 %s24, 1
      %s405 = smul.u32 %s404, 2
      %s406 = smul.u32 2, %s405
      %s407 = smul.u32 %s23, 2
      %s408 = sadd.s32 %s407, %s24
      %s409 = smul.u32 32, %s408
      %p410 = scmp.lt.s32.totalorder %s409, 127
      %s411 = scalar_select %p410, %s409, 127
      %s412 = smul.addr %s411, 4
      %s413 = scalar_lea.vmem %s6, %s412
      %s414 = smul.u32 %s23, 2
      %s415 = sadd.s32 %s414, %s24
      %s416 = smul.u32 32, %s415
      %p417 = scmp.lt.s32.totalorder %s23, 1
      %s418 = scalar_select %p417, %s23, 1
      %p419 = scmp.lt.s32.totalorder %s24, 1
      %s420 = scalar_select %p419, %s24, 1
      %s421 = smul.addr %s418, 2
      %s422 = sadd.s32 %s420, %s421
      %s423 = smul.addr %s422, 8
      %s424 = scalar_lea.vmem %s7, %s423
      %v426 = vld [vmem:[%s384] sm:$0xff]
      %v427 = vld [vmem:[%s384 + $0x8] sm:$0xff]
      %v428 = vld [vmem:[%s384 + $0x10] sm:$0xff]
      %v429 = vld [vmem:[%s384 + $0x18] sm:$0xff]
      %v430 = vld [vmem:[%s384 + $0x20] sm:$0xff]
      %v431 = vld [vmem:[%s384 + $0x28] sm:$0xff]
      %v432 = vld [vmem:[%s384 + $0x30] sm:$0xff]
      %v433 = vld [vmem:[%s384 + $0x38] sm:$0xff]
      %v434 = vld [vmem:[%s384 + $0x40] sm:$0xff]
      %v435 = vld [vmem:[%s384 + $0x48] sm:$0xff]
      %v436 = vld [vmem:[%s384 + $0x50] sm:$0xff]
      %v437 = vld [vmem:[%s384 + $0x58] sm:$0xff]
      %v438 = vld [vmem:[%s384 + $0x60] sm:$0xff]
      %v439 = vld [vmem:[%s384 + $0x68] sm:$0xff]
      %v440 = vld [vmem:[%s384 + $0x70] sm:$0xff]
      %v441 = vld [vmem:[%s384 + $0x78] sm:$0xff]
      %v442 = vld [vmem:[%s384 + $0x80] sm:$0xff]
      %v443 = vld [vmem:[%s384 + $0x88] sm:$0xff]
      %v444 = vld [vmem:[%s384 + $0x90] sm:$0xff]
      %v445 = vld [vmem:[%s384 + $0x98] sm:$0xff]
      %v446 = vld [vmem:[%s384 + $0xa0] sm:$0xff]
      %v447 = vld [vmem:[%s384 + $0xa8] sm:$0xff]
      %v448 = vld [vmem:[%s384 + $0xb0] sm:$0xff]
      %v449 = vld [vmem:[%s384 + $0xb8] sm:$0xff]
      %v450 = vld [vmem:[%s384 + $0xc0] sm:$0xff]
      %v451 = vld [vmem:[%s384 + $0xc8] sm:$0xff]
      %v452 = vld [vmem:[%s384 + $0xd0] sm:$0xff]
      %v453 = vld [vmem:[%s384 + $0xd8] sm:$0xff]
      %v454 = vld [vmem:[%s384 + $0xe0] sm:$0xff]
      %v455 = vld [vmem:[%s384 + $0xe8] sm:$0xff]
      %v456 = vld [vmem:[%s384 + $0xf0] sm:$0xff]
      %v457 = vld [vmem:[%s384 + $0xf8] sm:$0xff]
      %v458 = vld [vmem:[%s384 + $0x100] sm:$0xff]
      %v459 = vld [vmem:[%s384 + $0x108] sm:$0xff]
      %v460 = vld [vmem:[%s384 + $0x110] sm:$0xff]
      %v461 = vld [vmem:[%s384 + $0x118] sm:$0xff]
      %v462 = vld [vmem:[%s384 + $0x120] sm:$0xff]
      %v463 = vld [vmem:[%s384 + $0x128] sm:$0xff]
      %v464 = vld [vmem:[%s384 + $0x130] sm:$0xff]
      %v465 = vld [vmem:[%s384 + $0x138] sm:$0xff]
      %v466 = vld [vmem:[%s384 + $0x140] sm:$0xff]
      %v467 = vld [vmem:[%s384 + $0x148] sm:$0xff]
      %v468 = vld [vmem:[%s384 + $0x150] sm:$0xff]
      %v469 = vld [vmem:[%s384 + $0x158] sm:$0xff]
      %v470 = vld [vmem:[%s384 + $0x160] sm:$0xff]
      %v471 = vld [vmem:[%s384 + $0x168] sm:$0xff]
      %v472 = vld [vmem:[%s384 + $0x170] sm:$0xff]
      %v473 = vld [vmem:[%s384 + $0x178] sm:$0xff]
      %v474 = vld [vmem:[%s384 + $0x180] sm:$0xff]
      %v475 = vld [vmem:[%s384 + $0x188] sm:$0xff]
      %v476 = vld [vmem:[%s384 + $0x190] sm:$0xff]
      %v477 = vld [vmem:[%s384 + $0x198] sm:$0xff]
      %v478 = vld [vmem:[%s384 + $0x1a0] sm:$0xff]
      %v479 = vld [vmem:[%s384 + $0x1a8] sm:$0xff]
      %v480 = vld [vmem:[%s384 + $0x1b0] sm:$0xff]
      %v481 = vld [vmem:[%s384 + $0x1b8] sm:$0xff]
      %v482 = vld [vmem:[%s384 + $0x1c0] sm:$0xff]
      %v483 = vld [vmem:[%s384 + $0x1c8] sm:$0xff]
      %v484 = vld [vmem:[%s384 + $0x1d0] sm:$0xff]
      %v485 = vld [vmem:[%s384 + $0x1d8] sm:$0xff]
      %v486 = vld [vmem:[%s384 + $0x1e0] sm:$0xff]
      %v487 = vld [vmem:[%s384 + $0x1e8] sm:$0xff]
      %v488 = vld [vmem:[%s384 + $0x1f0] sm:$0xff]
      %v489 = vld [vmem:[%s384 + $0x1f8] sm:$0xff]
      %v490 = vld [vmem:[%s384 + $0x200] sm:$0xff]
      %v491 = vld [vmem:[%s384 + $0x208] sm:$0xff]
      %v492 = vld [vmem:[%s384 + $0x210] sm:$0xff]
      %v493 = vld [vmem:[%s384 + $0x218] sm:$0xff]
      %v494 = vld [vmem:[%s384 + $0x220] sm:$0xff]
      %v495 = vld [vmem:[%s384 + $0x228] sm:$0xff]
      %v496 = vld [vmem:[%s384 + $0x230] sm:$0xff]
      %v497 = vld [vmem:[%s384 + $0x238] sm:$0xff]
      %v498 = vld [vmem:[%s384 + $0x240] sm:$0xff]
      %v499 = vld [vmem:[%s384 + $0x248] sm:$0xff]
      %v500 = vld [vmem:[%s384 + $0x250] sm:$0xff]
      %v501 = vld [vmem:[%s384 + $0x258] sm:$0xff]
      %v502 = vld [vmem:[%s384 + $0x260] sm:$0xff]
      %v503 = vld [vmem:[%s384 + $0x268] sm:$0xff]
      %v504 = vld [vmem:[%s384 + $0x270] sm:$0xff]
      %v505 = vld [vmem:[%s384 + $0x278] sm:$0xff]
      %v506 = vpack.c.bf16 %v427, %v426
      %v507 = vpack.c.bf16 %v429, %v428
      %v508 = vpack.c.bf16 %v431, %v430
      %v509 = vpack.c.bf16 %v433, %v432
      %v510 = vpack.c.bf16 %v435, %v434
      %v511 = vpack.c.bf16 %v437, %v436
      %v512 = vpack.c.bf16 %v439, %v438
      %v513 = vpack.c.bf16 %v441, %v440
      %v514 = vpack.c.bf16 %v443, %v442
      %v515 = vpack.c.bf16 %v445, %v444
      %v516 = vpack.c.bf16 %v447, %v446
      %v517 = vpack.c.bf16 %v449, %v448
      %v518 = vpack.c.bf16 %v451, %v450
      %v519 = vpack.c.bf16 %v453, %v452
      %v520 = vpack.c.bf16 %v455, %v454
      %v521 = vpack.c.bf16 %v457, %v456
      %v522 = vpack.c.bf16 %v459, %v458
      %v523 = vpack.c.bf16 %v461, %v460
      %v524 = vpack.c.bf16 %v463, %v462
      %v525 = vpack.c.bf16 %v465, %v464
      %v526 = vpack.c.bf16 %v467, %v466
      %v527 = vpack.c.bf16 %v469, %v468
      %v528 = vpack.c.bf16 %v471, %v470
      %v529 = vpack.c.bf16 %v473, %v472
      %v530 = vpack.c.bf16 %v475, %v474
      %v531 = vpack.c.bf16 %v477, %v476
      %v532 = vpack.c.bf16 %v479, %v478
      %v533 = vpack.c.bf16 %v481, %v480
      %v534 = vpack.c.bf16 %v483, %v482
      %v535 = vpack.c.bf16 %v485, %v484
      %v536 = vpack.c.bf16 %v487, %v486
      %v537 = vpack.c.bf16 %v489, %v488
      %v538 = vpack.c.bf16 %v491, %v490
      %v539 = vpack.c.bf16 %v493, %v492
      %v540 = vpack.c.bf16 %v495, %v494
      %v541 = vpack.c.bf16 %v497, %v496
      %v542 = vpack.c.bf16 %v499, %v498
      %v543 = vpack.c.bf16 %v501, %v500
      %v544 = vpack.c.bf16 %v503, %v502
      %v545 = vpack.c.bf16 %v505, %v504
      %v546 = vld [vmem:[%s2] sm:$0x7]
      %v547 = vld [vmem:[%s3] sm:$0x1]
      %v549 = vperm.slane %v547, 0
      %vm551 = vcmask 39936
      %v553 = vsel %vm551, %v506, 0
      %v556 = vsel %vm551, %v507, 0
      %v559 = vsel %vm551, %v508, 0
      %v562 = vsel %vm551, %v509, 0
      %v565 = vsel %vm551, %v510, 0
      %v568 = vsel %vm551, %v511, 0
      %v571 = vsel %vm551, %v512, 0
      %v574 = vsel %vm551, %v513, 0
      %v577 = vsel %vm551, %v514, 0
      %v580 = vsel %vm551, %v515, 0
      %v583 = vsel %vm551, %v516, 0
      %v586 = vsel %vm551, %v517, 0
      %v589 = vsel %vm551, %v518, 0
      %v592 = vsel %vm551, %v519, 0
      %v595 = vsel %vm551, %v520, 0
      %v598 = vsel %vm551, %v521, 0
      %v601 = vsel %vm551, %v522, 0
      %v604 = vsel %vm551, %v523, 0
      %v607 = vsel %vm551, %v524, 0
      %v610 = vsel %vm551, %v525, 0
      %v613 = vsel %vm551, %v526, 0
      %v616 = vsel %vm551, %v527, 0
      %v619 = vsel %vm551, %v528, 0
      %v622 = vsel %vm551, %v529, 0
      %v625 = vsel %vm551, %v530, 0
      %v628 = vsel %vm551, %v531, 0
      %v631 = vsel %vm551, %v532, 0
      %v634 = vsel %vm551, %v533, 0
      %v637 = vsel %vm551, %v534, 0
      %v640 = vsel %vm551, %v535, 0
      %v643 = vsel %vm551, %v536, 0
      %v646 = vsel %vm551, %v537, 0
      %v649 = vsel %vm551, %v538, 0
      %v652 = vsel %vm551, %v539, 0
      %v655 = vsel %vm551, %v540, 0
      %v658 = vsel %vm551, %v541, 0
      %v661 = vsel %vm551, %v542, 0
      %v664 = vsel %vm551, %v543, 0
      %v667 = vsel %vm551, %v544, 0
      %v670 = vsel %vm551, %v545, 0
      %vm672 = vcmask 1041408
      %vm673 = vcmask 1042432
      %v674 = vsel %vm672, 4294967295, 65535
      %v675 = vsel %vm673, %v674, 0
      %v677 = vand.u32 %v546, %v675
      %679 = vmatpush.bf16.msra.mxu0 0
      %680 = vmatpush.bf16.msra.mxu0 0
      %681 = vmatpush.bf16.msra.mxu0 0
      %682 = vmatpush.bf16.msra.mxu0 0
      %683 = vmatpush.bf16.msra.mxu0 0
      %684 = vmatpush.bf16.msra.mxu0 0
      %685 = vmatpush.bf16.msra.mxu0 0
      %686 = vmatpush.bf16.msra.mxu0 %v677
      %687 = vmatmul.bf16.gmra.mxu0 %v553
      %v688 = vpop.f32.mrf.mxu0
      %v689 = vadd.f32 %v549, %v688
      %v690 = vpop.f32.mrf.mxu0
      %v691 = vadd.f32 %v549, %v690
      %692 = vmatmul.bf16.gmra.mxu0 %v556
      %v693 = vpop.f32.mrf.mxu0
      %v694 = vadd.f32 %v549, %v693
      %v695 = vpop.f32.mrf.mxu0
      %v696 = vadd.f32 %v549, %v695
      %697 = vmatmul.bf16.gmra.mxu0 %v559
      %v698 = vpop.f32.mrf.mxu0
      %v699 = vadd.f32 %v549, %v698
      %v700 = vpop.f32.mrf.mxu0
      %v701 = vadd.f32 %v549, %v700
      %702 = vmatmul.bf16.gmra.mxu0 %v562
      %v703 = vpop.f32.mrf.mxu0
      %v704 = vadd.f32 %v549, %v703
      %v705 = vpop.f32.mrf.mxu0
      %v706 = vadd.f32 %v549, %v705
      %707 = vmatmul.bf16.gmra.mxu0 %v565
      %v708 = vpop.f32.mrf.mxu0
      %v709 = vadd.f32 %v549, %v708
      %v710 = vpop.f32.mrf.mxu0
      %v711 = vadd.f32 %v549, %v710
      %712 = vmatmul.bf16.gmra.mxu0 %v568
      %v713 = vpop.f32.mrf.mxu0
      %v714 = vadd.f32 %v549, %v713
      %v715 = vpop.f32.mrf.mxu0
      %v716 = vadd.f32 %v549, %v715
      %717 = vmatmul.bf16.gmra.mxu0 %v571
      %v718 = vpop.f32.mrf.mxu0
      %v719 = vadd.f32 %v549, %v718
      %v720 = vpop.f32.mrf.mxu0
      %v721 = vadd.f32 %v549, %v720
      %722 = vmatmul.bf16.gmra.mxu0 %v574
      %v723 = vpop.f32.mrf.mxu0
      %v724 = vadd.f32 %v549, %v723
      %v725 = vpop.f32.mrf.mxu0
      %v726 = vadd.f32 %v549, %v725
      %727 = vmatmul.bf16.gmra.mxu0 %v577
      %v728 = vpop.f32.mrf.mxu0
      %v729 = vadd.f32 %v549, %v728
      %v730 = vpop.f32.mrf.mxu0
      %v731 = vadd.f32 %v549, %v730
      %732 = vmatmul.bf16.gmra.mxu0 %v580
      %v733 = vpop.f32.mrf.mxu0
      %v734 = vadd.f32 %v549, %v733
      %v735 = vpop.f32.mrf.mxu0
      %v736 = vadd.f32 %v549, %v735
      %737 = vmatmul.bf16.gmra.mxu0 %v583
      %v738 = vpop.f32.mrf.mxu0
      %v739 = vadd.f32 %v549, %v738
      %v740 = vpop.f32.mrf.mxu0
      %v741 = vadd.f32 %v549, %v740
      %742 = vmatmul.bf16.gmra.mxu0 %v586
      %v743 = vpop.f32.mrf.mxu0
      %v744 = vadd.f32 %v549, %v743
      %v745 = vpop.f32.mrf.mxu0
      %v746 = vadd.f32 %v549, %v745
      %747 = vmatmul.bf16.gmra.mxu0 %v589
      %v748 = vpop.f32.mrf.mxu0
      %v749 = vadd.f32 %v549, %v748
      %v750 = vpop.f32.mrf.mxu0
      %v751 = vadd.f32 %v549, %v750
      %752 = vmatmul.bf16.gmra.mxu0 %v592
      %v753 = vpop.f32.mrf.mxu0
      %v754 = vadd.f32 %v549, %v753
      %v755 = vpop.f32.mrf.mxu0
      %v756 = vadd.f32 %v549, %v755
      %757 = vmatmul.bf16.gmra.mxu0 %v595
      %v758 = vpop.f32.mrf.mxu0
      %v759 = vadd.f32 %v549, %v758
      %v760 = vpop.f32.mrf.mxu0
      %v761 = vadd.f32 %v549, %v760
      %762 = vmatmul.bf16.gmra.mxu0 %v598
      %v763 = vpop.f32.mrf.mxu0
      %v764 = vadd.f32 %v549, %v763
      %v765 = vpop.f32.mrf.mxu0
      %v766 = vadd.f32 %v549, %v765
      %767 = vmatmul.bf16.gmra.mxu0 %v601
      %v768 = vpop.f32.mrf.mxu0
      %v769 = vadd.f32 %v549, %v768
      %v770 = vpop.f32.mrf.mxu0
      %v771 = vadd.f32 %v549, %v770
      %772 = vmatmul.bf16.gmra.mxu0 %v604
      %v773 = vpop.f32.mrf.mxu0
      %v774 = vadd.f32 %v549, %v773
      %v775 = vpop.f32.mrf.mxu0
      %v776 = vadd.f32 %v549, %v775
      %777 = vmatmul.bf16.gmra.mxu0 %v607
      %v778 = vpop.f32.mrf.mxu0
      %v779 = vadd.f32 %v549, %v778
      %v780 = vpop.f32.mrf.mxu0
      %v781 = vadd.f32 %v549, %v780
      %782 = vmatmul.bf16.gmra.mxu0 %v610
      %v783 = vpop.f32.mrf.mxu0
      %v784 = vadd.f32 %v549, %v783
      %v785 = vpop.f32.mrf.mxu0
      %v786 = vadd.f32 %v549, %v785
      %787 = vmatmul.bf16.gmra.mxu0 %v613
      %v788 = vpop.f32.mrf.mxu0
      %v789 = vadd.f32 %v549, %v788
      %v790 = vpop.f32.mrf.mxu0
      %v791 = vadd.f32 %v549, %v790
      %792 = vmatmul.bf16.gmra.mxu0 %v616
      %v793 = vpop.f32.mrf.mxu0
      %v794 = vadd.f32 %v549, %v793
      %v795 = vpop.f32.mrf.mxu0
      %v796 = vadd.f32 %v549, %v795
      %797 = vmatmul.bf16.gmra.mxu0 %v619
      %v798 = vpop.f32.mrf.mxu0
      %v799 = vadd.f32 %v549, %v798
      %v800 = vpop.f32.mrf.mxu0
      %v801 = vadd.f32 %v549, %v800
      %802 = vmatmul.bf16.gmra.mxu0 %v622
      %v803 = vpop.f32.mrf.mxu0
      %v804 = vadd.f32 %v549, %v803
      %v805 = vpop.f32.mrf.mxu0
      %v806 = vadd.f32 %v549, %v805
      %807 = vmatmul.bf16.gmra.mxu0 %v625
      %v808 = vpop.f32.mrf.mxu0
      %v809 = vadd.f32 %v549, %v808
      %v810 = vpop.f32.mrf.mxu0
      %v811 = vadd.f32 %v549, %v810
      %812 = vmatmul.bf16.gmra.mxu0 %v628
      %v813 = vpop.f32.mrf.mxu0
      %v814 = vadd.f32 %v549, %v813
      %v815 = vpop.f32.mrf.mxu0
      %v816 = vadd.f32 %v549, %v815
      %817 = vmatmul.bf16.gmra.mxu0 %v631
      %v818 = vpop.f32.mrf.mxu0
      %v819 = vadd.f32 %v549, %v818
      %v820 = vpop.f32.mrf.mxu0
      %v821 = vadd.f32 %v549, %v820
      %822 = vmatmul.bf16.gmra.mxu0 %v634
      %v823 = vpop.f32.mrf.mxu0
      %v824 = vadd.f32 %v549, %v823
      %v825 = vpop.f32.mrf.mxu0
      %v826 = vadd.f32 %v549, %v825
      %827 = vmatmul.bf16.gmra.mxu0 %v637
      %v828 = vpop.f32.mrf.mxu0
      %v829 = vadd.f32 %v549, %v828
      %v830 = vpop.f32.mrf.mxu0
      %v831 = vadd.f32 %v549, %v830
      %832 = vmatmul.bf16.gmra.mxu0 %v640
      %v833 = vpop.f32.mrf.mxu0
      %v834 = vadd.f32 %v549, %v833
      %v835 = vpop.f32.mrf.mxu0
      %v836 = vadd.f32 %v549, %v835
      %837 = vmatmul.bf16.gmra.mxu0 %v643
      %v838 = vpop.f32.mrf.mxu0
      %v839 = vadd.f32 %v549, %v838
      %v840 = vpop.f32.mrf.mxu0
      %v841 = vadd.f32 %v549, %v840
      %842 = vmatmul.bf16.gmra.mxu0 %v646
      %v843 = vpop.f32.mrf.mxu0
      %v844 = vadd.f32 %v549, %v843
      %v845 = vpop.f32.mrf.mxu0
      %v846 = vadd.f32 %v549, %v845
      %847 = vmatmul.bf16.gmra.mxu0 %v649
      %v848 = vpop.f32.mrf.mxu0
      %v849 = vadd.f32 %v549, %v848
      %v850 = vpop.f32.mrf.mxu0
      %v851 = vadd.f32 %v549, %v850
      %852 = vmatmul.bf16.gmra.mxu0 %v652
      %v853 = vpop.f32.mrf.mxu0
      %v854 = vadd.f32 %v549, %v853
      %v855 = vpop.f32.mrf.mxu0
      %v856 = vadd.f32 %v549, %v855
      %857 = vmatmul.bf16.gmra.mxu0 %v655
      %v858 = vpop.f32.mrf.mxu0
      %v859 = vadd.f32 %v549, %v858
      %v860 = vpop.f32.mrf.mxu0
      %v861 = vadd.f32 %v549, %v860
      %862 = vmatmul.bf16.gmra.mxu0 %v658
      %v863 = vpop.f32.mrf.mxu0
      %v864 = vadd.f32 %v549, %v863
      %v865 = vpop.f32.mrf.mxu0
      %v866 = vadd.f32 %v549, %v865
      %867 = vmatmul.bf16.gmra.mxu0 %v661
      %v868 = vpop.f32.mrf.mxu0
      %v869 = vadd.f32 %v549, %v868
      %v870 = vpop.f32.mrf.mxu0
      %v871 = vadd.f32 %v549, %v870
      %872 = vmatmul.bf16.gmra.mxu0 %v664
      %v873 = vpop.f32.mrf.mxu0
      %v874 = vadd.f32 %v549, %v873
      %v875 = vpop.f32.mrf.mxu0
      %v876 = vadd.f32 %v549, %v875
      %877 = vmatmul.bf16.gmra.mxu0 %v667
      %v878 = vpop.f32.mrf.mxu0
      %v879 = vadd.f32 %v549, %v878
      %v880 = vpop.f32.mrf.mxu0
      %v881 = vadd.f32 %v549, %v880
      %882 = vmatmul.bf16.gmra.mxu0 %v670
      %v883 = vpop.f32.mrf.mxu0
      %v884 = vadd.f32 %v549, %v883
      %v885 = vpop.f32.mrf.mxu0
      %v886 = vadd.f32 %v549, %v885
      %887 = vdwg.mxu0
      %889 = vset.pattern.permute.xlu0 4
      %890 = vperm.xlu0 %889, %v426
      %v891 = vpop.permute.xlu0 %890
      %894 = vset.pattern.permute.xlu0 4
      %895 = vperm.xlu0 %894, %v427
      %v896 = vpop.permute.xlu0 %895
      %899 = vset.pattern.permute.xlu0 4
      %900 = vperm.xlu0 %899, %v428
      %v901 = vpop.permute.xlu0 %900
      %904 = vset.pattern.permute.xlu0 4
      %905 = vperm.xlu0 %904, %v429
      %v906 = vpop.permute.xlu0 %905
      %909 = vset.pattern.permute.xlu0 4
      %910 = vperm.xlu0 %909, %v430
      %v911 = vpop.permute.xlu0 %910
      %914 = vset.pattern.permute.xlu0 4
      %915 = vperm.xlu0 %914, %v431
      %v916 = vpop.permute.xlu0 %915
      %919 = vset.pattern.permute.xlu0 4
      %920 = vperm.xlu0 %919, %v432
      %v921 = vpop.permute.xlu0 %920
      %924 = vset.pattern.permute.xlu0 4
      %925 = vperm.xlu0 %924, %v433
      %v926 = vpop.permute.xlu0 %925
      %929 = vset.pattern.permute.xlu0 4
      %930 = vperm.xlu0 %929, %v434
      %v931 = vpop.permute.xlu0 %930
      %934 = vset.pattern.permute.xlu0 4
      %935 = vperm.xlu0 %934, %v435
      %v936 = vpop.permute.xlu0 %935
      %939 = vset.pattern.permute.xlu0 4
      %940 = vperm.xlu0 %939, %v436
      %v941 = vpop.permute.xlu0 %940
      %944 = vset.pattern.permute.xlu0 4
      %945 = vperm.xlu0 %944, %v437
      %v946 = vpop.permute.xlu0 %945
      %949 = vset.pattern.permute.xlu0 4
      %950 = vperm.xlu0 %949, %v438
      %v951 = vpop.permute.xlu0 %950
      %954 = vset.pattern.permute.xlu0 4
      %955 = vperm.xlu0 %954, %v439
      %v956 = vpop.permute.xlu0 %955
      %959 = vset.pattern.permute.xlu0 4
      %960 = vperm.xlu0 %959, %v440
      %v961 = vpop.permute.xlu0 %960
      %964 = vset.pattern.permute.xlu0 4
      %965 = vperm.xlu0 %964, %v441
      %v966 = vpop.permute.xlu0 %965
      %969 = vset.pattern.permute.xlu0 4
      %970 = vperm.xlu0 %969, %v442
      %v971 = vpop.permute.xlu0 %970
      %974 = vset.pattern.permute.xlu0 4
      %975 = vperm.xlu0 %974, %v443
      %v976 = vpop.permute.xlu0 %975
      %979 = vset.pattern.permute.xlu0 4
      %980 = vperm.xlu0 %979, %v444
      %v981 = vpop.permute.xlu0 %980
      %984 = vset.pattern.permute.xlu0 4
      %985 = vperm.xlu0 %984, %v445
      %v986 = vpop.permute.xlu0 %985
      %989 = vset.pattern.permute.xlu0 4
      %990 = vperm.xlu0 %989, %v446
      %v991 = vpop.permute.xlu0 %990
      %994 = vset.pattern.permute.xlu0 4
      %995 = vperm.xlu0 %994, %v447
      %v996 = vpop.permute.xlu0 %995
      %999 = vset.pattern.permute.xlu0 4
      %1000 = vperm.xlu0 %999, %v448
      %v1001 = vpop.permute.xlu0 %1000
      %1004 = vset.pattern.permute.xlu0 4
      %1005 = vperm.xlu0 %1004, %v449
      %v1006 = vpop.permute.xlu0 %1005
      %1009 = vset.pattern.permute.xlu0 4
      %1010 = vperm.xlu0 %1009, %v450
      %v1011 = vpop.permute.xlu0 %1010
      %1014 = vset.pattern.permute.xlu0 4
      %1015 = vperm.xlu0 %1014, %v451
      %v1016 = vpop.permute.xlu0 %1015
      %1019 = vset.pattern.permute.xlu0 4
      %1020 = vperm.xlu0 %1019, %v452
      %v1021 = vpop.permute.xlu0 %1020
      %1024 = vset.pattern.permute.xlu0 4
      %1025 = vperm.xlu0 %1024, %v453
      %v1026 = vpop.permute.xlu0 %1025
      %1029 = vset.pattern.permute.xlu0 4
      %1030 = vperm.xlu0 %1029, %v454
      %v1031 = vpop.permute.xlu0 %1030
      %1034 = vset.pattern.permute.xlu0 4
      %1035 = vperm.xlu0 %1034, %v455
      %v1036 = vpop.permute.xlu0 %1035
      %1039 = vset.pattern.permute.xlu0 4
      %1040 = vperm.xlu0 %1039, %v456
      %v1041 = vpop.permute.xlu0 %1040
      %1044 = vset.pattern.permute.xlu0 4
      %1045 = vperm.xlu0 %1044, %v457
      %v1046 = vpop.permute.xlu0 %1045
      %1049 = vset.pattern.permute.xlu0 4
      %1050 = vperm.xlu0 %1049, %v458
      %v1051 = vpop.permute.xlu0 %1050
      %1054 = vset.pattern.permute.xlu0 4
      %1055 = vperm.xlu0 %1054, %v459
      %v1056 = vpop.permute.xlu0 %1055
      %1059 = vset.pattern.permute.xlu0 4
      %1060 = vperm.xlu0 %1059, %v460
      %v1061 = vpop.permute.xlu0 %1060
      %1064 = vset.pattern.permute.xlu0 4
      %1065 = vperm.xlu0 %1064, %v461
      %v1066 = vpop.permute.xlu0 %1065
      %1069 = vset.pattern.permute.xlu0 4
      %1070 = vperm.xlu0 %1069, %v462
      %v1071 = vpop.permute.xlu0 %1070
      %1074 = vset.pattern.permute.xlu0 4
      %1075 = vperm.xlu0 %1074, %v463
      %v1076 = vpop.permute.xlu0 %1075
      %1079 = vset.pattern.permute.xlu0 4
      %1080 = vperm.xlu0 %1079, %v464
      %v1081 = vpop.permute.xlu0 %1080
      %1084 = vset.pattern.permute.xlu0 4
      %1085 = vperm.xlu0 %1084, %v465
      %v1086 = vpop.permute.xlu0 %1085
      %1089 = vset.pattern.permute.xlu0 4
      %1090 = vperm.xlu0 %1089, %v466
      %v1091 = vpop.permute.xlu0 %1090
      %1094 = vset.pattern.permute.xlu0 4
      %1095 = vperm.xlu0 %1094, %v467
      %v1096 = vpop.permute.xlu0 %1095
      %1099 = vset.pattern.permute.xlu0 4
      %1100 = vperm.xlu0 %1099, %v468
      %v1101 = vpop.permute.xlu0 %1100
      %1104 = vset.pattern.permute.xlu0 4
      %1105 = vperm.xlu0 %1104, %v469
      %v1106 = vpop.permute.xlu0 %1105
      %1109 = vset.pattern.permute.xlu0 4
      %1110 = vperm.xlu0 %1109, %v470
      %v1111 = vpop.permute.xlu0 %1110
      %1114 = vset.pattern.permute.xlu0 4
      %1115 = vperm.xlu0 %1114, %v471
      %v1116 = vpop.permute.xlu0 %1115
      %1119 = vset.pattern.permute.xlu0 4
      %1120 = vperm.xlu0 %1119, %v472
      %v1121 = vpop.permute.xlu0 %1120
      %1124 = vset.pattern.permute.xlu0 4
      %1125 = vperm.xlu0 %1124, %v473
      %v1126 = vpop.permute.xlu0 %1125
      %1129 = vset.pattern.permute.xlu0 4
      %1130 = vperm.xlu0 %1129, %v474
      %v1131 = vpop.permute.xlu0 %1130
      %1134 = vset.pattern.permute.xlu0 4
      %1135 = vperm.xlu0 %1134, %v475
      %v1136 = vpop.permute.xlu0 %1135
      %1139 = vset.pattern.permute.xlu0 4
      %1140 = vperm.xlu0 %1139, %v476
      %v1141 = vpop.permute.xlu0 %1140
      %1144 = vset.pattern.permute.xlu0 4
      %1145 = vperm.xlu0 %1144, %v477
      %v1146 = vpop.permute.xlu0 %1145
      %1149 = vset.pattern.permute.xlu0 4
      %1150 = vperm.xlu0 %1149, %v478
      %v1151 = vpop.permute.xlu0 %1150
      %1154 = vset.pattern.permute.xlu0 4
      %1155 = vperm.xlu0 %1154, %v479
      %v1156 = vpop.permute.xlu0 %1155
      %1159 = vset.pattern.permute.xlu0 4
      %1160 = vperm.xlu0 %1159, %v480
      %v1161 = vpop.permute.xlu0 %1160
      %1164 = vset.pattern.permute.xlu0 4
      %1165 = vperm.xlu0 %1164, %v481
      %v1166 = vpop.permute.xlu0 %1165
      %1169 = vset.pattern.permute.xlu0 4
      %1170 = vperm.xlu0 %1169, %v482
      %v1171 = vpop.permute.xlu0 %1170
      %1174 = vset.pattern.permute.xlu0 4
      %1175 = vperm.xlu0 %1174, %v483
      %v1176 = vpop.permute.xlu0 %1175
      %1179 = vset.pattern.permute.xlu0 4
      %1180 = vperm.xlu0 %1179, %v484
      %v1181 = vpop.permute.xlu0 %1180
      %1184 = vset.pattern.permute.xlu0 4
      %1185 = vperm.xlu0 %1184, %v485
      %v1186 = vpop.permute.xlu0 %1185
      %1189 = vset.pattern.permute.xlu0 4
      %1190 = vperm.xlu0 %1189, %v486
      %v1191 = vpop.permute.xlu0 %1190
      %1194 = vset.pattern.permute.xlu0 4
      %1195 = vperm.xlu0 %1194, %v487
      %v1196 = vpop.permute.xlu0 %1195
      %1199 = vset.pattern.permute.xlu0 4
      %1200 = vperm.xlu0 %1199, %v488
      %v1201 = vpop.permute.xlu0 %1200
      %1204 = vset.pattern.permute.xlu0 4
      %1205 = vperm.xlu0 %1204, %v489
      %v1206 = vpop.permute.xlu0 %1205
      %1209 = vset.pattern.permute.xlu0 4
      %1210 = vperm.xlu0 %1209, %v490
      %v1211 = vpop.permute.xlu0 %1210
      %1214 = vset.pattern.permute.xlu0 4
      %1215 = vperm.xlu0 %1214, %v491
      %v1216 = vpop.permute.xlu0 %1215
      %1219 = vset.pattern.permute.xlu0 4
      %1220 = vperm.xlu0 %1219, %v492
      %v1221 = vpop.permute.xlu0 %1220
      %1224 = vset.pattern.permute.xlu0 4
      %1225 = vperm.xlu0 %1224, %v493
      %v1226 = vpop.permute.xlu0 %1225
      %1229 = vset.pattern.permute.xlu0 4
      %1230 = vperm.xlu0 %1229, %v494
      %v1231 = vpop.permute.xlu0 %1230
      %1234 = vset.pattern.permute.xlu0 4
      %1235 = vperm.xlu0 %1234, %v495
      %v1236 = vpop.permute.xlu0 %1235
      %1239 = vset.pattern.permute.xlu0 4
      %1240 = vperm.xlu0 %1239, %v496
      %v1241 = vpop.permute.xlu0 %1240
      %1244 = vset.pattern.permute.xlu0 4
      %1245 = vperm.xlu0 %1244, %v497
      %v1246 = vpop.permute.xlu0 %1245
      %1249 = vset.pattern.permute.xlu0 4
      %1250 = vperm.xlu0 %1249, %v498
      %v1251 = vpop.permute.xlu0 %1250
      %1254 = vset.pattern.permute.xlu0 4
      %1255 = vperm.xlu0 %1254, %v499
      %v1256 = vpop.permute.xlu0 %1255
      %1259 = vset.pattern.permute.xlu0 4
      %1260 = vperm.xlu0 %1259, %v500
      %v1261 = vpop.permute.xlu0 %1260
      %1264 = vset.pattern.permute.xlu0 4
      %1265 = vperm.xlu0 %1264, %v501
      %v1266 = vpop.permute.xlu0 %1265
      %1269 = vset.pattern.permute.xlu0 4
      %1270 = vperm.xlu0 %1269, %v502
      %v1271 = vpop.permute.xlu0 %1270
      %1274 = vset.pattern.permute.xlu0 4
      %1275 = vperm.xlu0 %1274, %v503
      %v1276 = vpop.permute.xlu0 %1275
      %1279 = vset.pattern.permute.xlu0 4
      %1280 = vperm.xlu0 %1279, %v504
      %v1281 = vpop.permute.xlu0 %1280
      %1284 = vset.pattern.permute.xlu0 4
      %1285 = vperm.xlu0 %1284, %v505
      %v1286 = vpop.permute.xlu0 %1285
      %v1288 = vmul.f32 %v689, %v891
      %v1289 = vmul.f32 %v691, %v896
      %v1290 = vmul.f32 %v694, %v901
      %v1291 = vmul.f32 %v696, %v906
      %v1292 = vmul.f32 %v699, %v911
      %v1293 = vmul.f32 %v701, %v916
      %v1294 = vmul.f32 %v704, %v921
      %v1295 = vmul.f32 %v706, %v926
      %v1296 = vmul.f32 %v709, %v931
      %v1297 = vmul.f32 %v711, %v936
      %v1298 = vmul.f32 %v714, %v941
      %v1299 = vmul.f32 %v716, %v946
      %v1300 = vmul.f32 %v719, %v951
      %v1301 = vmul.f32 %v721, %v956
      %v1302 = vmul.f32 %v724, %v961
      %v1303 = vmul.f32 %v726, %v966
      %v1304 = vmul.f32 %v729, %v971
      %v1305 = vmul.f32 %v731, %v976
      %v1306 = vmul.f32 %v734, %v981
      %v1307 = vmul.f32 %v736, %v986
      %v1308 = vmul.f32 %v739, %v991
      %v1309 = vmul.f32 %v741, %v996
      %v1310 = vmul.f32 %v744, %v1001
      %v1311 = vmul.f32 %v746, %v1006
      %v1312 = vmul.f32 %v749, %v1011
      %v1313 = vmul.f32 %v751, %v1016
      %v1314 = vmul.f32 %v754, %v1021
      %v1315 = vmul.f32 %v756, %v1026
      %v1316 = vmul.f32 %v759, %v1031
      %v1317 = vmul.f32 %v761, %v1036
      %v1318 = vmul.f32 %v764, %v1041
      %v1319 = vmul.f32 %v766, %v1046
      %v1320 = vmul.f32 %v769, %v1051
      %v1321 = vmul.f32 %v771, %v1056
      %v1322 = vmul.f32 %v774, %v1061
      %v1323 = vmul.f32 %v776, %v1066
      %v1324 = vmul.f32 %v779, %v1071
      %v1325 = vmul.f32 %v781, %v1076
      %v1326 = vmul.f32 %v784, %v1081
      %v1327 = vmul.f32 %v786, %v1086
      %v1328 = vmul.f32 %v789, %v1091
      %v1329 = vmul.f32 %v791, %v1096
      %v1330 = vmul.f32 %v794, %v1101
      %v1331 = vmul.f32 %v796, %v1106
      %v1332 = vmul.f32 %v799, %v1111
      %v1333 = vmul.f32 %v801, %v1116
      %v1334 = vmul.f32 %v804, %v1121
      %v1335 = vmul.f32 %v806, %v1126
      %v1336 = vmul.f32 %v809, %v1131
      %v1337 = vmul.f32 %v811, %v1136
      %v1338 = vmul.f32 %v814, %v1141
      %v1339 = vmul.f32 %v816, %v1146
      %v1340 = vmul.f32 %v819, %v1151
      %v1341 = vmul.f32 %v821, %v1156
      %v1342 = vmul.f32 %v824, %v1161
      %v1343 = vmul.f32 %v826, %v1166
      %v1344 = vmul.f32 %v829, %v1171
      %v1345 = vmul.f32 %v831, %v1176
      %v1346 = vmul.f32 %v834, %v1181
      %v1347 = vmul.f32 %v836, %v1186
      %v1348 = vmul.f32 %v839, %v1191
      %v1349 = vmul.f32 %v841, %v1196
      %v1350 = vmul.f32 %v844, %v1201
      %v1351 = vmul.f32 %v846, %v1206
      %v1352 = vmul.f32 %v849, %v1211
      %v1353 = vmul.f32 %v851, %v1216
      %v1354 = vmul.f32 %v854, %v1221
      %v1355 = vmul.f32 %v856, %v1226
      %v1356 = vmul.f32 %v859, %v1231
      %v1357 = vmul.f32 %v861, %v1236
      %v1358 = vmul.f32 %v864, %v1241
      %v1359 = vmul.f32 %v866, %v1246
      %v1360 = vmul.f32 %v869, %v1251
      %v1361 = vmul.f32 %v871, %v1256
      %v1362 = vmul.f32 %v874, %v1261
      %v1363 = vmul.f32 %v876, %v1266
      %v1364 = vmul.f32 %v879, %v1271
      %v1365 = vmul.f32 %v881, %v1276
      %v1366 = vmul.f32 %v884, %v1281
      %v1367 = vmul.f32 %v886, %v1286
      %v1368 = vxor.u32 %v1288, 2147483648
      %v1369 = vxor.u32 %v1289, 2147483648
      %v1370 = vxor.u32 %v1290, 2147483648
      %v1371 = vxor.u32 %v1291, 2147483648
      %v1372 = vxor.u32 %v1292, 2147483648
      %v1373 = vxor.u32 %v1293, 2147483648
      %v1374 = vxor.u32 %v1294, 2147483648
      %v1375 = vxor.u32 %v1295, 2147483648
      %v1376 = vxor.u32 %v1296, 2147483648
      %v1377 = vxor.u32 %v1297, 2147483648
      %v1378 = vxor.u32 %v1298, 2147483648
      %v1379 = vxor.u32 %v1299, 2147483648
      %v1380 = vxor.u32 %v1300, 2147483648
      %v1381 = vxor.u32 %v1301, 2147483648
      %v1382 = vxor.u32 %v1302, 2147483648
      %v1383 = vxor.u32 %v1303, 2147483648
      %v1384 = vxor.u32 %v1304, 2147483648
      %v1385 = vxor.u32 %v1305, 2147483648
      %v1386 = vxor.u32 %v1306, 2147483648
      %v1387 = vxor.u32 %v1307, 2147483648
      %v1388 = vxor.u32 %v1308, 2147483648
      %v1389 = vxor.u32 %v1309, 2147483648
      %v1390 = vxor.u32 %v1310, 2147483648
      %v1391 = vxor.u32 %v1311, 2147483648
      %v1392 = vxor.u32 %v1312, 2147483648
      %v1393 = vxor.u32 %v1313, 2147483648
      %v1394 = vxor.u32 %v1314, 2147483648
      %v1395 = vxor.u32 %v1315, 2147483648
      %v1396 = vxor.u32 %v1316, 2147483648
      %v1397 = vxor.u32 %v1317, 2147483648
      %v1398 = vxor.u32 %v1318, 2147483648
      %v1399 = vxor.u32 %v1319, 2147483648
      %v1400 = vxor.u32 %v1320, 2147483648
      %v1401 = vxor.u32 %v1321, 2147483648
      %v1402 = vxor.u32 %v1322, 2147483648
      %v1403 = vxor.u32 %v1323, 2147483648
      %v1404 = vxor.u32 %v1324, 2147483648
      %v1405 = vxor.u32 %v1325, 2147483648
      %v1406 = vxor.u32 %v1326, 2147483648
      %v1407 = vxor.u32 %v1327, 2147483648
      %v1408 = vxor.u32 %v1328, 2147483648
      %v1409 = vxor.u32 %v1329, 2147483648
      %v1410 = vxor.u32 %v1330, 2147483648
      %v1411 = vxor.u32 %v1331, 2147483648
      %v1412 = vxor.u32 %v1332, 2147483648
      %v1413 = vxor.u32 %v1333, 2147483648
      %v1414 = vxor.u32 %v1334, 2147483648
      %v1415 = vxor.u32 %v1335, 2147483648
      %v1416 = vxor.u32 %v1336, 2147483648
      %v1417 = vxor.u32 %v1337, 2147483648
      %v1418 = vxor.u32 %v1338, 2147483648
      %v1419 = vxor.u32 %v1339, 2147483648
      %v1420 = vxor.u32 %v1340, 2147483648
      %v1421 = vxor.u32 %v1341, 2147483648
      %v1422 = vxor.u32 %v1342, 2147483648
      %v1423 = vxor.u32 %v1343, 2147483648
      %v1424 = vxor.u32 %v1344, 2147483648
      %v1425 = vxor.u32 %v1345, 2147483648
      %v1426 = vxor.u32 %v1346, 2147483648
      %v1427 = vxor.u32 %v1347, 2147483648
      %v1428 = vxor.u32 %v1348, 2147483648
      %v1429 = vxor.u32 %v1349, 2147483648
      %v1430 = vxor.u32 %v1350, 2147483648
      %v1431 = vxor.u32 %v1351, 2147483648
      %v1432 = vxor.u32 %v1352, 2147483648
      %v1433 = vxor.u32 %v1353, 2147483648
      %v1434 = vxor.u32 %v1354, 2147483648
      %v1435 = vxor.u32 %v1355, 2147483648
      %v1436 = vxor.u32 %v1356, 2147483648
      %v1437 = vxor.u32 %v1357, 2147483648
      %v1438 = vxor.u32 %v1358, 2147483648
      %v1439 = vxor.u32 %v1359, 2147483648
      %v1440 = vxor.u32 %v1360, 2147483648
      %v1441 = vxor.u32 %v1361, 2147483648
      %v1442 = vxor.u32 %v1362, 2147483648
      %v1443 = vxor.u32 %v1363, 2147483648
      %v1444 = vxor.u32 %v1364, 2147483648
      %v1445 = vxor.u32 %v1365, 2147483648
      %v1446 = vxor.u32 %v1366, 2147483648
      %v1447 = vxor.u32 %v1367, 2147483648
      %v1448 = vmul.f32 %v1368, 1.442695
      %v1449 = vpow.pop %v1448
      %v1450 = vmul.f32 %v1369, 1.442695
      %v1451 = vpow.pop %v1450
      %v1452 = vmul.f32 %v1370, 1.442695
      %v1453 = vpow.pop %v1452
      %v1454 = vmul.f32 %v1371, 1.442695
      %v1455 = vpow.pop %v1454
      %v1456 = vmul.f32 %v1372, 1.442695
      %v1457 = vpow.pop %v1456
      %v1458 = vmul.f32 %v1373, 1.442695
      %v1459 = vpow.pop %v1458
      %v1460 = vmul.f32 %v1374, 1.442695
      %v1461 = vpow.pop %v1460
      %v1462 = vmul.f32 %v1375, 1.442695
      %v1463 = vpow.pop %v1462
      %v1464 = vmul.f32 %v1376, 1.442695
      %v1465 = vpow.pop %v1464
      %v1466 = vmul.f32 %v1377, 1.442695
      %v1467 = vpow.pop %v1466
      %v1468 = vmul.f32 %v1378, 1.442695
      %v1469 = vpow.pop %v1468
      %v1470 = vmul.f32 %v1379, 1.442695
      %v1471 = vpow.pop %v1470
      %v1472 = vmul.f32 %v1380, 1.442695
      %v1473 = vpow.pop %v1472
      %v1474 = vmul.f32 %v1381, 1.442695
      %v1475 = vpow.pop %v1474
      %v1476 = vmul.f32 %v1382, 1.442695
      %v1477 = vpow.pop %v1476
      %v1478 = vmul.f32 %v1383, 1.442695
      %v1479 = vpow.pop %v1478
      %v1480 = vmul.f32 %v1384, 1.442695
      %v1481 = vpow.pop %v1480
      %v1482 = vmul.f32 %v1385, 1.442695
      %v1483 = vpow.pop %v1482
      %v1484 = vmul.f32 %v1386, 1.442695
      %v1485 = vpow.pop %v1484
      %v1486 = vmul.f32 %v1387, 1.442695
      %v1487 = vpow.pop %v1486
      %v1488 = vmul.f32 %v1388, 1.442695
      %v1489 = vpow.pop %v1488
      %v1490 = vmul.f32 %v1389, 1.442695
      %v1491 = vpow.pop %v1490
      %v1492 = vmul.f32 %v1390, 1.442695
      %v1493 = vpow.pop %v1492
      %v1494 = vmul.f32 %v1391, 1.442695
      %v1495 = vpow.pop %v1494
      %v1496 = vmul.f32 %v1392, 1.442695
      %v1497 = vpow.pop %v1496
      %v1498 = vmul.f32 %v1393, 1.442695
      %v1499 = vpow.pop %v1498
      %v1500 = vmul.f32 %v1394, 1.442695
      %v1501 = vpow.pop %v1500
      %v1502 = vmul.f32 %v1395, 1.442695
      %v1503 = vpow.pop %v1502
      %v1504 = vmul.f32 %v1396, 1.442695
      %v1505 = vpow.pop %v1504
      %v1506 = vmul.f32 %v1397, 1.442695
      %v1507 = vpow.pop %v1506
      %v1508 = vmul.f32 %v1398, 1.442695
      %v1509 = vpow.pop %v1508
      %v1510 = vmul.f32 %v1399, 1.442695
      %v1511 = vpow.pop %v1510
      %v1512 = vmul.f32 %v1400, 1.442695
      %v1513 = vpow.pop %v1512
      %v1514 = vmul.f32 %v1401, 1.442695
      %v1515 = vpow.pop %v1514
      %v1516 = vmul.f32 %v1402, 1.442695
      %v1517 = vpow.pop %v1516
      %v1518 = vmul.f32 %v1403, 1.442695
      %v1519 = vpow.pop %v1518
      %v1520 = vmul.f32 %v1404, 1.442695
      %v1521 = vpow.pop %v1520
      %v1522 = vmul.f32 %v1405, 1.442695
      %v1523 = vpow.pop %v1522
      %v1524 = vmul.f32 %v1406, 1.442695
      %v1525 = vpow.pop %v1524
      %v1526 = vmul.f32 %v1407, 1.442695
      %v1527 = vpow.pop %v1526
      %v1528 = vmul.f32 %v1408, 1.442695
      %v1529 = vpow.pop %v1528
      %v1530 = vmul.f32 %v1409, 1.442695
      %v1531 = vpow.pop %v1530
      %v1532 = vmul.f32 %v1410, 1.442695
      %v1533 = vpow.pop %v1532
      %v1534 = vmul.f32 %v1411, 1.442695
      %v1535 = vpow.pop %v1534
      %v1536 = vmul.f32 %v1412, 1.442695
      %v1537 = vpow.pop %v1536
      %v1538 = vmul.f32 %v1413, 1.442695
      %v1539 = vpow.pop %v1538
      %v1540 = vmul.f32 %v1414, 1.442695
      %v1541 = vpow.pop %v1540
      %v1542 = vmul.f32 %v1415, 1.442695
      %v1543 = vpow.pop %v1542
      %v1544 = vmul.f32 %v1416, 1.442695
      %v1545 = vpow.pop %v1544
      %v1546 = vmul.f32 %v1417, 1.442695
      %v1547 = vpow.pop %v1546
      %v1548 = vmul.f32 %v1418, 1.442695
      %v1549 = vpow.pop %v1548
      %v1550 = vmul.f32 %v1419, 1.442695
      %v1551 = vpow.pop %v1550
      %v1552 = vmul.f32 %v1420, 1.442695
      %v1553 = vpow.pop %v1552
      %v1554 = vmul.f32 %v1421, 1.442695
      %v1555 = vpow.pop %v1554
      %v1556 = vmul.f32 %v1422, 1.442695
      %v1557 = vpow.pop %v1556
      %v1558 = vmul.f32 %v1423, 1.442695
      %v1559 = vpow.pop %v1558
      %v1560 = vmul.f32 %v1424, 1.442695
      %v1561 = vpow.pop %v1560
      %v1562 = vmul.f32 %v1425, 1.442695
      %v1563 = vpow.pop %v1562
      %v1564 = vmul.f32 %v1426, 1.442695
      %v1565 = vpow.pop %v1564
      %v1566 = vmul.f32 %v1427, 1.442695
      %v1567 = vpow.pop %v1566
      %v1568 = vmul.f32 %v1428, 1.442695
      %v1569 = vpow.pop %v1568
      %v1570 = vmul.f32 %v1429, 1.442695
      %v1571 = vpow.pop %v1570
      %v1572 = vmul.f32 %v1430, 1.442695
      %v1573 = vpow.pop %v1572
      %v1574 = vmul.f32 %v1431, 1.442695
      %v1575 = vpow.pop %v1574
      %v1576 = vmul.f32 %v1432, 1.442695
      %v1577 = vpow.pop %v1576
      %v1578 = vmul.f32 %v1433, 1.442695
      %v1579 = vpow.pop %v1578
      %v1580 = vmul.f32 %v1434, 1.442695
      %v1581 = vpow.pop %v1580
      %v1582 = vmul.f32 %v1435, 1.442695
      %v1583 = vpow.pop %v1582
      %v1584 = vmul.f32 %v1436, 1.442695
      %v1585 = vpow.pop %v1584
      %v1586 = vmul.f32 %v1437, 1.442695
      %v1587 = vpow.pop %v1586
      %v1588 = vmul.f32 %v1438, 1.442695
      %v1589 = vpow.pop %v1588
      %v1590 = vmul.f32 %v1439, 1.442695
      %v1591 = vpow.pop %v1590
      %v1592 = vmul.f32 %v1440, 1.442695
      %v1593 = vpow.pop %v1592
      %v1594 = vmul.f32 %v1441, 1.442695
      %v1595 = vpow.pop %v1594
      %v1596 = vmul.f32 %v1442, 1.442695
      %v1597 = vpow.pop %v1596
      %v1598 = vmul.f32 %v1443, 1.442695
      %v1599 = vpow.pop %v1598
      %v1600 = vmul.f32 %v1444, 1.442695
      %v1601 = vpow.pop %v1600
      %v1602 = vmul.f32 %v1445, 1.442695
      %v1603 = vpow.pop %v1602
      %v1604 = vmul.f32 %v1446, 1.442695
      %v1605 = vpow.pop %v1604
      %v1606 = vmul.f32 %v1447, 1.442695
      %v1607 = vpow.pop %v1606
      %v1608 = vadd.f32 %v1449, 1.0
      %v1609 = vadd.f32 %v1451, 1.0
      %v1610 = vadd.f32 %v1453, 1.0
      %v1611 = vadd.f32 %v1455, 1.0
      %v1612 = vadd.f32 %v1457, 1.0
      %v1613 = vadd.f32 %v1459, 1.0
      %v1614 = vadd.f32 %v1461, 1.0
      %v1615 = vadd.f32 %v1463, 1.0
      %v1616 = vadd.f32 %v1465, 1.0
      %v1617 = vadd.f32 %v1467, 1.0
      %v1618 = vadd.f32 %v1469, 1.0
      %v1619 = vadd.f32 %v1471, 1.0
      %v1620 = vadd.f32 %v1473, 1.0
      %v1621 = vadd.f32 %v1475, 1.0
      %v1622 = vadd.f32 %v1477, 1.0
      %v1623 = vadd.f32 %v1479, 1.0
      %v1624 = vadd.f32 %v1481, 1.0
      %v1625 = vadd.f32 %v1483, 1.0
      %v1626 = vadd.f32 %v1485, 1.0
      %v1627 = vadd.f32 %v1487, 1.0
      %v1628 = vadd.f32 %v1489, 1.0
      %v1629 = vadd.f32 %v1491, 1.0
      %v1630 = vadd.f32 %v1493, 1.0
      %v1631 = vadd.f32 %v1495, 1.0
      %v1632 = vadd.f32 %v1497, 1.0
      %v1633 = vadd.f32 %v1499, 1.0
      %v1634 = vadd.f32 %v1501, 1.0
      %v1635 = vadd.f32 %v1503, 1.0
      %v1636 = vadd.f32 %v1505, 1.0
      %v1637 = vadd.f32 %v1507, 1.0
      %v1638 = vadd.f32 %v1509, 1.0
      %v1639 = vadd.f32 %v1511, 1.0
      %v1640 = vadd.f32 %v1513, 1.0
      %v1641 = vadd.f32 %v1515, 1.0
      %v1642 = vadd.f32 %v1517, 1.0
      %v1643 = vadd.f32 %v1519, 1.0
      %v1644 = vadd.f32 %v1521, 1.0
      %v1645 = vadd.f32 %v1523, 1.0
      %v1646 = vadd.f32 %v1525, 1.0
      %v1647 = vadd.f32 %v1527, 1.0
      %v1648 = vadd.f32 %v1529, 1.0
      %v1649 = vadd.f32 %v1531, 1.0
      %v1650 = vadd.f32 %v1533, 1.0
      %v1651 = vadd.f32 %v1535, 1.0
      %v1652 = vadd.f32 %v1537, 1.0
      %v1653 = vadd.f32 %v1539, 1.0
      %v1654 = vadd.f32 %v1541, 1.0
      %v1655 = vadd.f32 %v1543, 1.0
      %v1656 = vadd.f32 %v1545, 1.0
      %v1657 = vadd.f32 %v1547, 1.0
      %v1658 = vadd.f32 %v1549, 1.0
      %v1659 = vadd.f32 %v1551, 1.0
      %v1660 = vadd.f32 %v1553, 1.0
      %v1661 = vadd.f32 %v1555, 1.0
      %v1662 = vadd.f32 %v1557, 1.0
      %v1663 = vadd.f32 %v1559, 1.0
      %v1664 = vadd.f32 %v1561, 1.0
      %v1665 = vadd.f32 %v1563, 1.0
      %v1666 = vadd.f32 %v1565, 1.0
      %v1667 = vadd.f32 %v1567, 1.0
      %v1668 = vadd.f32 %v1569, 1.0
      %v1669 = vadd.f32 %v1571, 1.0
      %v1670 = vadd.f32 %v1573, 1.0
      %v1671 = vadd.f32 %v1575, 1.0
      %v1672 = vadd.f32 %v1577, 1.0
      %v1673 = vadd.f32 %v1579, 1.0
      %v1674 = vadd.f32 %v1581, 1.0
      %v1675 = vadd.f32 %v1583, 1.0
      %v1676 = vadd.f32 %v1585, 1.0
      %v1677 = vadd.f32 %v1587, 1.0
      %v1678 = vadd.f32 %v1589, 1.0
      %v1679 = vadd.f32 %v1591, 1.0
      %v1680 = vadd.f32 %v1593, 1.0
      %v1681 = vadd.f32 %v1595, 1.0
      %v1682 = vadd.f32 %v1597, 1.0
      %v1683 = vadd.f32 %v1599, 1.0
      %v1684 = vadd.f32 %v1601, 1.0
      %v1685 = vadd.f32 %v1603, 1.0
      %v1686 = vadd.f32 %v1605, 1.0
      %v1687 = vadd.f32 %v1607, 1.0
      %v1688 = vrcp.pop %v1608
      %v1689 = vmul.f32 %v1608, %v1688
      %v1690 = vsub.f32 1.0, %v1689
      %v1691 = vmul.f32 %v1688, %v1690
      %v1692 = vadd.f32 %v1688, %v1691
      %vm1693 = vweird.f32 %v1608
      %vm1694 = vweird.f32 %v1688
      %vm1695 = vmor %vm1693, %vm1694
      %v1696 = vsel %vm1695, %v1688, %v1692
      %v1697 = vand.u32 2147483647, %v1608
      %vm1698 = vcmp.eq.f32.partialorder %v1697, 8.507059e+37
      %v1699 = vand.u32 %v1608, 2147483648
      %v1700 = vor.u32 1.1754944e-38, %v1699
      %v1701 = vsel %vm1698, %v1700, %v1696
      %v1702 = vmul.f32 1.0, %v1701
      %v1703 = vrcp.pop %v1609
      %v1704 = vmul.f32 %v1609, %v1703
      %v1705 = vsub.f32 1.0, %v1704
      %v1706 = vmul.f32 %v1703, %v1705
      %v1707 = vadd.f32 %v1703, %v1706
      %vm1708 = vweird.f32 %v1609
      %vm1709 = vweird.f32 %v1703
      %vm1710 = vmor %vm1708, %vm1709
      %v1711 = vsel %vm1710, %v1703, %v1707
      %v1712 = vand.u32 2147483647, %v1609
      %vm1713 = vcmp.eq.f32.partialorder %v1712, 8.507059e+37
      %v1714 = vand.u32 %v1609, 2147483648
      %v1715 = vor.u32 1.1754944e-38, %v1714
      %v1716 = vsel %vm1713, %v1715, %v1711
      %v1717 = vmul.f32 1.0, %v1716
      %v1718 = vrcp.pop %v1610
      %v1719 = vmul.f32 %v1610, %v1718
      %v1720 = vsub.f32 1.0, %v1719
      %v1721 = vmul.f32 %v1718, %v1720
      %v1722 = vadd.f32 %v1718, %v1721
      %vm1723 = vweird.f32 %v1610
      %vm1724 = vweird.f32 %v1718
      %vm1725 = vmor %vm1723, %vm1724
      %v1726 = vsel %vm1725, %v1718, %v1722
      %v1727 = vand.u32 2147483647, %v1610
      %vm1728 = vcmp.eq.f32.partialorder %v1727, 8.507059e+37
      %v1729 = vand.u32 %v1610, 2147483648
      %v1730 = vor.u32 1.1754944e-38, %v1729
      %v1731 = vsel %vm1728, %v1730, %v1726
      %v1732 = vmul.f32 1.0, %v1731
      %v1733 = vrcp.pop %v1611
      %v1734 = vmul.f32 %v1611, %v1733
      %v1735 = vsub.f32 1.0, %v1734
      %v1736 = vmul.f32 %v1733, %v1735
      %v1737 = vadd.f32 %v1733, %v1736
      %vm1738 = vweird.f32 %v1611
      %vm1739 = vweird.f32 %v1733
      %vm1740 = vmor %vm1738, %vm1739
      %v1741 = vsel %vm1740, %v1733, %v1737
      %v1742 = vand.u32 2147483647, %v1611
      %vm1743 = vcmp.eq.f32.partialorder %v1742, 8.507059e+37
      %v1744 = vand.u32 %v1611, 2147483648
      %v1745 = vor.u32 1.1754944e-38, %v1744
      %v1746 = vsel %vm1743, %v1745, %v1741
      %v1747 = vmul.f32 1.0, %v1746
      %v1748 = vrcp.pop %v1612
      %v1749 = vmul.f32 %v1612, %v1748
      %v1750 = vsub.f32 1.0, %v1749
      %v1751 = vmul.f32 %v1748, %v1750
      %v1752 = vadd.f32 %v1748, %v1751
      %vm1753 = vweird.f32 %v1612
      %vm1754 = vweird.f32 %v1748
      %vm1755 = vmor %vm1753, %vm1754
      %v1756 = vsel %vm1755, %v1748, %v1752
      %v1757 = vand.u32 2147483647, %v1612
      %vm1758 = vcmp.eq.f32.partialorder %v1757, 8.507059e+37
      %v1759 = vand.u32 %v1612, 2147483648
      %v1760 = vor.u32 1.1754944e-38, %v1759
      %v1761 = vsel %vm1758, %v1760, %v1756
      %v1762 = vmul.f32 1.0, %v1761
      %v1763 = vrcp.pop %v1613
      %v1764 = vmul.f32 %v1613, %v1763
      %v1765 = vsub.f32 1.0, %v1764
      %v1766 = vmul.f32 %v1763, %v1765
      %v1767 = vadd.f32 %v1763, %v1766
      %vm1768 = vweird.f32 %v1613
      %vm1769 = vweird.f32 %v1763
      %vm1770 = vmor %vm1768, %vm1769
      %v1771 = vsel %vm1770, %v1763, %v1767
      %v1772 = vand.u32 2147483647, %v1613
      %vm1773 = vcmp.eq.f32.partialorder %v1772, 8.507059e+37
      %v1774 = vand.u32 %v1613, 2147483648
      %v1775 = vor.u32 1.1754944e-38, %v1774
      %v1776 = vsel %vm1773, %v1775, %v1771
      %v1777 = vmul.f32 1.0, %v1776
      %v1778 = vrcp.pop %v1614
      %v1779 = vmul.f32 %v1614, %v1778
      %v1780 = vsub.f32 1.0, %v1779
      %v1781 = vmul.f32 %v1778, %v1780
      %v1782 = vadd.f32 %v1778, %v1781
      %vm1783 = vweird.f32 %v1614
      %vm1784 = vweird.f32 %v1778
      %vm1785 = vmor %vm1783, %vm1784
      %v1786 = vsel %vm1785, %v1778, %v1782
      %v1787 = vand.u32 2147483647, %v1614
      %vm1788 = vcmp.eq.f32.partialorder %v1787, 8.507059e+37
      %v1789 = vand.u32 %v1614, 2147483648
      %v1790 = vor.u32 1.1754944e-38, %v1789
      %v1791 = vsel %vm1788, %v1790, %v1786
      %v1792 = vmul.f32 1.0, %v1791
      %v1793 = vrcp.pop %v1615
      %v1794 = vmul.f32 %v1615, %v1793
      %v1795 = vsub.f32 1.0, %v1794
      %v1796 = vmul.f32 %v1793, %v1795
      %v1797 = vadd.f32 %v1793, %v1796
      %vm1798 = vweird.f32 %v1615
      %vm1799 = vweird.f32 %v1793
      %vm1800 = vmor %vm1798, %vm1799
      %v1801 = vsel %vm1800, %v1793, %v1797
      %v1802 = vand.u32 2147483647, %v1615
      %vm1803 = vcmp.eq.f32.partialorder %v1802, 8.507059e+37
      %v1804 = vand.u32 %v1615, 2147483648
      %v1805 = vor.u32 1.1754944e-38, %v1804
      %v1806 = vsel %vm1803, %v1805, %v1801
      %v1807 = vmul.f32 1.0, %v1806
      %v1808 = vrcp.pop %v1616
      %v1809 = vmul.f32 %v1616, %v1808
      %v1810 = vsub.f32 1.0, %v1809
      %v1811 = vmul.f32 %v1808, %v1810
      %v1812 = vadd.f32 %v1808, %v1811
      %vm1813 = vweird.f32 %v1616
      %vm1814 = vweird.f32 %v1808
      %vm1815 = vmor %vm1813, %vm1814
      %v1816 = vsel %vm1815, %v1808, %v1812
      %v1817 = vand.u32 2147483647, %v1616
      %vm1818 = vcmp.eq.f32.partialorder %v1817, 8.507059e+37
      %v1819 = vand.u32 %v1616, 2147483648
      %v1820 = vor.u32 1.1754944e-38, %v1819
      %v1821 = vsel %vm1818, %v1820, %v1816
      %v1822 = vmul.f32 1.0, %v1821
      %v1823 = vrcp.pop %v1617
      %v1824 = vmul.f32 %v1617, %v1823
      %v1825 = vsub.f32 1.0, %v1824
      %v1826 = vmul.f32 %v1823, %v1825
      %v1827 = vadd.f32 %v1823, %v1826
      %vm1828 = vweird.f32 %v1617
      %vm1829 = vweird.f32 %v1823
      %vm1830 = vmor %vm1828, %vm1829
      %v1831 = vsel %vm1830, %v1823, %v1827
      %v1832 = vand.u32 2147483647, %v1617
      %vm1833 = vcmp.eq.f32.partialorder %v1832, 8.507059e+37
      %v1834 = vand.u32 %v1617, 2147483648
      %v1835 = vor.u32 1.1754944e-38, %v1834
      %v1836 = vsel %vm1833, %v1835, %v1831
      %v1837 = vmul.f32 1.0, %v1836
      %v1838 = vrcp.pop %v1618
      %v1839 = vmul.f32 %v1618, %v1838
      %v1840 = vsub.f32 1.0, %v1839
      %v1841 = vmul.f32 %v1838, %v1840
      %v1842 = vadd.f32 %v1838, %v1841
      %vm1843 = vweird.f32 %v1618
      %vm1844 = vweird.f32 %v1838
      %vm1845 = vmor %vm1843, %vm1844
      %v1846 = vsel %vm1845, %v1838, %v1842
      %v1847 = vand.u32 2147483647, %v1618
      %vm1848 = vcmp.eq.f32.partialorder %v1847, 8.507059e+37
      %v1849 = vand.u32 %v1618, 2147483648
      %v1850 = vor.u32 1.1754944e-38, %v1849
      %v1851 = vsel %vm1848, %v1850, %v1846
      %v1852 = vmul.f32 1.0, %v1851
      %v1853 = vrcp.pop %v1619
      %v1854 = vmul.f32 %v1619, %v1853
      %v1855 = vsub.f32 1.0, %v1854
      %v1856 = vmul.f32 %v1853, %v1855
      %v1857 = vadd.f32 %v1853, %v1856
      %vm1858 = vweird.f32 %v1619
      %vm1859 = vweird.f32 %v1853
      %vm1860 = vmor %vm1858, %vm1859
      %v1861 = vsel %vm1860, %v1853, %v1857
      %v1862 = vand.u32 2147483647, %v1619
      %vm1863 = vcmp.eq.f32.partialorder %v1862, 8.507059e+37
      %v1864 = vand.u32 %v1619, 2147483648
      %v1865 = vor.u32 1.1754944e-38, %v1864
      %v1866 = vsel %vm1863, %v1865, %v1861
      %v1867 = vmul.f32 1.0, %v1866
      %v1868 = vrcp.pop %v1620
      %v1869 = vmul.f32 %v1620, %v1868
      %v1870 = vsub.f32 1.0, %v1869
      %v1871 = vmul.f32 %v1868, %v1870
      %v1872 = vadd.f32 %v1868, %v1871
      %vm1873 = vweird.f32 %v1620
      %vm1874 = vweird.f32 %v1868
      %vm1875 = vmor %vm1873, %vm1874
      %v1876 = vsel %vm1875, %v1868, %v1872
      %v1877 = vand.u32 2147483647, %v1620
      %vm1878 = vcmp.eq.f32.partialorder %v1877, 8.507059e+37
      %v1879 = vand.u32 %v1620, 2147483648
      %v1880 = vor.u32 1.1754944e-38, %v1879
      %v1881 = vsel %vm1878, %v1880, %v1876
      %v1882 = vmul.f32 1.0, %v1881
      %v1883 = vrcp.pop %v1621
      %v1884 = vmul.f32 %v1621, %v1883
      %v1885 = vsub.f32 1.0, %v1884
      %v1886 = vmul.f32 %v1883, %v1885
      %v1887 = vadd.f32 %v1883, %v1886
      %vm1888 = vweird.f32 %v1621
      %vm1889 = vweird.f32 %v1883
      %vm1890 = vmor %vm1888, %vm1889
      %v1891 = vsel %vm1890, %v1883, %v1887
      %v1892 = vand.u32 2147483647, %v1621
      %vm1893 = vcmp.eq.f32.partialorder %v1892, 8.507059e+37
      %v1894 = vand.u32 %v1621, 2147483648
      %v1895 = vor.u32 1.1754944e-38, %v1894
      %v1896 = vsel %vm1893, %v1895, %v1891
      %v1897 = vmul.f32 1.0, %v1896
      %v1898 = vrcp.pop %v1622
      %v1899 = vmul.f32 %v1622, %v1898
      %v1900 = vsub.f32 1.0, %v1899
      %v1901 = vmul.f32 %v1898, %v1900
      %v1902 = vadd.f32 %v1898, %v1901
      %vm1903 = vweird.f32 %v1622
      %vm1904 = vweird.f32 %v1898
      %vm1905 = vmor %vm1903, %vm1904
      %v1906 = vsel %vm1905, %v1898, %v1902
      %v1907 = vand.u32 2147483647, %v1622
      %vm1908 = vcmp.eq.f32.partialorder %v1907, 8.507059e+37
      %v1909 = vand.u32 %v1622, 2147483648
      %v1910 = vor.u32 1.1754944e-38, %v1909
      %v1911 = vsel %vm1908, %v1910, %v1906
      %v1912 = vmul.f32 1.0, %v1911
      %v1913 = vrcp.pop %v1623
      %v1914 = vmul.f32 %v1623, %v1913
      %v1915 = vsub.f32 1.0, %v1914
      %v1916 = vmul.f32 %v1913, %v1915
      %v1917 = vadd.f32 %v1913, %v1916
      %vm1918 = vweird.f32 %v1623
      %vm1919 = vweird.f32 %v1913
      %vm1920 = vmor %vm1918, %vm1919
      %v1921 = vsel %vm1920, %v1913, %v1917
      %v1922 = vand.u32 2147483647, %v1623
      %vm1923 = vcmp.eq.f32.partialorder %v1922, 8.507059e+37
      %v1924 = vand.u32 %v1623, 2147483648
      %v1925 = vor.u32 1.1754944e-38, %v1924
      %v1926 = vsel %vm1923, %v1925, %v1921
      %v1927 = vmul.f32 1.0, %v1926
      %v1928 = vrcp.pop %v1624
      %v1929 = vmul.f32 %v1624, %v1928
      %v1930 = vsub.f32 1.0, %v1929
      %v1931 = vmul.f32 %v1928, %v1930
      %v1932 = vadd.f32 %v1928, %v1931
      %vm1933 = vweird.f32 %v1624
      %vm1934 = vweird.f32 %v1928
      %vm1935 = vmor %vm1933, %vm1934
      %v1936 = vsel %vm1935, %v1928, %v1932
      %v1937 = vand.u32 2147483647, %v1624
      %vm1938 = vcmp.eq.f32.partialorder %v1937, 8.507059e+37
      %v1939 = vand.u32 %v1624, 2147483648
      %v1940 = vor.u32 1.1754944e-38, %v1939
      %v1941 = vsel %vm1938, %v1940, %v1936
      %v1942 = vmul.f32 1.0, %v1941
      %v1943 = vrcp.pop %v1625
      %v1944 = vmul.f32 %v1625, %v1943
      %v1945 = vsub.f32 1.0, %v1944
      %v1946 = vmul.f32 %v1943, %v1945
      %v1947 = vadd.f32 %v1943, %v1946
      %vm1948 = vweird.f32 %v1625
      %vm1949 = vweird.f32 %v1943
      %vm1950 = vmor %vm1948, %vm1949
      %v1951 = vsel %vm1950, %v1943, %v1947
      %v1952 = vand.u32 2147483647, %v1625
      %vm1953 = vcmp.eq.f32.partialorder %v1952, 8.507059e+37
      %v1954 = vand.u32 %v1625, 2147483648
      %v1955 = vor.u32 1.1754944e-38, %v1954
      %v1956 = vsel %vm1953, %v1955, %v1951
      %v1957 = vmul.f32 1.0, %v1956
      %v1958 = vrcp.pop %v1626
      %v1959 = vmul.f32 %v1626, %v1958
      %v1960 = vsub.f32 1.0, %v1959
      %v1961 = vmul.f32 %v1958, %v1960
      %v1962 = vadd.f32 %v1958, %v1961
      %vm1963 = vweird.f32 %v1626
      %vm1964 = vweird.f32 %v1958
      %vm1965 = vmor %vm1963, %vm1964
      %v1966 = vsel %vm1965, %v1958, %v1962
      %v1967 = vand.u32 2147483647, %v1626
      %vm1968 = vcmp.eq.f32.partialorder %v1967, 8.507059e+37
      %v1969 = vand.u32 %v1626, 2147483648
      %v1970 = vor.u32 1.1754944e-38, %v1969
      %v1971 = vsel %vm1968, %v1970, %v1966
      %v1972 = vmul.f32 1.0, %v1971
      %v1973 = vrcp.pop %v1627
      %v1974 = vmul.f32 %v1627, %v1973
      %v1975 = vsub.f32 1.0, %v1974
      %v1976 = vmul.f32 %v1973, %v1975
      %v1977 = vadd.f32 %v1973, %v1976
      %vm1978 = vweird.f32 %v1627
      %vm1979 = vweird.f32 %v1973
      %vm1980 = vmor %vm1978, %vm1979
      %v1981 = vsel %vm1980, %v1973, %v1977
      %v1982 = vand.u32 2147483647, %v1627
      %vm1983 = vcmp.eq.f32.partialorder %v1982, 8.507059e+37
      %v1984 = vand.u32 %v1627, 2147483648
      %v1985 = vor.u32 1.1754944e-38, %v1984
      %v1986 = vsel %vm1983, %v1985, %v1981
      %v1987 = vmul.f32 1.0, %v1986
      %v1988 = vrcp.pop %v1628
      %v1989 = vmul.f32 %v1628, %v1988
      %v1990 = vsub.f32 1.0, %v1989
      %v1991 = vmul.f32 %v1988, %v1990
      %v1992 = vadd.f32 %v1988, %v1991
      %vm1993 = vweird.f32 %v1628
      %vm1994 = vweird.f32 %v1988
      %vm1995 = vmor %vm1993, %vm1994
      %v1996 = vsel %vm1995, %v1988, %v1992
      %v1997 = vand.u32 2147483647, %v1628
      %vm1998 = vcmp.eq.f32.partialorder %v1997, 8.507059e+37
      %v1999 = vand.u32 %v1628, 2147483648
      %v2000 = vor.u32 1.1754944e-38, %v1999
      %v2001 = vsel %vm1998, %v2000, %v1996
      %v2002 = vmul.f32 1.0, %v2001
      %v2003 = vrcp.pop %v1629
      %v2004 = vmul.f32 %v1629, %v2003
      %v2005 = vsub.f32 1.0, %v2004
      %v2006 = vmul.f32 %v2003, %v2005
      %v2007 = vadd.f32 %v2003, %v2006
      %vm2008 = vweird.f32 %v1629
      %vm2009 = vweird.f32 %v2003
      %vm2010 = vmor %vm2008, %vm2009
      %v2011 = vsel %vm2010, %v2003, %v2007
      %v2012 = vand.u32 2147483647, %v1629
      %vm2013 = vcmp.eq.f32.partialorder %v2012, 8.507059e+37
      %v2014 = vand.u32 %v1629, 2147483648
      %v2015 = vor.u32 1.1754944e-38, %v2014
      %v2016 = vsel %vm2013, %v2015, %v2011
      %v2017 = vmul.f32 1.0, %v2016
      %v2018 = vrcp.pop %v1630
      %v2019 = vmul.f32 %v1630, %v2018
      %v2020 = vsub.f32 1.0, %v2019
      %v2021 = vmul.f32 %v2018, %v2020
      %v2022 = vadd.f32 %v2018, %v2021
      %vm2023 = vweird.f32 %v1630
      %vm2024 = vweird.f32 %v2018
      %vm2025 = vmor %vm2023, %vm2024
      %v2026 = vsel %vm2025, %v2018, %v2022
      %v2027 = vand.u32 2147483647, %v1630
      %vm2028 = vcmp.eq.f32.partialorder %v2027, 8.507059e+37
      %v2029 = vand.u32 %v1630, 2147483648
      %v2030 = vor.u32 1.1754944e-38, %v2029
      %v2031 = vsel %vm2028, %v2030, %v2026
      %v2032 = vmul.f32 1.0, %v2031
      %v2033 = vrcp.pop %v1631
      %v2034 = vmul.f32 %v1631, %v2033
      %v2035 = vsub.f32 1.0, %v2034
      %v2036 = vmul.f32 %v2033, %v2035
      %v2037 = vadd.f32 %v2033, %v2036
      %vm2038 = vweird.f32 %v1631
      %vm2039 = vweird.f32 %v2033
      %vm2040 = vmor %vm2038, %vm2039
      %v2041 = vsel %vm2040, %v2033, %v2037
      %v2042 = vand.u32 2147483647, %v1631
      %vm2043 = vcmp.eq.f32.partialorder %v2042, 8.507059e+37
      %v2044 = vand.u32 %v1631, 2147483648
      %v2045 = vor.u32 1.1754944e-38, %v2044
      %v2046 = vsel %vm2043, %v2045, %v2041
      %v2047 = vmul.f32 1.0, %v2046
      %v2048 = vrcp.pop %v1632
      %v2049 = vmul.f32 %v1632, %v2048
      %v2050 = vsub.f32 1.0, %v2049
      %v2051 = vmul.f32 %v2048, %v2050
      %v2052 = vadd.f32 %v2048, %v2051
      %vm2053 = vweird.f32 %v1632
      %vm2054 = vweird.f32 %v2048
      %vm2055 = vmor %vm2053, %vm2054
      %v2056 = vsel %vm2055, %v2048, %v2052
      %v2057 = vand.u32 2147483647, %v1632
      %vm2058 = vcmp.eq.f32.partialorder %v2057, 8.507059e+37
      %v2059 = vand.u32 %v1632, 2147483648
      %v2060 = vor.u32 1.1754944e-38, %v2059
      %v2061 = vsel %vm2058, %v2060, %v2056
      %v2062 = vmul.f32 1.0, %v2061
      %v2063 = vrcp.pop %v1633
      %v2064 = vmul.f32 %v1633, %v2063
      %v2065 = vsub.f32 1.0, %v2064
      %v2066 = vmul.f32 %v2063, %v2065
      %v2067 = vadd.f32 %v2063, %v2066
      %vm2068 = vweird.f32 %v1633
      %vm2069 = vweird.f32 %v2063
      %vm2070 = vmor %vm2068, %vm2069
      %v2071 = vsel %vm2070, %v2063, %v2067
      %v2072 = vand.u32 2147483647, %v1633
      %vm2073 = vcmp.eq.f32.partialorder %v2072, 8.507059e+37
      %v2074 = vand.u32 %v1633, 2147483648
      %v2075 = vor.u32 1.1754944e-38, %v2074
      %v2076 = vsel %vm2073, %v2075, %v2071
      %v2077 = vmul.f32 1.0, %v2076
      %v2078 = vrcp.pop %v1634
      %v2079 = vmul.f32 %v1634, %v2078
      %v2080 = vsub.f32 1.0, %v2079
      %v2081 = vmul.f32 %v2078, %v2080
      %v2082 = vadd.f32 %v2078, %v2081
      %vm2083 = vweird.f32 %v1634
      %vm2084 = vweird.f32 %v2078
      %vm2085 = vmor %vm2083, %vm2084
      %v2086 = vsel %vm2085, %v2078, %v2082
      %v2087 = vand.u32 2147483647, %v1634
      %vm2088 = vcmp.eq.f32.partialorder %v2087, 8.507059e+37
      %v2089 = vand.u32 %v1634, 2147483648
      %v2090 = vor.u32 1.1754944e-38, %v2089
      %v2091 = vsel %vm2088, %v2090, %v2086
      %v2092 = vmul.f32 1.0, %v2091
      %v2093 = vrcp.pop %v1635
      %v2094 = vmul.f32 %v1635, %v2093
      %v2095 = vsub.f32 1.0, %v2094
      %v2096 = vmul.f32 %v2093, %v2095
      %v2097 = vadd.f32 %v2093, %v2096
      %vm2098 = vweird.f32 %v1635
      %vm2099 = vweird.f32 %v2093
      %vm2100 = vmor %vm2098, %vm2099
      %v2101 = vsel %vm2100, %v2093, %v2097
      %v2102 = vand.u32 2147483647, %v1635
      %vm2103 = vcmp.eq.f32.partialorder %v2102, 8.507059e+37
      %v2104 = vand.u32 %v1635, 2147483648
      %v2105 = vor.u32 1.1754944e-38, %v2104
      %v2106 = vsel %vm2103, %v2105, %v2101
      %v2107 = vmul.f32 1.0, %v2106
      %v2108 = vrcp.pop %v1636
      %v2109 = vmul.f32 %v1636, %v2108
      %v2110 = vsub.f32 1.0, %v2109
      %v2111 = vmul.f32 %v2108, %v2110
      %v2112 = vadd.f32 %v2108, %v2111
      %vm2113 = vweird.f32 %v1636
      %vm2114 = vweird.f32 %v2108
      %vm2115 = vmor %vm2113, %vm2114
      %v2116 = vsel %vm2115, %v2108, %v2112
      %v2117 = vand.u32 2147483647, %v1636
      %vm2118 = vcmp.eq.f32.partialorder %v2117, 8.507059e+37
      %v2119 = vand.u32 %v1636, 2147483648
      %v2120 = vor.u32 1.1754944e-38, %v2119
      %v2121 = vsel %vm2118, %v2120, %v2116
      %v2122 = vmul.f32 1.0, %v2121
      %v2123 = vrcp.pop %v1637
      %v2124 = vmul.f32 %v1637, %v2123
      %v2125 = vsub.f32 1.0, %v2124
      %v2126 = vmul.f32 %v2123, %v2125
      %v2127 = vadd.f32 %v2123, %v2126
      %vm2128 = vweird.f32 %v1637
      %vm2129 = vweird.f32 %v2123
      %vm2130 = vmor %vm2128, %vm2129
      %v2131 = vsel %vm2130, %v2123, %v2127
      %v2132 = vand.u32 2147483647, %v1637
      %vm2133 = vcmp.eq.f32.partialorder %v2132, 8.507059e+37
      %v2134 = vand.u32 %v1637, 2147483648
      %v2135 = vor.u32 1.1754944e-38, %v2134
      %v2136 = vsel %vm2133, %v2135, %v2131
      %v2137 = vmul.f32 1.0, %v2136
      %v2138 = vrcp.pop %v1638
      %v2139 = vmul.f32 %v1638, %v2138
      %v2140 = vsub.f32 1.0, %v2139
      %v2141 = vmul.f32 %v2138, %v2140
      %v2142 = vadd.f32 %v2138, %v2141
      %vm2143 = vweird.f32 %v1638
      %vm2144 = vweird.f32 %v2138
      %vm2145 = vmor %vm2143, %vm2144
      %v2146 = vsel %vm2145, %v2138, %v2142
      %v2147 = vand.u32 2147483647, %v1638
      %vm2148 = vcmp.eq.f32.partialorder %v2147, 8.507059e+37
      %v2149 = vand.u32 %v1638, 2147483648
      %v2150 = vor.u32 1.1754944e-38, %v2149
      %v2151 = vsel %vm2148, %v2150, %v2146
      %v2152 = vmul.f32 1.0, %v2151
      %v2153 = vrcp.pop %v1639
      %v2154 = vmul.f32 %v1639, %v2153
      %v2155 = vsub.f32 1.0, %v2154
      %v2156 = vmul.f32 %v2153, %v2155
      %v2157 = vadd.f32 %v2153, %v2156
      %vm2158 = vweird.f32 %v1639
      %vm2159 = vweird.f32 %v2153
      %vm2160 = vmor %vm2158, %vm2159
      %v2161 = vsel %vm2160, %v2153, %v2157
      %v2162 = vand.u32 2147483647, %v1639
      %vm2163 = vcmp.eq.f32.partialorder %v2162, 8.507059e+37
      %v2164 = vand.u32 %v1639, 2147483648
      %v2165 = vor.u32 1.1754944e-38, %v2164
      %v2166 = vsel %vm2163, %v2165, %v2161
      %v2167 = vmul.f32 1.0, %v2166
      %v2168 = vrcp.pop %v1640
      %v2169 = vmul.f32 %v1640, %v2168
      %v2170 = vsub.f32 1.0, %v2169
      %v2171 = vmul.f32 %v2168, %v2170
      %v2172 = vadd.f32 %v2168, %v2171
      %vm2173 = vweird.f32 %v1640
      %vm2174 = vweird.f32 %v2168
      %vm2175 = vmor %vm2173, %vm2174
      %v2176 = vsel %vm2175, %v2168, %v2172
      %v2177 = vand.u32 2147483647, %v1640
      %vm2178 = vcmp.eq.f32.partialorder %v2177, 8.507059e+37
      %v2179 = vand.u32 %v1640, 2147483648
      %v2180 = vor.u32 1.1754944e-38, %v2179
      %v2181 = vsel %vm2178, %v2180, %v2176
      %v2182 = vmul.f32 1.0, %v2181
      %v2183 = vrcp.pop %v1641
      %v2184 = vmul.f32 %v1641, %v2183
      %v2185 = vsub.f32 1.0, %v2184
      %v2186 = vmul.f32 %v2183, %v2185
      %v2187 = vadd.f32 %v2183, %v2186
      %vm2188 = vweird.f32 %v1641
      %vm2189 = vweird.f32 %v2183
      %vm2190 = vmor %vm2188, %vm2189
      %v2191 = vsel %vm2190, %v2183, %v2187
      %v2192 = vand.u32 2147483647, %v1641
      %vm2193 = vcmp.eq.f32.partialorder %v2192, 8.507059e+37
      %v2194 = vand.u32 %v1641, 2147483648
      %v2195 = vor.u32 1.1754944e-38, %v2194
      %v2196 = vsel %vm2193, %v2195, %v2191
      %v2197 = vmul.f32 1.0, %v2196
      %v2198 = vrcp.pop %v1642
      %v2199 = vmul.f32 %v1642, %v2198
      %v2200 = vsub.f32 1.0, %v2199
      %v2201 = vmul.f32 %v2198, %v2200
      %v2202 = vadd.f32 %v2198, %v2201
      %vm2203 = vweird.f32 %v1642
      %vm2204 = vweird.f32 %v2198
      %vm2205 = vmor %vm2203, %vm2204
      %v2206 = vsel %vm2205, %v2198, %v2202
      %v2207 = vand.u32 2147483647, %v1642
      %vm2208 = vcmp.eq.f32.partialorder %v2207, 8.507059e+37
      %v2209 = vand.u32 %v1642, 2147483648
      %v2210 = vor.u32 1.1754944e-38, %v2209
      %v2211 = vsel %vm2208, %v2210, %v2206
      %v2212 = vmul.f32 1.0, %v2211
      %v2213 = vrcp.pop %v1643
      %v2214 = vmul.f32 %v1643, %v2213
      %v2215 = vsub.f32 1.0, %v2214
      %v2216 = vmul.f32 %v2213, %v2215
      %v2217 = vadd.f32 %v2213, %v2216
      %vm2218 = vweird.f32 %v1643
      %vm2219 = vweird.f32 %v2213
      %vm2220 = vmor %vm2218, %vm2219
      %v2221 = vsel %vm2220, %v2213, %v2217
      %v2222 = vand.u32 2147483647, %v1643
      %vm2223 = vcmp.eq.f32.partialorder %v2222, 8.507059e+37
      %v2224 = vand.u32 %v1643, 2147483648
      %v2225 = vor.u32 1.1754944e-38, %v2224
      %v2226 = vsel %vm2223, %v2225, %v2221
      %v2227 = vmul.f32 1.0, %v2226
      %v2228 = vrcp.pop %v1644
      %v2229 = vmul.f32 %v1644, %v2228
      %v2230 = vsub.f32 1.0, %v2229
      %v2231 = vmul.f32 %v2228, %v2230
      %v2232 = vadd.f32 %v2228, %v2231
      %vm2233 = vweird.f32 %v1644
      %vm2234 = vweird.f32 %v2228
      %vm2235 = vmor %vm2233, %vm2234
      %v2236 = vsel %vm2235, %v2228, %v2232
      %v2237 = vand.u32 2147483647, %v1644
      %vm2238 = vcmp.eq.f32.partialorder %v2237, 8.507059e+37
      %v2239 = vand.u32 %v1644, 2147483648
      %v2240 = vor.u32 1.1754944e-38, %v2239
      %v2241 = vsel %vm2238, %v2240, %v2236
      %v2242 = vmul.f32 1.0, %v2241
      %v2243 = vrcp.pop %v1645
      %v2244 = vmul.f32 %v1645, %v2243
      %v2245 = vsub.f32 1.0, %v2244
      %v2246 = vmul.f32 %v2243, %v2245
      %v2247 = vadd.f32 %v2243, %v2246
      %vm2248 = vweird.f32 %v1645
      %vm2249 = vweird.f32 %v2243
      %vm2250 = vmor %vm2248, %vm2249
      %v2251 = vsel %vm2250, %v2243, %v2247
      %v2252 = vand.u32 2147483647, %v1645
      %vm2253 = vcmp.eq.f32.partialorder %v2252, 8.507059e+37
      %v2254 = vand.u32 %v1645, 2147483648
      %v2255 = vor.u32 1.1754944e-38, %v2254
      %v2256 = vsel %vm2253, %v2255, %v2251
      %v2257 = vmul.f32 1.0, %v2256
      %v2258 = vrcp.pop %v1646
      %v2259 = vmul.f32 %v1646, %v2258
      %v2260 = vsub.f32 1.0, %v2259
      %v2261 = vmul.f32 %v2258, %v2260
      %v2262 = vadd.f32 %v2258, %v2261
      %vm2263 = vweird.f32 %v1646
      %vm2264 = vweird.f32 %v2258
      %vm2265 = vmor %vm2263, %vm2264
      %v2266 = vsel %vm2265, %v2258, %v2262
      %v2267 = vand.u32 2147483647, %v1646
      %vm2268 = vcmp.eq.f32.partialorder %v2267, 8.507059e+37
      %v2269 = vand.u32 %v1646, 2147483648
      %v2270 = vor.u32 1.1754944e-38, %v2269
      %v2271 = vsel %vm2268, %v2270, %v2266
      %v2272 = vmul.f32 1.0, %v2271
      %v2273 = vrcp.pop %v1647
      %v2274 = vmul.f32 %v1647, %v2273
      %v2275 = vsub.f32 1.0, %v2274
      %v2276 = vmul.f32 %v2273, %v2275
      %v2277 = vadd.f32 %v2273, %v2276
      %vm2278 = vweird.f32 %v1647
      %vm2279 = vweird.f32 %v2273
      %vm2280 = vmor %vm2278, %vm2279
      %v2281 = vsel %vm2280, %v2273, %v2277
      %v2282 = vand.u32 2147483647, %v1647
      %vm2283 = vcmp.eq.f32.partialorder %v2282, 8.507059e+37
      %v2284 = vand.u32 %v1647, 2147483648
      %v2285 = vor.u32 1.1754944e-38, %v2284
      %v2286 = vsel %vm2283, %v2285, %v2281
      %v2287 = vmul.f32 1.0, %v2286
      %v2288 = vrcp.pop %v1648
      %v2289 = vmul.f32 %v1648, %v2288
      %v2290 = vsub.f32 1.0, %v2289
      %v2291 = vmul.f32 %v2288, %v2290
      %v2292 = vadd.f32 %v2288, %v2291
      %vm2293 = vweird.f32 %v1648
      %vm2294 = vweird.f32 %v2288
      %vm2295 = vmor %vm2293, %vm2294
      %v2296 = vsel %vm2295, %v2288, %v2292
      %v2297 = vand.u32 2147483647, %v1648
      %vm2298 = vcmp.eq.f32.partialorder %v2297, 8.507059e+37
      %v2299 = vand.u32 %v1648, 2147483648
      %v2300 = vor.u32 1.1754944e-38, %v2299
      %v2301 = vsel %vm2298, %v2300, %v2296
      %v2302 = vmul.f32 1.0, %v2301
      %v2303 = vrcp.pop %v1649
      %v2304 = vmul.f32 %v1649, %v2303
      %v2305 = vsub.f32 1.0, %v2304
      %v2306 = vmul.f32 %v2303, %v2305
      %v2307 = vadd.f32 %v2303, %v2306
      %vm2308 = vweird.f32 %v1649
      %vm2309 = vweird.f32 %v2303
      %vm2310 = vmor %vm2308, %vm2309
      %v2311 = vsel %vm2310, %v2303, %v2307
      %v2312 = vand.u32 2147483647, %v1649
      %vm2313 = vcmp.eq.f32.partialorder %v2312, 8.507059e+37
      %v2314 = vand.u32 %v1649, 2147483648
      %v2315 = vor.u32 1.1754944e-38, %v2314
      %v2316 = vsel %vm2313, %v2315, %v2311
      %v2317 = vmul.f32 1.0, %v2316
      %v2318 = vrcp.pop %v1650
      %v2319 = vmul.f32 %v1650, %v2318
      %v2320 = vsub.f32 1.0, %v2319
      %v2321 = vmul.f32 %v2318, %v2320
      %v2322 = vadd.f32 %v2318, %v2321
      %vm2323 = vweird.f32 %v1650
      %vm2324 = vweird.f32 %v2318
      %vm2325 = vmor %vm2323, %vm2324
      %v2326 = vsel %vm2325, %v2318, %v2322
      %v2327 = vand.u32 2147483647, %v1650
      %vm2328 = vcmp.eq.f32.partialorder %v2327, 8.507059e+37
      %v2329 = vand.u32 %v1650, 2147483648
      %v2330 = vor.u32 1.1754944e-38, %v2329
      %v2331 = vsel %vm2328, %v2330, %v2326
      %v2332 = vmul.f32 1.0, %v2331
      %v2333 = vrcp.pop %v1651
      %v2334 = vmul.f32 %v1651, %v2333
      %v2335 = vsub.f32 1.0, %v2334
      %v2336 = vmul.f32 %v2333, %v2335
      %v2337 = vadd.f32 %v2333, %v2336
      %vm2338 = vweird.f32 %v1651
      %vm2339 = vweird.f32 %v2333
      %vm2340 = vmor %vm2338, %vm2339
      %v2341 = vsel %vm2340, %v2333, %v2337
      %v2342 = vand.u32 2147483647, %v1651
      %vm2343 = vcmp.eq.f32.partialorder %v2342, 8.507059e+37
      %v2344 = vand.u32 %v1651, 2147483648
      %v2345 = vor.u32 1.1754944e-38, %v2344
      %v2346 = vsel %vm2343, %v2345, %v2341
      %v2347 = vmul.f32 1.0, %v2346
      %v2348 = vrcp.pop %v1652
      %v2349 = vmul.f32 %v1652, %v2348
      %v2350 = vsub.f32 1.0, %v2349
      %v2351 = vmul.f32 %v2348, %v2350
      %v2352 = vadd.f32 %v2348, %v2351
      %vm2353 = vweird.f32 %v1652
      %vm2354 = vweird.f32 %v2348
      %vm2355 = vmor %vm2353, %vm2354
      %v2356 = vsel %vm2355, %v2348, %v2352
      %v2357 = vand.u32 2147483647, %v1652
      %vm2358 = vcmp.eq.f32.partialorder %v2357, 8.507059e+37
      %v2359 = vand.u32 %v1652, 2147483648
      %v2360 = vor.u32 1.1754944e-38, %v2359
      %v2361 = vsel %vm2358, %v2360, %v2356
      %v2362 = vmul.f32 1.0, %v2361
      %v2363 = vrcp.pop %v1653
      %v2364 = vmul.f32 %v1653, %v2363
      %v2365 = vsub.f32 1.0, %v2364
      %v2366 = vmul.f32 %v2363, %v2365
      %v2367 = vadd.f32 %v2363, %v2366
      %vm2368 = vweird.f32 %v1653
      %vm2369 = vweird.f32 %v2363
      %vm2370 = vmor %vm2368, %vm2369
      %v2371 = vsel %vm2370, %v2363, %v2367
      %v2372 = vand.u32 2147483647, %v1653
      %vm2373 = vcmp.eq.f32.partialorder %v2372, 8.507059e+37
      %v2374 = vand.u32 %v1653, 2147483648
      %v2375 = vor.u32 1.1754944e-38, %v2374
      %v2376 = vsel %vm2373, %v2375, %v2371
      %v2377 = vmul.f32 1.0, %v2376
      %v2378 = vrcp.pop %v1654
      %v2379 = vmul.f32 %v1654, %v2378
      %v2380 = vsub.f32 1.0, %v2379
      %v2381 = vmul.f32 %v2378, %v2380
      %v2382 = vadd.f32 %v2378, %v2381
      %vm2383 = vweird.f32 %v1654
      %vm2384 = vweird.f32 %v2378
      %vm2385 = vmor %vm2383, %vm2384
      %v2386 = vsel %vm2385, %v2378, %v2382
      %v2387 = vand.u32 2147483647, %v1654
      %vm2388 = vcmp.eq.f32.partialorder %v2387, 8.507059e+37
      %v2389 = vand.u32 %v1654, 2147483648
      %v2390 = vor.u32 1.1754944e-38, %v2389
      %v2391 = vsel %vm2388, %v2390, %v2386
      %v2392 = vmul.f32 1.0, %v2391
      %v2393 = vrcp.pop %v1655
      %v2394 = vmul.f32 %v1655, %v2393
      %v2395 = vsub.f32 1.0, %v2394
      %v2396 = vmul.f32 %v2393, %v2395
      %v2397 = vadd.f32 %v2393, %v2396
      %vm2398 = vweird.f32 %v1655
      %vm2399 = vweird.f32 %v2393
      %vm2400 = vmor %vm2398, %vm2399
      %v2401 = vsel %vm2400, %v2393, %v2397
      %v2402 = vand.u32 2147483647, %v1655
      %vm2403 = vcmp.eq.f32.partialorder %v2402, 8.507059e+37
      %v2404 = vand.u32 %v1655, 2147483648
      %v2405 = vor.u32 1.1754944e-38, %v2404
      %v2406 = vsel %vm2403, %v2405, %v2401
      %v2407 = vmul.f32 1.0, %v2406
      %v2408 = vrcp.pop %v1656
      %v2409 = vmul.f32 %v1656, %v2408
      %v2410 = vsub.f32 1.0, %v2409
      %v2411 = vmul.f32 %v2408, %v2410
      %v2412 = vadd.f32 %v2408, %v2411
      %vm2413 = vweird.f32 %v1656
      %vm2414 = vweird.f32 %v2408
      %vm2415 = vmor %vm2413, %vm2414
      %v2416 = vsel %vm2415, %v2408, %v2412
      %v2417 = vand.u32 2147483647, %v1656
      %vm2418 = vcmp.eq.f32.partialorder %v2417, 8.507059e+37
      %v2419 = vand.u32 %v1656, 2147483648
      %v2420 = vor.u32 1.1754944e-38, %v2419
      %v2421 = vsel %vm2418, %v2420, %v2416
      %v2422 = vmul.f32 1.0, %v2421
      %v2423 = vrcp.pop %v1657
      %v2424 = vmul.f32 %v1657, %v2423
      %v2425 = vsub.f32 1.0, %v2424
      %v2426 = vmul.f32 %v2423, %v2425
      %v2427 = vadd.f32 %v2423, %v2426
      %vm2428 = vweird.f32 %v1657
      %vm2429 = vweird.f32 %v2423
      %vm2430 = vmor %vm2428, %vm2429
      %v2431 = vsel %vm2430, %v2423, %v2427
      %v2432 = vand.u32 2147483647, %v1657
      %vm2433 = vcmp.eq.f32.partialorder %v2432, 8.507059e+37
      %v2434 = vand.u32 %v1657, 2147483648
      %v2435 = vor.u32 1.1754944e-38, %v2434
      %v2436 = vsel %vm2433, %v2435, %v2431
      %v2437 = vmul.f32 1.0, %v2436
      %v2438 = vrcp.pop %v1658
      %v2439 = vmul.f32 %v1658, %v2438
      %v2440 = vsub.f32 1.0, %v2439
      %v2441 = vmul.f32 %v2438, %v2440
      %v2442 = vadd.f32 %v2438, %v2441
      %vm2443 = vweird.f32 %v1658
      %vm2444 = vweird.f32 %v2438
      %vm2445 = vmor %vm2443, %vm2444
      %v2446 = vsel %vm2445, %v2438, %v2442
      %v2447 = vand.u32 2147483647, %v1658
      %vm2448 = vcmp.eq.f32.partialorder %v2447, 8.507059e+37
      %v2449 = vand.u32 %v1658, 2147483648
      %v2450 = vor.u32 1.1754944e-38, %v2449
      %v2451 = vsel %vm2448, %v2450, %v2446
      %v2452 = vmul.f32 1.0, %v2451
      %v2453 = vrcp.pop %v1659
      %v2454 = vmul.f32 %v1659, %v2453
      %v2455 = vsub.f32 1.0, %v2454
      %v2456 = vmul.f32 %v2453, %v2455
      %v2457 = vadd.f32 %v2453, %v2456
      %vm2458 = vweird.f32 %v1659
      %vm2459 = vweird.f32 %v2453
      %vm2460 = vmor %vm2458, %vm2459
      %v2461 = vsel %vm2460, %v2453, %v2457
      %v2462 = vand.u32 2147483647, %v1659
      %vm2463 = vcmp.eq.f32.partialorder %v2462, 8.507059e+37
      %v2464 = vand.u32 %v1659, 2147483648
      %v2465 = vor.u32 1.1754944e-38, %v2464
      %v2466 = vsel %vm2463, %v2465, %v2461
      %v2467 = vmul.f32 1.0, %v2466
      %v2468 = vrcp.pop %v1660
      %v2469 = vmul.f32 %v1660, %v2468
      %v2470 = vsub.f32 1.0, %v2469
      %v2471 = vmul.f32 %v2468, %v2470
      %v2472 = vadd.f32 %v2468, %v2471
      %vm2473 = vweird.f32 %v1660
      %vm2474 = vweird.f32 %v2468
      %vm2475 = vmor %vm2473, %vm2474
      %v2476 = vsel %vm2475, %v2468, %v2472
      %v2477 = vand.u32 2147483647, %v1660
      %vm2478 = vcmp.eq.f32.partialorder %v2477, 8.507059e+37
      %v2479 = vand.u32 %v1660, 2147483648
      %v2480 = vor.u32 1.1754944e-38, %v2479
      %v2481 = vsel %vm2478, %v2480, %v2476
      %v2482 = vmul.f32 1.0, %v2481
      %v2483 = vrcp.pop %v1661
      %v2484 = vmul.f32 %v1661, %v2483
      %v2485 = vsub.f32 1.0, %v2484
      %v2486 = vmul.f32 %v2483, %v2485
      %v2487 = vadd.f32 %v2483, %v2486
      %vm2488 = vweird.f32 %v1661
      %vm2489 = vweird.f32 %v2483
      %vm2490 = vmor %vm2488, %vm2489
      %v2491 = vsel %vm2490, %v2483, %v2487
      %v2492 = vand.u32 2147483647, %v1661
      %vm2493 = vcmp.eq.f32.partialorder %v2492, 8.507059e+37
      %v2494 = vand.u32 %v1661, 2147483648
      %v2495 = vor.u32 1.1754944e-38, %v2494
      %v2496 = vsel %vm2493, %v2495, %v2491
      %v2497 = vmul.f32 1.0, %v2496
      %v2498 = vrcp.pop %v1662
      %v2499 = vmul.f32 %v1662, %v2498
      %v2500 = vsub.f32 1.0, %v2499
      %v2501 = vmul.f32 %v2498, %v2500
      %v2502 = vadd.f32 %v2498, %v2501
      %vm2503 = vweird.f32 %v1662
      %vm2504 = vweird.f32 %v2498
      %vm2505 = vmor %vm2503, %vm2504
      %v2506 = vsel %vm2505, %v2498, %v2502
      %v2507 = vand.u32 2147483647, %v1662
      %vm2508 = vcmp.eq.f32.partialorder %v2507, 8.507059e+37
      %v2509 = vand.u32 %v1662, 2147483648
      %v2510 = vor.u32 1.1754944e-38, %v2509
      %v2511 = vsel %vm2508, %v2510, %v2506
      %v2512 = vmul.f32 1.0, %v2511
      %v2513 = vrcp.pop %v1663
      %v2514 = vmul.f32 %v1663, %v2513
      %v2515 = vsub.f32 1.0, %v2514
      %v2516 = vmul.f32 %v2513, %v2515
      %v2517 = vadd.f32 %v2513, %v2516
      %vm2518 = vweird.f32 %v1663
      %vm2519 = vweird.f32 %v2513
      %vm2520 = vmor %vm2518, %vm2519
      %v2521 = vsel %vm2520, %v2513, %v2517
      %v2522 = vand.u32 2147483647, %v1663
      %vm2523 = vcmp.eq.f32.partialorder %v2522, 8.507059e+37
      %v2524 = vand.u32 %v1663, 2147483648
      %v2525 = vor.u32 1.1754944e-38, %v2524
      %v2526 = vsel %vm2523, %v2525, %v2521
      %v2527 = vmul.f32 1.0, %v2526
      %v2528 = vrcp.pop %v1664
      %v2529 = vmul.f32 %v1664, %v2528
      %v2530 = vsub.f32 1.0, %v2529
      %v2531 = vmul.f32 %v2528, %v2530
      %v2532 = vadd.f32 %v2528, %v2531
      %vm2533 = vweird.f32 %v1664
      %vm2534 = vweird.f32 %v2528
      %vm2535 = vmor %vm2533, %vm2534
      %v2536 = vsel %vm2535, %v2528, %v2532
      %v2537 = vand.u32 2147483647, %v1664
      %vm2538 = vcmp.eq.f32.partialorder %v2537, 8.507059e+37
      %v2539 = vand.u32 %v1664, 2147483648
      %v2540 = vor.u32 1.1754944e-38, %v2539
      %v2541 = vsel %vm2538, %v2540, %v2536
      %v2542 = vmul.f32 1.0, %v2541
      %v2543 = vrcp.pop %v1665
      %v2544 = vmul.f32 %v1665, %v2543
      %v2545 = vsub.f32 1.0, %v2544
      %v2546 = vmul.f32 %v2543, %v2545
      %v2547 = vadd.f32 %v2543, %v2546
      %vm2548 = vweird.f32 %v1665
      %vm2549 = vweird.f32 %v2543
      %vm2550 = vmor %vm2548, %vm2549
      %v2551 = vsel %vm2550, %v2543, %v2547
      %v2552 = vand.u32 2147483647, %v1665
      %vm2553 = vcmp.eq.f32.partialorder %v2552, 8.507059e+37
      %v2554 = vand.u32 %v1665, 2147483648
      %v2555 = vor.u32 1.1754944e-38, %v2554
      %v2556 = vsel %vm2553, %v2555, %v2551
      %v2557 = vmul.f32 1.0, %v2556
      %v2558 = vrcp.pop %v1666
      %v2559 = vmul.f32 %v1666, %v2558
      %v2560 = vsub.f32 1.0, %v2559
      %v2561 = vmul.f32 %v2558, %v2560
      %v2562 = vadd.f32 %v2558, %v2561
      %vm2563 = vweird.f32 %v1666
      %vm2564 = vweird.f32 %v2558
      %vm2565 = vmor %vm2563, %vm2564
      %v2566 = vsel %vm2565, %v2558, %v2562
      %v2567 = vand.u32 2147483647, %v1666
      %vm2568 = vcmp.eq.f32.partialorder %v2567, 8.507059e+37
      %v2569 = vand.u32 %v1666, 2147483648
      %v2570 = vor.u32 1.1754944e-38, %v2569
      %v2571 = vsel %vm2568, %v2570, %v2566
      %v2572 = vmul.f32 1.0, %v2571
      %v2573 = vrcp.pop %v1667
      %v2574 = vmul.f32 %v1667, %v2573
      %v2575 = vsub.f32 1.0, %v2574
      %v2576 = vmul.f32 %v2573, %v2575
      %v2577 = vadd.f32 %v2573, %v2576
      %vm2578 = vweird.f32 %v1667
      %vm2579 = vweird.f32 %v2573
      %vm2580 = vmor %vm2578, %vm2579
      %v2581 = vsel %vm2580, %v2573, %v2577
      %v2582 = vand.u32 2147483647, %v1667
      %vm2583 = vcmp.eq.f32.partialorder %v2582, 8.507059e+37
      %v2584 = vand.u32 %v1667, 2147483648
      %v2585 = vor.u32 1.1754944e-38, %v2584
      %v2586 = vsel %vm2583, %v2585, %v2581
      %v2587 = vmul.f32 1.0, %v2586
      %v2588 = vrcp.pop %v1668
      %v2589 = vmul.f32 %v1668, %v2588
      %v2590 = vsub.f32 1.0, %v2589
      %v2591 = vmul.f32 %v2588, %v2590
      %v2592 = vadd.f32 %v2588, %v2591
      %vm2593 = vweird.f32 %v1668
      %vm2594 = vweird.f32 %v2588
      %vm2595 = vmor %vm2593, %vm2594
      %v2596 = vsel %vm2595, %v2588, %v2592
      %v2597 = vand.u32 2147483647, %v1668
      %vm2598 = vcmp.eq.f32.partialorder %v2597, 8.507059e+37
      %v2599 = vand.u32 %v1668, 2147483648
      %v2600 = vor.u32 1.1754944e-38, %v2599
      %v2601 = vsel %vm2598, %v2600, %v2596
      %v2602 = vmul.f32 1.0, %v2601
      %v2603 = vrcp.pop %v1669
      %v2604 = vmul.f32 %v1669, %v2603
      %v2605 = vsub.f32 1.0, %v2604
      %v2606 = vmul.f32 %v2603, %v2605
      %v2607 = vadd.f32 %v2603, %v2606
      %vm2608 = vweird.f32 %v1669
      %vm2609 = vweird.f32 %v2603
      %vm2610 = vmor %vm2608, %vm2609
      %v2611 = vsel %vm2610, %v2603, %v2607
      %v2612 = vand.u32 2147483647, %v1669
      %vm2613 = vcmp.eq.f32.partialorder %v2612, 8.507059e+37
      %v2614 = vand.u32 %v1669, 2147483648
      %v2615 = vor.u32 1.1754944e-38, %v2614
      %v2616 = vsel %vm2613, %v2615, %v2611
      %v2617 = vmul.f32 1.0, %v2616
      %v2618 = vrcp.pop %v1670
      %v2619 = vmul.f32 %v1670, %v2618
      %v2620 = vsub.f32 1.0, %v2619
      %v2621 = vmul.f32 %v2618, %v2620
      %v2622 = vadd.f32 %v2618, %v2621
      %vm2623 = vweird.f32 %v1670
      %vm2624 = vweird.f32 %v2618
      %vm2625 = vmor %vm2623, %vm2624
      %v2626 = vsel %vm2625, %v2618, %v2622
      %v2627 = vand.u32 2147483647, %v1670
      %vm2628 = vcmp.eq.f32.partialorder %v2627, 8.507059e+37
      %v2629 = vand.u32 %v1670, 2147483648
      %v2630 = vor.u32 1.1754944e-38, %v2629
      %v2631 = vsel %vm2628, %v2630, %v2626
      %v2632 = vmul.f32 1.0, %v2631
      %v2633 = vrcp.pop %v1671
      %v2634 = vmul.f32 %v1671, %v2633
      %v2635 = vsub.f32 1.0, %v2634
      %v2636 = vmul.f32 %v2633, %v2635
      %v2637 = vadd.f32 %v2633, %v2636
      %vm2638 = vweird.f32 %v1671
      %vm2639 = vweird.f32 %v2633
      %vm2640 = vmor %vm2638, %vm2639
      %v2641 = vsel %vm2640, %v2633, %v2637
      %v2642 = vand.u32 2147483647, %v1671
      %vm2643 = vcmp.eq.f32.partialorder %v2642, 8.507059e+37
      %v2644 = vand.u32 %v1671, 2147483648
      %v2645 = vor.u32 1.1754944e-38, %v2644
      %v2646 = vsel %vm2643, %v2645, %v2641
      %v2647 = vmul.f32 1.0, %v2646
      %v2648 = vrcp.pop %v1672
      %v2649 = vmul.f32 %v1672, %v2648
      %v2650 = vsub.f32 1.0, %v2649
      %v2651 = vmul.f32 %v2648, %v2650
      %v2652 = vadd.f32 %v2648, %v2651
      %vm2653 = vweird.f32 %v1672
      %vm2654 = vweird.f32 %v2648
      %vm2655 = vmor %vm2653, %vm2654
      %v2656 = vsel %vm2655, %v2648, %v2652
      %v2657 = vand.u32 2147483647, %v1672
      %vm2658 = vcmp.eq.f32.partialorder %v2657, 8.507059e+37
      %v2659 = vand.u32 %v1672, 2147483648
      %v2660 = vor.u32 1.1754944e-38, %v2659
      %v2661 = vsel %vm2658, %v2660, %v2656
      %v2662 = vmul.f32 1.0, %v2661
      %v2663 = vrcp.pop %v1673
      %v2664 = vmul.f32 %v1673, %v2663
      %v2665 = vsub.f32 1.0, %v2664
      %v2666 = vmul.f32 %v2663, %v2665
      %v2667 = vadd.f32 %v2663, %v2666
      %vm2668 = vweird.f32 %v1673
      %vm2669 = vweird.f32 %v2663
      %vm2670 = vmor %vm2668, %vm2669
      %v2671 = vsel %vm2670, %v2663, %v2667
      %v2672 = vand.u32 2147483647, %v1673
      %vm2673 = vcmp.eq.f32.partialorder %v2672, 8.507059e+37
      %v2674 = vand.u32 %v1673, 2147483648
      %v2675 = vor.u32 1.1754944e-38, %v2674
      %v2676 = vsel %vm2673, %v2675, %v2671
      %v2677 = vmul.f32 1.0, %v2676
      %v2678 = vrcp.pop %v1674
      %v2679 = vmul.f32 %v1674, %v2678
      %v2680 = vsub.f32 1.0, %v2679
      %v2681 = vmul.f32 %v2678, %v2680
      %v2682 = vadd.f32 %v2678, %v2681
      %vm2683 = vweird.f32 %v1674
      %vm2684 = vweird.f32 %v2678
      %vm2685 = vmor %vm2683, %vm2684
      %v2686 = vsel %vm2685, %v2678, %v2682
      %v2687 = vand.u32 2147483647, %v1674
      %vm2688 = vcmp.eq.f32.partialorder %v2687, 8.507059e+37
      %v2689 = vand.u32 %v1674, 2147483648
      %v2690 = vor.u32 1.1754944e-38, %v2689
      %v2691 = vsel %vm2688, %v2690, %v2686
      %v2692 = vmul.f32 1.0, %v2691
      %v2693 = vrcp.pop %v1675
      %v2694 = vmul.f32 %v1675, %v2693
      %v2695 = vsub.f32 1.0, %v2694
      %v2696 = vmul.f32 %v2693, %v2695
      %v2697 = vadd.f32 %v2693, %v2696
      %vm2698 = vweird.f32 %v1675
      %vm2699 = vweird.f32 %v2693
      %vm2700 = vmor %vm2698, %vm2699
      %v2701 = vsel %vm2700, %v2693, %v2697
      %v2702 = vand.u32 2147483647, %v1675
      %vm2703 = vcmp.eq.f32.partialorder %v2702, 8.507059e+37
      %v2704 = vand.u32 %v1675, 2147483648
      %v2705 = vor.u32 1.1754944e-38, %v2704
      %v2706 = vsel %vm2703, %v2705, %v2701
      %v2707 = vmul.f32 1.0, %v2706
      %v2708 = vrcp.pop %v1676
      %v2709 = vmul.f32 %v1676, %v2708
      %v2710 = vsub.f32 1.0, %v2709
      %v2711 = vmul.f32 %v2708, %v2710
      %v2712 = vadd.f32 %v2708, %v2711
      %vm2713 = vweird.f32 %v1676
      %vm2714 = vweird.f32 %v2708
      %vm2715 = vmor %vm2713, %vm2714
      %v2716 = vsel %vm2715, %v2708, %v2712
      %v2717 = vand.u32 2147483647, %v1676
      %vm2718 = vcmp.eq.f32.partialorder %v2717, 8.507059e+37
      %v2719 = vand.u32 %v1676, 2147483648
      %v2720 = vor.u32 1.1754944e-38, %v2719
      %v2721 = vsel %vm2718, %v2720, %v2716
      %v2722 = vmul.f32 1.0, %v2721
      %v2723 = vrcp.pop %v1677
      %v2724 = vmul.f32 %v1677, %v2723
      %v2725 = vsub.f32 1.0, %v2724
      %v2726 = vmul.f32 %v2723, %v2725
      %v2727 = vadd.f32 %v2723, %v2726
      %vm2728 = vweird.f32 %v1677
      %vm2729 = vweird.f32 %v2723
      %vm2730 = vmor %vm2728, %vm2729
      %v2731 = vsel %vm2730, %v2723, %v2727
      %v2732 = vand.u32 2147483647, %v1677
      %vm2733 = vcmp.eq.f32.partialorder %v2732, 8.507059e+37
      %v2734 = vand.u32 %v1677, 2147483648
      %v2735 = vor.u32 1.1754944e-38, %v2734
      %v2736 = vsel %vm2733, %v2735, %v2731
      %v2737 = vmul.f32 1.0, %v2736
      %v2738 = vrcp.pop %v1678
      %v2739 = vmul.f32 %v1678, %v2738
      %v2740 = vsub.f32 1.0, %v2739
      %v2741 = vmul.f32 %v2738, %v2740
      %v2742 = vadd.f32 %v2738, %v2741
      %vm2743 = vweird.f32 %v1678
      %vm2744 = vweird.f32 %v2738
      %vm2745 = vmor %vm2743, %vm2744
      %v2746 = vsel %vm2745, %v2738, %v2742
      %v2747 = vand.u32 2147483647, %v1678
      %vm2748 = vcmp.eq.f32.partialorder %v2747, 8.507059e+37
      %v2749 = vand.u32 %v1678, 2147483648
      %v2750 = vor.u32 1.1754944e-38, %v2749
      %v2751 = vsel %vm2748, %v2750, %v2746
      %v2752 = vmul.f32 1.0, %v2751
      %v2753 = vrcp.pop %v1679
      %v2754 = vmul.f32 %v1679, %v2753
      %v2755 = vsub.f32 1.0, %v2754
      %v2756 = vmul.f32 %v2753, %v2755
      %v2757 = vadd.f32 %v2753, %v2756
      %vm2758 = vweird.f32 %v1679
      %vm2759 = vweird.f32 %v2753
      %vm2760 = vmor %vm2758, %vm2759
      %v2761 = vsel %vm2760, %v2753, %v2757
      %v2762 = vand.u32 2147483647, %v1679
      %vm2763 = vcmp.eq.f32.partialorder %v2762, 8.507059e+37
      %v2764 = vand.u32 %v1679, 2147483648
      %v2765 = vor.u32 1.1754944e-38, %v2764
      %v2766 = vsel %vm2763, %v2765, %v2761
      %v2767 = vmul.f32 1.0, %v2766
      %v2768 = vrcp.pop %v1680
      %v2769 = vmul.f32 %v1680, %v2768
      %v2770 = vsub.f32 1.0, %v2769
      %v2771 = vmul.f32 %v2768, %v2770
      %v2772 = vadd.f32 %v2768, %v2771
      %vm2773 = vweird.f32 %v1680
      %vm2774 = vweird.f32 %v2768
      %vm2775 = vmor %vm2773, %vm2774
      %v2776 = vsel %vm2775, %v2768, %v2772
      %v2777 = vand.u32 2147483647, %v1680
      %vm2778 = vcmp.eq.f32.partialorder %v2777, 8.507059e+37
      %v2779 = vand.u32 %v1680, 2147483648
      %v2780 = vor.u32 1.1754944e-38, %v2779
      %v2781 = vsel %vm2778, %v2780, %v2776
      %v2782 = vmul.f32 1.0, %v2781
      %v2783 = vrcp.pop %v1681
      %v2784 = vmul.f32 %v1681, %v2783
      %v2785 = vsub.f32 1.0, %v2784
      %v2786 = vmul.f32 %v2783, %v2785
      %v2787 = vadd.f32 %v2783, %v2786
      %vm2788 = vweird.f32 %v1681
      %vm2789 = vweird.f32 %v2783
      %vm2790 = vmor %vm2788, %vm2789
      %v2791 = vsel %vm2790, %v2783, %v2787
      %v2792 = vand.u32 2147483647, %v1681
      %vm2793 = vcmp.eq.f32.partialorder %v2792, 8.507059e+37
      %v2794 = vand.u32 %v1681, 2147483648
      %v2795 = vor.u32 1.1754944e-38, %v2794
      %v2796 = vsel %vm2793, %v2795, %v2791
      %v2797 = vmul.f32 1.0, %v2796
      %v2798 = vrcp.pop %v1682
      %v2799 = vmul.f32 %v1682, %v2798
      %v2800 = vsub.f32 1.0, %v2799
      %v2801 = vmul.f32 %v2798, %v2800
      %v2802 = vadd.f32 %v2798, %v2801
      %vm2803 = vweird.f32 %v1682
      %vm2804 = vweird.f32 %v2798
      %vm2805 = vmor %vm2803, %vm2804
      %v2806 = vsel %vm2805, %v2798, %v2802
      %v2807 = vand.u32 2147483647, %v1682
      %vm2808 = vcmp.eq.f32.partialorder %v2807, 8.507059e+37
      %v2809 = vand.u32 %v1682, 2147483648
      %v2810 = vor.u32 1.1754944e-38, %v2809
      %v2811 = vsel %vm2808, %v2810, %v2806
      %v2812 = vmul.f32 1.0, %v2811
      %v2813 = vrcp.pop %v1683
      %v2814 = vmul.f32 %v1683, %v2813
      %v2815 = vsub.f32 1.0, %v2814
      %v2816 = vmul.f32 %v2813, %v2815
      %v2817 = vadd.f32 %v2813, %v2816
      %vm2818 = vweird.f32 %v1683
      %vm2819 = vweird.f32 %v2813
      %vm2820 = vmor %vm2818, %vm2819
      %v2821 = vsel %vm2820, %v2813, %v2817
      %v2822 = vand.u32 2147483647, %v1683
      %vm2823 = vcmp.eq.f32.partialorder %v2822, 8.507059e+37
      %v2824 = vand.u32 %v1683, 2147483648
      %v2825 = vor.u32 1.1754944e-38, %v2824
      %v2826 = vsel %vm2823, %v2825, %v2821
      %v2827 = vmul.f32 1.0, %v2826
      %v2828 = vrcp.pop %v1684
      %v2829 = vmul.f32 %v1684, %v2828
      %v2830 = vsub.f32 1.0, %v2829
      %v2831 = vmul.f32 %v2828, %v2830
      %v2832 = vadd.f32 %v2828, %v2831
      %vm2833 = vweird.f32 %v1684
      %vm2834 = vweird.f32 %v2828
      %vm2835 = vmor %vm2833, %vm2834
      %v2836 = vsel %vm2835, %v2828, %v2832
      %v2837 = vand.u32 2147483647, %v1684
      %vm2838 = vcmp.eq.f32.partialorder %v2837, 8.507059e+37
      %v2839 = vand.u32 %v1684, 2147483648
      %v2840 = vor.u32 1.1754944e-38, %v2839
      %v2841 = vsel %vm2838, %v2840, %v2836
      %v2842 = vmul.f32 1.0, %v2841
      %v2843 = vrcp.pop %v1685
      %v2844 = vmul.f32 %v1685, %v2843
      %v2845 = vsub.f32 1.0, %v2844
      %v2846 = vmul.f32 %v2843, %v2845
      %v2847 = vadd.f32 %v2843, %v2846
      %vm2848 = vweird.f32 %v1685
      %vm2849 = vweird.f32 %v2843
      %vm2850 = vmor %vm2848, %vm2849
      %v2851 = vsel %vm2850, %v2843, %v2847
      %v2852 = vand.u32 2147483647, %v1685
      %vm2853 = vcmp.eq.f32.partialorder %v2852, 8.507059e+37
      %v2854 = vand.u32 %v1685, 2147483648
      %v2855 = vor.u32 1.1754944e-38, %v2854
      %v2856 = vsel %vm2853, %v2855, %v2851
      %v2857 = vmul.f32 1.0, %v2856
      %v2858 = vrcp.pop %v1686
      %v2859 = vmul.f32 %v1686, %v2858
      %v2860 = vsub.f32 1.0, %v2859
      %v2861 = vmul.f32 %v2858, %v2860
      %v2862 = vadd.f32 %v2858, %v2861
      %vm2863 = vweird.f32 %v1686
      %vm2864 = vweird.f32 %v2858
      %vm2865 = vmor %vm2863, %vm2864
      %v2866 = vsel %vm2865, %v2858, %v2862
      %v2867 = vand.u32 2147483647, %v1686
      %vm2868 = vcmp.eq.f32.partialorder %v2867, 8.507059e+37
      %v2869 = vand.u32 %v1686, 2147483648
      %v2870 = vor.u32 1.1754944e-38, %v2869
      %v2871 = vsel %vm2868, %v2870, %v2866
      %v2872 = vmul.f32 1.0, %v2871
      %v2873 = vrcp.pop %v1687
      %v2874 = vmul.f32 %v1687, %v2873
      %v2875 = vsub.f32 1.0, %v2874
      %v2876 = vmul.f32 %v2873, %v2875
      %v2877 = vadd.f32 %v2873, %v2876
      %vm2878 = vweird.f32 %v1687
      %vm2879 = vweird.f32 %v2873
      %vm2880 = vmor %vm2878, %vm2879
      %v2881 = vsel %vm2880, %v2873, %v2877
      %v2882 = vand.u32 2147483647, %v1687
      %vm2883 = vcmp.eq.f32.partialorder %v2882, 8.507059e+37
      %v2884 = vand.u32 %v1687, 2147483648
      %v2885 = vor.u32 1.1754944e-38, %v2884
      %v2886 = vsel %vm2883, %v2885, %v2881
      %v2887 = vmul.f32 1.0, %v2886
      %v2888 = vmul.f32 %v1288, %v1702
      %v2889 = vmul.f32 %v1289, %v1717
      %v2890 = vmul.f32 %v1290, %v1732
      %v2891 = vmul.f32 %v1291, %v1747
      %v2892 = vmul.f32 %v1292, %v1762
      %v2893 = vmul.f32 %v1293, %v1777
      %v2894 = vmul.f32 %v1294, %v1792
      %v2895 = vmul.f32 %v1295, %v1807
      %v2896 = vmul.f32 %v1296, %v1822
      %v2897 = vmul.f32 %v1297, %v1837
      %v2898 = vmul.f32 %v1298, %v1852
      %v2899 = vmul.f32 %v1299, %v1867
      %v2900 = vmul.f32 %v1300, %v1882
      %v2901 = vmul.f32 %v1301, %v1897
      %v2902 = vmul.f32 %v1302, %v1912
      %v2903 = vmul.f32 %v1303, %v1927
      %v2904 = vmul.f32 %v1304, %v1942
      %v2905 = vmul.f32 %v1305, %v1957
      %v2906 = vmul.f32 %v1306, %v1972
      %v2907 = vmul.f32 %v1307, %v1987
      %v2908 = vmul.f32 %v1308, %v2002
      %v2909 = vmul.f32 %v1309, %v2017
      %v2910 = vmul.f32 %v1310, %v2032
      %v2911 = vmul.f32 %v1311, %v2047
      %v2912 = vmul.f32 %v1312, %v2062
      %v2913 = vmul.f32 %v1313, %v2077
      %v2914 = vmul.f32 %v1314, %v2092
      %v2915 = vmul.f32 %v1315, %v2107
      %v2916 = vmul.f32 %v1316, %v2122
      %v2917 = vmul.f32 %v1317, %v2137
      %v2918 = vmul.f32 %v1318, %v2152
      %v2919 = vmul.f32 %v1319, %v2167
      %v2920 = vmul.f32 %v1320, %v2182
      %v2921 = vmul.f32 %v1321, %v2197
      %v2922 = vmul.f32 %v1322, %v2212
      %v2923 = vmul.f32 %v1323, %v2227
      %v2924 = vmul.f32 %v1324, %v2242
      %v2925 = vmul.f32 %v1325, %v2257
      %v2926 = vmul.f32 %v1326, %v2272
      %v2927 = vmul.f32 %v1327, %v2287
      %v2928 = vmul.f32 %v1328, %v2302
      %v2929 = vmul.f32 %v1329, %v2317
      %v2930 = vmul.f32 %v1330, %v2332
      %v2931 = vmul.f32 %v1331, %v2347
      %v2932 = vmul.f32 %v1332, %v2362
      %v2933 = vmul.f32 %v1333, %v2377
      %v2934 = vmul.f32 %v1334, %v2392
      %v2935 = vmul.f32 %v1335, %v2407
      %v2936 = vmul.f32 %v1336, %v2422
      %v2937 = vmul.f32 %v1337, %v2437
      %v2938 = vmul.f32 %v1338, %v2452
      %v2939 = vmul.f32 %v1339, %v2467
      %v2940 = vmul.f32 %v1340, %v2482
      %v2941 = vmul.f32 %v1341, %v2497
      %v2942 = vmul.f32 %v1342, %v2512
      %v2943 = vmul.f32 %v1343, %v2527
      %v2944 = vmul.f32 %v1344, %v2542
      %v2945 = vmul.f32 %v1345, %v2557
      %v2946 = vmul.f32 %v1346, %v2572
      %v2947 = vmul.f32 %v1347, %v2587
      %v2948 = vmul.f32 %v1348, %v2602
      %v2949 = vmul.f32 %v1349, %v2617
      %v2950 = vmul.f32 %v1350, %v2632
      %v2951 = vmul.f32 %v1351, %v2647
      %v2952 = vmul.f32 %v1352, %v2662
      %v2953 = vmul.f32 %v1353, %v2677
      %v2954 = vmul.f32 %v1354, %v2692
      %v2955 = vmul.f32 %v1355, %v2707
      %v2956 = vmul.f32 %v1356, %v2722
      %v2957 = vmul.f32 %v1357, %v2737
      %v2958 = vmul.f32 %v1358, %v2752
      %v2959 = vmul.f32 %v1359, %v2767
      %v2960 = vmul.f32 %v1360, %v2782
      %v2961 = vmul.f32 %v1361, %v2797
      %v2962 = vmul.f32 %v1362, %v2812
      %v2963 = vmul.f32 %v1363, %v2827
      %v2964 = vmul.f32 %v1364, %v2842
      %v2965 = vmul.f32 %v1365, %v2857
      %v2966 = vmul.f32 %v1366, %v2872
      %v2967 = vmul.f32 %v1367, %v2887
      %vm2968 = vcmask 64512
      %2969 = vst.msk [vmem:[#allocation2] sm:$0xff] %vm2968, %v2888
      %2970 = vst.msk [vmem:[#allocation2 + $0x8] sm:$0xff] %vm2968, %v2889
      %2971 = vst.msk [vmem:[#allocation2 + $0x10] sm:$0xff] %vm2968, %v2890
      %2972 = vst.msk [vmem:[#allocation2 + $0x18] sm:$0xff] %vm2968, %v2891
      %2973 = vst.msk [vmem:[#allocation2 + $0x20] sm:$0xff] %vm2968, %v2892
      %2974 = vst.msk [vmem:[#allocation2 + $0x28] sm:$0xff] %vm2968, %v2893
      %2975 = vst.msk [vmem:[#allocation2 + $0x30] sm:$0xff] %vm2968, %v2894
      %2976 = vst.msk [vmem:[#allocation2 + $0x38] sm:$0xff] %vm2968, %v2895
      %2977 = vst.msk [vmem:[#allocation2 + $0x40] sm:$0xff] %vm2968, %v2896
      %2978 = vst.msk [vmem:[#allocation2 + $0x48] sm:$0xff] %vm2968, %v2897
      %2979 = vst.msk [vmem:[#allocation2 + $0x50] sm:$0xff] %vm2968, %v2898
      %2980 = vst.msk [vmem:[#allocation2 + $0x58] sm:$0xff] %vm2968, %v2899
      %2981 = vst.msk [vmem:[#allocation2 + $0x60] sm:$0xff] %vm2968, %v2900
      %2982 = vst.msk [vmem:[#allocation2 + $0x68] sm:$0xff] %vm2968, %v2901
      %2983 = vst.msk [vmem:[#allocation2 + $0x70] sm:$0xff] %vm2968, %v2902
      %2984 = vst.msk [vmem:[#allocation2 + $0x78] sm:$0xff] %vm2968, %v2903
      %2985 = vst.msk [vmem:[#allocation2 + $0x80] sm:$0xff] %vm2968, %v2904
      %2986 = vst.msk [vmem:[#allocation2 + $0x88] sm:$0xff] %vm2968, %v2905
      %2987 = vst.msk [vmem:[#allocation2 + $0x90] sm:$0xff] %vm2968, %v2906
      %2988 = vst.msk [vmem:[#allocation2 + $0x98] sm:$0xff] %vm2968, %v2907
      %2989 = vst.msk [vmem:[#allocation2 + $0xa0] sm:$0xff] %vm2968, %v2908
      %2990 = vst.msk [vmem:[#allocation2 + $0xa8] sm:$0xff] %vm2968, %v2909
      %2991 = vst.msk [vmem:[#allocation2 + $0xb0] sm:$0xff] %vm2968, %v2910
      %2992 = vst.msk [vmem:[#allocation2 + $0xb8] sm:$0xff] %vm2968, %v2911
      %2993 = vst.msk [vmem:[#allocation2 + $0xc0] sm:$0xff] %vm2968, %v2912
      %2994 = vst.msk [vmem:[#allocation2 + $0xc8] sm:$0xff] %vm2968, %v2913
      %2995 = vst.msk [vmem:[#allocation2 + $0xd0] sm:$0xff] %vm2968, %v2914
      %2996 = vst.msk [vmem:[#allocation2 + $0xd8] sm:$0xff] %vm2968, %v2915
      %2997 = vst.msk [vmem:[#allocation2 + $0xe0] sm:$0xff] %vm2968, %v2916
      %2998 = vst.msk [vmem:[#allocation2 + $0xe8] sm:$0xff] %vm2968, %v2917
      %2999 = vst.msk [vmem:[#allocation2 + $0xf0] sm:$0xff] %vm2968, %v2918
      %3000 = vst.msk [vmem:[#allocation2 + $0xf8] sm:$0xff] %vm2968, %v2919
      %3001 = vst.msk [vmem:[#allocation2 + $0x100] sm:$0xff] %vm2968, %v2920
      %3002 = vst.msk [vmem:[#allocation2 + $0x108] sm:$0xff] %vm2968, %v2921
      %3003 = vst.msk [vmem:[#allocation2 + $0x110] sm:$0xff] %vm2968, %v2922
      %3004 = vst.msk [vmem:[#allocation2 + $0x118] sm:$0xff] %vm2968, %v2923
      %3005 = vst.msk [vmem:[#allocation2 + $0x120] sm:$0xff] %vm2968, %v2924
      %3006 = vst.msk [vmem:[#allocation2 + $0x128] sm:$0xff] %vm2968, %v2925
      %3007 = vst.msk [vmem:[#allocation2 + $0x130] sm:$0xff] %vm2968, %v2926
      %3008 = vst.msk [vmem:[#allocation2 + $0x138] sm:$0xff] %vm2968, %v2927
      %3009 = vst.msk [vmem:[#allocation2 + $0x140] sm:$0xff] %vm2968, %v2928
      %3010 = vst.msk [vmem:[#allocation2 + $0x148] sm:$0xff] %vm2968, %v2929
      %3011 = vst.msk [vmem:[#allocation2 + $0x150] sm:$0xff] %vm2968, %v2930
      %3012 = vst.msk [vmem:[#allocation2 + $0x158] sm:$0xff] %vm2968, %v2931
      %3013 = vst.msk [vmem:[#allocation2 + $0x160] sm:$0xff] %vm2968, %v2932
      %3014 = vst.msk [vmem:[#allocation2 + $0x168] sm:$0xff] %vm2968, %v2933
      %3015 = vst.msk [vmem:[#allocation2 + $0x170] sm:$0xff] %vm2968, %v2934
      %3016 = vst.msk [vmem:[#allocation2 + $0x178] sm:$0xff] %vm2968, %v2935
      %3017 = vst.msk [vmem:[#allocation2 + $0x180] sm:$0xff] %vm2968, %v2936
      %3018 = vst.msk [vmem:[#allocation2 + $0x188] sm:$0xff] %vm2968, %v2937
      %3019 = vst.msk [vmem:[#allocation2 + $0x190] sm:$0xff] %vm2968, %v2938
      %3020 = vst.msk [vmem:[#allocation2 + $0x198] sm:$0xff] %vm2968, %v2939
      %3021 = vst.msk [vmem:[#allocation2 + $0x1a0] sm:$0xff] %vm2968, %v2940
      %3022 = vst.msk [vmem:[#allocation2 + $0x1a8] sm:$0xff] %vm2968, %v2941
      %3023 = vst.msk [vmem:[#allocation2 + $0x1b0] sm:$0xff] %vm2968, %v2942
      %3024 = vst.msk [vmem:[#allocation2 + $0x1b8] sm:$0xff] %vm2968, %v2943
      %3025 = vst.msk [vmem:[#allocation2 + $0x1c0] sm:$0xff] %vm2968, %v2944
      %3026 = vst.msk [vmem:[#allocation2 + $0x1c8] sm:$0xff] %vm2968, %v2945
      %3027 = vst.msk [vmem:[#allocation2 + $0x1d0] sm:$0xff] %vm2968, %v2946
      %3028 = vst.msk [vmem:[#allocation2 + $0x1d8] sm:$0xff] %vm2968, %v2947
      %3029 = vst.msk [vmem:[#allocation2 + $0x1e0] sm:$0xff] %vm2968, %v2948
      %3030 = vst.msk [vmem:[#allocation2 + $0x1e8] sm:$0xff] %vm2968, %v2949
      %3031 = vst.msk [vmem:[#allocation2 + $0x1f0] sm:$0xff] %vm2968, %v2950
      %3032 = vst.msk [vmem:[#allocation2 + $0x1f8] sm:$0xff] %vm2968, %v2951
      %3033 = vst.msk [vmem:[#allocation2 + $0x200] sm:$0xff] %vm2968, %v2952
      %3034 = vst.msk [vmem:[#allocation2 + $0x208] sm:$0xff] %vm2968, %v2953
      %3035 = vst.msk [vmem:[#allocation2 + $0x210] sm:$0xff] %vm2968, %v2954
      %3036 = vst.msk [vmem:[#allocation2 + $0x218] sm:$0xff] %vm2968, %v2955
      %3037 = vst.msk [vmem:[#allocation2 + $0x220] sm:$0xff] %vm2968, %v2956
      %3038 = vst.msk [vmem:[#allocation2 + $0x228] sm:$0xff] %vm2968, %v2957
      %3039 = vst.msk [vmem:[#allocation2 + $0x230] sm:$0xff] %vm2968, %v2958
      %3040 = vst.msk [vmem:[#allocation2 + $0x238] sm:$0xff] %vm2968, %v2959
      %3041 = vst.msk [vmem:[#allocation2 + $0x240] sm:$0xff] %vm2968, %v2960
      %3042 = vst.msk [vmem:[#allocation2 + $0x248] sm:$0xff] %vm2968, %v2961
      %3043 = vst.msk [vmem:[#allocation2 + $0x250] sm:$0xff] %vm2968, %v2962
      %3044 = vst.msk [vmem:[#allocation2 + $0x258] sm:$0xff] %vm2968, %v2963
      %3045 = vst.msk [vmem:[#allocation2 + $0x260] sm:$0xff] %vm2968, %v2964
      %3046 = vst.msk [vmem:[#allocation2 + $0x268] sm:$0xff] %vm2968, %v2965
      %3047 = vst.msk [vmem:[#allocation2 + $0x270] sm:$0xff] %vm2968, %v2966
      %3048 = vst.msk [vmem:[#allocation2 + $0x278] sm:$0xff] %vm2968, %v2967
      %v3049 = vld [vmem:[%s403] sm:$0xff]
      %v3050 = vld [vmem:[%s403 + $0x8] sm:$0xff]
      %v3051 = vld [vmem:[%s403 + $0x10] sm:$0xff]
      %v3052 = vld [vmem:[%s403 + $0x18] sm:$0xff]
      %v3053 = vld [vmem:[%s403 + $0x20] sm:$0xff]
      %v3054 = vld [vmem:[%s403 + $0x28] sm:$0xff]
      %v3055 = vld [vmem:[%s403 + $0x30] sm:$0xff]
      %v3056 = vld [vmem:[%s403 + $0x38] sm:$0xff]
      %v3057 = vld [vmem:[%s403 + $0x40] sm:$0xff]
      %v3058 = vld [vmem:[%s403 + $0x48] sm:$0xff]
      %v3059 = vld [vmem:[%s403 + $0x50] sm:$0xff]
      %v3060 = vld [vmem:[%s403 + $0x58] sm:$0xff]
      %v3061 = vld [vmem:[%s403 + $0x60] sm:$0xff]
      %v3062 = vld [vmem:[%s403 + $0x68] sm:$0xff]
      %v3063 = vld [vmem:[%s403 + $0x70] sm:$0xff]
      %v3064 = vld [vmem:[%s403 + $0x78] sm:$0xff]
      %v3065 = vld [vmem:[%s403 + $0x80] sm:$0xff]
      %v3066 = vld [vmem:[%s403 + $0x88] sm:$0xff]
      %v3067 = vld [vmem:[%s403 + $0x90] sm:$0xff]
      %v3068 = vld [vmem:[%s403 + $0x98] sm:$0xff]
      %v3069 = vld [vmem:[%s403 + $0xa0] sm:$0xff]
      %v3070 = vld [vmem:[%s403 + $0xa8] sm:$0xff]
      %v3071 = vld [vmem:[%s403 + $0xb0] sm:$0xff]
      %v3072 = vld [vmem:[%s403 + $0xb8] sm:$0xff]
      %v3073 = vld [vmem:[%s403 + $0xc0] sm:$0xff]
      %v3074 = vld [vmem:[%s403 + $0xc8] sm:$0xff]
      %v3075 = vld [vmem:[%s403 + $0xd0] sm:$0xff]
      %v3076 = vld [vmem:[%s403 + $0xd8] sm:$0xff]
      %v3077 = vld [vmem:[%s403 + $0xe0] sm:$0xff]
      %v3078 = vld [vmem:[%s403 + $0xe8] sm:$0xff]
      %v3079 = vld [vmem:[%s403 + $0xf0] sm:$0xff]
      %v3080 = vld [vmem:[%s403 + $0xf8] sm:$0xff]
      %v3081 = vld [vmem:[%s403 + $0x100] sm:$0xff]
      %v3082 = vld [vmem:[%s403 + $0x108] sm:$0xff]
      %v3083 = vld [vmem:[%s403 + $0x110] sm:$0xff]
      %v3084 = vld [vmem:[%s403 + $0x118] sm:$0xff]
      %v3085 = vld [vmem:[%s403 + $0x120] sm:$0xff]
      %v3086 = vld [vmem:[%s403 + $0x128] sm:$0xff]
      %v3087 = vld [vmem:[%s403 + $0x130] sm:$0xff]
      %v3088 = vld [vmem:[%s403 + $0x138] sm:$0xff]
      %v3089 = vpack.c.bf16 %v3050, %v3049
      %v3090 = vpack.c.bf16 %v3052, %v3051
      %v3091 = vpack.c.bf16 %v3054, %v3053
      %v3092 = vpack.c.bf16 %v3056, %v3055
      %v3093 = vpack.c.bf16 %v3058, %v3057
      %v3094 = vpack.c.bf16 %v3060, %v3059
      %v3095 = vpack.c.bf16 %v3062, %v3061
      %v3096 = vpack.c.bf16 %v3064, %v3063
      %v3097 = vpack.c.bf16 %v3066, %v3065
      %v3098 = vpack.c.bf16 %v3068, %v3067
      %v3099 = vpack.c.bf16 %v3070, %v3069
      %v3100 = vpack.c.bf16 %v3072, %v3071
      %v3101 = vpack.c.bf16 %v3074, %v3073
      %v3102 = vpack.c.bf16 %v3076, %v3075
      %v3103 = vpack.c.bf16 %v3078, %v3077
      %v3104 = vpack.c.bf16 %v3080, %v3079
      %v3105 = vpack.c.bf16 %v3082, %v3081
      %v3106 = vpack.c.bf16 %v3084, %v3083
      %v3107 = vpack.c.bf16 %v3086, %v3085
      %v3108 = vpack.c.bf16 %v3088, %v3087
      %v3109 = vld [vmem:[%s2] sm:$0x7]
      %v3110 = vld [vmem:[%s3] sm:$0x1]
      %v3112 = vperm.slane %v3110, 0
      %v3115 = vsel %vm551, %v3089, 0
      %v3118 = vsel %vm551, %v3090, 0
      %v3121 = vsel %vm551, %v3091, 0
      %v3124 = vsel %vm551, %v3092, 0
      %v3127 = vsel %vm551, %v3093, 0
      %v3130 = vsel %vm551, %v3094, 0
      %v3133 = vsel %vm551, %v3095, 0
      %v3136 = vsel %vm551, %v3096, 0
      %v3139 = vsel %vm551, %v3097, 0
      %v3142 = vsel %vm551, %v3098, 0
      %v3145 = vsel %vm551, %v3099, 0
      %v3148 = vsel %vm551, %v3100, 0
      %v3151 = vsel %vm551, %v3101, 0
      %v3154 = vsel %vm551, %v3102, 0
      %v3157 = vsel %vm551, %v3103, 0
      %v3160 = vsel %vm551, %v3104, 0
      %v3163 = vsel %vm551, %v3105, 0
      %v3166 = vsel %vm551, %v3106, 0
      %v3169 = vsel %vm551, %v3107, 0
      %v3172 = vsel %vm551, %v3108, 0
      %v3175 = vand.u32 %v3109, %v675
      %3177 = vmatpush.bf16.msra.mxu0 0
      %3178 = vmatpush.bf16.msra.mxu0 0
      %3179 = vmatpush.bf16.msra.mxu0 0
      %3180 = vmatpush.bf16.msra.mxu0 0
      %3181 = vmatpush.bf16.msra.mxu0 0
      %3182 = vmatpush.bf16.msra.mxu0 0
      %3183 = vmatpush.bf16.msra.mxu0 0
      %3184 = vmatpush.bf16.msra.mxu0 %v3175
      %3185 = vmatmul.bf16.gmra.mxu0 %v3115
      %v3186 = vpop.f32.mrf.mxu0
      %v3187 = vadd.f32 %v3112, %v3186
      %v3188 = vpop.f32.mrf.mxu0
      %v3189 = vadd.f32 %v3112, %v3188
      %3190 = vmatmul.bf16.gmra.mxu0 %v3118
      %v3191 = vpop.f32.mrf.mxu0
      %v3192 = vadd.f32 %v3112, %v3191
      %v3193 = vpop.f32.mrf.mxu0
      %v3194 = vadd.f32 %v3112, %v3193
      %3195 = vmatmul.bf16.gmra.mxu0 %v3121
      %v3196 = vpop.f32.mrf.mxu0
      %v3197 = vadd.f32 %v3112, %v3196
      %v3198 = vpop.f32.mrf.mxu0
      %v3199 = vadd.f32 %v3112, %v3198
      %3200 = vmatmul.bf16.gmra.mxu0 %v3124
      %v3201 = vpop.f32.mrf.mxu0
      %v3202 = vadd.f32 %v3112, %v3201
      %v3203 = vpop.f32.mrf.mxu0
      %v3204 = vadd.f32 %v3112, %v3203
      %3205 = vmatmul.bf16.gmra.mxu0 %v3127
      %v3206 = vpop.f32.mrf.mxu0
      %v3207 = vadd.f32 %v3112, %v3206
      %v3208 = vpop.f32.mrf.mxu0
      %v3209 = vadd.f32 %v3112, %v3208
      %3210 = vmatmul.bf16.gmra.mxu0 %v3130
      %v3211 = vpop.f32.mrf.mxu0
      %v3212 = vadd.f32 %v3112, %v3211
      %v3213 = vpop.f32.mrf.mxu0
      %v3214 = vadd.f32 %v3112, %v3213
      %3215 = vmatmul.bf16.gmra.mxu0 %v3133
      %v3216 = vpop.f32.mrf.mxu0
      %v3217 = vadd.f32 %v3112, %v3216
      %v3218 = vpop.f32.mrf.mxu0
      %v3219 = vadd.f32 %v3112, %v3218
      %3220 = vmatmul.bf16.gmra.mxu0 %v3136
      %v3221 = vpop.f32.mrf.mxu0
      %v3222 = vadd.f32 %v3112, %v3221
      %v3223 = vpop.f32.mrf.mxu0
      %v3224 = vadd.f32 %v3112, %v3223
      %3225 = vmatmul.bf16.gmra.mxu0 %v3139
      %v3226 = vpop.f32.mrf.mxu0
      %v3227 = vadd.f32 %v3112, %v3226
      %v3228 = vpop.f32.mrf.mxu0
      %v3229 = vadd.f32 %v3112, %v3228
      %3230 = vmatmul.bf16.gmra.mxu0 %v3142
      %v3231 = vpop.f32.mrf.mxu0
      %v3232 = vadd.f32 %v3112, %v3231
      %v3233 = vpop.f32.mrf.mxu0
      %v3234 = vadd.f32 %v3112, %v3233
      %3235 = vmatmul.bf16.gmra.mxu0 %v3145
      %v3236 = vpop.f32.mrf.mxu0
      %v3237 = vadd.f32 %v3112, %v3236
      %v3238 = vpop.f32.mrf.mxu0
      %v3239 = vadd.f32 %v3112, %v3238
      %3240 = vmatmul.bf16.gmra.mxu0 %v3148
      %v3241 = vpop.f32.mrf.mxu0
      %v3242 = vadd.f32 %v3112, %v3241
      %v3243 = vpop.f32.mrf.mxu0
      %v3244 = vadd.f32 %v3112, %v3243
      %3245 = vmatmul.bf16.gmra.mxu0 %v3151
      %v3246 = vpop.f32.mrf.mxu0
      %v3247 = vadd.f32 %v3112, %v3246
      %v3248 = vpop.f32.mrf.mxu0
      %v3249 = vadd.f32 %v3112, %v3248
      %3250 = vmatmul.bf16.gmra.mxu0 %v3154
      %v3251 = vpop.f32.mrf.mxu0
      %v3252 = vadd.f32 %v3112, %v3251
      %v3253 = vpop.f32.mrf.mxu0
      %v3254 = vadd.f32 %v3112, %v3253
      %3255 = vmatmul.bf16.gmra.mxu0 %v3157
      %v3256 = vpop.f32.mrf.mxu0
      %v3257 = vadd.f32 %v3112, %v3256
      %v3258 = vpop.f32.mrf.mxu0
      %v3259 = vadd.f32 %v3112, %v3258
      %3260 = vmatmul.bf16.gmra.mxu0 %v3160
      %v3261 = vpop.f32.mrf.mxu0
      %v3262 = vadd.f32 %v3112, %v3261
      %v3263 = vpop.f32.mrf.mxu0
      %v3264 = vadd.f32 %v3112, %v3263
      %3265 = vmatmul.bf16.gmra.mxu0 %v3163
      %v3266 = vpop.f32.mrf.mxu0
      %v3267 = vadd.f32 %v3112, %v3266
      %v3268 = vpop.f32.mrf.mxu0
      %v3269 = vadd.f32 %v3112, %v3268
      %3270 = vmatmul.bf16.gmra.mxu0 %v3166
      %v3271 = vpop.f32.mrf.mxu0
      %v3272 = vadd.f32 %v3112, %v3271
      %v3273 = vpop.f32.mrf.mxu0
      %v3274 = vadd.f32 %v3112, %v3273
      %3275 = vmatmul.bf16.gmra.mxu0 %v3169
      %v3276 = vpop.f32.mrf.mxu0
      %v3277 = vadd.f32 %v3112, %v3276
      %v3278 = vpop.f32.mrf.mxu0
      %v3279 = vadd.f32 %v3112, %v3278
      %3280 = vmatmul.bf16.gmra.mxu0 %v3172
      %v3281 = vpop.f32.mrf.mxu0
      %v3282 = vadd.f32 %v3112, %v3281
      %v3283 = vpop.f32.mrf.mxu0
      %v3284 = vadd.f32 %v3112, %v3283
      %3285 = vdwg.mxu0
      %3287 = vset.pattern.permute.xlu0 4
      %3288 = vperm.xlu0 %3287, %v3049
      %v3289 = vpop.permute.xlu0 %3288
      %3292 = vset.pattern.permute.xlu0 4
      %3293 = vperm.xlu0 %3292, %v3050
      %v3294 = vpop.permute.xlu0 %3293
      %3297 = vset.pattern.permute.xlu0 4
      %3298 = vperm.xlu0 %3297, %v3051
      %v3299 = vpop.permute.xlu0 %3298
      %3302 = vset.pattern.permute.xlu0 4
      %3303 = vperm.xlu0 %3302, %v3052
      %v3304 = vpop.permute.xlu0 %3303
      %3307 = vset.pattern.permute.xlu0 4
      %3308 = vperm.xlu0 %3307, %v3053
      %v3309 = vpop.permute.xlu0 %3308
      %3312 = vset.pattern.permute.xlu0 4
      %3313 = vperm.xlu0 %3312, %v3054
      %v3314 = vpop.permute.xlu0 %3313
      %3317 = vset.pattern.permute.xlu0 4
      %3318 = vperm.xlu0 %3317, %v3055
      %v3319 = vpop.permute.xlu0 %3318
      %3322 = vset.pattern.permute.xlu0 4
      %3323 = vperm.xlu0 %3322, %v3056
      %v3324 = vpop.permute.xlu0 %3323
      %3327 = vset.pattern.permute.xlu0 4
      %3328 = vperm.xlu0 %3327, %v3057
      %v3329 = vpop.permute.xlu0 %3328
      %3332 = vset.pattern.permute.xlu0 4
      %3333 = vperm.xlu0 %3332, %v3058
      %v3334 = vpop.permute.xlu0 %3333
      %3337 = vset.pattern.permute.xlu0 4
      %3338 = vperm.xlu0 %3337, %v3059
      %v3339 = vpop.permute.xlu0 %3338
      %3342 = vset.pattern.permute.xlu0 4
      %3343 = vperm.xlu0 %3342, %v3060
      %v3344 = vpop.permute.xlu0 %3343
      %3347 = vset.pattern.permute.xlu0 4
      %3348 = vperm.xlu0 %3347, %v3061
      %v3349 = vpop.permute.xlu0 %3348
      %3352 = vset.pattern.permute.xlu0 4
      %3353 = vperm.xlu0 %3352, %v3062
      %v3354 = vpop.permute.xlu0 %3353
      %3357 = vset.pattern.permute.xlu0 4
      %3358 = vperm.xlu0 %3357, %v3063
      %v3359 = vpop.permute.xlu0 %3358
      %3362 = vset.pattern.permute.xlu0 4
      %3363 = vperm.xlu0 %3362, %v3064
      %v3364 = vpop.permute.xlu0 %3363
      %3367 = vset.pattern.permute.xlu0 4
      %3368 = vperm.xlu0 %3367, %v3065
      %v3369 = vpop.permute.xlu0 %3368
      %3372 = vset.pattern.permute.xlu0 4
      %3373 = vperm.xlu0 %3372, %v3066
      %v3374 = vpop.permute.xlu0 %3373
      %3377 = vset.pattern.permute.xlu0 4
      %3378 = vperm.xlu0 %3377, %v3067
      %v3379 = vpop.permute.xlu0 %3378
      %3382 = vset.pattern.permute.xlu0 4
      %3383 = vperm.xlu0 %3382, %v3068
      %v3384 = vpop.permute.xlu0 %3383
      %3387 = vset.pattern.permute.xlu0 4
      %3388 = vperm.xlu0 %3387, %v3069
      %v3389 = vpop.permute.xlu0 %3388
      %3392 = vset.pattern.permute.xlu0 4
      %3393 = vperm.xlu0 %3392, %v3070
      %v3394 = vpop.permute.xlu0 %3393
      %3397 = vset.pattern.permute.xlu0 4
      %3398 = vperm.xlu0 %3397, %v3071
      %v3399 = vpop.permute.xlu0 %3398
      %3402 = vset.pattern.permute.xlu0 4
      %3403 = vperm.xlu0 %3402, %v3072
      %v3404 = vpop.permute.xlu0 %3403
      %3407 = vset.pattern.permute.xlu0 4
      %3408 = vperm.xlu0 %3407, %v3073
      %v3409 = vpop.permute.xlu0 %3408
      %3412 = vset.pattern.permute.xlu0 4
      %3413 = vperm.xlu0 %3412, %v3074
      %v3414 = vpop.permute.xlu0 %3413
      %3417 = vset.pattern.permute.xlu0 4
      %3418 = vperm.xlu0 %3417, %v3075
      %v3419 = vpop.permute.xlu0 %3418
      %3422 = vset.pattern.permute.xlu0 4
      %3423 = vperm.xlu0 %3422, %v3076
      %v3424 = vpop.permute.xlu0 %3423
      %3427 = vset.pattern.permute.xlu0 4
      %3428 = vperm.xlu0 %3427, %v3077
      %v3429 = vpop.permute.xlu0 %3428
      %3432 = vset.pattern.permute.xlu0 4
      %3433 = vperm.xlu0 %3432, %v3078
      %v3434 = vpop.permute.xlu0 %3433
      %3437 = vset.pattern.permute.xlu0 4
      %3438 = vperm.xlu0 %3437, %v3079
      %v3439 = vpop.permute.xlu0 %3438
      %3442 = vset.pattern.permute.xlu0 4
      %3443 = vperm.xlu0 %3442, %v3080
      %v3444 = vpop.permute.xlu0 %3443
      %3447 = vset.pattern.permute.xlu0 4
      %3448 = vperm.xlu0 %3447, %v3081
      %v3449 = vpop.permute.xlu0 %3448
      %3452 = vset.pattern.permute.xlu0 4
      %3453 = vperm.xlu0 %3452, %v3082
      %v3454 = vpop.permute.xlu0 %3453
      %3457 = vset.pattern.permute.xlu0 4
      %3458 = vperm.xlu0 %3457, %v3083
      %v3459 = vpop.permute.xlu0 %3458
      %3462 = vset.pattern.permute.xlu0 4
      %3463 = vperm.xlu0 %3462, %v3084
      %v3464 = vpop.permute.xlu0 %3463
      %3467 = vset.pattern.permute.xlu0 4
      %3468 = vperm.xlu0 %3467, %v3085
      %v3469 = vpop.permute.xlu0 %3468
      %3472 = vset.pattern.permute.xlu0 4
      %3473 = vperm.xlu0 %3472, %v3086
      %v3474 = vpop.permute.xlu0 %3473
      %3477 = vset.pattern.permute.xlu0 4
      %3478 = vperm.xlu0 %3477, %v3087
      %v3479 = vpop.permute.xlu0 %3478
      %3482 = vset.pattern.permute.xlu0 4
      %3483 = vperm.xlu0 %3482, %v3088
      %v3484 = vpop.permute.xlu0 %3483
      %v3486 = vmul.f32 %v3187, %v3289
      %v3487 = vmul.f32 %v3189, %v3294
      %v3488 = vmul.f32 %v3192, %v3299
      %v3489 = vmul.f32 %v3194, %v3304
      %v3490 = vmul.f32 %v3197, %v3309
      %v3491 = vmul.f32 %v3199, %v3314
      %v3492 = vmul.f32 %v3202, %v3319
      %v3493 = vmul.f32 %v3204, %v3324
      %v3494 = vmul.f32 %v3207, %v3329
      %v3495 = vmul.f32 %v3209, %v3334
      %v3496 = vmul.f32 %v3212, %v3339
      %v3497 = vmul.f32 %v3214, %v3344
      %v3498 = vmul.f32 %v3217, %v3349
      %v3499 = vmul.f32 %v3219, %v3354
      %v3500 = vmul.f32 %v3222, %v3359
      %v3501 = vmul.f32 %v3224, %v3364
      %v3502 = vmul.f32 %v3227, %v3369
      %v3503 = vmul.f32 %v3229, %v3374
      %v3504 = vmul.f32 %v3232, %v3379
      %v3505 = vmul.f32 %v3234, %v3384
      %v3506 = vmul.f32 %v3237, %v3389
      %v3507 = vmul.f32 %v3239, %v3394
      %v3508 = vmul.f32 %v3242, %v3399
      %v3509 = vmul.f32 %v3244, %v3404
      %v3510 = vmul.f32 %v3247, %v3409
      %v3511 = vmul.f32 %v3249, %v3414
      %v3512 = vmul.f32 %v3252, %v3419
      %v3513 = vmul.f32 %v3254, %v3424
      %v3514 = vmul.f32 %v3257, %v3429
      %v3515 = vmul.f32 %v3259, %v3434
      %v3516 = vmul.f32 %v3262, %v3439
      %v3517 = vmul.f32 %v3264, %v3444
      %v3518 = vmul.f32 %v3267, %v3449
      %v3519 = vmul.f32 %v3269, %v3454
      %v3520 = vmul.f32 %v3272, %v3459
      %v3521 = vmul.f32 %v3274, %v3464
      %v3522 = vmul.f32 %v3277, %v3469
      %v3523 = vmul.f32 %v3279, %v3474
      %v3524 = vmul.f32 %v3282, %v3479
      %v3525 = vmul.f32 %v3284, %v3484
      %v3526 = vxor.u32 %v3486, 2147483648
      %v3527 = vxor.u32 %v3487, 2147483648
      %v3528 = vxor.u32 %v3488, 2147483648
      %v3529 = vxor.u32 %v3489, 2147483648
      %v3530 = vxor.u32 %v3490, 2147483648
      %v3531 = vxor.u32 %v3491, 2147483648
      %v3532 = vxor.u32 %v3492, 2147483648
      %v3533 = vxor.u32 %v3493, 2147483648
      %v3534 = vxor.u32 %v3494, 2147483648
      %v3535 = vxor.u32 %v3495, 2147483648
      %v3536 = vxor.u32 %v3496, 2147483648
      %v3537 = vxor.u32 %v3497, 2147483648
      %v3538 = vxor.u32 %v3498, 2147483648
      %v3539 = vxor.u32 %v3499, 2147483648
      %v3540 = vxor.u32 %v3500, 2147483648
      %v3541 = vxor.u32 %v3501, 2147483648
      %v3542 = vxor.u32 %v3502, 2147483648
      %v3543 = vxor.u32 %v3503, 2147483648
      %v3544 = vxor.u32 %v3504, 2147483648
      %v3545 = vxor.u32 %v3505, 2147483648
      %v3546 = vxor.u32 %v3506, 2147483648
      %v3547 = vxor.u32 %v3507, 2147483648
      %v3548 = vxor.u32 %v3508, 2147483648
      %v3549 = vxor.u32 %v3509, 2147483648
      %v3550 = vxor.u32 %v3510, 2147483648
      %v3551 = vxor.u32 %v3511, 2147483648
      %v3552 = vxor.u32 %v3512, 2147483648
      %v3553 = vxor.u32 %v3513, 2147483648
      %v3554 = vxor.u32 %v3514, 2147483648
      %v3555 = vxor.u32 %v3515, 2147483648
      %v3556 = vxor.u32 %v3516, 2147483648
      %v3557 = vxor.u32 %v3517, 2147483648
      %v3558 = vxor.u32 %v3518, 2147483648
      %v3559 = vxor.u32 %v3519, 2147483648
      %v3560 = vxor.u32 %v3520, 2147483648
      %v3561 = vxor.u32 %v3521, 2147483648
      %v3562 = vxor.u32 %v3522, 2147483648
      %v3563 = vxor.u32 %v3523, 2147483648
      %v3564 = vxor.u32 %v3524, 2147483648
      %v3565 = vxor.u32 %v3525, 2147483648
      %v3566 = vmul.f32 %v3526, 1.442695
      %v3567 = vpow.pop %v3566
      %v3568 = vmul.f32 %v3527, 1.442695
      %v3569 = vpow.pop %v3568
      %v3570 = vmul.f32 %v3528, 1.442695
      %v3571 = vpow.pop %v3570
      %v3572 = vmul.f32 %v3529, 1.442695
      %v3573 = vpow.pop %v3572
      %v3574 = vmul.f32 %v3530, 1.442695
      %v3575 = vpow.pop %v3574
      %v3576 = vmul.f32 %v3531, 1.442695
      %v3577 = vpow.pop %v3576
      %v3578 = vmul.f32 %v3532, 1.442695
      %v3579 = vpow.pop %v3578
      %v3580 = vmul.f32 %v3533, 1.442695
      %v3581 = vpow.pop %v3580
      %v3582 = vmul.f32 %v3534, 1.442695
      %v3583 = vpow.pop %v3582
      %v3584 = vmul.f32 %v3535, 1.442695
      %v3585 = vpow.pop %v3584
      %v3586 = vmul.f32 %v3536, 1.442695
      %v3587 = vpow.pop %v3586
      %v3588 = vmul.f32 %v3537, 1.442695
      %v3589 = vpow.pop %v3588
      %v3590 = vmul.f32 %v3538, 1.442695
      %v3591 = vpow.pop %v3590
      %v3592 = vmul.f32 %v3539, 1.442695
      %v3593 = vpow.pop %v3592
      %v3594 = vmul.f32 %v3540, 1.442695
      %v3595 = vpow.pop %v3594
      %v3596 = vmul.f32 %v3541, 1.442695
      %v3597 = vpow.pop %v3596
      %v3598 = vmul.f32 %v3542, 1.442695
      %v3599 = vpow.pop %v3598
      %v3600 = vmul.f32 %v3543, 1.442695
      %v3601 = vpow.pop %v3600
      %v3602 = vmul.f32 %v3544, 1.442695
      %v3603 = vpow.pop %v3602
      %v3604 = vmul.f32 %v3545, 1.442695
      %v3605 = vpow.pop %v3604
      %v3606 = vmul.f32 %v3546, 1.442695
      %v3607 = vpow.pop %v3606
      %v3608 = vmul.f32 %v3547, 1.442695
      %v3609 = vpow.pop %v3608
      %v3610 = vmul.f32 %v3548, 1.442695
      %v3611 = vpow.pop %v3610
      %v3612 = vmul.f32 %v3549, 1.442695
      %v3613 = vpow.pop %v3612
      %v3614 = vmul.f32 %v3550, 1.442695
      %v3615 = vpow.pop %v3614
      %v3616 = vmul.f32 %v3551, 1.442695
      %v3617 = vpow.pop %v3616
      %v3618 = vmul.f32 %v3552, 1.442695
      %v3619 = vpow.pop %v3618
      %v3620 = vmul.f32 %v3553, 1.442695
      %v3621 = vpow.pop %v3620
      %v3622 = vmul.f32 %v3554, 1.442695
      %v3623 = vpow.pop %v3622
      %v3624 = vmul.f32 %v3555, 1.442695
      %v3625 = vpow.pop %v3624
      %v3626 = vmul.f32 %v3556, 1.442695
      %v3627 = vpow.pop %v3626
      %v3628 = vmul.f32 %v3557, 1.442695
      %v3629 = vpow.pop %v3628
      %v3630 = vmul.f32 %v3558, 1.442695
      %v3631 = vpow.pop %v3630
      %v3632 = vmul.f32 %v3559, 1.442695
      %v3633 = vpow.pop %v3632
      %v3634 = vmul.f32 %v3560, 1.442695
      %v3635 = vpow.pop %v3634
      %v3636 = vmul.f32 %v3561, 1.442695
      %v3637 = vpow.pop %v3636
      %v3638 = vmul.f32 %v3562, 1.442695
      %v3639 = vpow.pop %v3638
      %v3640 = vmul.f32 %v3563, 1.442695
      %v3641 = vpow.pop %v3640
      %v3642 = vmul.f32 %v3564, 1.442695
      %v3643 = vpow.pop %v3642
      %v3644 = vmul.f32 %v3565, 1.442695
      %v3645 = vpow.pop %v3644
      %v3646 = vadd.f32 %v3567, 1.0
      %v3647 = vadd.f32 %v3569, 1.0
      %v3648 = vadd.f32 %v3571, 1.0
      %v3649 = vadd.f32 %v3573, 1.0
      %v3650 = vadd.f32 %v3575, 1.0
      %v3651 = vadd.f32 %v3577, 1.0
      %v3652 = vadd.f32 %v3579, 1.0
      %v3653 = vadd.f32 %v3581, 1.0
      %v3654 = vadd.f32 %v3583, 1.0
      %v3655 = vadd.f32 %v3585, 1.0
      %v3656 = vadd.f32 %v3587, 1.0
      %v3657 = vadd.f32 %v3589, 1.0
      %v3658 = vadd.f32 %v3591, 1.0
      %v3659 = vadd.f32 %v3593, 1.0
      %v3660 = vadd.f32 %v3595, 1.0
      %v3661 = vadd.f32 %v3597, 1.0
      %v3662 = vadd.f32 %v3599, 1.0
      %v3663 = vadd.f32 %v3601, 1.0
      %v3664 = vadd.f32 %v3603, 1.0
      %v3665 = vadd.f32 %v3605, 1.0
      %v3666 = vadd.f32 %v3607, 1.0
      %v3667 = vadd.f32 %v3609, 1.0
      %v3668 = vadd.f32 %v3611, 1.0
      %v3669 = vadd.f32 %v3613, 1.0
      %v3670 = vadd.f32 %v3615, 1.0
      %v3671 = vadd.f32 %v3617, 1.0
      %v3672 = vadd.f32 %v3619, 1.0
      %v3673 = vadd.f32 %v3621, 1.0
      %v3674 = vadd.f32 %v3623, 1.0
      %v3675 = vadd.f32 %v3625, 1.0
      %v3676 = vadd.f32 %v3627, 1.0
      %v3677 = vadd.f32 %v3629, 1.0
      %v3678 = vadd.f32 %v3631, 1.0
      %v3679 = vadd.f32 %v3633, 1.0
      %v3680 = vadd.f32 %v3635, 1.0
      %v3681 = vadd.f32 %v3637, 1.0
      %v3682 = vadd.f32 %v3639, 1.0
      %v3683 = vadd.f32 %v3641, 1.0
      %v3684 = vadd.f32 %v3643, 1.0
      %v3685 = vadd.f32 %v3645, 1.0
      %v3686 = vrcp.pop %v3646
      %v3687 = vmul.f32 %v3646, %v3686
      %v3688 = vsub.f32 1.0, %v3687
      %v3689 = vmul.f32 %v3686, %v3688
      %v3690 = vadd.f32 %v3686, %v3689
      %vm3691 = vweird.f32 %v3646
      %vm3692 = vweird.f32 %v3686
      %vm3693 = vmor %vm3691, %vm3692
      %v3694 = vsel %vm3693, %v3686, %v3690
      %v3695 = vand.u32 2147483647, %v3646
      %vm3696 = vcmp.eq.f32.partialorder %v3695, 8.507059e+37
      %v3697 = vand.u32 %v3646, 2147483648
      %v3698 = vor.u32 1.1754944e-38, %v3697
      %v3699 = vsel %vm3696, %v3698, %v3694
      %v3700 = vmul.f32 1.0, %v3699
      %v3701 = vrcp.pop %v3647
      %v3702 = vmul.f32 %v3647, %v3701
      %v3703 = vsub.f32 1.0, %v3702
      %v3704 = vmul.f32 %v3701, %v3703
      %v3705 = vadd.f32 %v3701, %v3704
      %vm3706 = vweird.f32 %v3647
      %vm3707 = vweird.f32 %v3701
      %vm3708 = vmor %vm3706, %vm3707
      %v3709 = vsel %vm3708, %v3701, %v3705
      %v3710 = vand.u32 2147483647, %v3647
      %vm3711 = vcmp.eq.f32.partialorder %v3710, 8.507059e+37
      %v3712 = vand.u32 %v3647, 2147483648
      %v3713 = vor.u32 1.1754944e-38, %v3712
      %v3714 = vsel %vm3711, %v3713, %v3709
      %v3715 = vmul.f32 1.0, %v3714
      %v3716 = vrcp.pop %v3648
      %v3717 = vmul.f32 %v3648, %v3716
      %v3718 = vsub.f32 1.0, %v3717
      %v3719 = vmul.f32 %v3716, %v3718
      %v3720 = vadd.f32 %v3716, %v3719
      %vm3721 = vweird.f32 %v3648
      %vm3722 = vweird.f32 %v3716
      %vm3723 = vmor %vm3721, %vm3722
      %v3724 = vsel %vm3723, %v3716, %v3720
      %v3725 = vand.u32 2147483647, %v3648
      %vm3726 = vcmp.eq.f32.partialorder %v3725, 8.507059e+37
      %v3727 = vand.u32 %v3648, 2147483648
      %v3728 = vor.u32 1.1754944e-38, %v3727
      %v3729 = vsel %vm3726, %v3728, %v3724
      %v3730 = vmul.f32 1.0, %v3729
      %v3731 = vrcp.pop %v3649
      %v3732 = vmul.f32 %v3649, %v3731
      %v3733 = vsub.f32 1.0, %v3732
      %v3734 = vmul.f32 %v3731, %v3733
      %v3735 = vadd.f32 %v3731, %v3734
      %vm3736 = vweird.f32 %v3649
      %vm3737 = vweird.f32 %v3731
      %vm3738 = vmor %vm3736, %vm3737
      %v3739 = vsel %vm3738, %v3731, %v3735
      %v3740 = vand.u32 2147483647, %v3649
      %vm3741 = vcmp.eq.f32.partialorder %v3740, 8.507059e+37
      %v3742 = vand.u32 %v3649, 2147483648
      %v3743 = vor.u32 1.1754944e-38, %v3742
      %v3744 = vsel %vm3741, %v3743, %v3739
      %v3745 = vmul.f32 1.0, %v3744
      %v3746 = vrcp.pop %v3650
      %v3747 = vmul.f32 %v3650, %v3746
      %v3748 = vsub.f32 1.0, %v3747
      %v3749 = vmul.f32 %v3746, %v3748
      %v3750 = vadd.f32 %v3746, %v3749
      %vm3751 = vweird.f32 %v3650
      %vm3752 = vweird.f32 %v3746
      %vm3753 = vmor %vm3751, %vm3752
      %v3754 = vsel %vm3753, %v3746, %v3750
      %v3755 = vand.u32 2147483647, %v3650
      %vm3756 = vcmp.eq.f32.partialorder %v3755, 8.507059e+37
      %v3757 = vand.u32 %v3650, 2147483648
      %v3758 = vor.u32 1.1754944e-38, %v3757
      %v3759 = vsel %vm3756, %v3758, %v3754
      %v3760 = vmul.f32 1.0, %v3759
      %v3761 = vrcp.pop %v3651
      %v3762 = vmul.f32 %v3651, %v3761
      %v3763 = vsub.f32 1.0, %v3762
      %v3764 = vmul.f32 %v3761, %v3763
      %v3765 = vadd.f32 %v3761, %v3764
      %vm3766 = vweird.f32 %v3651
      %vm3767 = vweird.f32 %v3761
      %vm3768 = vmor %vm3766, %vm3767
      %v3769 = vsel %vm3768, %v3761, %v3765
      %v3770 = vand.u32 2147483647, %v3651
      %vm3771 = vcmp.eq.f32.partialorder %v3770, 8.507059e+37
      %v3772 = vand.u32 %v3651, 2147483648
      %v3773 = vor.u32 1.1754944e-38, %v3772
      %v3774 = vsel %vm3771, %v3773, %v3769
      %v3775 = vmul.f32 1.0, %v3774
      %v3776 = vrcp.pop %v3652
      %v3777 = vmul.f32 %v3652, %v3776
      %v3778 = vsub.f32 1.0, %v3777
      %v3779 = vmul.f32 %v3776, %v3778
      %v3780 = vadd.f32 %v3776, %v3779
      %vm3781 = vweird.f32 %v3652
      %vm3782 = vweird.f32 %v3776
      %vm3783 = vmor %vm3781, %vm3782
      %v3784 = vsel %vm3783, %v3776, %v3780
      %v3785 = vand.u32 2147483647, %v3652
      %vm3786 = vcmp.eq.f32.partialorder %v3785, 8.507059e+37
      %v3787 = vand.u32 %v3652, 2147483648
      %v3788 = vor.u32 1.1754944e-38, %v3787
      %v3789 = vsel %vm3786, %v3788, %v3784
      %v3790 = vmul.f32 1.0, %v3789
      %v3791 = vrcp.pop %v3653
      %v3792 = vmul.f32 %v3653, %v3791
      %v3793 = vsub.f32 1.0, %v3792
      %v3794 = vmul.f32 %v3791, %v3793
      %v3795 = vadd.f32 %v3791, %v3794
      %vm3796 = vweird.f32 %v3653
      %vm3797 = vweird.f32 %v3791
      %vm3798 = vmor %vm3796, %vm3797
      %v3799 = vsel %vm3798, %v3791, %v3795
      %v3800 = vand.u32 2147483647, %v3653
      %vm3801 = vcmp.eq.f32.partialorder %v3800, 8.507059e+37
      %v3802 = vand.u32 %v3653, 2147483648
      %v3803 = vor.u32 1.1754944e-38, %v3802
      %v3804 = vsel %vm3801, %v3803, %v3799
      %v3805 = vmul.f32 1.0, %v3804
      %v3806 = vrcp.pop %v3654
      %v3807 = vmul.f32 %v3654, %v3806
      %v3808 = vsub.f32 1.0, %v3807
      %v3809 = vmul.f32 %v3806, %v3808
      %v3810 = vadd.f32 %v3806, %v3809
      %vm3811 = vweird.f32 %v3654
      %vm3812 = vweird.f32 %v3806
      %vm3813 = vmor %vm3811, %vm3812
      %v3814 = vsel %vm3813, %v3806, %v3810
      %v3815 = vand.u32 2147483647, %v3654
      %vm3816 = vcmp.eq.f32.partialorder %v3815, 8.507059e+37
      %v3817 = vand.u32 %v3654, 2147483648
      %v3818 = vor.u32 1.1754944e-38, %v3817
      %v3819 = vsel %vm3816, %v3818, %v3814
      %v3820 = vmul.f32 1.0, %v3819
      %v3821 = vrcp.pop %v3655
      %v3822 = vmul.f32 %v3655, %v3821
      %v3823 = vsub.f32 1.0, %v3822
      %v3824 = vmul.f32 %v3821, %v3823
      %v3825 = vadd.f32 %v3821, %v3824
      %vm3826 = vweird.f32 %v3655
      %vm3827 = vweird.f32 %v3821
      %vm3828 = vmor %vm3826, %vm3827
      %v3829 = vsel %vm3828, %v3821, %v3825
      %v3830 = vand.u32 2147483647, %v3655
      %vm3831 = vcmp.eq.f32.partialorder %v3830, 8.507059e+37
      %v3832 = vand.u32 %v3655, 2147483648
      %v3833 = vor.u32 1.1754944e-38, %v3832
      %v3834 = vsel %vm3831, %v3833, %v3829
      %v3835 = vmul.f32 1.0, %v3834
      %v3836 = vrcp.pop %v3656
      %v3837 = vmul.f32 %v3656, %v3836
      %v3838 = vsub.f32 1.0, %v3837
      %v3839 = vmul.f32 %v3836, %v3838
      %v3840 = vadd.f32 %v3836, %v3839
      %vm3841 = vweird.f32 %v3656
      %vm3842 = vweird.f32 %v3836
      %vm3843 = vmor %vm3841, %vm3842
      %v3844 = vsel %vm3843, %v3836, %v3840
      %v3845 = vand.u32 2147483647, %v3656
      %vm3846 = vcmp.eq.f32.partialorder %v3845, 8.507059e+37
      %v3847 = vand.u32 %v3656, 2147483648
      %v3848 = vor.u32 1.1754944e-38, %v3847
      %v3849 = vsel %vm3846, %v3848, %v3844
      %v3850 = vmul.f32 1.0, %v3849
      %v3851 = vrcp.pop %v3657
      %v3852 = vmul.f32 %v3657, %v3851
      %v3853 = vsub.f32 1.0, %v3852
      %v3854 = vmul.f32 %v3851, %v3853
      %v3855 = vadd.f32 %v3851, %v3854
      %vm3856 = vweird.f32 %v3657
      %vm3857 = vweird.f32 %v3851
      %vm3858 = vmor %vm3856, %vm3857
      %v3859 = vsel %vm3858, %v3851, %v3855
      %v3860 = vand.u32 2147483647, %v3657
      %vm3861 = vcmp.eq.f32.partialorder %v3860, 8.507059e+37
      %v3862 = vand.u32 %v3657, 2147483648
      %v3863 = vor.u32 1.1754944e-38, %v3862
      %v3864 = vsel %vm3861, %v3863, %v3859
      %v3865 = vmul.f32 1.0, %v3864
      %v3866 = vrcp.pop %v3658
      %v3867 = vmul.f32 %v3658, %v3866
      %v3868 = vsub.f32 1.0, %v3867
      %v3869 = vmul.f32 %v3866, %v3868
      %v3870 = vadd.f32 %v3866, %v3869
      %vm3871 = vweird.f32 %v3658
      %vm3872 = vweird.f32 %v3866
      %vm3873 = vmor %vm3871, %vm3872
      %v3874 = vsel %vm3873, %v3866, %v3870
      %v3875 = vand.u32 2147483647, %v3658
      %vm3876 = vcmp.eq.f32.partialorder %v3875, 8.507059e+37
      %v3877 = vand.u32 %v3658, 2147483648
      %v3878 = vor.u32 1.1754944e-38, %v3877
      %v3879 = vsel %vm3876, %v3878, %v3874
      %v3880 = vmul.f32 1.0, %v3879
      %v3881 = vrcp.pop %v3659
      %v3882 = vmul.f32 %v3659, %v3881
      %v3883 = vsub.f32 1.0, %v3882
      %v3884 = vmul.f32 %v3881, %v3883
      %v3885 = vadd.f32 %v3881, %v3884
      %vm3886 = vweird.f32 %v3659
      %vm3887 = vweird.f32 %v3881
      %vm3888 = vmor %vm3886, %vm3887
      %v3889 = vsel %vm3888, %v3881, %v3885
      %v3890 = vand.u32 2147483647, %v3659
      %vm3891 = vcmp.eq.f32.partialorder %v3890, 8.507059e+37
      %v3892 = vand.u32 %v3659, 2147483648
      %v3893 = vor.u32 1.1754944e-38, %v3892
      %v3894 = vsel %vm3891, %v3893, %v3889
      %v3895 = vmul.f32 1.0, %v3894
      %v3896 = vrcp.pop %v3660
      %v3897 = vmul.f32 %v3660, %v3896
      %v3898 = vsub.f32 1.0, %v3897
      %v3899 = vmul.f32 %v3896, %v3898
      %v3900 = vadd.f32 %v3896, %v3899
      %vm3901 = vweird.f32 %v3660
      %vm3902 = vweird.f32 %v3896
      %vm3903 = vmor %vm3901, %vm3902
      %v3904 = vsel %vm3903, %v3896, %v3900
      %v3905 = vand.u32 2147483647, %v3660
      %vm3906 = vcmp.eq.f32.partialorder %v3905, 8.507059e+37
      %v3907 = vand.u32 %v3660, 2147483648
      %v3908 = vor.u32 1.1754944e-38, %v3907
      %v3909 = vsel %vm3906, %v3908, %v3904
      %v3910 = vmul.f32 1.0, %v3909
      %v3911 = vrcp.pop %v3661
      %v3912 = vmul.f32 %v3661, %v3911
      %v3913 = vsub.f32 1.0, %v3912
      %v3914 = vmul.f32 %v3911, %v3913
      %v3915 = vadd.f32 %v3911, %v3914
      %vm3916 = vweird.f32 %v3661
      %vm3917 = vweird.f32 %v3911
      %vm3918 = vmor %vm3916, %vm3917
      %v3919 = vsel %vm3918, %v3911, %v3915
      %v3920 = vand.u32 2147483647, %v3661
      %vm3921 = vcmp.eq.f32.partialorder %v3920, 8.507059e+37
      %v3922 = vand.u32 %v3661, 2147483648
      %v3923 = vor.u32 1.1754944e-38, %v3922
      %v3924 = vsel %vm3921, %v3923, %v3919
      %v3925 = vmul.f32 1.0, %v3924
      %v3926 = vrcp.pop %v3662
      %v3927 = vmul.f32 %v3662, %v3926
      %v3928 = vsub.f32 1.0, %v3927
      %v3929 = vmul.f32 %v3926, %v3928
      %v3930 = vadd.f32 %v3926, %v3929
      %vm3931 = vweird.f32 %v3662
      %vm3932 = vweird.f32 %v3926
      %vm3933 = vmor %vm3931, %vm3932
      %v3934 = vsel %vm3933, %v3926, %v3930
      %v3935 = vand.u32 2147483647, %v3662
      %vm3936 = vcmp.eq.f32.partialorder %v3935, 8.507059e+37
      %v3937 = vand.u32 %v3662, 2147483648
      %v3938 = vor.u32 1.1754944e-38, %v3937
      %v3939 = vsel %vm3936, %v3938, %v3934
      %v3940 = vmul.f32 1.0, %v3939
      %v3941 = vrcp.pop %v3663
      %v3942 = vmul.f32 %v3663, %v3941
      %v3943 = vsub.f32 1.0, %v3942
      %v3944 = vmul.f32 %v3941, %v3943
      %v3945 = vadd.f32 %v3941, %v3944
      %vm3946 = vweird.f32 %v3663
      %vm3947 = vweird.f32 %v3941
      %vm3948 = vmor %vm3946, %vm3947
      %v3949 = vsel %vm3948, %v3941, %v3945
      %v3950 = vand.u32 2147483647, %v3663
      %vm3951 = vcmp.eq.f32.partialorder %v3950, 8.507059e+37
      %v3952 = vand.u32 %v3663, 2147483648
      %v3953 = vor.u32 1.1754944e-38, %v3952
      %v3954 = vsel %vm3951, %v3953, %v3949
      %v3955 = vmul.f32 1.0, %v3954
      %v3956 = vrcp.pop %v3664
      %v3957 = vmul.f32 %v3664, %v3956
      %v3958 = vsub.f32 1.0, %v3957
      %v3959 = vmul.f32 %v3956, %v3958
      %v3960 = vadd.f32 %v3956, %v3959
      %vm3961 = vweird.f32 %v3664
      %vm3962 = vweird.f32 %v3956
      %vm3963 = vmor %vm3961, %vm3962
      %v3964 = vsel %vm3963, %v3956, %v3960
      %v3965 = vand.u32 2147483647, %v3664
      %vm3966 = vcmp.eq.f32.partialorder %v3965, 8.507059e+37
      %v3967 = vand.u32 %v3664, 2147483648
      %v3968 = vor.u32 1.1754944e-38, %v3967
      %v3969 = vsel %vm3966, %v3968, %v3964
      %v3970 = vmul.f32 1.0, %v3969
      %v3971 = vrcp.pop %v3665
      %v3972 = vmul.f32 %v3665, %v3971
      %v3973 = vsub.f32 1.0, %v3972
      %v3974 = vmul.f32 %v3971, %v3973
      %v3975 = vadd.f32 %v3971, %v3974
      %vm3976 = vweird.f32 %v3665
      %vm3977 = vweird.f32 %v3971
      %vm3978 = vmor %vm3976, %vm3977
      %v3979 = vsel %vm3978, %v3971, %v3975
      %v3980 = vand.u32 2147483647, %v3665
      %vm3981 = vcmp.eq.f32.partialorder %v3980, 8.507059e+37
      %v3982 = vand.u32 %v3665, 2147483648
      %v3983 = vor.u32 1.1754944e-38, %v3982
      %v3984 = vsel %vm3981, %v3983, %v3979
      %v3985 = vmul.f32 1.0, %v3984
      %v3986 = vrcp.pop %v3666
      %v3987 = vmul.f32 %v3666, %v3986
      %v3988 = vsub.f32 1.0, %v3987
      %v3989 = vmul.f32 %v3986, %v3988
      %v3990 = vadd.f32 %v3986, %v3989
      %vm3991 = vweird.f32 %v3666
      %vm3992 = vweird.f32 %v3986
      %vm3993 = vmor %vm3991, %vm3992
      %v3994 = vsel %vm3993, %v3986, %v3990
      %v3995 = vand.u32 2147483647, %v3666
      %vm3996 = vcmp.eq.f32.partialorder %v3995, 8.507059e+37
      %v3997 = vand.u32 %v3666, 2147483648
      %v3998 = vor.u32 1.1754944e-38, %v3997
      %v3999 = vsel %vm3996, %v3998, %v3994
      %v4000 = vmul.f32 1.0, %v3999
      %v4001 = vrcp.pop %v3667
      %v4002 = vmul.f32 %v3667, %v4001
      %v4003 = vsub.f32 1.0, %v4002
      %v4004 = vmul.f32 %v4001, %v4003
      %v4005 = vadd.f32 %v4001, %v4004
      %vm4006 = vweird.f32 %v3667
      %vm4007 = vweird.f32 %v4001
      %vm4008 = vmor %vm4006, %vm4007
      %v4009 = vsel %vm4008, %v4001, %v4005
      %v4010 = vand.u32 2147483647, %v3667
      %vm4011 = vcmp.eq.f32.partialorder %v4010, 8.507059e+37
      %v4012 = vand.u32 %v3667, 2147483648
      %v4013 = vor.u32 1.1754944e-38, %v4012
      %v4014 = vsel %vm4011, %v4013, %v4009
      %v4015 = vmul.f32 1.0, %v4014
      %v4016 = vrcp.pop %v3668
      %v4017 = vmul.f32 %v3668, %v4016
      %v4018 = vsub.f32 1.0, %v4017
      %v4019 = vmul.f32 %v4016, %v4018
      %v4020 = vadd.f32 %v4016, %v4019
      %vm4021 = vweird.f32 %v3668
      %vm4022 = vweird.f32 %v4016
      %vm4023 = vmor %vm4021, %vm4022
      %v4024 = vsel %vm4023, %v4016, %v4020
      %v4025 = vand.u32 2147483647, %v3668
      %vm4026 = vcmp.eq.f32.partialorder %v4025, 8.507059e+37
      %v4027 = vand.u32 %v3668, 2147483648
      %v4028 = vor.u32 1.1754944e-38, %v4027
      %v4029 = vsel %vm4026, %v4028, %v4024
      %v4030 = vmul.f32 1.0, %v4029
      %v4031 = vrcp.pop %v3669
      %v4032 = vmul.f32 %v3669, %v4031
      %v4033 = vsub.f32 1.0, %v4032
      %v4034 = vmul.f32 %v4031, %v4033
      %v4035 = vadd.f32 %v4031, %v4034
      %vm4036 = vweird.f32 %v3669
      %vm4037 = vweird.f32 %v4031
      %vm4038 = vmor %vm4036, %vm4037
      %v4039 = vsel %vm4038, %v4031, %v4035
      %v4040 = vand.u32 2147483647, %v3669
      %vm4041 = vcmp.eq.f32.partialorder %v4040, 8.507059e+37
      %v4042 = vand.u32 %v3669, 2147483648
      %v4043 = vor.u32 1.1754944e-38, %v4042
      %v4044 = vsel %vm4041, %v4043, %v4039
      %v4045 = vmul.f32 1.0, %v4044
      %v4046 = vrcp.pop %v3670
      %v4047 = vmul.f32 %v3670, %v4046
      %v4048 = vsub.f32 1.0, %v4047
      %v4049 = vmul.f32 %v4046, %v4048
      %v4050 = vadd.f32 %v4046, %v4049
      %vm4051 = vweird.f32 %v3670
      %vm4052 = vweird.f32 %v4046
      %vm4053 = vmor %vm4051, %vm4052
      %v4054 = vsel %vm4053, %v4046, %v4050
      %v4055 = vand.u32 2147483647, %v3670
      %vm4056 = vcmp.eq.f32.partialorder %v4055, 8.507059e+37
      %v4057 = vand.u32 %v3670, 2147483648
      %v4058 = vor.u32 1.1754944e-38, %v4057
      %v4059 = vsel %vm4056, %v4058, %v4054
      %v4060 = vmul.f32 1.0, %v4059
      %v4061 = vrcp.pop %v3671
      %v4062 = vmul.f32 %v3671, %v4061
      %v4063 = vsub.f32 1.0, %v4062
      %v4064 = vmul.f32 %v4061, %v4063
      %v4065 = vadd.f32 %v4061, %v4064
      %vm4066 = vweird.f32 %v3671
      %vm4067 = vweird.f32 %v4061
      %vm4068 = vmor %vm4066, %vm4067
      %v4069 = vsel %vm4068, %v4061, %v4065
      %v4070 = vand.u32 2147483647, %v3671
      %vm4071 = vcmp.eq.f32.partialorder %v4070, 8.507059e+37
      %v4072 = vand.u32 %v3671, 2147483648
      %v4073 = vor.u32 1.1754944e-38, %v4072
      %v4074 = vsel %vm4071, %v4073, %v4069
      %v4075 = vmul.f32 1.0, %v4074
      %v4076 = vrcp.pop %v3672
      %v4077 = vmul.f32 %v3672, %v4076
      %v4078 = vsub.f32 1.0, %v4077
      %v4079 = vmul.f32 %v4076, %v4078
      %v4080 = vadd.f32 %v4076, %v4079
      %vm4081 = vweird.f32 %v3672
      %vm4082 = vweird.f32 %v4076
      %vm4083 = vmor %vm4081, %vm4082
      %v4084 = vsel %vm4083, %v4076, %v4080
      %v4085 = vand.u32 2147483647, %v3672
      %vm4086 = vcmp.eq.f32.partialorder %v4085, 8.507059e+37
      %v4087 = vand.u32 %v3672, 2147483648
      %v4088 = vor.u32 1.1754944e-38, %v4087
      %v4089 = vsel %vm4086, %v4088, %v4084
      %v4090 = vmul.f32 1.0, %v4089
      %v4091 = vrcp.pop %v3673
      %v4092 = vmul.f32 %v3673, %v4091
      %v4093 = vsub.f32 1.0, %v4092
      %v4094 = vmul.f32 %v4091, %v4093
      %v4095 = vadd.f32 %v4091, %v4094
      %vm4096 = vweird.f32 %v3673
      %vm4097 = vweird.f32 %v4091
      %vm4098 = vmor %vm4096, %vm4097
      %v4099 = vsel %vm4098, %v4091, %v4095
      %v4100 = vand.u32 2147483647, %v3673
      %vm4101 = vcmp.eq.f32.partialorder %v4100, 8.507059e+37
      %v4102 = vand.u32 %v3673, 2147483648
      %v4103 = vor.u32 1.1754944e-38, %v4102
      %v4104 = vsel %vm4101, %v4103, %v4099
      %v4105 = vmul.f32 1.0, %v4104
      %v4106 = vrcp.pop %v3674
      %v4107 = vmul.f32 %v3674, %v4106
      %v4108 = vsub.f32 1.0, %v4107
      %v4109 = vmul.f32 %v4106, %v4108
      %v4110 = vadd.f32 %v4106, %v4109
      %vm4111 = vweird.f32 %v3674
      %vm4112 = vweird.f32 %v4106
      %vm4113 = vmor %vm4111, %vm4112
      %v4114 = vsel %vm4113, %v4106, %v4110
      %v4115 = vand.u32 2147483647, %v3674
      %vm4116 = vcmp.eq.f32.partialorder %v4115, 8.507059e+37
      %v4117 = vand.u32 %v3674, 2147483648
      %v4118 = vor.u32 1.1754944e-38, %v4117
      %v4119 = vsel %vm4116, %v4118, %v4114
      %v4120 = vmul.f32 1.0, %v4119
      %v4121 = vrcp.pop %v3675
      %v4122 = vmul.f32 %v3675, %v4121
      %v4123 = vsub.f32 1.0, %v4122
      %v4124 = vmul.f32 %v4121, %v4123
      %v4125 = vadd.f32 %v4121, %v4124
      %vm4126 = vweird.f32 %v3675
      %vm4127 = vweird.f32 %v4121
      %vm4128 = vmor %vm4126, %vm4127
      %v4129 = vsel %vm4128, %v4121, %v4125
      %v4130 = vand.u32 2147483647, %v3675
      %vm4131 = vcmp.eq.f32.partialorder %v4130, 8.507059e+37
      %v4132 = vand.u32 %v3675, 2147483648
      %v4133 = vor.u32 1.1754944e-38, %v4132
      %v4134 = vsel %vm4131, %v4133, %v4129
      %v4135 = vmul.f32 1.0, %v4134
      %v4136 = vrcp.pop %v3676
      %v4137 = vmul.f32 %v3676, %v4136
      %v4138 = vsub.f32 1.0, %v4137
      %v4139 = vmul.f32 %v4136, %v4138
      %v4140 = vadd.f32 %v4136, %v4139
      %vm4141 = vweird.f32 %v3676
      %vm4142 = vweird.f32 %v4136
      %vm4143 = vmor %vm4141, %vm4142
      %v4144 = vsel %vm4143, %v4136, %v4140
      %v4145 = vand.u32 2147483647, %v3676
      %vm4146 = vcmp.eq.f32.partialorder %v4145, 8.507059e+37
      %v4147 = vand.u32 %v3676, 2147483648
      %v4148 = vor.u32 1.1754944e-38, %v4147
      %v4149 = vsel %vm4146, %v4148, %v4144
      %v4150 = vmul.f32 1.0, %v4149
      %v4151 = vrcp.pop %v3677
      %v4152 = vmul.f32 %v3677, %v4151
      %v4153 = vsub.f32 1.0, %v4152
      %v4154 = vmul.f32 %v4151, %v4153
      %v4155 = vadd.f32 %v4151, %v4154
      %vm4156 = vweird.f32 %v3677
      %vm4157 = vweird.f32 %v4151
      %vm4158 = vmor %vm4156, %vm4157
      %v4159 = vsel %vm4158, %v4151, %v4155
      %v4160 = vand.u32 2147483647, %v3677
      %vm4161 = vcmp.eq.f32.partialorder %v4160, 8.507059e+37
      %v4162 = vand.u32 %v3677, 2147483648
      %v4163 = vor.u32 1.1754944e-38, %v4162
      %v4164 = vsel %vm4161, %v4163, %v4159
      %v4165 = vmul.f32 1.0, %v4164
      %v4166 = vrcp.pop %v3678
      %v4167 = vmul.f32 %v3678, %v4166
      %v4168 = vsub.f32 1.0, %v4167
      %v4169 = vmul.f32 %v4166, %v4168
      %v4170 = vadd.f32 %v4166, %v4169
      %vm4171 = vweird.f32 %v3678
      %vm4172 = vweird.f32 %v4166
      %vm4173 = vmor %vm4171, %vm4172
      %v4174 = vsel %vm4173, %v4166, %v4170
      %v4175 = vand.u32 2147483647, %v3678
      %vm4176 = vcmp.eq.f32.partialorder %v4175, 8.507059e+37
      %v4177 = vand.u32 %v3678, 2147483648
      %v4178 = vor.u32 1.1754944e-38, %v4177
      %v4179 = vsel %vm4176, %v4178, %v4174
      %v4180 = vmul.f32 1.0, %v4179
      %v4181 = vrcp.pop %v3679
      %v4182 = vmul.f32 %v3679, %v4181
      %v4183 = vsub.f32 1.0, %v4182
      %v4184 = vmul.f32 %v4181, %v4183
      %v4185 = vadd.f32 %v4181, %v4184
      %vm4186 = vweird.f32 %v3679
      %vm4187 = vweird.f32 %v4181
      %vm4188 = vmor %vm4186, %vm4187
      %v4189 = vsel %vm4188, %v4181, %v4185
      %v4190 = vand.u32 2147483647, %v3679
      %vm4191 = vcmp.eq.f32.partialorder %v4190, 8.507059e+37
      %v4192 = vand.u32 %v3679, 2147483648
      %v4193 = vor.u32 1.1754944e-38, %v4192
      %v4194 = vsel %vm4191, %v4193, %v4189
      %v4195 = vmul.f32 1.0, %v4194
      %v4196 = vrcp.pop %v3680
      %v4197 = vmul.f32 %v3680, %v4196
      %v4198 = vsub.f32 1.0, %v4197
      %v4199 = vmul.f32 %v4196, %v4198
      %v4200 = vadd.f32 %v4196, %v4199
      %vm4201 = vweird.f32 %v3680
      %vm4202 = vweird.f32 %v4196
      %vm4203 = vmor %vm4201, %vm4202
      %v4204 = vsel %vm4203, %v4196, %v4200
      %v4205 = vand.u32 2147483647, %v3680
      %vm4206 = vcmp.eq.f32.partialorder %v4205, 8.507059e+37
      %v4207 = vand.u32 %v3680, 2147483648
      %v4208 = vor.u32 1.1754944e-38, %v4207
      %v4209 = vsel %vm4206, %v4208, %v4204
      %v4210 = vmul.f32 1.0, %v4209
      %v4211 = vrcp.pop %v3681
      %v4212 = vmul.f32 %v3681, %v4211
      %v4213 = vsub.f32 1.0, %v4212
      %v4214 = vmul.f32 %v4211, %v4213
      %v4215 = vadd.f32 %v4211, %v4214
      %vm4216 = vweird.f32 %v3681
      %vm4217 = vweird.f32 %v4211
      %vm4218 = vmor %vm4216, %vm4217
      %v4219 = vsel %vm4218, %v4211, %v4215
      %v4220 = vand.u32 2147483647, %v3681
      %vm4221 = vcmp.eq.f32.partialorder %v4220, 8.507059e+37
      %v4222 = vand.u32 %v3681, 2147483648
      %v4223 = vor.u32 1.1754944e-38, %v4222
      %v4224 = vsel %vm4221, %v4223, %v4219
      %v4225 = vmul.f32 1.0, %v4224
      %v4226 = vrcp.pop %v3682
      %v4227 = vmul.f32 %v3682, %v4226
      %v4228 = vsub.f32 1.0, %v4227
      %v4229 = vmul.f32 %v4226, %v4228
      %v4230 = vadd.f32 %v4226, %v4229
      %vm4231 = vweird.f32 %v3682
      %vm4232 = vweird.f32 %v4226
      %vm4233 = vmor %vm4231, %vm4232
      %v4234 = vsel %vm4233, %v4226, %v4230
      %v4235 = vand.u32 2147483647, %v3682
      %vm4236 = vcmp.eq.f32.partialorder %v4235, 8.507059e+37
      %v4237 = vand.u32 %v3682, 2147483648
      %v4238 = vor.u32 1.1754944e-38, %v4237
      %v4239 = vsel %vm4236, %v4238, %v4234
      %v4240 = vmul.f32 1.0, %v4239
      %v4241 = vrcp.pop %v3683
      %v4242 = vmul.f32 %v3683, %v4241
      %v4243 = vsub.f32 1.0, %v4242
      %v4244 = vmul.f32 %v4241, %v4243
      %v4245 = vadd.f32 %v4241, %v4244
      %vm4246 = vweird.f32 %v3683
      %vm4247 = vweird.f32 %v4241
      %vm4248 = vmor %vm4246, %vm4247
      %v4249 = vsel %vm4248, %v4241, %v4245
      %v4250 = vand.u32 2147483647, %v3683
      %vm4251 = vcmp.eq.f32.partialorder %v4250, 8.507059e+37
      %v4252 = vand.u32 %v3683, 2147483648
      %v4253 = vor.u32 1.1754944e-38, %v4252
      %v4254 = vsel %vm4251, %v4253, %v4249
      %v4255 = vmul.f32 1.0, %v4254
      %v4256 = vrcp.pop %v3684
      %v4257 = vmul.f32 %v3684, %v4256
      %v4258 = vsub.f32 1.0, %v4257
      %v4259 = vmul.f32 %v4256, %v4258
      %v4260 = vadd.f32 %v4256, %v4259
      %vm4261 = vweird.f32 %v3684
      %vm4262 = vweird.f32 %v4256
      %vm4263 = vmor %vm4261, %vm4262
      %v4264 = vsel %vm4263, %v4256, %v4260
      %v4265 = vand.u32 2147483647, %v3684
      %vm4266 = vcmp.eq.f32.partialorder %v4265, 8.507059e+37
      %v4267 = vand.u32 %v3684, 2147483648
      %v4268 = vor.u32 1.1754944e-38, %v4267
      %v4269 = vsel %vm4266, %v4268, %v4264
      %v4270 = vmul.f32 1.0, %v4269
      %v4271 = vrcp.pop %v3685
      %v4272 = vmul.f32 %v3685, %v4271
      %v4273 = vsub.f32 1.0, %v4272
      %v4274 = vmul.f32 %v4271, %v4273
      %v4275 = vadd.f32 %v4271, %v4274
      %vm4276 = vweird.f32 %v3685
      %vm4277 = vweird.f32 %v4271
      %vm4278 = vmor %vm4276, %vm4277
      %v4279 = vsel %vm4278, %v4271, %v4275
      %v4280 = vand.u32 2147483647, %v3685
      %vm4281 = vcmp.eq.f32.partialorder %v4280, 8.507059e+37
      %v4282 = vand.u32 %v3685, 2147483648
      %v4283 = vor.u32 1.1754944e-38, %v4282
      %v4284 = vsel %vm4281, %v4283, %v4279
      %v4285 = vmul.f32 1.0, %v4284
      %v4286 = vmul.f32 %v3486, %v3700
      %v4287 = vmul.f32 %v3487, %v3715
      %v4288 = vmul.f32 %v3488, %v3730
      %v4289 = vmul.f32 %v3489, %v3745
      %v4290 = vmul.f32 %v3490, %v3760
      %v4291 = vmul.f32 %v3491, %v3775
      %v4292 = vmul.f32 %v3492, %v3790
      %v4293 = vmul.f32 %v3493, %v3805
      %v4294 = vmul.f32 %v3494, %v3820
      %v4295 = vmul.f32 %v3495, %v3835
      %v4296 = vmul.f32 %v3496, %v3850
      %v4297 = vmul.f32 %v3497, %v3865
      %v4298 = vmul.f32 %v3498, %v3880
      %v4299 = vmul.f32 %v3499, %v3895
      %v4300 = vmul.f32 %v3500, %v3910
      %v4301 = vmul.f32 %v3501, %v3925
      %v4302 = vmul.f32 %v3502, %v3940
      %v4303 = vmul.f32 %v3503, %v3955
      %v4304 = vmul.f32 %v3504, %v3970
      %v4305 = vmul.f32 %v3505, %v3985
      %v4306 = vmul.f32 %v3506, %v4000
      %v4307 = vmul.f32 %v3507, %v4015
      %v4308 = vmul.f32 %v3508, %v4030
      %v4309 = vmul.f32 %v3509, %v4045
      %v4310 = vmul.f32 %v3510, %v4060
      %v4311 = vmul.f32 %v3511, %v4075
      %v4312 = vmul.f32 %v3512, %v4090
      %v4313 = vmul.f32 %v3513, %v4105
      %v4314 = vmul.f32 %v3514, %v4120
      %v4315 = vmul.f32 %v3515, %v4135
      %v4316 = vmul.f32 %v3516, %v4150
      %v4317 = vmul.f32 %v3517, %v4165
      %v4318 = vmul.f32 %v3518, %v4180
      %v4319 = vmul.f32 %v3519, %v4195
      %v4320 = vmul.f32 %v3520, %v4210
      %v4321 = vmul.f32 %v3521, %v4225
      %v4322 = vmul.f32 %v3522, %v4240
      %v4323 = vmul.f32 %v3523, %v4255
      %v4324 = vmul.f32 %v3524, %v4270
      %v4325 = vmul.f32 %v3525, %v4285
      %s4326 = scalar_lea.vmem [#allocation2], 640
      %4327 = vst.msk [vmem:[%s4326] sm:$0xff] %vm2968, %v4286
      %4328 = vst.msk [vmem:[%s4326 + $0x8] sm:$0xff] %vm2968, %v4287
      %4329 = vst.msk [vmem:[%s4326 + $0x10] sm:$0xff] %vm2968, %v4288
      %4330 = vst.msk [vmem:[%s4326 + $0x18] sm:$0xff] %vm2968, %v4289
      %4331 = vst.msk [vmem:[%s4326 + $0x20] sm:$0xff] %vm2968, %v4290
      %4332 = vst.msk [vmem:[%s4326 + $0x28] sm:$0xff] %vm2968, %v4291
      %4333 = vst.msk [vmem:[%s4326 + $0x30] sm:$0xff] %vm2968, %v4292
      %4334 = vst.msk [vmem:[%s4326 + $0x38] sm:$0xff] %vm2968, %v4293
      %4335 = vst.msk [vmem:[%s4326 + $0x40] sm:$0xff] %vm2968, %v4294
      %4336 = vst.msk [vmem:[%s4326 + $0x48] sm:$0xff] %vm2968, %v4295
      %4337 = vst.msk [vmem:[%s4326 + $0x50] sm:$0xff] %vm2968, %v4296
      %4338 = vst.msk [vmem:[%s4326 + $0x58] sm:$0xff] %vm2968, %v4297
      %4339 = vst.msk [vmem:[%s4326 + $0x60] sm:$0xff] %vm2968, %v4298
      %4340 = vst.msk [vmem:[%s4326 + $0x68] sm:$0xff] %vm2968, %v4299
      %4341 = vst.msk [vmem:[%s4326 + $0x70] sm:$0xff] %vm2968, %v4300
      %4342 = vst.msk [vmem:[%s4326 + $0x78] sm:$0xff] %vm2968, %v4301
      %4343 = vst.msk [vmem:[%s4326 + $0x80] sm:$0xff] %vm2968, %v4302
      %4344 = vst.msk [vmem:[%s4326 + $0x88] sm:$0xff] %vm2968, %v4303
      %4345 = vst.msk [vmem:[%s4326 + $0x90] sm:$0xff] %vm2968, %v4304
      %4346 = vst.msk [vmem:[%s4326 + $0x98] sm:$0xff] %vm2968, %v4305
      %4347 = vst.msk [vmem:[%s4326 + $0xa0] sm:$0xff] %vm2968, %v4306
      %4348 = vst.msk [vmem:[%s4326 + $0xa8] sm:$0xff] %vm2968, %v4307
      %4349 = vst.msk [vmem:[%s4326 + $0xb0] sm:$0xff] %vm2968, %v4308
      %4350 = vst.msk [vmem:[%s4326 + $0xb8] sm:$0xff] %vm2968, %v4309
      %4351 = vst.msk [vmem:[%s4326 + $0xc0] sm:$0xff] %vm2968, %v4310
      %4352 = vst.msk [vmem:[%s4326 + $0xc8] sm:$0xff] %vm2968, %v4311
      %4353 = vst.msk [vmem:[%s4326 + $0xd0] sm:$0xff] %vm2968, %v4312
      %4354 = vst.msk [vmem:[%s4326 + $0xd8] sm:$0xff] %vm2968, %v4313
      %4355 = vst.msk [vmem:[%s4326 + $0xe0] sm:$0xff] %vm2968, %v4314
      %4356 = vst.msk [vmem:[%s4326 + $0xe8] sm:$0xff] %vm2968, %v4315
      %4357 = vst.msk [vmem:[%s4326 + $0xf0] sm:$0xff] %vm2968, %v4316
      %4358 = vst.msk [vmem:[%s4326 + $0xf8] sm:$0xff] %vm2968, %v4317
      %4359 = vst.msk [vmem:[%s4326 + $0x100] sm:$0xff] %vm2968, %v4318
      %4360 = vst.msk [vmem:[%s4326 + $0x108] sm:$0xff] %vm2968, %v4319
      %4361 = vst.msk [vmem:[%s4326 + $0x110] sm:$0xff] %vm2968, %v4320
      %4362 = vst.msk [vmem:[%s4326 + $0x118] sm:$0xff] %vm2968, %v4321
      %4363 = vst.msk [vmem:[%s4326 + $0x120] sm:$0xff] %vm2968, %v4322
      %4364 = vst.msk [vmem:[%s4326 + $0x128] sm:$0xff] %vm2968, %v4323
      %4365 = vst.msk [vmem:[%s4326 + $0x130] sm:$0xff] %vm2968, %v4324
      %4366 = vst.msk [vmem:[%s4326 + $0x138] sm:$0xff] %vm2968, %v4325
      %v4367 = vld [vmem:[#allocation2] sm:$0xff]
      %v4368 = vld [vmem:[#allocation2 + $0x10] sm:$0xff]
      %v4369 = vld [vmem:[#allocation2 + $0x20] sm:$0xff]
      %v4370 = vld [vmem:[#allocation2 + $0x30] sm:$0xff]
      %v4371 = vld [vmem:[#allocation2 + $0x40] sm:$0xff]
      %v4372 = vld [vmem:[#allocation2 + $0x50] sm:$0xff]
      %v4373 = vld [vmem:[#allocation2 + $0x60] sm:$0xff]
      %v4374 = vld [vmem:[#allocation2 + $0x70] sm:$0xff]
      %v4375 = vld [vmem:[#allocation2 + $0x80] sm:$0xff]
      %v4376 = vld [vmem:[#allocation2 + $0x90] sm:$0xff]
      %v4377 = vld [vmem:[#allocation2 + $0xa0] sm:$0xff]
      %v4378 = vld [vmem:[#allocation2 + $0xb0] sm:$0xff]
      %v4379 = vld [vmem:[#allocation2 + $0xc0] sm:$0xff]
      %v4380 = vld [vmem:[#allocation2 + $0xd0] sm:$0xff]
      %v4381 = vld [vmem:[#allocation2 + $0xe0] sm:$0xff]
      %v4382 = vld [vmem:[#allocation2 + $0xf0] sm:$0xff]
      %v4383 = vld [vmem:[#allocation2 + $0x100] sm:$0xff]
      %v4384 = vld [vmem:[#allocation2 + $0x110] sm:$0xff]
      %v4385 = vld [vmem:[#allocation2 + $0x120] sm:$0xff]
      %v4386 = vld [vmem:[#allocation2 + $0x130] sm:$0xff]
      %v4387 = vld [vmem:[#allocation2 + $0x140] sm:$0xff]
      %v4388 = vld [vmem:[#allocation2 + $0x150] sm:$0xff]
      %v4389 = vld [vmem:[#allocation2 + $0x160] sm:$0xff]
      %v4390 = vld [vmem:[#allocation2 + $0x170] sm:$0xff]
      %v4391 = vld [vmem:[#allocation2 + $0x180] sm:$0xff]
      %v4392 = vld [vmem:[#allocation2 + $0x190] sm:$0xff]
      %v4393 = vld [vmem:[#allocation2 + $0x1a0] sm:$0xff]
      %v4394 = vld [vmem:[#allocation2 + $0x1b0] sm:$0xff]
      %v4395 = vld [vmem:[#allocation2 + $0x1c0] sm:$0xff]
      %v4396 = vld [vmem:[#allocation2 + $0x1d0] sm:$0xff]
      %v4397 = vld [vmem:[#allocation2 + $0x1e0] sm:$0xff]
      %v4398 = vld [vmem:[#allocation2 + $0x1f0] sm:$0xff]
      %v4399 = vld [vmem:[#allocation2 + $0x200] sm:$0xff]
      %v4400 = vld [vmem:[#allocation2 + $0x210] sm:$0xff]
      %v4401 = vld [vmem:[#allocation2 + $0x220] sm:$0xff]
      %v4402 = vld [vmem:[#allocation2 + $0x230] sm:$0xff]
      %v4403 = vld [vmem:[#allocation2 + $0x240] sm:$0xff]
      %v4404 = vld [vmem:[#allocation2 + $0x250] sm:$0xff]
      %v4405 = vld [vmem:[#allocation2 + $0x260] sm:$0xff]
      %v4406 = vld [vmem:[#allocation2 + $0x270] sm:$0xff]
      %v4407 = vld [vmem:[#allocation2 + $0x280] sm:$0xff]
      %v4408 = vld [vmem:[#allocation2 + $0x290] sm:$0xff]
      %v4409 = vld [vmem:[#allocation2 + $0x2a0] sm:$0xff]
      %v4410 = vld [vmem:[#allocation2 + $0x2b0] sm:$0xff]
      %v4411 = vld [vmem:[#allocation2 + $0x2c0] sm:$0xff]
      %v4412 = vld [vmem:[#allocation2 + $0x2d0] sm:$0xff]
      %v4413 = vld [vmem:[#allocation2 + $0x2e0] sm:$0xff]
      %v4414 = vld [vmem:[#allocation2 + $0x2f0] sm:$0xff]
      %v4415 = vld [vmem:[#allocation2 + $0x300] sm:$0xff]
      %v4416 = vld [vmem:[#allocation2 + $0x310] sm:$0xff]
      %v4417 = vld [vmem:[#allocation2 + $0x320] sm:$0xff]
      %v4418 = vld [vmem:[#allocation2 + $0x330] sm:$0xff]
      %v4419 = vld [vmem:[#allocation2 + $0x340] sm:$0xff]
      %v4420 = vld [vmem:[#allocation2 + $0x350] sm:$0xff]
      %v4421 = vld [vmem:[#allocation2 + $0x360] sm:$0xff]
      %v4422 = vld [vmem:[#allocation2 + $0x370] sm:$0xff]
      %v4423 = vld [vmem:[#allocation2 + $0x380] sm:$0xff]
      %v4424 = vld [vmem:[#allocation2 + $0x390] sm:$0xff]
      %v4425 = vld [vmem:[#allocation2 + $0x3a0] sm:$0xff]
      %v4426 = vld [vmem:[#allocation2 + $0x3b0] sm:$0xff]
      %4427 = vst.msk [vmem:[#allocation3] sm:$0xff] %vm2968, %v4367
      %4428 = vst.msk [vmem:[#allocation3 + $0x8] sm:$0xff] %vm2968, %v4368
      %4429 = vst.msk [vmem:[#allocation3 + $0x10] sm:$0xff] %vm2968, %v4369
      %4430 = vst.msk [vmem:[#allocation3 + $0x18] sm:$0xff] %vm2968, %v4370
      %4431 = vst.msk [vmem:[#allocation3 + $0x20] sm:$0xff] %vm2968, %v4371
      %4432 = vst.msk [vmem:[#allocation3 + $0x28] sm:$0xff] %vm2968, %v4372
      %4433 = vst.msk [vmem:[#allocation3 + $0x30] sm:$0xff] %vm2968, %v4373
      %4434 = vst.msk [vmem:[#allocation3 + $0x38] sm:$0xff] %vm2968, %v4374
      %4435 = vst.msk [vmem:[#allocation3 + $0x40] sm:$0xff] %vm2968, %v4375
      %4436 = vst.msk [vmem:[#allocation3 + $0x48] sm:$0xff] %vm2968, %v4376
      %4437 = vst.msk [vmem:[#allocation3 + $0x50] sm:$0xff] %vm2968, %v4377
      %4438 = vst.msk [vmem:[#allocation3 + $0x58] sm:$0xff] %vm2968, %v4378
      %4439 = vst.msk [vmem:[#allocation3 + $0x60] sm:$0xff] %vm2968, %v4379
      %4440 = vst.msk [vmem:[#allocation3 + $0x68] sm:$0xff] %vm2968, %v4380
      %4441 = vst.msk [vmem:[#allocation3 + $0x70] sm:$0xff] %vm2968, %v4381
      %4442 = vst.msk [vmem:[#allocation3 + $0x78] sm:$0xff] %vm2968, %v4382
      %4443 = vst.msk [vmem:[#allocation3 + $0x80] sm:$0xff] %vm2968, %v4383
      %4444 = vst.msk [vmem:[#allocation3 + $0x88] sm:$0xff] %vm2968, %v4384
      %4445 = vst.msk [vmem:[#allocation3 + $0x90] sm:$0xff] %vm2968, %v4385
      %4446 = vst.msk [vmem:[#allocation3 + $0x98] sm:$0xff] %vm2968, %v4386
      %4447 = vst.msk [vmem:[#allocation3 + $0xa0] sm:$0xff] %vm2968, %v4387
      %4448 = vst.msk [vmem:[#allocation3 + $0xa8] sm:$0xff] %vm2968, %v4388
      %4449 = vst.msk [vmem:[#allocation3 + $0xb0] sm:$0xff] %vm2968, %v4389
      %4450 = vst.msk [vmem:[#allocation3 + $0xb8] sm:$0xff] %vm2968, %v4390
      %4451 = vst.msk [vmem:[#allocation3 + $0xc0] sm:$0xff] %vm2968, %v4391
      %4452 = vst.msk [vmem:[#allocation3 + $0xc8] sm:$0xff] %vm2968, %v4392
      %4453 = vst.msk [vmem:[#allocation3 + $0xd0] sm:$0xff] %vm2968, %v4393
      %4454 = vst.msk [vmem:[#allocation3 + $0xd8] sm:$0xff] %vm2968, %v4394
      %4455 = vst.msk [vmem:[#allocation3 + $0xe0] sm:$0xff] %vm2968, %v4395
      %4456 = vst.msk [vmem:[#allocation3 + $0xe8] sm:$0xff] %vm2968, %v4396
      %4457 = vst.msk [vmem:[#allocation3 + $0xf0] sm:$0xff] %vm2968, %v4397
      %4458 = vst.msk [vmem:[#allocation3 + $0xf8] sm:$0xff] %vm2968, %v4398
      %4459 = vst.msk [vmem:[#allocation3 + $0x100] sm:$0xff] %vm2968, %v4399
      %4460 = vst.msk [vmem:[#allocation3 + $0x108] sm:$0xff] %vm2968, %v4400
      %4461 = vst.msk [vmem:[#allocation3 + $0x110] sm:$0xff] %vm2968, %v4401
      %4462 = vst.msk [vmem:[#allocation3 + $0x118] sm:$0xff] %vm2968, %v4402
      %4463 = vst.msk [vmem:[#allocation3 + $0x120] sm:$0xff] %vm2968, %v4403
      %4464 = vst.msk [vmem:[#allocation3 + $0x128] sm:$0xff] %vm2968, %v4404
      %4465 = vst.msk [vmem:[#allocation3 + $0x130] sm:$0xff] %vm2968, %v4405
      %4466 = vst.msk [vmem:[#allocation3 + $0x138] sm:$0xff] %vm2968, %v4406
      %4467 = vst.msk [vmem:[#allocation3 + $0x140] sm:$0xff] %vm2968, %v4407
      %4468 = vst.msk [vmem:[#allocation3 + $0x148] sm:$0xff] %vm2968, %v4408
      %4469 = vst.msk [vmem:[#allocation3 + $0x150] sm:$0xff] %vm2968, %v4409
      %4470 = vst.msk [vmem:[#allocation3 + $0x158] sm:$0xff] %vm2968, %v4410
      %4471 = vst.msk [vmem:[#allocation3 + $0x160] sm:$0xff] %vm2968, %v4411
      %4472 = vst.msk [vmem:[#allocation3 + $0x168] sm:$0xff] %vm2968, %v4412
      %4473 = vst.msk [vmem:[#allocation3 + $0x170] sm:$0xff] %vm2968, %v4413
      %4474 = vst.msk [vmem:[#allocation3 + $0x178] sm:$0xff] %vm2968, %v4414
      %4475 = vst.msk [vmem:[#allocation3 + $0x180] sm:$0xff] %vm2968, %v4415
      %4476 = vst.msk [vmem:[#allocation3 + $0x188] sm:$0xff] %vm2968, %v4416
      %4477 = vst.msk [vmem:[#allocation3 + $0x190] sm:$0xff] %vm2968, %v4417
      %4478 = vst.msk [vmem:[#allocation3 + $0x198] sm:$0xff] %vm2968, %v4418
      %4479 = vst.msk [vmem:[#allocation3 + $0x1a0] sm:$0xff] %vm2968, %v4419
      %4480 = vst.msk [vmem:[#allocation3 + $0x1a8] sm:$0xff] %vm2968, %v4420
      %4481 = vst.msk [vmem:[#allocation3 + $0x1b0] sm:$0xff] %vm2968, %v4421
      %4482 = vst.msk [vmem:[#allocation3 + $0x1b8] sm:$0xff] %vm2968, %v4422
      %4483 = vst.msk [vmem:[#allocation3 + $0x1c0] sm:$0xff] %vm2968, %v4423
      %4484 = vst.msk [vmem:[#allocation3 + $0x1c8] sm:$0xff] %vm2968, %v4424
      %4485 = vst.msk [vmem:[#allocation3 + $0x1d0] sm:$0xff] %vm2968, %v4425
      %4486 = vst.msk [vmem:[#allocation3 + $0x1d8] sm:$0xff] %vm2968, %v4426
      %v4487 = vld [vmem:[#allocation3] sm:$0xff]
      %v4488 = vld [vmem:[#allocation3 + $0x8] sm:$0xff]
      %v4489 = vld [vmem:[#allocation3 + $0x10] sm:$0xff]
      %v4490 = vld [vmem:[#allocation3 + $0x18] sm:$0xff]
      %v4491 = vld [vmem:[#allocation3 + $0x20] sm:$0xff]
      %v4492 = vld [vmem:[#allocation3 + $0x28] sm:$0xff]
      %v4493 = vld [vmem:[#allocation3 + $0x30] sm:$0xff]
      %v4494 = vld [vmem:[#allocation3 + $0x38] sm:$0xff]
      %v4495 = vld [vmem:[#allocation3 + $0x50] sm:$0xff]
      %v4496 = vld [vmem:[#allocation3 + $0x58] sm:$0xff]
      %v4497 = vld [vmem:[#allocation3 + $0x60] sm:$0xff]
      %v4498 = vld [vmem:[#allocation3 + $0x68] sm:$0xff]
      %v4499 = vld [vmem:[#allocation3 + $0x70] sm:$0xff]
      %v4500 = vld [vmem:[#allocation3 + $0x78] sm:$0xff]
      %v4501 = vld [vmem:[#allocation3 + $0x80] sm:$0xff]
      %v4502 = vld [vmem:[#allocation3 + $0x88] sm:$0xff]
      %v4503 = vld [vmem:[#allocation3 + $0xa0] sm:$0xff]
      %v4504 = vld [vmem:[#allocation3 + $0xa8] sm:$0xff]
      %v4505 = vld [vmem:[#allocation3 + $0xb0] sm:$0xff]
      %v4506 = vld [vmem:[#allocation3 + $0xb8] sm:$0xff]
      %v4507 = vld [vmem:[#allocation3 + $0xc0] sm:$0xff]
      %v4508 = vld [vmem:[#allocation3 + $0xc8] sm:$0xff]
      %v4509 = vld [vmem:[#allocation3 + $0xd0] sm:$0xff]
      %v4510 = vld [vmem:[#allocation3 + $0xd8] sm:$0xff]
      %v4511 = vld [vmem:[#allocation3 + $0xf0] sm:$0xff]
      %v4512 = vld [vmem:[#allocation3 + $0xf8] sm:$0xff]
      %v4513 = vld [vmem:[#allocation3 + $0x100] sm:$0xff]
      %v4514 = vld [vmem:[#allocation3 + $0x108] sm:$0xff]
      %v4515 = vld [vmem:[#allocation3 + $0x110] sm:$0xff]
      %v4516 = vld [vmem:[#allocation3 + $0x118] sm:$0xff]
      %v4517 = vld [vmem:[#allocation3 + $0x120] sm:$0xff]
      %v4518 = vld [vmem:[#allocation3 + $0x128] sm:$0xff]
      %v4519 = vld [vmem:[%s4] sm:$0x1]
      %v4520 = vperm.slane %v4519, 0
      %v4521 = vmul.f32 %v4487, %v4520
      %v4522 = vmul.f32 %v4488, %v4520
      %v4523 = vmul.f32 %v4489, %v4520
      %v4524 = vmul.f32 %v4490, %v4520
      %v4525 = vmul.f32 %v4491, %v4520
      %v4526 = vmul.f32 %v4492, %v4520
      %v4527 = vmul.f32 %v4493, %v4520
      %v4528 = vmul.f32 %v4494, %v4520
      %v4529 = vmul.f32 %v4495, %v4520
      %v4530 = vmul.f32 %v4496, %v4520
      %v4531 = vmul.f32 %v4497, %v4520
      %v4532 = vmul.f32 %v4498, %v4520
      %v4533 = vmul.f32 %v4499, %v4520
      %v4534 = vmul.f32 %v4500, %v4520
      %v4535 = vmul.f32 %v4501, %v4520
      %v4536 = vmul.f32 %v4502, %v4520
      %v4537 = vmul.f32 %v4503, %v4520
      %v4538 = vmul.f32 %v4504, %v4520
      %v4539 = vmul.f32 %v4505, %v4520
      %v4540 = vmul.f32 %v4506, %v4520
      %v4541 = vmul.f32 %v4507, %v4520
      %v4542 = vmul.f32 %v4508, %v4520
      %v4543 = vmul.f32 %v4509, %v4520
      %v4544 = vmul.f32 %v4510, %v4520
      %v4545 = vmul.f32 %v4511, %v4520
      %v4546 = vmul.f32 %v4512, %v4520
      %v4547 = vmul.f32 %v4513, %v4520
      %v4548 = vmul.f32 %v4514, %v4520
      %v4549 = vmul.f32 %v4515, %v4520
      %v4550 = vmul.f32 %v4516, %v4520
      %v4551 = vmul.f32 %v4517, %v4520
      %v4552 = vmul.f32 %v4518, %v4520
      %s4553 = scalar_lea.vmem [#allocation3], 8
      %v4554 = vld [vmem:[%s4553] sm:$0xff]
      %v4555 = vld [vmem:[%s4553 + $0x8] sm:$0xff]
      %v4556 = vld [vmem:[%s4553 + $0x10] sm:$0xff]
      %v4557 = vld [vmem:[%s4553 + $0x18] sm:$0xff]
      %v4558 = vld [vmem:[%s4553 + $0x20] sm:$0xff]
      %v4559 = vld [vmem:[%s4553 + $0x28] sm:$0xff]
      %v4560 = vld [vmem:[%s4553 + $0x30] sm:$0xff]
      %v4561 = vld [vmem:[%s4553 + $0x38] sm:$0xff]
      %v4562 = vld [vmem:[%s4553 + $0x50] sm:$0xff]
      %v4563 = vld [vmem:[%s4553 + $0x58] sm:$0xff]
      %v4564 = vld [vmem:[%s4553 + $0x60] sm:$0xff]
      %v4565 = vld [vmem:[%s4553 + $0x68] sm:$0xff]
      %v4566 = vld [vmem:[%s4553 + $0x70] sm:$0xff]
      %v4567 = vld [vmem:[%s4553 + $0x78] sm:$0xff]
      %v4568 = vld [vmem:[%s4553 + $0x80] sm:$0xff]
      %v4569 = vld [vmem:[%s4553 + $0x88] sm:$0xff]
      %v4570 = vld [vmem:[%s4553 + $0xa0] sm:$0xff]
      %v4571 = vld [vmem:[%s4553 + $0xa8] sm:$0xff]
      %v4572 = vld [vmem:[%s4553 + $0xb0] sm:$0xff]
      %v4573 = vld [vmem:[%s4553 + $0xb8] sm:$0xff]
      %v4574 = vld [vmem:[%s4553 + $0xc0] sm:$0xff]
      %v4575 = vld [vmem:[%s4553 + $0xc8] sm:$0xff]
      %v4576 = vld [vmem:[%s4553 + $0xd0] sm:$0xff]
      %v4577 = vld [vmem:[%s4553 + $0xd8] sm:$0xff]
      %v4578 = vld [vmem:[%s4553 + $0xf0] sm:$0xff]
      %v4579 = vld [vmem:[%s4553 + $0xf8] sm:$0xff]
      %v4580 = vld [vmem:[%s4553 + $0x100] sm:$0xff]
      %v4581 = vld [vmem:[%s4553 + $0x108] sm:$0xff]
      %v4582 = vld [vmem:[%s4553 + $0x110] sm:$0xff]
      %v4583 = vld [vmem:[%s4553 + $0x118] sm:$0xff]
      %v4584 = vld [vmem:[%s4553 + $0x120] sm:$0xff]
      %v4585 = vld [vmem:[%s4553 + $0x128] sm:$0xff]
      %v4586 = vld [vmem:[%s4 + $0x3] sm:$0x1]
      %v4587 = vperm.slane %v4586, 0
      %v4588 = vmul.f32 %v4554, %v4587
      %v4589 = vmul.f32 %v4555, %v4587
      %v4590 = vmul.f32 %v4556, %v4587
      %v4591 = vmul.f32 %v4557, %v4587
      %v4592 = vmul.f32 %v4558, %v4587
      %v4593 = vmul.f32 %v4559, %v4587
      %v4594 = vmul.f32 %v4560, %v4587
      %v4595 = vmul.f32 %v4561, %v4587
      %v4596 = vmul.f32 %v4562, %v4587
      %v4597 = vmul.f32 %v4563, %v4587
      %v4598 = vmul.f32 %v4564, %v4587
      %v4599 = vmul.f32 %v4565, %v4587
      %v4600 = vmul.f32 %v4566, %v4587
      %v4601 = vmul.f32 %v4567, %v4587
      %v4602 = vmul.f32 %v4568, %v4587
      %v4603 = vmul.f32 %v4569, %v4587
      %v4604 = vmul.f32 %v4570, %v4587
      %v4605 = vmul.f32 %v4571, %v4587
      %v4606 = vmul.f32 %v4572, %v4587
      %v4607 = vmul.f32 %v4573, %v4587
      %v4608 = vmul.f32 %v4574, %v4587
      %v4609 = vmul.f32 %v4575, %v4587
      %v4610 = vmul.f32 %v4576, %v4587
      %v4611 = vmul.f32 %v4577, %v4587
      %v4612 = vmul.f32 %v4578, %v4587
      %v4613 = vmul.f32 %v4579, %v4587
      %v4614 = vmul.f32 %v4580, %v4587
      %v4615 = vmul.f32 %v4581, %v4587
      %v4616 = vmul.f32 %v4582, %v4587
      %v4617 = vmul.f32 %v4583, %v4587
      %v4618 = vmul.f32 %v4584, %v4587
      %v4619 = vmul.f32 %v4585, %v4587
      %v4620 = vadd.f32 %v4521, %v4588
      %v4621 = vadd.f32 %v4522, %v4589
      %v4622 = vadd.f32 %v4523, %v4590
      %v4623 = vadd.f32 %v4524, %v4591
      %v4624 = vadd.f32 %v4525, %v4592
      %v4625 = vadd.f32 %v4526, %v4593
      %v4626 = vadd.f32 %v4527, %v4594
      %v4627 = vadd.f32 %v4528, %v4595
      %v4628 = vadd.f32 %v4529, %v4596
      %v4629 = vadd.f32 %v4530, %v4597
      %v4630 = vadd.f32 %v4531, %v4598
      %v4631 = vadd.f32 %v4532, %v4599
      %v4632 = vadd.f32 %v4533, %v4600
      %v4633 = vadd.f32 %v4534, %v4601
      %v4634 = vadd.f32 %v4535, %v4602
      %v4635 = vadd.f32 %v4536, %v4603
      %v4636 = vadd.f32 %v4537, %v4604
      %v4637 = vadd.f32 %v4538, %v4605
      %v4638 = vadd.f32 %v4539, %v4606
      %v4639 = vadd.f32 %v4540, %v4607
      %v4640 = vadd.f32 %v4541, %v4608
      %v4641 = vadd.f32 %v4542, %v4609
      %v4642 = vadd.f32 %v4543, %v4610
      %v4643 = vadd.f32 %v4544, %v4611
      %v4644 = vadd.f32 %v4545, %v4612
      %v4645 = vadd.f32 %v4546, %v4613
      %v4646 = vadd.f32 %v4547, %v4614
      %v4647 = vadd.f32 %v4548, %v4615
      %v4648 = vadd.f32 %v4549, %v4616
      %v4649 = vadd.f32 %v4550, %v4617
      %v4650 = vadd.f32 %v4551, %v4618
      %v4651 = vadd.f32 %v4552, %v4619
      %s4652 = scalar_lea.vmem [#allocation3], 16
      %v4653 = vld [vmem:[%s4652] sm:$0xff]
      %v4654 = vld [vmem:[%s4652 + $0x8] sm:$0xff]
      %v4655 = vld [vmem:[%s4652 + $0x10] sm:$0xff]
      %v4656 = vld [vmem:[%s4652 + $0x18] sm:$0xff]
      %v4657 = vld [vmem:[%s4652 + $0x20] sm:$0xff]
      %v4658 = vld [vmem:[%s4652 + $0x28] sm:$0xff]
      %v4659 = vld [vmem:[%s4652 + $0x30] sm:$0xff]
      %v4660 = vld [vmem:[%s4652 + $0x38] sm:$0xff]
      %v4661 = vld [vmem:[%s4652 + $0x50] sm:$0xff]
      %v4662 = vld [vmem:[%s4652 + $0x58] sm:$0xff]
      %v4663 = vld [vmem:[%s4652 + $0x60] sm:$0xff]
      %v4664 = vld [vmem:[%s4652 + $0x68] sm:$0xff]
      %v4665 = vld [vmem:[%s4652 + $0x70] sm:$0xff]
      %v4666 = vld [vmem:[%s4652 + $0x78] sm:$0xff]
      %v4667 = vld [vmem:[%s4652 + $0x80] sm:$0xff]
      %v4668 = vld [vmem:[%s4652 + $0x88] sm:$0xff]
      %v4669 = vld [vmem:[%s4652 + $0xa0] sm:$0xff]
      %v4670 = vld [vmem:[%s4652 + $0xa8] sm:$0xff]
      %v4671 = vld [vmem:[%s4652 + $0xb0] sm:$0xff]
      %v4672 = vld [vmem:[%s4652 + $0xb8] sm:$0xff]
      %v4673 = vld [vmem:[%s4652 + $0xc0] sm:$0xff]
      %v4674 = vld [vmem:[%s4652 + $0xc8] sm:$0xff]
      %v4675 = vld [vmem:[%s4652 + $0xd0] sm:$0xff]
      %v4676 = vld [vmem:[%s4652 + $0xd8] sm:$0xff]
      %v4677 = vld [vmem:[%s4652 + $0xf0] sm:$0xff]
      %v4678 = vld [vmem:[%s4652 + $0xf8] sm:$0xff]
      %v4679 = vld [vmem:[%s4652 + $0x100] sm:$0xff]
      %v4680 = vld [vmem:[%s4652 + $0x108] sm:$0xff]
      %v4681 = vld [vmem:[%s4652 + $0x110] sm:$0xff]
      %v4682 = vld [vmem:[%s4652 + $0x118] sm:$0xff]
      %v4683 = vld [vmem:[%s4652 + $0x120] sm:$0xff]
      %v4684 = vld [vmem:[%s4652 + $0x128] sm:$0xff]
      %v4685 = vld [vmem:[%s4 + $0x6] sm:$0x1]
      %v4686 = vperm.slane %v4685, 0
      %v4687 = vmul.f32 %v4653, %v4686
      %v4688 = vmul.f32 %v4654, %v4686
      %v4689 = vmul.f32 %v4655, %v4686
      %v4690 = vmul.f32 %v4656, %v4686
      %v4691 = vmul.f32 %v4657, %v4686
      %v4692 = vmul.f32 %v4658, %v4686
      %v4693 = vmul.f32 %v4659, %v4686
      %v4694 = vmul.f32 %v4660, %v4686
      %v4695 = vmul.f32 %v4661, %v4686
      %v4696 = vmul.f32 %v4662, %v4686
      %v4697 = vmul.f32 %v4663, %v4686
      %v4698 = vmul.f32 %v4664, %v4686
      %v4699 = vmul.f32 %v4665, %v4686
      %v4700 = vmul.f32 %v4666, %v4686
      %v4701 = vmul.f32 %v4667, %v4686
      %v4702 = vmul.f32 %v4668, %v4686
      %v4703 = vmul.f32 %v4669, %v4686
      %v4704 = vmul.f32 %v4670, %v4686
      %v4705 = vmul.f32 %v4671, %v4686
      %v4706 = vmul.f32 %v4672, %v4686
      %v4707 = vmul.f32 %v4673, %v4686
      %v4708 = vmul.f32 %v4674, %v4686
      %v4709 = vmul.f32 %v4675, %v4686
      %v4710 = vmul.f32 %v4676, %v4686
      %v4711 = vmul.f32 %v4677, %v4686
      %v4712 = vmul.f32 %v4678, %v4686
      %v4713 = vmul.f32 %v4679, %v4686
      %v4714 = vmul.f32 %v4680, %v4686
      %v4715 = vmul.f32 %v4681, %v4686
      %v4716 = vmul.f32 %v4682, %v4686
      %v4717 = vmul.f32 %v4683, %v4686
      %v4718 = vmul.f32 %v4684, %v4686
      %v4719 = vadd.f32 %v4620, %v4687
      %v4720 = vadd.f32 %v4621, %v4688
      %v4721 = vadd.f32 %v4622, %v4689
      %v4722 = vadd.f32 %v4623, %v4690
      %v4723 = vadd.f32 %v4624, %v4691
      %v4724 = vadd.f32 %v4625, %v4692
      %v4725 = vadd.f32 %v4626, %v4693
      %v4726 = vadd.f32 %v4627, %v4694
      %v4727 = vadd.f32 %v4628, %v4695
      %v4728 = vadd.f32 %v4629, %v4696
      %v4729 = vadd.f32 %v4630, %v4697
      %v4730 = vadd.f32 %v4631, %v4698
      %v4731 = vadd.f32 %v4632, %v4699
      %v4732 = vadd.f32 %v4633, %v4700
      %v4733 = vadd.f32 %v4634, %v4701
      %v4734 = vadd.f32 %v4635, %v4702
      %v4735 = vadd.f32 %v4636, %v4703
      %v4736 = vadd.f32 %v4637, %v4704
      %v4737 = vadd.f32 %v4638, %v4705
      %v4738 = vadd.f32 %v4639, %v4706
      %v4739 = vadd.f32 %v4640, %v4707
      %v4740 = vadd.f32 %v4641, %v4708
      %v4741 = vadd.f32 %v4642, %v4709
      %v4742 = vadd.f32 %v4643, %v4710
      %v4743 = vadd.f32 %v4644, %v4711
      %v4744 = vadd.f32 %v4645, %v4712
      %v4745 = vadd.f32 %v4646, %v4713
      %v4746 = vadd.f32 %v4647, %v4714
      %v4747 = vadd.f32 %v4648, %v4715
      %v4748 = vadd.f32 %v4649, %v4716
      %v4749 = vadd.f32 %v4650, %v4717
      %v4750 = vadd.f32 %v4651, %v4718
      %s4751 = scalar_lea.vmem [#allocation3], 80
      %v4752 = vld [vmem:[%s4751] sm:$0xff]
      %v4753 = vld [vmem:[%s4751 + $0x8] sm:$0xff]
      %v4754 = vld [vmem:[%s4751 + $0x10] sm:$0xff]
      %v4755 = vld [vmem:[%s4751 + $0x18] sm:$0xff]
      %v4756 = vld [vmem:[%s4751 + $0x20] sm:$0xff]
      %v4757 = vld [vmem:[%s4751 + $0x28] sm:$0xff]
      %v4758 = vld [vmem:[%s4751 + $0x30] sm:$0xff]
      %v4759 = vld [vmem:[%s4751 + $0x38] sm:$0xff]
      %v4760 = vld [vmem:[%s4751 + $0x50] sm:$0xff]
      %v4761 = vld [vmem:[%s4751 + $0x58] sm:$0xff]
      %v4762 = vld [vmem:[%s4751 + $0x60] sm:$0xff]
      %v4763 = vld [vmem:[%s4751 + $0x68] sm:$0xff]
      %v4764 = vld [vmem:[%s4751 + $0x70] sm:$0xff]
      %v4765 = vld [vmem:[%s4751 + $0x78] sm:$0xff]
      %v4766 = vld [vmem:[%s4751 + $0x80] sm:$0xff]
      %v4767 = vld [vmem:[%s4751 + $0x88] sm:$0xff]
      %v4768 = vld [vmem:[%s4751 + $0xa0] sm:$0xff]
      %v4769 = vld [vmem:[%s4751 + $0xa8] sm:$0xff]
      %v4770 = vld [vmem:[%s4751 + $0xb0] sm:$0xff]
      %v4771 = vld [vmem:[%s4751 + $0xb8] sm:$0xff]
      %v4772 = vld [vmem:[%s4751 + $0xc0] sm:$0xff]
      %v4773 = vld [vmem:[%s4751 + $0xc8] sm:$0xff]
      %v4774 = vld [vmem:[%s4751 + $0xd0] sm:$0xff]
      %v4775 = vld [vmem:[%s4751 + $0xd8] sm:$0xff]
      %v4776 = vld [vmem:[%s4751 + $0xf0] sm:$0xff]
      %v4777 = vld [vmem:[%s4751 + $0xf8] sm:$0xff]
      %v4778 = vld [vmem:[%s4751 + $0x100] sm:$0xff]
      %v4779 = vld [vmem:[%s4751 + $0x108] sm:$0xff]
      %v4780 = vld [vmem:[%s4751 + $0x110] sm:$0xff]
      %v4781 = vld [vmem:[%s4751 + $0x118] sm:$0xff]
      %v4782 = vld [vmem:[%s4751 + $0x120] sm:$0xff]
      %v4783 = vld [vmem:[%s4751 + $0x128] sm:$0xff]
      %v4784 = vld [vmem:[%s4 + $0x9] sm:$0x1]
      %v4785 = vperm.slane %v4784, 0
      %v4786 = vmul.f32 %v4752, %v4785
      %v4787 = vmul.f32 %v4753, %v4785
      %v4788 = vmul.f32 %v4754, %v4785
      %v4789 = vmul.f32 %v4755, %v4785
      %v4790 = vmul.f32 %v4756, %v4785
      %v4791 = vmul.f32 %v4757, %v4785
      %v4792 = vmul.f32 %v4758, %v4785
      %v4793 = vmul.f32 %v4759, %v4785
      %v4794 = vmul.f32 %v4760, %v4785
      %v4795 = vmul.f32 %v4761, %v4785
      %v4796 = vmul.f32 %v4762, %v4785
      %v4797 = vmul.f32 %v4763, %v4785
      %v4798 = vmul.f32 %v4764, %v4785
      %v4799 = vmul.f32 %v4765, %v4785
      %v4800 = vmul.f32 %v4766, %v4785
      %v4801 = vmul.f32 %v4767, %v4785
      %v4802 = vmul.f32 %v4768, %v4785
      %v4803 = vmul.f32 %v4769, %v4785
      %v4804 = vmul.f32 %v4770, %v4785
      %v4805 = vmul.f32 %v4771, %v4785
      %v4806 = vmul.f32 %v4772, %v4785
      %v4807 = vmul.f32 %v4773, %v4785
      %v4808 = vmul.f32 %v4774, %v4785
      %v4809 = vmul.f32 %v4775, %v4785
      %v4810 = vmul.f32 %v4776, %v4785
      %v4811 = vmul.f32 %v4777, %v4785
      %v4812 = vmul.f32 %v4778, %v4785
      %v4813 = vmul.f32 %v4779, %v4785
      %v4814 = vmul.f32 %v4780, %v4785
      %v4815 = vmul.f32 %v4781, %v4785
      %v4816 = vmul.f32 %v4782, %v4785
      %v4817 = vmul.f32 %v4783, %v4785
      %v4818 = vadd.f32 %v4719, %v4786
      %v4819 = vadd.f32 %v4720, %v4787
      %v4820 = vadd.f32 %v4721, %v4788
      %v4821 = vadd.f32 %v4722, %v4789
      %v4822 = vadd.f32 %v4723, %v4790
      %v4823 = vadd.f32 %v4724, %v4791
      %v4824 = vadd.f32 %v4725, %v4792
      %v4825 = vadd.f32 %v4726, %v4793
      %v4826 = vadd.f32 %v4727, %v4794
      %v4827 = vadd.f32 %v4728, %v4795
      %v4828 = vadd.f32 %v4729, %v4796
      %v4829 = vadd.f32 %v4730, %v4797
      %v4830 = vadd.f32 %v4731, %v4798
      %v4831 = vadd.f32 %v4732, %v4799
      %v4832 = vadd.f32 %v4733, %v4800
      %v4833 = vadd.f32 %v4734, %v4801
      %v4834 = vadd.f32 %v4735, %v4802
      %v4835 = vadd.f32 %v4736, %v4803
      %v4836 = vadd.f32 %v4737, %v4804
      %v4837 = vadd.f32 %v4738, %v4805
      %v4838 = vadd.f32 %v4739, %v4806
      %v4839 = vadd.f32 %v4740, %v4807
      %v4840 = vadd.f32 %v4741, %v4808
      %v4841 = vadd.f32 %v4742, %v4809
      %v4842 = vadd.f32 %v4743, %v4810
      %v4843 = vadd.f32 %v4744, %v4811
      %v4844 = vadd.f32 %v4745, %v4812
      %v4845 = vadd.f32 %v4746, %v4813
      %v4846 = vadd.f32 %v4747, %v4814
      %v4847 = vadd.f32 %v4748, %v4815
      %v4848 = vadd.f32 %v4749, %v4816
      %v4849 = vadd.f32 %v4750, %v4817
      %s4850 = scalar_lea.vmem [#allocation3], 88
      %v4851 = vld [vmem:[%s4850] sm:$0xff]
      %v4852 = vld [vmem:[%s4850 + $0x8] sm:$0xff]
      %v4853 = vld [vmem:[%s4850 + $0x10] sm:$0xff]
      %v4854 = vld [vmem:[%s4850 + $0x18] sm:$0xff]
      %v4855 = vld [vmem:[%s4850 + $0x20] sm:$0xff]
      %v4856 = vld [vmem:[%s4850 + $0x28] sm:$0xff]
      %v4857 = vld [vmem:[%s4850 + $0x30] sm:$0xff]
      %v4858 = vld [vmem:[%s4850 + $0x38] sm:$0xff]
      %v4859 = vld [vmem:[%s4850 + $0x50] sm:$0xff]
      %v4860 = vld [vmem:[%s4850 + $0x58] sm:$0xff]
      %v4861 = vld [vmem:[%s4850 + $0x60] sm:$0xff]
      %v4862 = vld [vmem:[%s4850 + $0x68] sm:$0xff]
      %v4863 = vld [vmem:[%s4850 + $0x70] sm:$0xff]
      %v4864 = vld [vmem:[%s4850 + $0x78] sm:$0xff]
      %v4865 = vld [vmem:[%s4850 + $0x80] sm:$0xff]
      %v4866 = vld [vmem:[%s4850 + $0x88] sm:$0xff]
      %v4867 = vld [vmem:[%s4850 + $0xa0] sm:$0xff]
      %v4868 = vld [vmem:[%s4850 + $0xa8] sm:$0xff]
      %v4869 = vld [vmem:[%s4850 + $0xb0] sm:$0xff]
      %v4870 = vld [vmem:[%s4850 + $0xb8] sm:$0xff]
      %v4871 = vld [vmem:[%s4850 + $0xc0] sm:$0xff]
      %v4872 = vld [vmem:[%s4850 + $0xc8] sm:$0xff]
      %v4873 = vld [vmem:[%s4850 + $0xd0] sm:$0xff]
      %v4874 = vld [vmem:[%s4850 + $0xd8] sm:$0xff]
      %v4875 = vld [vmem:[%s4850 + $0xf0] sm:$0xff]
      %v4876 = vld [vmem:[%s4850 + $0xf8] sm:$0xff]
      %v4877 = vld [vmem:[%s4850 + $0x100] sm:$0xff]
      %v4878 = vld [vmem:[%s4850 + $0x108] sm:$0xff]
      %v4879 = vld [vmem:[%s4850 + $0x110] sm:$0xff]
      %v4880 = vld [vmem:[%s4850 + $0x118] sm:$0xff]
      %v4881 = vld [vmem:[%s4850 + $0x120] sm:$0xff]
      %v4882 = vld [vmem:[%s4850 + $0x128] sm:$0xff]
      %v4883 = vld [vmem:[%s4 + $0xc] sm:$0x1]
      %v4884 = vperm.slane %v4883, 0
      %v4885 = vmul.f32 %v4851, %v4884
      %v4886 = vmul.f32 %v4852, %v4884
      %v4887 = vmul.f32 %v4853, %v4884
      %v4888 = vmul.f32 %v4854, %v4884
      %v4889 = vmul.f32 %v4855, %v4884
      %v4890 = vmul.f32 %v4856, %v4884
      %v4891 = vmul.f32 %v4857, %v4884
      %v4892 = vmul.f32 %v4858, %v4884
      %v4893 = vmul.f32 %v4859, %v4884
      %v4894 = vmul.f32 %v4860, %v4884
      %v4895 = vmul.f32 %v4861, %v4884
      %v4896 = vmul.f32 %v4862, %v4884
      %v4897 = vmul.f32 %v4863, %v4884
      %v4898 = vmul.f32 %v4864, %v4884
      %v4899 = vmul.f32 %v4865, %v4884
      %v4900 = vmul.f32 %v4866, %v4884
      %v4901 = vmul.f32 %v4867, %v4884
      %v4902 = vmul.f32 %v4868, %v4884
      %v4903 = vmul.f32 %v4869, %v4884
      %v4904 = vmul.f32 %v4870, %v4884
      %v4905 = vmul.f32 %v4871, %v4884
      %v4906 = vmul.f32 %v4872, %v4884
      %v4907 = vmul.f32 %v4873, %v4884
      %v4908 = vmul.f32 %v4874, %v4884
      %v4909 = vmul.f32 %v4875, %v4884
      %v4910 = vmul.f32 %v4876, %v4884
      %v4911 = vmul.f32 %v4877, %v4884
      %v4912 = vmul.f32 %v4878, %v4884
      %v4913 = vmul.f32 %v4879, %v4884
      %v4914 = vmul.f32 %v4880, %v4884
      %v4915 = vmul.f32 %v4881, %v4884
      %v4916 = vmul.f32 %v4882, %v4884
      %v4917 = vadd.f32 %v4818, %v4885
      %v4918 = vadd.f32 %v4819, %v4886
      %v4919 = vadd.f32 %v4820, %v4887
      %v4920 = vadd.f32 %v4821, %v4888
      %v4921 = vadd.f32 %v4822, %v4889
      %v4922 = vadd.f32 %v4823, %v4890
      %v4923 = vadd.f32 %v4824, %v4891
      %v4924 = vadd.f32 %v4825, %v4892
      %v4925 = vadd.f32 %v4826, %v4893
      %v4926 = vadd.f32 %v4827, %v4894
      %v4927 = vadd.f32 %v4828, %v4895
      %v4928 = vadd.f32 %v4829, %v4896
      %v4929 = vadd.f32 %v4830, %v4897
      %v4930 = vadd.f32 %v4831, %v4898
      %v4931 = vadd.f32 %v4832, %v4899
      %v4932 = vadd.f32 %v4833, %v4900
      %v4933 = vadd.f32 %v4834, %v4901
      %v4934 = vadd.f32 %v4835, %v4902
      %v4935 = vadd.f32 %v4836, %v4903
      %v4936 = vadd.f32 %v4837, %v4904
      %v4937 = vadd.f32 %v4838, %v4905
      %v4938 = vadd.f32 %v4839, %v4906
      %v4939 = vadd.f32 %v4840, %v4907
      %v4940 = vadd.f32 %v4841, %v4908
      %v4941 = vadd.f32 %v4842, %v4909
      %v4942 = vadd.f32 %v4843, %v4910
      %v4943 = vadd.f32 %v4844, %v4911
      %v4944 = vadd.f32 %v4845, %v4912
      %v4945 = vadd.f32 %v4846, %v4913
      %v4946 = vadd.f32 %v4847, %v4914
      %v4947 = vadd.f32 %v4848, %v4915
      %v4948 = vadd.f32 %v4849, %v4916
      %s4949 = scalar_lea.vmem [#allocation3], 96
      %v4950 = vld [vmem:[%s4949] sm:$0xff]
      %v4951 = vld [vmem:[%s4949 + $0x8] sm:$0xff]
      %v4952 = vld [vmem:[%s4949 + $0x10] sm:$0xff]
      %v4953 = vld [vmem:[%s4949 + $0x18] sm:$0xff]
      %v4954 = vld [vmem:[%s4949 + $0x20] sm:$0xff]
      %v4955 = vld [vmem:[%s4949 + $0x28] sm:$0xff]
      %v4956 = vld [vmem:[%s4949 + $0x30] sm:$0xff]
      %v4957 = vld [vmem:[%s4949 + $0x38] sm:$0xff]
      %v4958 = vld [vmem:[%s4949 + $0x50] sm:$0xff]
      %v4959 = vld [vmem:[%s4949 + $0x58] sm:$0xff]
      %v4960 = vld [vmem:[%s4949 + $0x60] sm:$0xff]
      %v4961 = vld [vmem:[%s4949 + $0x68] sm:$0xff]
      %v4962 = vld [vmem:[%s4949 + $0x70] sm:$0xff]
      %v4963 = vld [vmem:[%s4949 + $0x78] sm:$0xff]
      %v4964 = vld [vmem:[%s4949 + $0x80] sm:$0xff]
      %v4965 = vld [vmem:[%s4949 + $0x88] sm:$0xff]
      %v4966 = vld [vmem:[%s4949 + $0xa0] sm:$0xff]
      %v4967 = vld [vmem:[%s4949 + $0xa8] sm:$0xff]
      %v4968 = vld [vmem:[%s4949 + $0xb0] sm:$0xff]
      %v4969 = vld [vmem:[%s4949 + $0xb8] sm:$0xff]
      %v4970 = vld [vmem:[%s4949 + $0xc0] sm:$0xff]
      %v4971 = vld [vmem:[%s4949 + $0xc8] sm:$0xff]
      %v4972 = vld [vmem:[%s4949 + $0xd0] sm:$0xff]
      %v4973 = vld [vmem:[%s4949 + $0xd8] sm:$0xff]
      %v4974 = vld [vmem:[%s4949 + $0xf0] sm:$0xff]
      %v4975 = vld [vmem:[%s4949 + $0xf8] sm:$0xff]
      %v4976 = vld [vmem:[%s4949 + $0x100] sm:$0xff]
      %v4977 = vld [vmem:[%s4949 + $0x108] sm:$0xff]
      %v4978 = vld [vmem:[%s4949 + $0x110] sm:$0xff]
      %v4979 = vld [vmem:[%s4949 + $0x118] sm:$0xff]
      %v4980 = vld [vmem:[%s4949 + $0x120] sm:$0xff]
      %v4981 = vld [vmem:[%s4949 + $0x128] sm:$0xff]
      %v4982 = vld [vmem:[%s4 + $0xf] sm:$0x1]
      %v4983 = vperm.slane %v4982, 0
      %v4984 = vmul.f32 %v4950, %v4983
      %v4985 = vmul.f32 %v4951, %v4983
      %v4986 = vmul.f32 %v4952, %v4983
      %v4987 = vmul.f32 %v4953, %v4983
      %v4988 = vmul.f32 %v4954, %v4983
      %v4989 = vmul.f32 %v4955, %v4983
      %v4990 = vmul.f32 %v4956, %v4983
      %v4991 = vmul.f32 %v4957, %v4983
      %v4992 = vmul.f32 %v4958, %v4983
      %v4993 = vmul.f32 %v4959, %v4983
      %v4994 = vmul.f32 %v4960, %v4983
      %v4995 = vmul.f32 %v4961, %v4983
      %v4996 = vmul.f32 %v4962, %v4983
      %v4997 = vmul.f32 %v4963, %v4983
      %v4998 = vmul.f32 %v4964, %v4983
      %v4999 = vmul.f32 %v4965, %v4983
      %v5000 = vmul.f32 %v4966, %v4983
      %v5001 = vmul.f32 %v4967, %v4983
      %v5002 = vmul.f32 %v4968, %v4983
      %v5003 = vmul.f32 %v4969, %v4983
      %v5004 = vmul.f32 %v4970, %v4983
      %v5005 = vmul.f32 %v4971, %v4983
      %v5006 = vmul.f32 %v4972, %v4983
      %v5007 = vmul.f32 %v4973, %v4983
      %v5008 = vmul.f32 %v4974, %v4983
      %v5009 = vmul.f32 %v4975, %v4983
      %v5010 = vmul.f32 %v4976, %v4983
      %v5011 = vmul.f32 %v4977, %v4983
      %v5012 = vmul.f32 %v4978, %v4983
      %v5013 = vmul.f32 %v4979, %v4983
      %v5014 = vmul.f32 %v4980, %v4983
      %v5015 = vmul.f32 %v4981, %v4983
      %v5016 = vadd.f32 %v4917, %v4984
      %v5017 = vadd.f32 %v4918, %v4985
      %v5018 = vadd.f32 %v4919, %v4986
      %v5019 = vadd.f32 %v4920, %v4987
      %v5020 = vadd.f32 %v4921, %v4988
      %v5021 = vadd.f32 %v4922, %v4989
      %v5022 = vadd.f32 %v4923, %v4990
      %v5023 = vadd.f32 %v4924, %v4991
      %v5024 = vadd.f32 %v4925, %v4992
      %v5025 = vadd.f32 %v4926, %v4993
      %v5026 = vadd.f32 %v4927, %v4994
      %v5027 = vadd.f32 %v4928, %v4995
      %v5028 = vadd.f32 %v4929, %v4996
      %v5029 = vadd.f32 %v4930, %v4997
      %v5030 = vadd.f32 %v4931, %v4998
      %v5031 = vadd.f32 %v4932, %v4999
      %v5032 = vadd.f32 %v4933, %v5000
      %v5033 = vadd.f32 %v4934, %v5001
      %v5034 = vadd.f32 %v4935, %v5002
      %v5035 = vadd.f32 %v4936, %v5003
      %v5036 = vadd.f32 %v4937, %v5004
      %v5037 = vadd.f32 %v4938, %v5005
      %v5038 = vadd.f32 %v4939, %v5006
      %v5039 = vadd.f32 %v4940, %v5007
      %v5040 = vadd.f32 %v4941, %v5008
      %v5041 = vadd.f32 %v4942, %v5009
      %v5042 = vadd.f32 %v4943, %v5010
      %v5043 = vadd.f32 %v4944, %v5011
      %v5044 = vadd.f32 %v4945, %v5012
      %v5045 = vadd.f32 %v4946, %v5013
      %v5046 = vadd.f32 %v4947, %v5014
      %v5047 = vadd.f32 %v4948, %v5015
      %s5048 = scalar_lea.vmem [#allocation3], 160
      %v5049 = vld [vmem:[%s5048] sm:$0xff]
      %v5050 = vld [vmem:[%s5048 + $0x8] sm:$0xff]
      %v5051 = vld [vmem:[%s5048 + $0x10] sm:$0xff]
      %v5052 = vld [vmem:[%s5048 + $0x18] sm:$0xff]
      %v5053 = vld [vmem:[%s5048 + $0x20] sm:$0xff]
      %v5054 = vld [vmem:[%s5048 + $0x28] sm:$0xff]
      %v5055 = vld [vmem:[%s5048 + $0x30] sm:$0xff]
      %v5056 = vld [vmem:[%s5048 + $0x38] sm:$0xff]
      %v5057 = vld [vmem:[%s5048 + $0x50] sm:$0xff]
      %v5058 = vld [vmem:[%s5048 + $0x58] sm:$0xff]
      %v5059 = vld [vmem:[%s5048 + $0x60] sm:$0xff]
      %v5060 = vld [vmem:[%s5048 + $0x68] sm:$0xff]
      %v5061 = vld [vmem:[%s5048 + $0x70] sm:$0xff]
      %v5062 = vld [vmem:[%s5048 + $0x78] sm:$0xff]
      %v5063 = vld [vmem:[%s5048 + $0x80] sm:$0xff]
      %v5064 = vld [vmem:[%s5048 + $0x88] sm:$0xff]
      %v5065 = vld [vmem:[%s5048 + $0xa0] sm:$0xff]
      %v5066 = vld [vmem:[%s5048 + $0xa8] sm:$0xff]
      %v5067 = vld [vmem:[%s5048 + $0xb0] sm:$0xff]
      %v5068 = vld [vmem:[%s5048 + $0xb8] sm:$0xff]
      %v5069 = vld [vmem:[%s5048 + $0xc0] sm:$0xff]
      %v5070 = vld [vmem:[%s5048 + $0xc8] sm:$0xff]
      %v5071 = vld [vmem:[%s5048 + $0xd0] sm:$0xff]
      %v5072 = vld [vmem:[%s5048 + $0xd8] sm:$0xff]
      %v5073 = vld [vmem:[%s5048 + $0xf0] sm:$0xff]
      %v5074 = vld [vmem:[%s5048 + $0xf8] sm:$0xff]
      %v5075 = vld [vmem:[%s5048 + $0x100] sm:$0xff]
      %v5076 = vld [vmem:[%s5048 + $0x108] sm:$0xff]
      %v5077 = vld [vmem:[%s5048 + $0x110] sm:$0xff]
      %v5078 = vld [vmem:[%s5048 + $0x118] sm:$0xff]
      %v5079 = vld [vmem:[%s5048 + $0x120] sm:$0xff]
      %v5080 = vld [vmem:[%s5048 + $0x128] sm:$0xff]
      %v5081 = vld [vmem:[%s4 + $0x12] sm:$0x1]
      %v5082 = vperm.slane %v5081, 0
      %v5083 = vmul.f32 %v5049, %v5082
      %v5084 = vmul.f32 %v5050, %v5082
      %v5085 = vmul.f32 %v5051, %v5082
      %v5086 = vmul.f32 %v5052, %v5082
      %v5087 = vmul.f32 %v5053, %v5082
      %v5088 = vmul.f32 %v5054, %v5082
      %v5089 = vmul.f32 %v5055, %v5082
      %v5090 = vmul.f32 %v5056, %v5082
      %v5091 = vmul.f32 %v5057, %v5082
      %v5092 = vmul.f32 %v5058, %v5082
      %v5093 = vmul.f32 %v5059, %v5082
      %v5094 = vmul.f32 %v5060, %v5082
      %v5095 = vmul.f32 %v5061, %v5082
      %v5096 = vmul.f32 %v5062, %v5082
      %v5097 = vmul.f32 %v5063, %v5082
      %v5098 = vmul.f32 %v5064, %v5082
      %v5099 = vmul.f32 %v5065, %v5082
      %v5100 = vmul.f32 %v5066, %v5082
      %v5101 = vmul.f32 %v5067, %v5082
      %v5102 = vmul.f32 %v5068, %v5082
      %v5103 = vmul.f32 %v5069, %v5082
      %v5104 = vmul.f32 %v5070, %v5082
      %v5105 = vmul.f32 %v5071, %v5082
      %v5106 = vmul.f32 %v5072, %v5082
      %v5107 = vmul.f32 %v5073, %v5082
      %v5108 = vmul.f32 %v5074, %v5082
      %v5109 = vmul.f32 %v5075, %v5082
      %v5110 = vmul.f32 %v5076, %v5082
      %v5111 = vmul.f32 %v5077, %v5082
      %v5112 = vmul.f32 %v5078, %v5082
      %v5113 = vmul.f32 %v5079, %v5082
      %v5114 = vmul.f32 %v5080, %v5082
      %v5115 = vadd.f32 %v5016, %v5083
      %v5116 = vadd.f32 %v5017, %v5084
      %v5117 = vadd.f32 %v5018, %v5085
      %v5118 = vadd.f32 %v5019, %v5086
      %v5119 = vadd.f32 %v5020, %v5087
      %v5120 = vadd.f32 %v5021, %v5088
      %v5121 = vadd.f32 %v5022, %v5089
      %v5122 = vadd.f32 %v5023, %v5090
      %v5123 = vadd.f32 %v5024, %v5091
      %v5124 = vadd.f32 %v5025, %v5092
      %v5125 = vadd.f32 %v5026, %v5093
      %v5126 = vadd.f32 %v5027, %v5094
      %v5127 = vadd.f32 %v5028, %v5095
      %v5128 = vadd.f32 %v5029, %v5096
      %v5129 = vadd.f32 %v5030, %v5097
      %v5130 = vadd.f32 %v5031, %v5098
      %v5131 = vadd.f32 %v5032, %v5099
      %v5132 = vadd.f32 %v5033, %v5100
      %v5133 = vadd.f32 %v5034, %v5101
      %v5134 = vadd.f32 %v5035, %v5102
      %v5135 = vadd.f32 %v5036, %v5103
      %v5136 = vadd.f32 %v5037, %v5104
      %v5137 = vadd.f32 %v5038, %v5105
      %v5138 = vadd.f32 %v5039, %v5106
      %v5139 = vadd.f32 %v5040, %v5107
      %v5140 = vadd.f32 %v5041, %v5108
      %v5141 = vadd.f32 %v5042, %v5109
      %v5142 = vadd.f32 %v5043, %v5110
      %v5143 = vadd.f32 %v5044, %v5111
      %v5144 = vadd.f32 %v5045, %v5112
      %v5145 = vadd.f32 %v5046, %v5113
      %v5146 = vadd.f32 %v5047, %v5114
      %s5147 = scalar_lea.vmem [#allocation3], 168
      %v5148 = vld [vmem:[%s5147] sm:$0xff]
      %v5149 = vld [vmem:[%s5147 + $0x8] sm:$0xff]
      %v5150 = vld [vmem:[%s5147 + $0x10] sm:$0xff]
      %v5151 = vld [vmem:[%s5147 + $0x18] sm:$0xff]
      %v5152 = vld [vmem:[%s5147 + $0x20] sm:$0xff]
      %v5153 = vld [vmem:[%s5147 + $0x28] sm:$0xff]
      %v5154 = vld [vmem:[%s5147 + $0x30] sm:$0xff]
      %v5155 = vld [vmem:[%s5147 + $0x38] sm:$0xff]
      %v5156 = vld [vmem:[%s5147 + $0x50] sm:$0xff]
      %v5157 = vld [vmem:[%s5147 + $0x58] sm:$0xff]
      %v5158 = vld [vmem:[%s5147 + $0x60] sm:$0xff]
      %v5159 = vld [vmem:[%s5147 + $0x68] sm:$0xff]
      %v5160 = vld [vmem:[%s5147 + $0x70] sm:$0xff]
      %v5161 = vld [vmem:[%s5147 + $0x78] sm:$0xff]
      %v5162 = vld [vmem:[%s5147 + $0x80] sm:$0xff]
      %v5163 = vld [vmem:[%s5147 + $0x88] sm:$0xff]
      %v5164 = vld [vmem:[%s5147 + $0xa0] sm:$0xff]
      %v5165 = vld [vmem:[%s5147 + $0xa8] sm:$0xff]
      %v5166 = vld [vmem:[%s5147 + $0xb0] sm:$0xff]
      %v5167 = vld [vmem:[%s5147 + $0xb8] sm:$0xff]
      %v5168 = vld [vmem:[%s5147 + $0xc0] sm:$0xff]
      %v5169 = vld [vmem:[%s5147 + $0xc8] sm:$0xff]
      %v5170 = vld [vmem:[%s5147 + $0xd0] sm:$0xff]
      %v5171 = vld [vmem:[%s5147 + $0xd8] sm:$0xff]
      %v5172 = vld [vmem:[%s5147 + $0xf0] sm:$0xff]
      %v5173 = vld [vmem:[%s5147 + $0xf8] sm:$0xff]
      %v5174 = vld [vmem:[%s5147 + $0x100] sm:$0xff]
      %v5175 = vld [vmem:[%s5147 + $0x108] sm:$0xff]
      %v5176 = vld [vmem:[%s5147 + $0x110] sm:$0xff]
      %v5177 = vld [vmem:[%s5147 + $0x118] sm:$0xff]
      %v5178 = vld [vmem:[%s5147 + $0x120] sm:$0xff]
      %v5179 = vld [vmem:[%s5147 + $0x128] sm:$0xff]
      %v5180 = vld [vmem:[%s4 + $0x15] sm:$0x1]
      %v5181 = vperm.slane %v5180, 0
      %v5182 = vmul.f32 %v5148, %v5181
      %v5183 = vmul.f32 %v5149, %v5181
      %v5184 = vmul.f32 %v5150, %v5181
      %v5185 = vmul.f32 %v5151, %v5181
      %v5186 = vmul.f32 %v5152, %v5181
      %v5187 = vmul.f32 %v5153, %v5181
      %v5188 = vmul.f32 %v5154, %v5181
      %v5189 = vmul.f32 %v5155, %v5181
      %v5190 = vmul.f32 %v5156, %v5181
      %v5191 = vmul.f32 %v5157, %v5181
      %v5192 = vmul.f32 %v5158, %v5181
      %v5193 = vmul.f32 %v5159, %v5181
      %v5194 = vmul.f32 %v5160, %v5181
      %v5195 = vmul.f32 %v5161, %v5181
      %v5196 = vmul.f32 %v5162, %v5181
      %v5197 = vmul.f32 %v5163, %v5181
      %v5198 = vmul.f32 %v5164, %v5181
      %v5199 = vmul.f32 %v5165, %v5181
      %v5200 = vmul.f32 %v5166, %v5181
      %v5201 = vmul.f32 %v5167, %v5181
      %v5202 = vmul.f32 %v5168, %v5181
      %v5203 = vmul.f32 %v5169, %v5181
      %v5204 = vmul.f32 %v5170, %v5181
      %v5205 = vmul.f32 %v5171, %v5181
      %v5206 = vmul.f32 %v5172, %v5181
      %v5207 = vmul.f32 %v5173, %v5181
      %v5208 = vmul.f32 %v5174, %v5181
      %v5209 = vmul.f32 %v5175, %v5181
      %v5210 = vmul.f32 %v5176, %v5181
      %v5211 = vmul.f32 %v5177, %v5181
      %v5212 = vmul.f32 %v5178, %v5181
      %v5213 = vmul.f32 %v5179, %v5181
      %v5214 = vadd.f32 %v5115, %v5182
      %v5215 = vadd.f32 %v5116, %v5183
      %v5216 = vadd.f32 %v5117, %v5184
      %v5217 = vadd.f32 %v5118, %v5185
      %v5218 = vadd.f32 %v5119, %v5186
      %v5219 = vadd.f32 %v5120, %v5187
      %v5220 = vadd.f32 %v5121, %v5188
      %v5221 = vadd.f32 %v5122, %v5189
      %v5222 = vadd.f32 %v5123, %v5190
      %v5223 = vadd.f32 %v5124, %v5191
      %v5224 = vadd.f32 %v5125, %v5192
      %v5225 = vadd.f32 %v5126, %v5193
      %v5226 = vadd.f32 %v5127, %v5194
      %v5227 = vadd.f32 %v5128, %v5195
      %v5228 = vadd.f32 %v5129, %v5196
      %v5229 = vadd.f32 %v5130, %v5197
      %v5230 = vadd.f32 %v5131, %v5198
      %v5231 = vadd.f32 %v5132, %v5199
      %v5232 = vadd.f32 %v5133, %v5200
      %v5233 = vadd.f32 %v5134, %v5201
      %v5234 = vadd.f32 %v5135, %v5202
      %v5235 = vadd.f32 %v5136, %v5203
      %v5236 = vadd.f32 %v5137, %v5204
      %v5237 = vadd.f32 %v5138, %v5205
      %v5238 = vadd.f32 %v5139, %v5206
      %v5239 = vadd.f32 %v5140, %v5207
      %v5240 = vadd.f32 %v5141, %v5208
      %v5241 = vadd.f32 %v5142, %v5209
      %v5242 = vadd.f32 %v5143, %v5210
      %v5243 = vadd.f32 %v5144, %v5211
      %v5244 = vadd.f32 %v5145, %v5212
      %v5245 = vadd.f32 %v5146, %v5213
      %s5246 = scalar_lea.vmem [#allocation3], 176
      %v5247 = vld [vmem:[%s5246] sm:$0xff]
      %v5248 = vld [vmem:[%s5246 + $0x8] sm:$0xff]
      %v5249 = vld [vmem:[%s5246 + $0x10] sm:$0xff]
      %v5250 = vld [vmem:[%s5246 + $0x18] sm:$0xff]
      %v5251 = vld [vmem:[%s5246 + $0x20] sm:$0xff]
      %v5252 = vld [vmem:[%s5246 + $0x28] sm:$0xff]
      %v5253 = vld [vmem:[%s5246 + $0x30] sm:$0xff]
      %v5254 = vld [vmem:[%s5246 + $0x38] sm:$0xff]
      %v5255 = vld [vmem:[%s5246 + $0x50] sm:$0xff]
      %v5256 = vld [vmem:[%s5246 + $0x58] sm:$0xff]
      %v5257 = vld [vmem:[%s5246 + $0x60] sm:$0xff]
      %v5258 = vld [vmem:[%s5246 + $0x68] sm:$0xff]
      %v5259 = vld [vmem:[%s5246 + $0x70] sm:$0xff]
      %v5260 = vld [vmem:[%s5246 + $0x78] sm:$0xff]
      %v5261 = vld [vmem:[%s5246 + $0x80] sm:$0xff]
      %v5262 = vld [vmem:[%s5246 + $0x88] sm:$0xff]
      %v5263 = vld [vmem:[%s5246 + $0xa0] sm:$0xff]
      %v5264 = vld [vmem:[%s5246 + $0xa8] sm:$0xff]
      %v5265 = vld [vmem:[%s5246 + $0xb0] sm:$0xff]
      %v5266 = vld [vmem:[%s5246 + $0xb8] sm:$0xff]
      %v5267 = vld [vmem:[%s5246 + $0xc0] sm:$0xff]
      %v5268 = vld [vmem:[%s5246 + $0xc8] sm:$0xff]
      %v5269 = vld [vmem:[%s5246 + $0xd0] sm:$0xff]
      %v5270 = vld [vmem:[%s5246 + $0xd8] sm:$0xff]
      %v5271 = vld [vmem:[%s5246 + $0xf0] sm:$0xff]
      %v5272 = vld [vmem:[%s5246 + $0xf8] sm:$0xff]
      %v5273 = vld [vmem:[%s5246 + $0x100] sm:$0xff]
      %v5274 = vld [vmem:[%s5246 + $0x108] sm:$0xff]
      %v5275 = vld [vmem:[%s5246 + $0x110] sm:$0xff]
      %v5276 = vld [vmem:[%s5246 + $0x118] sm:$0xff]
      %v5277 = vld [vmem:[%s5246 + $0x120] sm:$0xff]
      %v5278 = vld [vmem:[%s5246 + $0x128] sm:$0xff]
      %v5279 = vld [vmem:[%s4 + $0x18] sm:$0x1]
      %v5280 = vperm.slane %v5279, 0
      %v5281 = vmul.f32 %v5247, %v5280
      %v5282 = vmul.f32 %v5248, %v5280
      %v5283 = vmul.f32 %v5249, %v5280
      %v5284 = vmul.f32 %v5250, %v5280
      %v5285 = vmul.f32 %v5251, %v5280
      %v5286 = vmul.f32 %v5252, %v5280
      %v5287 = vmul.f32 %v5253, %v5280
      %v5288 = vmul.f32 %v5254, %v5280
      %v5289 = vmul.f32 %v5255, %v5280
      %v5290 = vmul.f32 %v5256, %v5280
      %v5291 = vmul.f32 %v5257, %v5280
      %v5292 = vmul.f32 %v5258, %v5280
      %v5293 = vmul.f32 %v5259, %v5280
      %v5294 = vmul.f32 %v5260, %v5280
      %v5295 = vmul.f32 %v5261, %v5280
      %v5296 = vmul.f32 %v5262, %v5280
      %v5297 = vmul.f32 %v5263, %v5280
      %v5298 = vmul.f32 %v5264, %v5280
      %v5299 = vmul.f32 %v5265, %v5280
      %v5300 = vmul.f32 %v5266, %v5280
      %v5301 = vmul.f32 %v5267, %v5280
      %v5302 = vmul.f32 %v5268, %v5280
      %v5303 = vmul.f32 %v5269, %v5280
      %v5304 = vmul.f32 %v5270, %v5280
      %v5305 = vmul.f32 %v5271, %v5280
      %v5306 = vmul.f32 %v5272, %v5280
      %v5307 = vmul.f32 %v5273, %v5280
      %v5308 = vmul.f32 %v5274, %v5280
      %v5309 = vmul.f32 %v5275, %v5280
      %v5310 = vmul.f32 %v5276, %v5280
      %v5311 = vmul.f32 %v5277, %v5280
      %v5312 = vmul.f32 %v5278, %v5280
      %v5313 = vadd.f32 %v5214, %v5281
      %v5314 = vadd.f32 %v5215, %v5282
      %v5315 = vadd.f32 %v5216, %v5283
      %v5316 = vadd.f32 %v5217, %v5284
      %v5317 = vadd.f32 %v5218, %v5285
      %v5318 = vadd.f32 %v5219, %v5286
      %v5319 = vadd.f32 %v5220, %v5287
      %v5320 = vadd.f32 %v5221, %v5288
      %v5321 = vadd.f32 %v5222, %v5289
      %v5322 = vadd.f32 %v5223, %v5290
      %v5323 = vadd.f32 %v5224, %v5291
      %v5324 = vadd.f32 %v5225, %v5292
      %v5325 = vadd.f32 %v5226, %v5293
      %v5326 = vadd.f32 %v5227, %v5294
      %v5327 = vadd.f32 %v5228, %v5295
      %v5328 = vadd.f32 %v5229, %v5296
      %v5329 = vadd.f32 %v5230, %v5297
      %v5330 = vadd.f32 %v5231, %v5298
      %v5331 = vadd.f32 %v5232, %v5299
      %v5332 = vadd.f32 %v5233, %v5300
      %v5333 = vadd.f32 %v5234, %v5301
      %v5334 = vadd.f32 %v5235, %v5302
      %v5335 = vadd.f32 %v5236, %v5303
      %v5336 = vadd.f32 %v5237, %v5304
      %v5337 = vadd.f32 %v5238, %v5305
      %v5338 = vadd.f32 %v5239, %v5306
      %v5339 = vadd.f32 %v5240, %v5307
      %v5340 = vadd.f32 %v5241, %v5308
      %v5341 = vadd.f32 %v5242, %v5309
      %v5342 = vadd.f32 %v5243, %v5310
      %v5343 = vadd.f32 %v5244, %v5311
      %v5344 = vadd.f32 %v5245, %v5312
      %v5345 = vld [vmem:[%s5] sm:$0x1]
      %v5347 = vperm.slane %v5345, 0
      %v5349 = vadd.f32 %v5313, %v5347
      %v5350 = vadd.f32 %v5314, %v5347
      %v5351 = vadd.f32 %v5315, %v5347
      %v5352 = vadd.f32 %v5316, %v5347
      %v5353 = vadd.f32 %v5317, %v5347
      %v5354 = vadd.f32 %v5318, %v5347
      %v5355 = vadd.f32 %v5319, %v5347
      %v5356 = vadd.f32 %v5320, %v5347
      %v5357 = vadd.f32 %v5321, %v5347
      %v5358 = vadd.f32 %v5322, %v5347
      %v5359 = vadd.f32 %v5323, %v5347
      %v5360 = vadd.f32 %v5324, %v5347
      %v5361 = vadd.f32 %v5325, %v5347
      %v5362 = vadd.f32 %v5326, %v5347
      %v5363 = vadd.f32 %v5327, %v5347
      %v5364 = vadd.f32 %v5328, %v5347
      %v5365 = vadd.f32 %v5329, %v5347
      %v5366 = vadd.f32 %v5330, %v5347
      %v5367 = vadd.f32 %v5331, %v5347
      %v5368 = vadd.f32 %v5332, %v5347
      %v5369 = vadd.f32 %v5333, %v5347
      %v5370 = vadd.f32 %v5334, %v5347
      %v5371 = vadd.f32 %v5335, %v5347
      %v5372 = vadd.f32 %v5336, %v5347
      %v5373 = vadd.f32 %v5337, %v5347
      %v5374 = vadd.f32 %v5338, %v5347
      %v5375 = vadd.f32 %v5339, %v5347
      %v5376 = vadd.f32 %v5340, %v5347
      %v5377 = vadd.f32 %v5341, %v5347
      %v5378 = vadd.f32 %v5342, %v5347
      %v5379 = vadd.f32 %v5343, %v5347
      %v5380 = vadd.f32 %v5344, %v5347
      %5381 = vst.msk [vmem:[#allocation4] sm:$0xff] %vm2968, %v5349
      %5382 = vst.msk [vmem:[#allocation4 + $0x8] sm:$0xff] %vm2968, %v5350
      %5383 = vst.msk [vmem:[#allocation4 + $0x10] sm:$0xff] %vm2968, %v5351
      %5384 = vst.msk [vmem:[#allocation4 + $0x18] sm:$0xff] %vm2968, %v5352
      %5385 = vst.msk [vmem:[#allocation4 + $0x20] sm:$0xff] %vm2968, %v5353
      %5386 = vst.msk [vmem:[#allocation4 + $0x28] sm:$0xff] %vm2968, %v5354
      %5387 = vst.msk [vmem:[#allocation4 + $0x30] sm:$0xff] %vm2968, %v5355
      %5388 = vst.msk [vmem:[#allocation4 + $0x38] sm:$0xff] %vm2968, %v5356
      %5389 = vst.msk [vmem:[#allocation4 + $0x40] sm:$0xff] %vm2968, %v5357
      %5390 = vst.msk [vmem:[#allocation4 + $0x48] sm:$0xff] %vm2968, %v5358
      %5391 = vst.msk [vmem:[#allocation4 + $0x50] sm:$0xff] %vm2968, %v5359
      %5392 = vst.msk [vmem:[#allocation4 + $0x58] sm:$0xff] %vm2968, %v5360
      %5393 = vst.msk [vmem:[#allocation4 + $0x60] sm:$0xff] %vm2968, %v5361
      %5394 = vst.msk [vmem:[#allocation4 + $0x68] sm:$0xff] %vm2968, %v5362
      %5395 = vst.msk [vmem:[#allocation4 + $0x70] sm:$0xff] %vm2968, %v5363
      %5396 = vst.msk [vmem:[#allocation4 + $0x78] sm:$0xff] %vm2968, %v5364
      %5397 = vst.msk [vmem:[#allocation4 + $0x80] sm:$0xff] %vm2968, %v5365
      %5398 = vst.msk [vmem:[#allocation4 + $0x88] sm:$0xff] %vm2968, %v5366
      %5399 = vst.msk [vmem:[#allocation4 + $0x90] sm:$0xff] %vm2968, %v5367
      %5400 = vst.msk [vmem:[#allocation4 + $0x98] sm:$0xff] %vm2968, %v5368
      %5401 = vst.msk [vmem:[#allocation4 + $0xa0] sm:$0xff] %vm2968, %v5369
      %5402 = vst.msk [vmem:[#allocation4 + $0xa8] sm:$0xff] %vm2968, %v5370
      %5403 = vst.msk [vmem:[#allocation4 + $0xb0] sm:$0xff] %vm2968, %v5371
      %5404 = vst.msk [vmem:[#allocation4 + $0xb8] sm:$0xff] %vm2968, %v5372
      %5405 = vst.msk [vmem:[#allocation4 + $0xc0] sm:$0xff] %vm2968, %v5373
      %5406 = vst.msk [vmem:[#allocation4 + $0xc8] sm:$0xff] %vm2968, %v5374
      %5407 = vst.msk [vmem:[#allocation4 + $0xd0] sm:$0xff] %vm2968, %v5375
      %5408 = vst.msk [vmem:[#allocation4 + $0xd8] sm:$0xff] %vm2968, %v5376
      %5409 = vst.msk [vmem:[#allocation4 + $0xe0] sm:$0xff] %vm2968, %v5377
      %5410 = vst.msk [vmem:[#allocation4 + $0xe8] sm:$0xff] %vm2968, %v5378
      %5411 = vst.msk [vmem:[#allocation4 + $0xf0] sm:$0xff] %vm2968, %v5379
      %5412 = vst.msk [vmem:[#allocation4 + $0xf8] sm:$0xff] %vm2968, %v5380
      %v5413 = vld [vmem:[#allocation2 + $0x1] sm:$0xff]
      %v5414 = vld [vmem:[#allocation2 + $0x11] sm:$0xff]
      %v5415 = vld [vmem:[#allocation2 + $0x21] sm:$0xff]
      %v5416 = vld [vmem:[#allocation2 + $0x31] sm:$0xff]
      %v5417 = vld [vmem:[#allocation2 + $0x41] sm:$0xff]
      %v5418 = vld [vmem:[#allocation2 + $0x51] sm:$0xff]
      %v5419 = vld [vmem:[#allocation2 + $0x61] sm:$0xff]
      %v5420 = vld [vmem:[#allocation2 + $0x71] sm:$0xff]
      %v5421 = vld [vmem:[#allocation2 + $0x81] sm:$0xff]
      %v5422 = vld [vmem:[#allocation2 + $0x91] sm:$0xff]
      %v5423 = vld [vmem:[#allocation2 + $0xa1] sm:$0xff]
      %v5424 = vld [vmem:[#allocation2 + $0xb1] sm:$0xff]
      %v5425 = vld [vmem:[#allocation2 + $0xc1] sm:$0xff]
      %v5426 = vld [vmem:[#allocation2 + $0xd1] sm:$0xff]
      %v5427 = vld [vmem:[#allocation2 + $0xe1] sm:$0xff]
      %v5428 = vld [vmem:[#allocation2 + $0xf1] sm:$0xff]
      %v5429 = vld [vmem:[#allocation2 + $0x101] sm:$0xff]
      %v5430 = vld [vmem:[#allocation2 + $0x111] sm:$0xff]
      %v5431 = vld [vmem:[#allocation2 + $0x121] sm:$0xff]
      %v5432 = vld [vmem:[#allocation2 + $0x131] sm:$0xff]
      %v5433 = vld [vmem:[#allocation2 + $0x141] sm:$0xff]
      %v5434 = vld [vmem:[#allocation2 + $0x151] sm:$0xff]
      %v5435 = vld [vmem:[#allocation2 + $0x161] sm:$0xff]
      %v5436 = vld [vmem:[#allocation2 + $0x171] sm:$0xff]
      %v5437 = vld [vmem:[#allocation2 + $0x181] sm:$0xff]
      %v5438 = vld [vmem:[#allocation2 + $0x191] sm:$0xff]
      %v5439 = vld [vmem:[#allocation2 + $0x1a1] sm:$0xff]
      %v5440 = vld [vmem:[#allocation2 + $0x1b1] sm:$0xff]
      %v5441 = vld [vmem:[#allocation2 + $0x1c1] sm:$0xff]
      %v5442 = vld [vmem:[#allocation2 + $0x1d1] sm:$0xff]
      %v5443 = vld [vmem:[#allocation2 + $0x1e1] sm:$0xff]
      %v5444 = vld [vmem:[#allocation2 + $0x1f1] sm:$0xff]
      %v5445 = vld [vmem:[#allocation2 + $0x201] sm:$0xff]
      %v5446 = vld [vmem:[#allocation2 + $0x211] sm:$0xff]
      %v5447 = vld [vmem:[#allocation2 + $0x221] sm:$0xff]
      %v5448 = vld [vmem:[#allocation2 + $0x231] sm:$0xff]
      %v5449 = vld [vmem:[#allocation2 + $0x241] sm:$0xff]
      %v5450 = vld [vmem:[#allocation2 + $0x251] sm:$0xff]
      %v5451 = vld [vmem:[#allocation2 + $0x261] sm:$0xff]
      %v5452 = vld [vmem:[#allocation2 + $0x271] sm:$0xff]
      %v5453 = vld [vmem:[#allocation2 + $0x281] sm:$0xff]
      %v5454 = vld [vmem:[#allocation2 + $0x291] sm:$0xff]
      %v5455 = vld [vmem:[#allocation2 + $0x2a1] sm:$0xff]
      %v5456 = vld [vmem:[#allocation2 + $0x2b1] sm:$0xff]
      %v5457 = vld [vmem:[#allocation2 + $0x2c1] sm:$0xff]
      %v5458 = vld [vmem:[#allocation2 + $0x2d1] sm:$0xff]
      %v5459 = vld [vmem:[#allocation2 + $0x2e1] sm:$0xff]
      %v5460 = vld [vmem:[#allocation2 + $0x2f1] sm:$0xff]
      %v5461 = vld [vmem:[#allocation2 + $0x301] sm:$0xff]
      %v5462 = vld [vmem:[#allocation2 + $0x311] sm:$0xff]
      %v5463 = vld [vmem:[#allocation2 + $0x321] sm:$0xff]
      %v5464 = vld [vmem:[#allocation2 + $0x331] sm:$0xff]
      %v5465 = vld [vmem:[#allocation2 + $0x341] sm:$0xff]
      %v5466 = vld [vmem:[#allocation2 + $0x351] sm:$0xff]
      %v5467 = vld [vmem:[#allocation2 + $0x361] sm:$0xff]
      %v5468 = vld [vmem:[#allocation2 + $0x371] sm:$0xff]
      %v5469 = vld [vmem:[#allocation2 + $0x381] sm:$0xff]
      %v5470 = vld [vmem:[#allocation2 + $0x391] sm:$0xff]
      %v5471 = vld [vmem:[#allocation2 + $0x3a1] sm:$0xff]
      %v5472 = vld [vmem:[#allocation2 + $0x3b1] sm:$0xff]
      %5473 = vst.msk [vmem:[#allocation3] sm:$0xff] %vm2968, %v5413
      %5474 = vst.msk [vmem:[#allocation3 + $0x8] sm:$0xff] %vm2968, %v5414
      %5475 = vst.msk [vmem:[#allocation3 + $0x10] sm:$0xff] %vm2968, %v5415
      %5476 = vst.msk [vmem:[#allocation3 + $0x18] sm:$0xff] %vm2968, %v5416
      %5477 = vst.msk [vmem:[#allocation3 + $0x20] sm:$0xff] %vm2968, %v5417
      %5478 = vst.msk [vmem:[#allocation3 + $0x28] sm:$0xff] %vm2968, %v5418
      %5479 = vst.msk [vmem:[#allocation3 + $0x30] sm:$0xff] %vm2968, %v5419
      %5480 = vst.msk [vmem:[#allocation3 + $0x38] sm:$0xff] %vm2968, %v5420
      %5481 = vst.msk [vmem:[#allocation3 + $0x40] sm:$0xff] %vm2968, %v5421
      %5482 = vst.msk [vmem:[#allocation3 + $0x48] sm:$0xff] %vm2968, %v5422
      %5483 = vst.msk [vmem:[#allocation3 + $0x50] sm:$0xff] %vm2968, %v5423
      %5484 = vst.msk [vmem:[#allocation3 + $0x58] sm:$0xff] %vm2968, %v5424
      %5485 = vst.msk [vmem:[#allocation3 + $0x60] sm:$0xff] %vm2968, %v5425
      %5486 = vst.msk [vmem:[#allocation3 + $0x68] sm:$0xff] %vm2968, %v5426
      %5487 = vst.msk [vmem:[#allocation3 + $0x70] sm:$0xff] %vm2968, %v5427
      %5488 = vst.msk [vmem:[#allocation3 + $0x78] sm:$0xff] %vm2968, %v5428
      %5489 = vst.msk [vmem:[#allocation3 + $0x80] sm:$0xff] %vm2968, %v5429
      %5490 = vst.msk [vmem:[#allocation3 + $0x88] sm:$0xff] %vm2968, %v5430
      %5491 = vst.msk [vmem:[#allocation3 + $0x90] sm:$0xff] %vm2968, %v5431
      %5492 = vst.msk [vmem:[#allocation3 + $0x98] sm:$0xff] %vm2968, %v5432
      %5493 = vst.msk [vmem:[#allocation3 + $0xa0] sm:$0xff] %vm2968, %v5433
      %5494 = vst.msk [vmem:[#allocation3 + $0xa8] sm:$0xff] %vm2968, %v5434
      %5495 = vst.msk [vmem:[#allocation3 + $0xb0] sm:$0xff] %vm2968, %v5435
      %5496 = vst.msk [vmem:[#allocation3 + $0xb8] sm:$0xff] %vm2968, %v5436
      %5497 = vst.msk [vmem:[#allocation3 + $0xc0] sm:$0xff] %vm2968, %v5437
      %5498 = vst.msk [vmem:[#allocation3 + $0xc8] sm:$0xff] %vm2968, %v5438
      %5499 = vst.msk [vmem:[#allocation3 + $0xd0] sm:$0xff] %vm2968, %v5439
      %5500 = vst.msk [vmem:[#allocation3 + $0xd8] sm:$0xff] %vm2968, %v5440
      %5501 = vst.msk [vmem:[#allocation3 + $0xe0] sm:$0xff] %vm2968, %v5441
      %5502 = vst.msk [vmem:[#allocation3 + $0xe8] sm:$0xff] %vm2968, %v5442
      %5503 = vst.msk [vmem:[#allocation3 + $0xf0] sm:$0xff] %vm2968, %v5443
      %5504 = vst.msk [vmem:[#allocation3 + $0xf8] sm:$0xff] %vm2968, %v5444
      %5505 = vst.msk [vmem:[#allocation3 + $0x100] sm:$0xff] %vm2968, %v5445
      %5506 = vst.msk [vmem:[#allocation3 + $0x108] sm:$0xff] %vm2968, %v5446
      %5507 = vst.msk [vmem:[#allocation3 + $0x110] sm:$0xff] %vm2968, %v5447
      %5508 = vst.msk [vmem:[#allocation3 + $0x118] sm:$0xff] %vm2968, %v5448
      %5509 = vst.msk [vmem:[#allocation3 + $0x120] sm:$0xff] %vm2968, %v5449
      %5510 = vst.msk [vmem:[#allocation3 + $0x128] sm:$0xff] %vm2968, %v5450
      %5511 = vst.msk [vmem:[#allocation3 + $0x130] sm:$0xff] %vm2968, %v5451
      %5512 = vst.msk [vmem:[#allocation3 + $0x138] sm:$0xff] %vm2968, %v5452
      %5513 = vst.msk [vmem:[#allocation3 + $0x140] sm:$0xff] %vm2968, %v5453
      %5514 = vst.msk [vmem:[#allocation3 + $0x148] sm:$0xff] %vm2968, %v5454
      %5515 = vst.msk [vmem:[#allocation3 + $0x150] sm:$0xff] %vm2968, %v5455
      %5516 = vst.msk [vmem:[#allocation3 + $0x158] sm:$0xff] %vm2968, %v5456
      %5517 = vst.msk [vmem:[#allocation3 + $0x160] sm:$0xff] %vm2968, %v5457
      %5518 = vst.msk [vmem:[#allocation3 + $0x168] sm:$0xff] %vm2968, %v5458
      %5519 = vst.msk [vmem:[#allocation3 + $0x170] sm:$0xff] %vm2968, %v5459
      %5520 = vst.msk [vmem:[#allocation3 + $0x178] sm:$0xff] %vm2968, %v5460
      %5521 = vst.msk [vmem:[#allocation3 + $0x180] sm:$0xff] %vm2968, %v5461
      %5522 = vst.msk [vmem:[#allocation3 + $0x188] sm:$0xff] %vm2968, %v5462
      %5523 = vst.msk [vmem:[#allocation3 + $0x190] sm:$0xff] %vm2968, %v5463
      %5524 = vst.msk [vmem:[#allocation3 + $0x198] sm:$0xff] %vm2968, %v5464
      %5525 = vst.msk [vmem:[#allocation3 + $0x1a0] sm:$0xff] %vm2968, %v5465
      %5526 = vst.msk [vmem:[#allocation3 + $0x1a8] sm:$0xff] %vm2968, %v5466
      %5527 = vst.msk [vmem:[#allocation3 + $0x1b0] sm:$0xff] %vm2968, %v5467
      %5528 = vst.msk [vmem:[#allocation3 + $0x1b8] sm:$0xff] %vm2968, %v5468
      %5529 = vst.msk [vmem:[#allocation3 + $0x1c0] sm:$0xff] %vm2968, %v5469
      %5530 = vst.msk [vmem:[#allocation3 + $0x1c8] sm:$0xff] %vm2968, %v5470
      %5531 = vst.msk [vmem:[#allocation3 + $0x1d0] sm:$0xff] %vm2968, %v5471
      %5532 = vst.msk [vmem:[#allocation3 + $0x1d8] sm:$0xff] %vm2968, %v5472
      %v5533 = vld [vmem:[#allocation3] sm:$0xff]
      %v5534 = vld [vmem:[#allocation3 + $0x8] sm:$0xff]
      %v5535 = vld [vmem:[#allocation3 + $0x10] sm:$0xff]
      %v5536 = vld [vmem:[#allocation3 + $0x18] sm:$0xff]
      %v5537 = vld [vmem:[#allocation3 + $0x20] sm:$0xff]
      %v5538 = vld [vmem:[#allocation3 + $0x28] sm:$0xff]
      %v5539 = vld [vmem:[#allocation3 + $0x30] sm:$0xff]
      %v5540 = vld [vmem:[#allocation3 + $0x38] sm:$0xff]
      %v5541 = vld [vmem:[#allocation3 + $0x50] sm:$0xff]
      %v5542 = vld [vmem:[#allocation3 + $0x58] sm:$0xff]
      %v5543 = vld [vmem:[#allocation3 + $0x60] sm:$0xff]
      %v5544 = vld [vmem:[#allocation3 + $0x68] sm:$0xff]
      %v5545 = vld [vmem:[#allocation3 + $0x70] sm:$0xff]
      %v5546 = vld [vmem:[#allocation3 + $0x78] sm:$0xff]
      %v5547 = vld [vmem:[#allocation3 + $0x80] sm:$0xff]
      %v5548 = vld [vmem:[#allocation3 + $0x88] sm:$0xff]
      %v5549 = vld [vmem:[#allocation3 + $0xa0] sm:$0xff]
      %v5550 = vld [vmem:[#allocation3 + $0xa8] sm:$0xff]
      %v5551 = vld [vmem:[#allocation3 + $0xb0] sm:$0xff]
      %v5552 = vld [vmem:[#allocation3 + $0xb8] sm:$0xff]
      %v5553 = vld [vmem:[#allocation3 + $0xc0] sm:$0xff]
      %v5554 = vld [vmem:[#allocation3 + $0xc8] sm:$0xff]
      %v5555 = vld [vmem:[#allocation3 + $0xd0] sm:$0xff]
      %v5556 = vld [vmem:[#allocation3 + $0xd8] sm:$0xff]
      %v5557 = vld [vmem:[#allocation3 + $0xf0] sm:$0xff]
      %v5558 = vld [vmem:[#allocation3 + $0xf8] sm:$0xff]
      %v5559 = vld [vmem:[#allocation3 + $0x100] sm:$0xff]
      %v5560 = vld [vmem:[#allocation3 + $0x108] sm:$0xff]
      %v5561 = vld [vmem:[#allocation3 + $0x110] sm:$0xff]
      %v5562 = vld [vmem:[#allocation3 + $0x118] sm:$0xff]
      %v5563 = vld [vmem:[#allocation3 + $0x120] sm:$0xff]
      %v5564 = vld [vmem:[#allocation3 + $0x128] sm:$0xff]
      %v5565 = vld [vmem:[%s4 + $0x1] sm:$0x1]
      %v5566 = vperm.slane %v5565, 0
      %v5567 = vmul.f32 %v5533, %v5566
      %v5568 = vmul.f32 %v5534, %v5566
      %v5569 = vmul.f32 %v5535, %v5566
      %v5570 = vmul.f32 %v5536, %v5566
      %v5571 = vmul.f32 %v5537, %v5566
      %v5572 = vmul.f32 %v5538, %v5566
      %v5573 = vmul.f32 %v5539, %v5566
      %v5574 = vmul.f32 %v5540, %v5566
      %v5575 = vmul.f32 %v5541, %v5566
      %v5576 = vmul.f32 %v5542, %v5566
      %v5577 = vmul.f32 %v5543, %v5566
      %v5578 = vmul.f32 %v5544, %v5566
      %v5579 = vmul.f32 %v5545, %v5566
      %v5580 = vmul.f32 %v5546, %v5566
      %v5581 = vmul.f32 %v5547, %v5566
      %v5582 = vmul.f32 %v5548, %v5566
      %v5583 = vmul.f32 %v5549, %v5566
      %v5584 = vmul.f32 %v5550, %v5566
      %v5585 = vmul.f32 %v5551, %v5566
      %v5586 = vmul.f32 %v5552, %v5566
      %v5587 = vmul.f32 %v5553, %v5566
      %v5588 = vmul.f32 %v5554, %v5566
      %v5589 = vmul.f32 %v5555, %v5566
      %v5590 = vmul.f32 %v5556, %v5566
      %v5591 = vmul.f32 %v5557, %v5566
      %v5592 = vmul.f32 %v5558, %v5566
      %v5593 = vmul.f32 %v5559, %v5566
      %v5594 = vmul.f32 %v5560, %v5566
      %v5595 = vmul.f32 %v5561, %v5566
      %v5596 = vmul.f32 %v5562, %v5566
      %v5597 = vmul.f32 %v5563, %v5566
      %v5598 = vmul.f32 %v5564, %v5566
      %v5599 = vld [vmem:[%s4553] sm:$0xff]
      %v5600 = vld [vmem:[%s4553 + $0x8] sm:$0xff]
      %v5601 = vld [vmem:[%s4553 + $0x10] sm:$0xff]
      %v5602 = vld [vmem:[%s4553 + $0x18] sm:$0xff]
      %v5603 = vld [vmem:[%s4553 + $0x20] sm:$0xff]
      %v5604 = vld [vmem:[%s4553 + $0x28] sm:$0xff]
      %v5605 = vld [vmem:[%s4553 + $0x30] sm:$0xff]
      %v5606 = vld [vmem:[%s4553 + $0x38] sm:$0xff]
      %v5607 = vld [vmem:[%s4553 + $0x50] sm:$0xff]
      %v5608 = vld [vmem:[%s4553 + $0x58] sm:$0xff]
      %v5609 = vld [vmem:[%s4553 + $0x60] sm:$0xff]
      %v5610 = vld [vmem:[%s4553 + $0x68] sm:$0xff]
      %v5611 = vld [vmem:[%s4553 + $0x70] sm:$0xff]
      %v5612 = vld [vmem:[%s4553 + $0x78] sm:$0xff]
      %v5613 = vld [vmem:[%s4553 + $0x80] sm:$0xff]
      %v5614 = vld [vmem:[%s4553 + $0x88] sm:$0xff]
      %v5615 = vld [vmem:[%s4553 + $0xa0] sm:$0xff]
      %v5616 = vld [vmem:[%s4553 + $0xa8] sm:$0xff]
      %v5617 = vld [vmem:[%s4553 + $0xb0] sm:$0xff]
      %v5618 = vld [vmem:[%s4553 + $0xb8] sm:$0xff]
      %v5619 = vld [vmem:[%s4553 + $0xc0] sm:$0xff]
      %v5620 = vld [vmem:[%s4553 + $0xc8] sm:$0xff]
      %v5621 = vld [vmem:[%s4553 + $0xd0] sm:$0xff]
      %v5622 = vld [vmem:[%s4553 + $0xd8] sm:$0xff]
      %v5623 = vld [vmem:[%s4553 + $0xf0] sm:$0xff]
      %v5624 = vld [vmem:[%s4553 + $0xf8] sm:$0xff]
      %v5625 = vld [vmem:[%s4553 + $0x100] sm:$0xff]
      %v5626 = vld [vmem:[%s4553 + $0x108] sm:$0xff]
      %v5627 = vld [vmem:[%s4553 + $0x110] sm:$0xff]
      %v5628 = vld [vmem:[%s4553 + $0x118] sm:$0xff]
      %v5629 = vld [vmem:[%s4553 + $0x120] sm:$0xff]
      %v5630 = vld [vmem:[%s4553 + $0x128] sm:$0xff]
      %v5631 = vld [vmem:[%s4 + $0x4] sm:$0x1]
      %v5632 = vperm.slane %v5631, 0
      %v5633 = vmul.f32 %v5599, %v5632
      %v5634 = vmul.f32 %v5600, %v5632
      %v5635 = vmul.f32 %v5601, %v5632
      %v5636 = vmul.f32 %v5602, %v5632
      %v5637 = vmul.f32 %v5603, %v5632
      %v5638 = vmul.f32 %v5604, %v5632
      %v5639 = vmul.f32 %v5605, %v5632
      %v5640 = vmul.f32 %v5606, %v5632
      %v5641 = vmul.f32 %v5607, %v5632
      %v5642 = vmul.f32 %v5608, %v5632
      %v5643 = vmul.f32 %v5609, %v5632
      %v5644 = vmul.f32 %v5610, %v5632
      %v5645 = vmul.f32 %v5611, %v5632
      %v5646 = vmul.f32 %v5612, %v5632
      %v5647 = vmul.f32 %v5613, %v5632
      %v5648 = vmul.f32 %v5614, %v5632
      %v5649 = vmul.f32 %v5615, %v5632
      %v5650 = vmul.f32 %v5616, %v5632
      %v5651 = vmul.f32 %v5617, %v5632
      %v5652 = vmul.f32 %v5618, %v5632
      %v5653 = vmul.f32 %v5619, %v5632
      %v5654 = vmul.f32 %v5620, %v5632
      %v5655 = vmul.f32 %v5621, %v5632
      %v5656 = vmul.f32 %v5622, %v5632
      %v5657 = vmul.f32 %v5623, %v5632
      %v5658 = vmul.f32 %v5624, %v5632
      %v5659 = vmul.f32 %v5625, %v5632
      %v5660 = vmul.f32 %v5626, %v5632
      %v5661 = vmul.f32 %v5627, %v5632
      %v5662 = vmul.f32 %v5628, %v5632
      %v5663 = vmul.f32 %v5629, %v5632
      %v5664 = vmul.f32 %v5630, %v5632
      %v5665 = vadd.f32 %v5567, %v5633
      %v5666 = vadd.f32 %v5568, %v5634
      %v5667 = vadd.f32 %v5569, %v5635
      %v5668 = vadd.f32 %v5570, %v5636
      %v5669 = vadd.f32 %v5571, %v5637
      %v5670 = vadd.f32 %v5572, %v5638
      %v5671 = vadd.f32 %v5573, %v5639
      %v5672 = vadd.f32 %v5574, %v5640
      %v5673 = vadd.f32 %v5575, %v5641
      %v5674 = vadd.f32 %v5576, %v5642
      %v5675 = vadd.f32 %v5577, %v5643
      %v5676 = vadd.f32 %v5578, %v5644
      %v5677 = vadd.f32 %v5579, %v5645
      %v5678 = vadd.f32 %v5580, %v5646
      %v5679 = vadd.f32 %v5581, %v5647
      %v5680 = vadd.f32 %v5582, %v5648
      %v5681 = vadd.f32 %v5583, %v5649
      %v5682 = vadd.f32 %v5584, %v5650
      %v5683 = vadd.f32 %v5585, %v5651
      %v5684 = vadd.f32 %v5586, %v5652
      %v5685 = vadd.f32 %v5587, %v5653
      %v5686 = vadd.f32 %v5588, %v5654
      %v5687 = vadd.f32 %v5589, %v5655
      %v5688 = vadd.f32 %v5590, %v5656
      %v5689 = vadd.f32 %v5591, %v5657
      %v5690 = vadd.f32 %v5592, %v5658
      %v5691 = vadd.f32 %v5593, %v5659
      %v5692 = vadd.f32 %v5594, %v5660
      %v5693 = vadd.f32 %v5595, %v5661
      %v5694 = vadd.f32 %v5596, %v5662
      %v5695 = vadd.f32 %v5597, %v5663
      %v5696 = vadd.f32 %v5598, %v5664
      %v5697 = vld [vmem:[%s4652] sm:$0xff]
      %v5698 = vld [vmem:[%s4652 + $0x8] sm:$0xff]
      %v5699 = vld [vmem:[%s4652 + $0x10] sm:$0xff]
      %v5700 = vld [vmem:[%s4652 + $0x18] sm:$0xff]
      %v5701 = vld [vmem:[%s4652 + $0x20] sm:$0xff]
      %v5702 = vld [vmem:[%s4652 + $0x28] sm:$0xff]
      %v5703 = vld [vmem:[%s4652 + $0x30] sm:$0xff]
      %v5704 = vld [vmem:[%s4652 + $0x38] sm:$0xff]
      %v5705 = vld [vmem:[%s4652 + $0x50] sm:$0xff]
      %v5706 = vld [vmem:[%s4652 + $0x58] sm:$0xff]
      %v5707 = vld [vmem:[%s4652 + $0x60] sm:$0xff]
      %v5708 = vld [vmem:[%s4652 + $0x68] sm:$0xff]
      %v5709 = vld [vmem:[%s4652 + $0x70] sm:$0xff]
      %v5710 = vld [vmem:[%s4652 + $0x78] sm:$0xff]
      %v5711 = vld [vmem:[%s4652 + $0x80] sm:$0xff]
      %v5712 = vld [vmem:[%s4652 + $0x88] sm:$0xff]
      %v5713 = vld [vmem:[%s4652 + $0xa0] sm:$0xff]
      %v5714 = vld [vmem:[%s4652 + $0xa8] sm:$0xff]
      %v5715 = vld [vmem:[%s4652 + $0xb0] sm:$0xff]
      %v5716 = vld [vmem:[%s4652 + $0xb8] sm:$0xff]
      %v5717 = vld [vmem:[%s4652 + $0xc0] sm:$0xff]
      %v5718 = vld [vmem:[%s4652 + $0xc8] sm:$0xff]
      %v5719 = vld [vmem:[%s4652 + $0xd0] sm:$0xff]
      %v5720 = vld [vmem:[%s4652 + $0xd8] sm:$0xff]
      %v5721 = vld [vmem:[%s4652 + $0xf0] sm:$0xff]
      %v5722 = vld [vmem:[%s4652 + $0xf8] sm:$0xff]
      %v5723 = vld [vmem:[%s4652 + $0x100] sm:$0xff]
      %v5724 = vld [vmem:[%s4652 + $0x108] sm:$0xff]
      %v5725 = vld [vmem:[%s4652 + $0x110] sm:$0xff]
      %v5726 = vld [vmem:[%s4652 + $0x118] sm:$0xff]
      %v5727 = vld [vmem:[%s4652 + $0x120] sm:$0xff]
      %v5728 = vld [vmem:[%s4652 + $0x128] sm:$0xff]
      %v5729 = vld [vmem:[%s4 + $0x7] sm:$0x1]
      %v5730 = vperm.slane %v5729, 0
      %v5731 = vmul.f32 %v5697, %v5730
      %v5732 = vmul.f32 %v5698, %v5730
      %v5733 = vmul.f32 %v5699, %v5730
      %v5734 = vmul.f32 %v5700, %v5730
      %v5735 = vmul.f32 %v5701, %v5730
      %v5736 = vmul.f32 %v5702, %v5730
      %v5737 = vmul.f32 %v5703, %v5730
      %v5738 = vmul.f32 %v5704, %v5730
      %v5739 = vmul.f32 %v5705, %v5730
      %v5740 = vmul.f32 %v5706, %v5730
      %v5741 = vmul.f32 %v5707, %v5730
      %v5742 = vmul.f32 %v5708, %v5730
      %v5743 = vmul.f32 %v5709, %v5730
      %v5744 = vmul.f32 %v5710, %v5730
      %v5745 = vmul.f32 %v5711, %v5730
      %v5746 = vmul.f32 %v5712, %v5730
      %v5747 = vmul.f32 %v5713, %v5730
      %v5748 = vmul.f32 %v5714, %v5730
      %v5749 = vmul.f32 %v5715, %v5730
      %v5750 = vmul.f32 %v5716, %v5730
      %v5751 = vmul.f32 %v5717, %v5730
      %v5752 = vmul.f32 %v5718, %v5730
      %v5753 = vmul.f32 %v5719, %v5730
      %v5754 = vmul.f32 %v5720, %v5730
      %v5755 = vmul.f32 %v5721, %v5730
      %v5756 = vmul.f32 %v5722, %v5730
      %v5757 = vmul.f32 %v5723, %v5730
      %v5758 = vmul.f32 %v5724, %v5730
      %v5759 = vmul.f32 %v5725, %v5730
      %v5760 = vmul.f32 %v5726, %v5730
      %v5761 = vmul.f32 %v5727, %v5730
      %v5762 = vmul.f32 %v5728, %v5730
      %v5763 = vadd.f32 %v5665, %v5731
      %v5764 = vadd.f32 %v5666, %v5732
      %v5765 = vadd.f32 %v5667, %v5733
      %v5766 = vadd.f32 %v5668, %v5734
      %v5767 = vadd.f32 %v5669, %v5735
      %v5768 = vadd.f32 %v5670, %v5736
      %v5769 = vadd.f32 %v5671, %v5737
      %v5770 = vadd.f32 %v5672, %v5738
      %v5771 = vadd.f32 %v5673, %v5739
      %v5772 = vadd.f32 %v5674, %v5740
      %v5773 = vadd.f32 %v5675, %v5741
      %v5774 = vadd.f32 %v5676, %v5742
      %v5775 = vadd.f32 %v5677, %v5743
      %v5776 = vadd.f32 %v5678, %v5744
      %v5777 = vadd.f32 %v5679, %v5745
      %v5778 = vadd.f32 %v5680, %v5746
      %v5779 = vadd.f32 %v5681, %v5747
      %v5780 = vadd.f32 %v5682, %v5748
      %v5781 = vadd.f32 %v5683, %v5749
      %v5782 = vadd.f32 %v5684, %v5750
      %v5783 = vadd.f32 %v5685, %v5751
      %v5784 = vadd.f32 %v5686, %v5752
      %v5785 = vadd.f32 %v5687, %v5753
      %v5786 = vadd.f32 %v5688, %v5754
      %v5787 = vadd.f32 %v5689, %v5755
      %v5788 = vadd.f32 %v5690, %v5756
      %v5789 = vadd.f32 %v5691, %v5757
      %v5790 = vadd.f32 %v5692, %v5758
      %v5791 = vadd.f32 %v5693, %v5759
      %v5792 = vadd.f32 %v5694, %v5760
      %v5793 = vadd.f32 %v5695, %v5761
      %v5794 = vadd.f32 %v5696, %v5762
      %v5795 = vld [vmem:[%s4751] sm:$0xff]
      %v5796 = vld [vmem:[%s4751 + $0x8] sm:$0xff]
      %v5797 = vld [vmem:[%s4751 + $0x10] sm:$0xff]
      %v5798 = vld [vmem:[%s4751 + $0x18] sm:$0xff]
      %v5799 = vld [vmem:[%s4751 + $0x20] sm:$0xff]
      %v5800 = vld [vmem:[%s4751 + $0x28] sm:$0xff]
      %v5801 = vld [vmem:[%s4751 + $0x30] sm:$0xff]
      %v5802 = vld [vmem:[%s4751 + $0x38] sm:$0xff]
      %v5803 = vld [vmem:[%s4751 + $0x50] sm:$0xff]
      %v5804 = vld [vmem:[%s4751 + $0x58] sm:$0xff]
      %v5805 = vld [vmem:[%s4751 + $0x60] sm:$0xff]
      %v5806 = vld [vmem:[%s4751 + $0x68] sm:$0xff]
      %v5807 = vld [vmem:[%s4751 + $0x70] sm:$0xff]
      %v5808 = vld [vmem:[%s4751 + $0x78] sm:$0xff]
      %v5809 = vld [vmem:[%s4751 + $0x80] sm:$0xff]
      %v5810 = vld [vmem:[%s4751 + $0x88] sm:$0xff]
      %v5811 = vld [vmem:[%s4751 + $0xa0] sm:$0xff]
      %v5812 = vld [vmem:[%s4751 + $0xa8] sm:$0xff]
      %v5813 = vld [vmem:[%s4751 + $0xb0] sm:$0xff]
      %v5814 = vld [vmem:[%s4751 + $0xb8] sm:$0xff]
      %v5815 = vld [vmem:[%s4751 + $0xc0] sm:$0xff]
      %v5816 = vld [vmem:[%s4751 + $0xc8] sm:$0xff]
      %v5817 = vld [vmem:[%s4751 + $0xd0] sm:$0xff]
      %v5818 = vld [vmem:[%s4751 + $0xd8] sm:$0xff]
      %v5819 = vld [vmem:[%s4751 + $0xf0] sm:$0xff]
      %v5820 = vld [vmem:[%s4751 + $0xf8] sm:$0xff]
      %v5821 = vld [vmem:[%s4751 + $0x100] sm:$0xff]
      %v5822 = vld [vmem:[%s4751 + $0x108] sm:$0xff]
      %v5823 = vld [vmem:[%s4751 + $0x110] sm:$0xff]
      %v5824 = vld [vmem:[%s4751 + $0x118] sm:$0xff]
      %v5825 = vld [vmem:[%s4751 + $0x120] sm:$0xff]
      %v5826 = vld [vmem:[%s4751 + $0x128] sm:$0xff]
      %v5827 = vld [vmem:[%s4 + $0xa] sm:$0x1]
      %v5828 = vperm.slane %v5827, 0
      %v5829 = vmul.f32 %v5795, %v5828
      %v5830 = vmul.f32 %v5796, %v5828
      %v5831 = vmul.f32 %v5797, %v5828
      %v5832 = vmul.f32 %v5798, %v5828
      %v5833 = vmul.f32 %v5799, %v5828
      %v5834 = vmul.f32 %v5800, %v5828
      %v5835 = vmul.f32 %v5801, %v5828
      %v5836 = vmul.f32 %v5802, %v5828
      %v5837 = vmul.f32 %v5803, %v5828
      %v5838 = vmul.f32 %v5804, %v5828
      %v5839 = vmul.f32 %v5805, %v5828
      %v5840 = vmul.f32 %v5806, %v5828
      %v5841 = vmul.f32 %v5807, %v5828
      %v5842 = vmul.f32 %v5808, %v5828
      %v5843 = vmul.f32 %v5809, %v5828
      %v5844 = vmul.f32 %v5810, %v5828
      %v5845 = vmul.f32 %v5811, %v5828
      %v5846 = vmul.f32 %v5812, %v5828
      %v5847 = vmul.f32 %v5813, %v5828
      %v5848 = vmul.f32 %v5814, %v5828
      %v5849 = vmul.f32 %v5815, %v5828
      %v5850 = vmul.f32 %v5816, %v5828
      %v5851 = vmul.f32 %v5817, %v5828
      %v5852 = vmul.f32 %v5818, %v5828
      %v5853 = vmul.f32 %v5819, %v5828
      %v5854 = vmul.f32 %v5820, %v5828
      %v5855 = vmul.f32 %v5821, %v5828
      %v5856 = vmul.f32 %v5822, %v5828
      %v5857 = vmul.f32 %v5823, %v5828
      %v5858 = vmul.f32 %v5824, %v5828
      %v5859 = vmul.f32 %v5825, %v5828
      %v5860 = vmul.f32 %v5826, %v5828
      %v5861 = vadd.f32 %v5763, %v5829
      %v5862 = vadd.f32 %v5764, %v5830
      %v5863 = vadd.f32 %v5765, %v5831
      %v5864 = vadd.f32 %v5766, %v5832
      %v5865 = vadd.f32 %v5767, %v5833
      %v5866 = vadd.f32 %v5768, %v5834
      %v5867 = vadd.f32 %v5769, %v5835
      %v5868 = vadd.f32 %v5770, %v5836
      %v5869 = vadd.f32 %v5771, %v5837
      %v5870 = vadd.f32 %v5772, %v5838
      %v5871 = vadd.f32 %v5773, %v5839
      %v5872 = vadd.f32 %v5774, %v5840
      %v5873 = vadd.f32 %v5775, %v5841
      %v5874 = vadd.f32 %v5776, %v5842
      %v5875 = vadd.f32 %v5777, %v5843
      %v5876 = vadd.f32 %v5778, %v5844
      %v5877 = vadd.f32 %v5779, %v5845
      %v5878 = vadd.f32 %v5780, %v5846
      %v5879 = vadd.f32 %v5781, %v5847
      %v5880 = vadd.f32 %v5782, %v5848
      %v5881 = vadd.f32 %v5783, %v5849
      %v5882 = vadd.f32 %v5784, %v5850
      %v5883 = vadd.f32 %v5785, %v5851
      %v5884 = vadd.f32 %v5786, %v5852
      %v5885 = vadd.f32 %v5787, %v5853
      %v5886 = vadd.f32 %v5788, %v5854
      %v5887 = vadd.f32 %v5789, %v5855
      %v5888 = vadd.f32 %v5790, %v5856
      %v5889 = vadd.f32 %v5791, %v5857
      %v5890 = vadd.f32 %v5792, %v5858
      %v5891 = vadd.f32 %v5793, %v5859
      %v5892 = vadd.f32 %v5794, %v5860
      %v5893 = vld [vmem:[%s4850] sm:$0xff]
      %v5894 = vld [vmem:[%s4850 + $0x8] sm:$0xff]
      %v5895 = vld [vmem:[%s4850 + $0x10] sm:$0xff]
      %v5896 = vld [vmem:[%s4850 + $0x18] sm:$0xff]
      %v5897 = vld [vmem:[%s4850 + $0x20] sm:$0xff]
      %v5898 = vld [vmem:[%s4850 + $0x28] sm:$0xff]
      %v5899 = vld [vmem:[%s4850 + $0x30] sm:$0xff]
      %v5900 = vld [vmem:[%s4850 + $0x38] sm:$0xff]
      %v5901 = vld [vmem:[%s4850 + $0x50] sm:$0xff]
      %v5902 = vld [vmem:[%s4850 + $0x58] sm:$0xff]
      %v5903 = vld [vmem:[%s4850 + $0x60] sm:$0xff]
      %v5904 = vld [vmem:[%s4850 + $0x68] sm:$0xff]
      %v5905 = vld [vmem:[%s4850 + $0x70] sm:$0xff]
      %v5906 = vld [vmem:[%s4850 + $0x78] sm:$0xff]
      %v5907 = vld [vmem:[%s4850 + $0x80] sm:$0xff]
      %v5908 = vld [vmem:[%s4850 + $0x88] sm:$0xff]
      %v5909 = vld [vmem:[%s4850 + $0xa0] sm:$0xff]
      %v5910 = vld [vmem:[%s4850 + $0xa8] sm:$0xff]
      %v5911 = vld [vmem:[%s4850 + $0xb0] sm:$0xff]
      %v5912 = vld [vmem:[%s4850 + $0xb8] sm:$0xff]
      %v5913 = vld [vmem:[%s4850 + $0xc0] sm:$0xff]
      %v5914 = vld [vmem:[%s4850 + $0xc8] sm:$0xff]
      %v5915 = vld [vmem:[%s4850 + $0xd0] sm:$0xff]
      %v5916 = vld [vmem:[%s4850 + $0xd8] sm:$0xff]
      %v5917 = vld [vmem:[%s4850 + $0xf0] sm:$0xff]
      %v5918 = vld [vmem:[%s4850 + $0xf8] sm:$0xff]
      %v5919 = vld [vmem:[%s4850 + $0x100] sm:$0xff]
      %v5920 = vld [vmem:[%s4850 + $0x108] sm:$0xff]
      %v5921 = vld [vmem:[%s4850 + $0x110] sm:$0xff]
      %v5922 = vld [vmem:[%s4850 + $0x118] sm:$0xff]
      %v5923 = vld [vmem:[%s4850 + $0x120] sm:$0xff]
      %v5924 = vld [vmem:[%s4850 + $0x128] sm:$0xff]
      %v5925 = vld [vmem:[%s4 + $0xd] sm:$0x1]
      %v5926 = vperm.slane %v5925, 0
      %v5927 = vmul.f32 %v5893, %v5926
      %v5928 = vmul.f32 %v5894, %v5926
      %v5929 = vmul.f32 %v5895, %v5926
      %v5930 = vmul.f32 %v5896, %v5926
      %v5931 = vmul.f32 %v5897, %v5926
      %v5932 = vmul.f32 %v5898, %v5926
      %v5933 = vmul.f32 %v5899, %v5926
      %v5934 = vmul.f32 %v5900, %v5926
      %v5935 = vmul.f32 %v5901, %v5926
      %v5936 = vmul.f32 %v5902, %v5926
      %v5937 = vmul.f32 %v5903, %v5926
      %v5938 = vmul.f32 %v5904, %v5926
      %v5939 = vmul.f32 %v5905, %v5926
      %v5940 = vmul.f32 %v5906, %v5926
      %v5941 = vmul.f32 %v5907, %v5926
      %v5942 = vmul.f32 %v5908, %v5926
      %v5943 = vmul.f32 %v5909, %v5926
      %v5944 = vmul.f32 %v5910, %v5926
      %v5945 = vmul.f32 %v5911, %v5926
      %v5946 = vmul.f32 %v5912, %v5926
      %v5947 = vmul.f32 %v5913, %v5926
      %v5948 = vmul.f32 %v5914, %v5926
      %v5949 = vmul.f32 %v5915, %v5926
      %v5950 = vmul.f32 %v5916, %v5926
      %v5951 = vmul.f32 %v5917, %v5926
      %v5952 = vmul.f32 %v5918, %v5926
      %v5953 = vmul.f32 %v5919, %v5926
      %v5954 = vmul.f32 %v5920, %v5926
      %v5955 = vmul.f32 %v5921, %v5926
      %v5956 = vmul.f32 %v5922, %v5926
      %v5957 = vmul.f32 %v5923, %v5926
      %v5958 = vmul.f32 %v5924, %v5926
      %v5959 = vadd.f32 %v5861, %v5927
      %v5960 = vadd.f32 %v5862, %v5928
      %v5961 = vadd.f32 %v5863, %v5929
      %v5962 = vadd.f32 %v5864, %v5930
      %v5963 = vadd.f32 %v5865, %v5931
      %v5964 = vadd.f32 %v5866, %v5932
      %v5965 = vadd.f32 %v5867, %v5933
      %v5966 = vadd.f32 %v5868, %v5934
      %v5967 = vadd.f32 %v5869, %v5935
      %v5968 = vadd.f32 %v5870, %v5936
      %v5969 = vadd.f32 %v5871, %v5937
      %v5970 = vadd.f32 %v5872, %v5938
      %v5971 = vadd.f32 %v5873, %v5939
      %v5972 = vadd.f32 %v5874, %v5940
      %v5973 = vadd.f32 %v5875, %v5941
      %v5974 = vadd.f32 %v5876, %v5942
      %v5975 = vadd.f32 %v5877, %v5943
      %v5976 = vadd.f32 %v5878, %v5944
      %v5977 = vadd.f32 %v5879, %v5945
      %v5978 = vadd.f32 %v5880, %v5946
      %v5979 = vadd.f32 %v5881, %v5947
      %v5980 = vadd.f32 %v5882, %v5948
      %v5981 = vadd.f32 %v5883, %v5949
      %v5982 = vadd.f32 %v5884, %v5950
      %v5983 = vadd.f32 %v5885, %v5951
      %v5984 = vadd.f32 %v5886, %v5952
      %v5985 = vadd.f32 %v5887, %v5953
      %v5986 = vadd.f32 %v5888, %v5954
      %v5987 = vadd.f32 %v5889, %v5955
      %v5988 = vadd.f32 %v5890, %v5956
      %v5989 = vadd.f32 %v5891, %v5957
      %v5990 = vadd.f32 %v5892, %v5958
      %v5991 = vld [vmem:[%s4949] sm:$0xff]
      %v5992 = vld [vmem:[%s4949 + $0x8] sm:$0xff]
      %v5993 = vld [vmem:[%s4949 + $0x10] sm:$0xff]
      %v5994 = vld [vmem:[%s4949 + $0x18] sm:$0xff]
      %v5995 = vld [vmem:[%s4949 + $0x20] sm:$0xff]
      %v5996 = vld [vmem:[%s4949 + $0x28] sm:$0xff]
      %v5997 = vld [vmem:[%s4949 + $0x30] sm:$0xff]
      %v5998 = vld [vmem:[%s4949 + $0x38] sm:$0xff]
      %v5999 = vld [vmem:[%s4949 + $0x50] sm:$0xff]
      %v6000 = vld [vmem:[%s4949 + $0x58] sm:$0xff]
      %v6001 = vld [vmem:[%s4949 + $0x60] sm:$0xff]
      %v6002 = vld [vmem:[%s4949 + $0x68] sm:$0xff]
      %v6003 = vld [vmem:[%s4949 + $0x70] sm:$0xff]
      %v6004 = vld [vmem:[%s4949 + $0x78] sm:$0xff]
      %v6005 = vld [vmem:[%s4949 + $0x80] sm:$0xff]
      %v6006 = vld [vmem:[%s4949 + $0x88] sm:$0xff]
      %v6007 = vld [vmem:[%s4949 + $0xa0] sm:$0xff]
      %v6008 = vld [vmem:[%s4949 + $0xa8] sm:$0xff]
      %v6009 = vld [vmem:[%s4949 + $0xb0] sm:$0xff]
      %v6010 = vld [vmem:[%s4949 + $0xb8] sm:$0xff]
      %v6011 = vld [vmem:[%s4949 + $0xc0] sm:$0xff]
      %v6012 = vld [vmem:[%s4949 + $0xc8] sm:$0xff]
      %v6013 = vld [vmem:[%s4949 + $0xd0] sm:$0xff]
      %v6014 = vld [vmem:[%s4949 + $0xd8] sm:$0xff]
      %v6015 = vld [vmem:[%s4949 + $0xf0] sm:$0xff]
      %v6016 = vld [vmem:[%s4949 + $0xf8] sm:$0xff]
      %v6017 = vld [vmem:[%s4949 + $0x100] sm:$0xff]
      %v6018 = vld [vmem:[%s4949 + $0x108] sm:$0xff]
      %v6019 = vld [vmem:[%s4949 + $0x110] sm:$0xff]
      %v6020 = vld [vmem:[%s4949 + $0x118] sm:$0xff]
      %v6021 = vld [vmem:[%s4949 + $0x120] sm:$0xff]
      %v6022 = vld [vmem:[%s4949 + $0x128] sm:$0xff]
      %v6023 = vld [vmem:[%s4 + $0x10] sm:$0x1]
      %v6024 = vperm.slane %v6023, 0
      %v6025 = vmul.f32 %v5991, %v6024
      %v6026 = vmul.f32 %v5992, %v6024
      %v6027 = vmul.f32 %v5993, %v6024
      %v6028 = vmul.f32 %v5994, %v6024
      %v6029 = vmul.f32 %v5995, %v6024
      %v6030 = vmul.f32 %v5996, %v6024
      %v6031 = vmul.f32 %v5997, %v6024
      %v6032 = vmul.f32 %v5998, %v6024
      %v6033 = vmul.f32 %v5999, %v6024
      %v6034 = vmul.f32 %v6000, %v6024
      %v6035 = vmul.f32 %v6001, %v6024
      %v6036 = vmul.f32 %v6002, %v6024
      %v6037 = vmul.f32 %v6003, %v6024
      %v6038 = vmul.f32 %v6004, %v6024
      %v6039 = vmul.f32 %v6005, %v6024
      %v6040 = vmul.f32 %v6006, %v6024
      %v6041 = vmul.f32 %v6007, %v6024
      %v6042 = vmul.f32 %v6008, %v6024
      %v6043 = vmul.f32 %v6009, %v6024
      %v6044 = vmul.f32 %v6010, %v6024
      %v6045 = vmul.f32 %v6011, %v6024
      %v6046 = vmul.f32 %v6012, %v6024
      %v6047 = vmul.f32 %v6013, %v6024
      %v6048 = vmul.f32 %v6014, %v6024
      %v6049 = vmul.f32 %v6015, %v6024
      %v6050 = vmul.f32 %v6016, %v6024
      %v6051 = vmul.f32 %v6017, %v6024
      %v6052 = vmul.f32 %v6018, %v6024
      %v6053 = vmul.f32 %v6019, %v6024
      %v6054 = vmul.f32 %v6020, %v6024
      %v6055 = vmul.f32 %v6021, %v6024
      %v6056 = vmul.f32 %v6022, %v6024
      %v6057 = vadd.f32 %v5959, %v6025
      %v6058 = vadd.f32 %v5960, %v6026
      %v6059 = vadd.f32 %v5961, %v6027
      %v6060 = vadd.f32 %v5962, %v6028
      %v6061 = vadd.f32 %v5963, %v6029
      %v6062 = vadd.f32 %v5964, %v6030
      %v6063 = vadd.f32 %v5965, %v6031
      %v6064 = vadd.f32 %v5966, %v6032
      %v6065 = vadd.f32 %v5967, %v6033
      %v6066 = vadd.f32 %v5968, %v6034
      %v6067 = vadd.f32 %v5969, %v6035
      %v6068 = vadd.f32 %v5970, %v6036
      %v6069 = vadd.f32 %v5971, %v6037
      %v6070 = vadd.f32 %v5972, %v6038
      %v6071 = vadd.f32 %v5973, %v6039
      %v6072 = vadd.f32 %v5974, %v6040
      %v6073 = vadd.f32 %v5975, %v6041
      %v6074 = vadd.f32 %v5976, %v6042
      %v6075 = vadd.f32 %v5977, %v6043
      %v6076 = vadd.f32 %v5978, %v6044
      %v6077 = vadd.f32 %v5979, %v6045
      %v6078 = vadd.f32 %v5980, %v6046
      %v6079 = vadd.f32 %v5981, %v6047
      %v6080 = vadd.f32 %v5982, %v6048
      %v6081 = vadd.f32 %v5983, %v6049
      %v6082 = vadd.f32 %v5984, %v6050
      %v6083 = vadd.f32 %v5985, %v6051
      %v6084 = vadd.f32 %v5986, %v6052
      %v6085 = vadd.f32 %v5987, %v6053
      %v6086 = vadd.f32 %v5988, %v6054
      %v6087 = vadd.f32 %v5989, %v6055
      %v6088 = vadd.f32 %v5990, %v6056
      %v6089 = vld [vmem:[%s5048] sm:$0xff]
      %v6090 = vld [vmem:[%s5048 + $0x8] sm:$0xff]
      %v6091 = vld [vmem:[%s5048 + $0x10] sm:$0xff]
      %v6092 = vld [vmem:[%s5048 + $0x18] sm:$0xff]
      %v6093 = vld [vmem:[%s5048 + $0x20] sm:$0xff]
      %v6094 = vld [vmem:[%s5048 + $0x28] sm:$0xff]
      %v6095 = vld [vmem:[%s5048 + $0x30] sm:$0xff]
      %v6096 = vld [vmem:[%s5048 + $0x38] sm:$0xff]
      %v6097 = vld [vmem:[%s5048 + $0x50] sm:$0xff]
      %v6098 = vld [vmem:[%s5048 + $0x58] sm:$0xff]
      %v6099 = vld [vmem:[%s5048 + $0x60] sm:$0xff]
      %v6100 = vld [vmem:[%s5048 + $0x68] sm:$0xff]
      %v6101 = vld [vmem:[%s5048 + $0x70] sm:$0xff]
      %v6102 = vld [vmem:[%s5048 + $0x78] sm:$0xff]
      %v6103 = vld [vmem:[%s5048 + $0x80] sm:$0xff]
      %v6104 = vld [vmem:[%s5048 + $0x88] sm:$0xff]
      %v6105 = vld [vmem:[%s5048 + $0xa0] sm:$0xff]
      %v6106 = vld [vmem:[%s5048 + $0xa8] sm:$0xff]
      %v6107 = vld [vmem:[%s5048 + $0xb0] sm:$0xff]
      %v6108 = vld [vmem:[%s5048 + $0xb8] sm:$0xff]
      %v6109 = vld [vmem:[%s5048 + $0xc0] sm:$0xff]
      %v6110 = vld [vmem:[%s5048 + $0xc8] sm:$0xff]
      %v6111 = vld [vmem:[%s5048 + $0xd0] sm:$0xff]
      %v6112 = vld [vmem:[%s5048 + $0xd8] sm:$0xff]
      %v6113 = vld [vmem:[%s5048 + $0xf0] sm:$0xff]
      %v6114 = vld [vmem:[%s5048 + $0xf8] sm:$0xff]
      %v6115 = vld [vmem:[%s5048 + $0x100] sm:$0xff]
      %v6116 = vld [vmem:[%s5048 + $0x108] sm:$0xff]
      %v6117 = vld [vmem:[%s5048 + $0x110] sm:$0xff]
      %v6118 = vld [vmem:[%s5048 + $0x118] sm:$0xff]
      %v6119 = vld [vmem:[%s5048 + $0x120] sm:$0xff]
      %v6120 = vld [vmem:[%s5048 + $0x128] sm:$0xff]
      %v6121 = vld [vmem:[%s4 + $0x13] sm:$0x1]
      %v6122 = vperm.slane %v6121, 0
      %v6123 = vmul.f32 %v6089, %v6122
      %v6124 = vmul.f32 %v6090, %v6122
      %v6125 = vmul.f32 %v6091, %v6122
      %v6126 = vmul.f32 %v6092, %v6122
      %v6127 = vmul.f32 %v6093, %v6122
      %v6128 = vmul.f32 %v6094, %v6122
      %v6129 = vmul.f32 %v6095, %v6122
      %v6130 = vmul.f32 %v6096, %v6122
      %v6131 = vmul.f32 %v6097, %v6122
      %v6132 = vmul.f32 %v6098, %v6122
      %v6133 = vmul.f32 %v6099, %v6122
      %v6134 = vmul.f32 %v6100, %v6122
      %v6135 = vmul.f32 %v6101, %v6122
      %v6136 = vmul.f32 %v6102, %v6122
      %v6137 = vmul.f32 %v6103, %v6122
      %v6138 = vmul.f32 %v6104, %v6122
      %v6139 = vmul.f32 %v6105, %v6122
      %v6140 = vmul.f32 %v6106, %v6122
      %v6141 = vmul.f32 %v6107, %v6122
      %v6142 = vmul.f32 %v6108, %v6122
      %v6143 = vmul.f32 %v6109, %v6122
      %v6144 = vmul.f32 %v6110, %v6122
      %v6145 = vmul.f32 %v6111, %v6122
      %v6146 = vmul.f32 %v6112, %v6122
      %v6147 = vmul.f32 %v6113, %v6122
      %v6148 = vmul.f32 %v6114, %v6122
      %v6149 = vmul.f32 %v6115, %v6122
      %v6150 = vmul.f32 %v6116, %v6122
      %v6151 = vmul.f32 %v6117, %v6122
      %v6152 = vmul.f32 %v6118, %v6122
      %v6153 = vmul.f32 %v6119, %v6122
      %v6154 = vmul.f32 %v6120, %v6122
      %v6155 = vadd.f32 %v6057, %v6123
      %v6156 = vadd.f32 %v6058, %v6124
      %v6157 = vadd.f32 %v6059, %v6125
      %v6158 = vadd.f32 %v6060, %v6126
      %v6159 = vadd.f32 %v6061, %v6127
      %v6160 = vadd.f32 %v6062, %v6128
      %v6161 = vadd.f32 %v6063, %v6129
      %v6162 = vadd.f32 %v6064, %v6130
      %v6163 = vadd.f32 %v6065, %v6131
      %v6164 = vadd.f32 %v6066, %v6132
      %v6165 = vadd.f32 %v6067, %v6133
      %v6166 = vadd.f32 %v6068, %v6134
      %v6167 = vadd.f32 %v6069, %v6135
      %v6168 = vadd.f32 %v6070, %v6136
      %v6169 = vadd.f32 %v6071, %v6137
      %v6170 = vadd.f32 %v6072, %v6138
      %v6171 = vadd.f32 %v6073, %v6139
      %v6172 = vadd.f32 %v6074, %v6140
      %v6173 = vadd.f32 %v6075, %v6141
      %v6174 = vadd.f32 %v6076, %v6142
      %v6175 = vadd.f32 %v6077, %v6143
      %v6176 = vadd.f32 %v6078, %v6144
      %v6177 = vadd.f32 %v6079, %v6145
      %v6178 = vadd.f32 %v6080, %v6146
      %v6179 = vadd.f32 %v6081, %v6147
      %v6180 = vadd.f32 %v6082, %v6148
      %v6181 = vadd.f32 %v6083, %v6149
      %v6182 = vadd.f32 %v6084, %v6150
      %v6183 = vadd.f32 %v6085, %v6151
      %v6184 = vadd.f32 %v6086, %v6152
      %v6185 = vadd.f32 %v6087, %v6153
      %v6186 = vadd.f32 %v6088, %v6154
      %v6187 = vld [vmem:[%s5147] sm:$0xff]
      %v6188 = vld [vmem:[%s5147 + $0x8] sm:$0xff]
      %v6189 = vld [vmem:[%s5147 + $0x10] sm:$0xff]
      %v6190 = vld [vmem:[%s5147 + $0x18] sm:$0xff]
      %v6191 = vld [vmem:[%s5147 + $0x20] sm:$0xff]
      %v6192 = vld [vmem:[%s5147 + $0x28] sm:$0xff]
      %v6193 = vld [vmem:[%s5147 + $0x30] sm:$0xff]
      %v6194 = vld [vmem:[%s5147 + $0x38] sm:$0xff]
      %v6195 = vld [vmem:[%s5147 + $0x50] sm:$0xff]
      %v6196 = vld [vmem:[%s5147 + $0x58] sm:$0xff]
      %v6197 = vld [vmem:[%s5147 + $0x60] sm:$0xff]
      %v6198 = vld [vmem:[%s5147 + $0x68] sm:$0xff]
      %v6199 = vld [vmem:[%s5147 + $0x70] sm:$0xff]
      %v6200 = vld [vmem:[%s5147 + $0x78] sm:$0xff]
      %v6201 = vld [vmem:[%s5147 + $0x80] sm:$0xff]
      %v6202 = vld [vmem:[%s5147 + $0x88] sm:$0xff]
      %v6203 = vld [vmem:[%s5147 + $0xa0] sm:$0xff]
      %v6204 = vld [vmem:[%s5147 + $0xa8] sm:$0xff]
      %v6205 = vld [vmem:[%s5147 + $0xb0] sm:$0xff]
      %v6206 = vld [vmem:[%s5147 + $0xb8] sm:$0xff]
      %v6207 = vld [vmem:[%s5147 + $0xc0] sm:$0xff]
      %v6208 = vld [vmem:[%s5147 + $0xc8] sm:$0xff]
      %v6209 = vld [vmem:[%s5147 + $0xd0] sm:$0xff]
      %v6210 = vld [vmem:[%s5147 + $0xd8] sm:$0xff]
      %v6211 = vld [vmem:[%s5147 + $0xf0] sm:$0xff]
      %v6212 = vld [vmem:[%s5147 + $0xf8] sm:$0xff]
      %v6213 = vld [vmem:[%s5147 + $0x100] sm:$0xff]
      %v6214 = vld [vmem:[%s5147 + $0x108] sm:$0xff]
      %v6215 = vld [vmem:[%s5147 + $0x110] sm:$0xff]
      %v6216 = vld [vmem:[%s5147 + $0x118] sm:$0xff]
      %v6217 = vld [vmem:[%s5147 + $0x120] sm:$0xff]
      %v6218 = vld [vmem:[%s5147 + $0x128] sm:$0xff]
      %v6219 = vld [vmem:[%s4 + $0x16] sm:$0x1]
      %v6220 = vperm.slane %v6219, 0
      %v6221 = vmul.f32 %v6187, %v6220
      %v6222 = vmul.f32 %v6188, %v6220
      %v6223 = vmul.f32 %v6189, %v6220
      %v6224 = vmul.f32 %v6190, %v6220
      %v6225 = vmul.f32 %v6191, %v6220
      %v6226 = vmul.f32 %v6192, %v6220
      %v6227 = vmul.f32 %v6193, %v6220
      %v6228 = vmul.f32 %v6194, %v6220
      %v6229 = vmul.f32 %v6195, %v6220
      %v6230 = vmul.f32 %v6196, %v6220
      %v6231 = vmul.f32 %v6197, %v6220
      %v6232 = vmul.f32 %v6198, %v6220
      %v6233 = vmul.f32 %v6199, %v6220
      %v6234 = vmul.f32 %v6200, %v6220
      %v6235 = vmul.f32 %v6201, %v6220
      %v6236 = vmul.f32 %v6202, %v6220
      %v6237 = vmul.f32 %v6203, %v6220
      %v6238 = vmul.f32 %v6204, %v6220
      %v6239 = vmul.f32 %v6205, %v6220
      %v6240 = vmul.f32 %v6206, %v6220
      %v6241 = vmul.f32 %v6207, %v6220
      %v6242 = vmul.f32 %v6208, %v6220
      %v6243 = vmul.f32 %v6209, %v6220
      %v6244 = vmul.f32 %v6210, %v6220
      %v6245 = vmul.f32 %v6211, %v6220
      %v6246 = vmul.f32 %v6212, %v6220
      %v6247 = vmul.f32 %v6213, %v6220
      %v6248 = vmul.f32 %v6214, %v6220
      %v6249 = vmul.f32 %v6215, %v6220
      %v6250 = vmul.f32 %v6216, %v6220
      %v6251 = vmul.f32 %v6217, %v6220
      %v6252 = vmul.f32 %v6218, %v6220
      %v6253 = vadd.f32 %v6155, %v6221
      %v6254 = vadd.f32 %v6156, %v6222
      %v6255 = vadd.f32 %v6157, %v6223
      %v6256 = vadd.f32 %v6158, %v6224
      %v6257 = vadd.f32 %v6159, %v6225
      %v6258 = vadd.f32 %v6160, %v6226
      %v6259 = vadd.f32 %v6161, %v6227
      %v6260 = vadd.f32 %v6162, %v6228
      %v6261 = vadd.f32 %v6163, %v6229
      %v6262 = vadd.f32 %v6164, %v6230
      %v6263 = vadd.f32 %v6165, %v6231
      %v6264 = vadd.f32 %v6166, %v6232
      %v6265 = vadd.f32 %v6167, %v6233
      %v6266 = vadd.f32 %v6168, %v6234
      %v6267 = vadd.f32 %v6169, %v6235
      %v6268 = vadd.f32 %v6170, %v6236
      %v6269 = vadd.f32 %v6171, %v6237
      %v6270 = vadd.f32 %v6172, %v6238
      %v6271 = vadd.f32 %v6173, %v6239
      %v6272 = vadd.f32 %v6174, %v6240
      %v6273 = vadd.f32 %v6175, %v6241
      %v6274 = vadd.f32 %v6176, %v6242
      %v6275 = vadd.f32 %v6177, %v6243
      %v6276 = vadd.f32 %v6178, %v6244
      %v6277 = vadd.f32 %v6179, %v6245
      %v6278 = vadd.f32 %v6180, %v6246
      %v6279 = vadd.f32 %v6181, %v6247
      %v6280 = vadd.f32 %v6182, %v6248
      %v6281 = vadd.f32 %v6183, %v6249
      %v6282 = vadd.f32 %v6184, %v6250
      %v6283 = vadd.f32 %v6185, %v6251
      %v6284 = vadd.f32 %v6186, %v6252
      %v6285 = vld [vmem:[%s5246] sm:$0xff]
      %v6286 = vld [vmem:[%s5246 + $0x8] sm:$0xff]
      %v6287 = vld [vmem:[%s5246 + $0x10] sm:$0xff]
      %v6288 = vld [vmem:[%s5246 + $0x18] sm:$0xff]
      %v6289 = vld [vmem:[%s5246 + $0x20] sm:$0xff]
      %v6290 = vld [vmem:[%s5246 + $0x28] sm:$0xff]
      %v6291 = vld [vmem:[%s5246 + $0x30] sm:$0xff]
      %v6292 = vld [vmem:[%s5246 + $0x38] sm:$0xff]
      %v6293 = vld [vmem:[%s5246 + $0x50] sm:$0xff]
      %v6294 = vld [vmem:[%s5246 + $0x58] sm:$0xff]
      %v6295 = vld [vmem:[%s5246 + $0x60] sm:$0xff]
      %v6296 = vld [vmem:[%s5246 + $0x68] sm:$0xff]
      %v6297 = vld [vmem:[%s5246 + $0x70] sm:$0xff]
      %v6298 = vld [vmem:[%s5246 + $0x78] sm:$0xff]
      %v6299 = vld [vmem:[%s5246 + $0x80] sm:$0xff]
      %v6300 = vld [vmem:[%s5246 + $0x88] sm:$0xff]
      %v6301 = vld [vmem:[%s5246 + $0xa0] sm:$0xff]
      %v6302 = vld [vmem:[%s5246 + $0xa8] sm:$0xff]
      %v6303 = vld [vmem:[%s5246 + $0xb0] sm:$0xff]
      %v6304 = vld [vmem:[%s5246 + $0xb8] sm:$0xff]
      %v6305 = vld [vmem:[%s5246 + $0xc0] sm:$0xff]
      %v6306 = vld [vmem:[%s5246 + $0xc8] sm:$0xff]
      %v6307 = vld [vmem:[%s5246 + $0xd0] sm:$0xff]
      %v6308 = vld [vmem:[%s5246 + $0xd8] sm:$0xff]
      %v6309 = vld [vmem:[%s5246 + $0xf0] sm:$0xff]
      %v6310 = vld [vmem:[%s5246 + $0xf8] sm:$0xff]
      %v6311 = vld [vmem:[%s5246 + $0x100] sm:$0xff]
      %v6312 = vld [vmem:[%s5246 + $0x108] sm:$0xff]
      %v6313 = vld [vmem:[%s5246 + $0x110] sm:$0xff]
      %v6314 = vld [vmem:[%s5246 + $0x118] sm:$0xff]
      %v6315 = vld [vmem:[%s5246 + $0x120] sm:$0xff]
      %v6316 = vld [vmem:[%s5246 + $0x128] sm:$0xff]
      %v6317 = vld [vmem:[%s4 + $0x19] sm:$0x1]
      %v6318 = vperm.slane %v6317, 0
      %v6319 = vmul.f32 %v6285, %v6318
      %v6320 = vmul.f32 %v6286, %v6318
      %v6321 = vmul.f32 %v6287, %v6318
      %v6322 = vmul.f32 %v6288, %v6318
      %v6323 = vmul.f32 %v6289, %v6318
      %v6324 = vmul.f32 %v6290, %v6318
      %v6325 = vmul.f32 %v6291, %v6318
      %v6326 = vmul.f32 %v6292, %v6318
      %v6327 = vmul.f32 %v6293, %v6318
      %v6328 = vmul.f32 %v6294, %v6318
      %v6329 = vmul.f32 %v6295, %v6318
      %v6330 = vmul.f32 %v6296, %v6318
      %v6331 = vmul.f32 %v6297, %v6318
      %v6332 = vmul.f32 %v6298, %v6318
      %v6333 = vmul.f32 %v6299, %v6318
      %v6334 = vmul.f32 %v6300, %v6318
      %v6335 = vmul.f32 %v6301, %v6318
      %v6336 = vmul.f32 %v6302, %v6318
      %v6337 = vmul.f32 %v6303, %v6318
      %v6338 = vmul.f32 %v6304, %v6318
      %v6339 = vmul.f32 %v6305, %v6318
      %v6340 = vmul.f32 %v6306, %v6318
      %v6341 = vmul.f32 %v6307, %v6318
      %v6342 = vmul.f32 %v6308, %v6318
      %v6343 = vmul.f32 %v6309, %v6318
      %v6344 = vmul.f32 %v6310, %v6318
      %v6345 = vmul.f32 %v6311, %v6318
      %v6346 = vmul.f32 %v6312, %v6318
      %v6347 = vmul.f32 %v6313, %v6318
      %v6348 = vmul.f32 %v6314, %v6318
      %v6349 = vmul.f32 %v6315, %v6318
      %v6350 = vmul.f32 %v6316, %v6318
      %v6351 = vadd.f32 %v6253, %v6319
      %v6352 = vadd.f32 %v6254, %v6320
      %v6353 = vadd.f32 %v6255, %v6321
      %v6354 = vadd.f32 %v6256, %v6322
      %v6355 = vadd.f32 %v6257, %v6323
      %v6356 = vadd.f32 %v6258, %v6324
      %v6357 = vadd.f32 %v6259, %v6325
      %v6358 = vadd.f32 %v6260, %v6326
      %v6359 = vadd.f32 %v6261, %v6327
      %v6360 = vadd.f32 %v6262, %v6328
      %v6361 = vadd.f32 %v6263, %v6329
      %v6362 = vadd.f32 %v6264, %v6330
      %v6363 = vadd.f32 %v6265, %v6331
      %v6364 = vadd.f32 %v6266, %v6332
      %v6365 = vadd.f32 %v6267, %v6333
      %v6366 = vadd.f32 %v6268, %v6334
      %v6367 = vadd.f32 %v6269, %v6335
      %v6368 = vadd.f32 %v6270, %v6336
      %v6369 = vadd.f32 %v6271, %v6337
      %v6370 = vadd.f32 %v6272, %v6338
      %v6371 = vadd.f32 %v6273, %v6339
      %v6372 = vadd.f32 %v6274, %v6340
      %v6373 = vadd.f32 %v6275, %v6341
      %v6374 = vadd.f32 %v6276, %v6342
      %v6375 = vadd.f32 %v6277, %v6343
      %v6376 = vadd.f32 %v6278, %v6344
      %v6377 = vadd.f32 %v6279, %v6345
      %v6378 = vadd.f32 %v6280, %v6346
      %v6379 = vadd.f32 %v6281, %v6347
      %v6380 = vadd.f32 %v6282, %v6348
      %v6381 = vadd.f32 %v6283, %v6349
      %v6382 = vadd.f32 %v6284, %v6350
      %v6383 = vld [vmem:[#allocation4] sm:$0xff]
      %v6384 = vld [vmem:[#allocation4 + $0x8] sm:$0xff]
      %v6385 = vld [vmem:[#allocation4 + $0x10] sm:$0xff]
      %v6386 = vld [vmem:[#allocation4 + $0x18] sm:$0xff]
      %v6387 = vld [vmem:[#allocation4 + $0x20] sm:$0xff]
      %v6388 = vld [vmem:[#allocation4 + $0x28] sm:$0xff]
      %v6389 = vld [vmem:[#allocation4 + $0x30] sm:$0xff]
      %v6390 = vld [vmem:[#allocation4 + $0x38] sm:$0xff]
      %v6391 = vld [vmem:[#allocation4 + $0x40] sm:$0xff]
      %v6392 = vld [vmem:[#allocation4 + $0x48] sm:$0xff]
      %v6393 = vld [vmem:[#allocation4 + $0x50] sm:$0xff]
      %v6394 = vld [vmem:[#allocation4 + $0x58] sm:$0xff]
      %v6395 = vld [vmem:[#allocation4 + $0x60] sm:$0xff]
      %v6396 = vld [vmem:[#allocation4 + $0x68] sm:$0xff]
      %v6397 = vld [vmem:[#allocation4 + $0x70] sm:$0xff]
      %v6398 = vld [vmem:[#allocation4 + $0x78] sm:$0xff]
      %v6399 = vld [vmem:[#allocation4 + $0x80] sm:$0xff]
      %v6400 = vld [vmem:[#allocation4 + $0x88] sm:$0xff]
      %v6401 = vld [vmem:[#allocation4 + $0x90] sm:$0xff]
      %v6402 = vld [vmem:[#allocation4 + $0x98] sm:$0xff]
      %v6403 = vld [vmem:[#allocation4 + $0xa0] sm:$0xff]
      %v6404 = vld [vmem:[#allocation4 + $0xa8] sm:$0xff]
      %v6405 = vld [vmem:[#allocation4 + $0xb0] sm:$0xff]
      %v6406 = vld [vmem:[#allocation4 + $0xb8] sm:$0xff]
      %v6407 = vld [vmem:[#allocation4 + $0xc0] sm:$0xff]
      %v6408 = vld [vmem:[#allocation4 + $0xc8] sm:$0xff]
      %v6409 = vld [vmem:[#allocation4 + $0xd0] sm:$0xff]
      %v6410 = vld [vmem:[#allocation4 + $0xd8] sm:$0xff]
      %v6411 = vld [vmem:[#allocation4 + $0xe0] sm:$0xff]
      %v6412 = vld [vmem:[#allocation4 + $0xe8] sm:$0xff]
      %v6413 = vld [vmem:[#allocation4 + $0xf0] sm:$0xff]
      %v6414 = vld [vmem:[#allocation4 + $0xf8] sm:$0xff]
      %v6415 = vadd.f32 %v6383, %v6351
      %v6416 = vadd.f32 %v6384, %v6352
      %v6417 = vadd.f32 %v6385, %v6353
      %v6418 = vadd.f32 %v6386, %v6354
      %v6419 = vadd.f32 %v6387, %v6355
      %v6420 = vadd.f32 %v6388, %v6356
      %v6421 = vadd.f32 %v6389, %v6357
      %v6422 = vadd.f32 %v6390, %v6358
      %v6423 = vadd.f32 %v6391, %v6359
      %v6424 = vadd.f32 %v6392, %v6360
      %v6425 = vadd.f32 %v6393, %v6361
      %v6426 = vadd.f32 %v6394, %v6362
      %v6427 = vadd.f32 %v6395, %v6363
      %v6428 = vadd.f32 %v6396, %v6364
      %v6429 = vadd.f32 %v6397, %v6365
      %v6430 = vadd.f32 %v6398, %v6366
      %v6431 = vadd.f32 %v6399, %v6367
      %v6432 = vadd.f32 %v6400, %v6368
      %v6433 = vadd.f32 %v6401, %v6369
      %v6434 = vadd.f32 %v6402, %v6370
      %v6435 = vadd.f32 %v6403, %v6371
      %v6436 = vadd.f32 %v6404, %v6372
      %v6437 = vadd.f32 %v6405, %v6373
      %v6438 = vadd.f32 %v6406, %v6374
      %v6439 = vadd.f32 %v6407, %v6375
      %v6440 = vadd.f32 %v6408, %v6376
      %v6441 = vadd.f32 %v6409, %v6377
      %v6442 = vadd.f32 %v6410, %v6378
      %v6443 = vadd.f32 %v6411, %v6379
      %v6444 = vadd.f32 %v6412, %v6380
      %v6445 = vadd.f32 %v6413, %v6381
      %v6446 = vadd.f32 %v6414, %v6382
      %6447 = vst.msk [vmem:[#allocation4] sm:$0xff] %vm2968, %v6415
      %6448 = vst.msk [vmem:[#allocation4 + $0x8] sm:$0xff] %vm2968, %v6416
      %6449 = vst.msk [vmem:[#allocation4 + $0x10] sm:$0xff] %vm2968, %v6417
      %6450 = vst.msk [vmem:[#allocation4 + $0x18] sm:$0xff] %vm2968, %v6418
      %6451 = vst.msk [vmem:[#allocation4 + $0x20] sm:$0xff] %vm2968, %v6419
      %6452 = vst.msk [vmem:[#allocation4 + $0x28] sm:$0xff] %vm2968, %v6420
      %6453 = vst.msk [vmem:[#allocation4 + $0x30] sm:$0xff] %vm2968, %v6421
      %6454 = vst.msk [vmem:[#allocation4 + $0x38] sm:$0xff] %vm2968, %v6422
      %6455 = vst.msk [vmem:[#allocation4 + $0x40] sm:$0xff] %vm2968, %v6423
      %6456 = vst.msk [vmem:[#allocation4 + $0x48] sm:$0xff] %vm2968, %v6424
      %6457 = vst.msk [vmem:[#allocation4 + $0x50] sm:$0xff] %vm2968, %v6425
      %6458 = vst.msk [vmem:[#allocation4 + $0x58] sm:$0xff] %vm2968, %v6426
      %6459 = vst.msk [vmem:[#allocation4 + $0x60] sm:$0xff] %vm2968, %v6427
      %6460 = vst.msk [vmem:[#allocation4 + $0x68] sm:$0xff] %vm2968, %v6428
      %6461 = vst.msk [vmem:[#allocation4 + $0x70] sm:$0xff] %vm2968, %v6429
      %6462 = vst.msk [vmem:[#allocation4 + $0x78] sm:$0xff] %vm2968, %v6430
      %6463 = vst.msk [vmem:[#allocation4 + $0x80] sm:$0xff] %vm2968, %v6431
      %6464 = vst.msk [vmem:[#allocation4 + $0x88] sm:$0xff] %vm2968, %v6432
      %6465 = vst.msk [vmem:[#allocation4 + $0x90] sm:$0xff] %vm2968, %v6433
      %6466 = vst.msk [vmem:[#allocation4 + $0x98] sm:$0xff] %vm2968, %v6434
      %6467 = vst.msk [vmem:[#allocation4 + $0xa0] sm:$0xff] %vm2968, %v6435
      %6468 = vst.msk [vmem:[#allocation4 + $0xa8] sm:$0xff] %vm2968, %v6436
      %6469 = vst.msk [vmem:[#allocation4 + $0xb0] sm:$0xff] %vm2968, %v6437
      %6470 = vst.msk [vmem:[#allocation4 + $0xb8] sm:$0xff] %vm2968, %v6438
      %6471 = vst.msk [vmem:[#allocation4 + $0xc0] sm:$0xff] %vm2968, %v6439
      %6472 = vst.msk [vmem:[#allocation4 + $0xc8] sm:$0xff] %vm2968, %v6440
      %6473 = vst.msk [vmem:[#allocation4 + $0xd0] sm:$0xff] %vm2968, %v6441
      %6474 = vst.msk [vmem:[#allocation4 + $0xd8] sm:$0xff] %vm2968, %v6442
      %6475 = vst.msk [vmem:[#allocation4 + $0xe0] sm:$0xff] %vm2968, %v6443
      %6476 = vst.msk [vmem:[#allocation4 + $0xe8] sm:$0xff] %vm2968, %v6444
      %6477 = vst.msk [vmem:[#allocation4 + $0xf0] sm:$0xff] %vm2968, %v6445
      %6478 = vst.msk [vmem:[#allocation4 + $0xf8] sm:$0xff] %vm2968, %v6446
      %v6479 = vld [vmem:[#allocation2 + $0x2] sm:$0xff]
      %v6480 = vld [vmem:[#allocation2 + $0x12] sm:$0xff]
      %v6481 = vld [vmem:[#allocation2 + $0x22] sm:$0xff]
      %v6482 = vld [vmem:[#allocation2 + $0x32] sm:$0xff]
      %v6483 = vld [vmem:[#allocation2 + $0x42] sm:$0xff]
      %v6484 = vld [vmem:[#allocation2 + $0x52] sm:$0xff]
      %v6485 = vld [vmem:[#allocation2 + $0x62] sm:$0xff]
      %v6486 = vld [vmem:[#allocation2 + $0x72] sm:$0xff]
      %v6487 = vld [vmem:[#allocation2 + $0x82] sm:$0xff]
      %v6488 = vld [vmem:[#allocation2 + $0x92] sm:$0xff]
      %v6489 = vld [vmem:[#allocation2 + $0xa2] sm:$0xff]
      %v6490 = vld [vmem:[#allocation2 + $0xb2] sm:$0xff]
      %v6491 = vld [vmem:[#allocation2 + $0xc2] sm:$0xff]
      %v6492 = vld [vmem:[#allocation2 + $0xd2] sm:$0xff]
      %v6493 = vld [vmem:[#allocation2 + $0xe2] sm:$0xff]
      %v6494 = vld [vmem:[#allocation2 + $0xf2] sm:$0xff]
      %v6495 = vld [vmem:[#allocation2 + $0x102] sm:$0xff]
      %v6496 = vld [vmem:[#allocation2 + $0x112] sm:$0xff]
      %v6497 = vld [vmem:[#allocation2 + $0x122] sm:$0xff]
      %v6498 = vld [vmem:[#allocation2 + $0x132] sm:$0xff]
      %v6499 = vld [vmem:[#allocation2 + $0x142] sm:$0xff]
      %v6500 = vld [vmem:[#allocation2 + $0x152] sm:$0xff]
      %v6501 = vld [vmem:[#allocation2 + $0x162] sm:$0xff]
      %v6502 = vld [vmem:[#allocation2 + $0x172] sm:$0xff]
      %v6503 = vld [vmem:[#allocation2 + $0x182] sm:$0xff]
      %v6504 = vld [vmem:[#allocation2 + $0x192] sm:$0xff]
      %v6505 = vld [vmem:[#allocation2 + $0x1a2] sm:$0xff]
      %v6506 = vld [vmem:[#allocation2 + $0x1b2] sm:$0xff]
      %v6507 = vld [vmem:[#allocation2 + $0x1c2] sm:$0xff]
      %v6508 = vld [vmem:[#allocation2 + $0x1d2] sm:$0xff]
      %v6509 = vld [vmem:[#allocation2 + $0x1e2] sm:$0xff]
      %v6510 = vld [vmem:[#allocation2 + $0x1f2] sm:$0xff]
      %v6511 = vld [vmem:[#allocation2 + $0x202] sm:$0xff]
      %v6512 = vld [vmem:[#allocation2 + $0x212] sm:$0xff]
      %v6513 = vld [vmem:[#allocation2 + $0x222] sm:$0xff]
      %v6514 = vld [vmem:[#allocation2 + $0x232] sm:$0xff]
      %v6515 = vld [vmem:[#allocation2 + $0x242] sm:$0xff]
      %v6516 = vld [vmem:[#allocation2 + $0x252] sm:$0xff]
      %v6517 = vld [vmem:[#allocation2 + $0x262] sm:$0xff]
      %v6518 = vld [vmem:[#allocation2 + $0x272] sm:$0xff]
      %v6519 = vld [vmem:[#allocation2 + $0x282] sm:$0xff]
      %v6520 = vld [vmem:[#allocation2 + $0x292] sm:$0xff]
      %v6521 = vld [vmem:[#allocation2 + $0x2a2] sm:$0xff]
      %v6522 = vld [vmem:[#allocation2 + $0x2b2] sm:$0xff]
      %v6523 = vld [vmem:[#allocation2 + $0x2c2] sm:$0xff]
      %v6524 = vld [vmem:[#allocation2 + $0x2d2] sm:$0xff]
      %v6525 = vld [vmem:[#allocation2 + $0x2e2] sm:$0xff]
      %v6526 = vld [vmem:[#allocation2 + $0x2f2] sm:$0xff]
      %v6527 = vld [vmem:[#allocation2 + $0x302] sm:$0xff]
      %v6528 = vld [vmem:[#allocation2 + $0x312] sm:$0xff]
      %v6529 = vld [vmem:[#allocation2 + $0x322] sm:$0xff]
      %v6530 = vld [vmem:[#allocation2 + $0x332] sm:$0xff]
      %v6531 = vld [vmem:[#allocation2 + $0x342] sm:$0xff]
      %v6532 = vld [vmem:[#allocation2 + $0x352] sm:$0xff]
      %v6533 = vld [vmem:[#allocation2 + $0x362] sm:$0xff]
      %v6534 = vld [vmem:[#allocation2 + $0x372] sm:$0xff]
      %v6535 = vld [vmem:[#allocation2 + $0x382] sm:$0xff]
      %v6536 = vld [vmem:[#allocation2 + $0x392] sm:$0xff]
      %v6537 = vld [vmem:[#allocation2 + $0x3a2] sm:$0xff]
      %v6538 = vld [vmem:[#allocation2 + $0x3b2] sm:$0xff]
      %6539 = vst.msk [vmem:[#allocation3] sm:$0xff] %vm2968, %v6479
      %6540 = vst.msk [vmem:[#allocation3 + $0x8] sm:$0xff] %vm2968, %v6480
      %6541 = vst.msk [vmem:[#allocation3 + $0x10] sm:$0xff] %vm2968, %v6481
      %6542 = vst.msk [vmem:[#allocation3 + $0x18] sm:$0xff] %vm2968, %v6482
      %6543 = vst.msk [vmem:[#allocation3 + $0x20] sm:$0xff] %vm2968, %v6483
      %6544 = vst.msk [vmem:[#allocation3 + $0x28] sm:$0xff] %vm2968, %v6484
      %6545 = vst.msk [vmem:[#allocation3 + $0x30] sm:$0xff] %vm2968, %v6485
      %6546 = vst.msk [vmem:[#allocation3 + $0x38] sm:$0xff] %vm2968, %v6486
      %6547 = vst.msk [vmem:[#allocation3 + $0x40] sm:$0xff] %vm2968, %v6487
      %6548 = vst.msk [vmem:[#allocation3 + $0x48] sm:$0xff] %vm2968, %v6488
      %6549 = vst.msk [vmem:[#allocation3 + $0x50] sm:$0xff] %vm2968, %v6489
      %6550 = vst.msk [vmem:[#allocation3 + $0x58] sm:$0xff] %vm2968, %v6490
      %6551 = vst.msk [vmem:[#allocation3 + $0x60] sm:$0xff] %vm2968, %v6491
      %6552 = vst.msk [vmem:[#allocation3 + $0x68] sm:$0xff] %vm2968, %v6492
      %6553 = vst.msk [vmem:[#allocation3 + $0x70] sm:$0xff] %vm2968, %v6493
      %6554 = vst.msk [vmem:[#allocation3 + $0x78] sm:$0xff] %vm2968, %v6494
      %6555 = vst.msk [vmem:[#allocation3 + $0x80] sm:$0xff] %vm2968, %v6495
      %6556 = vst.msk [vmem:[#allocation3 + $0x88] sm:$0xff] %vm2968, %v6496
      %6557 = vst.msk [vmem:[#allocation3 + $0x90] sm:$0xff] %vm2968, %v6497
      %6558 = vst.msk [vmem:[#allocation3 + $0x98] sm:$0xff] %vm2968, %v6498
      %6559 = vst.msk [vmem:[#allocation3 + $0xa0] sm:$0xff] %vm2968, %v6499
      %6560 = vst.msk [vmem:[#allocation3 + $0xa8] sm:$0xff] %vm2968, %v6500
      %6561 = vst.msk [vmem:[#allocation3 + $0xb0] sm:$0xff] %vm2968, %v6501
      %6562 = vst.msk [vmem:[#allocation3 + $0xb8] sm:$0xff] %vm2968, %v6502
      %6563 = vst.msk [vmem:[#allocation3 + $0xc0] sm:$0xff] %vm2968, %v6503
      %6564 = vst.msk [vmem:[#allocation3 + $0xc8] sm:$0xff] %vm2968, %v6504
      %6565 = vst.msk [vmem:[#allocation3 + $0xd0] sm:$0xff] %vm2968, %v6505
      %6566 = vst.msk [vmem:[#allocation3 + $0xd8] sm:$0xff] %vm2968, %v6506
      %6567 = vst.msk [vmem:[#allocation3 + $0xe0] sm:$0xff] %vm2968, %v6507
      %6568 = vst.msk [vmem:[#allocation3 + $0xe8] sm:$0xff] %vm2968, %v6508
      %6569 = vst.msk [vmem:[#allocation3 + $0xf0] sm:$0xff] %vm2968, %v6509
      %6570 = vst.msk [vmem:[#allocation3 + $0xf8] sm:$0xff] %vm2968, %v6510
      %6571 = vst.msk [vmem:[#allocation3 + $0x100] sm:$0xff] %vm2968, %v6511
      %6572 = vst.msk [vmem:[#allocation3 + $0x108] sm:$0xff] %vm2968, %v6512
      %6573 = vst.msk [vmem:[#allocation3 + $0x110] sm:$0xff] %vm2968, %v6513
      %6574 = vst.msk [vmem:[#allocation3 + $0x118] sm:$0xff] %vm2968, %v6514
      %6575 = vst.msk [vmem:[#allocation3 + $0x120] sm:$0xff] %vm2968, %v6515
      %6576 = vst.msk [vmem:[#allocation3 + $0x128] sm:$0xff] %vm2968, %v6516
      %6577 = vst.msk [vmem:[#allocation3 + $0x130] sm:$0xff] %vm2968, %v6517
      %6578 = vst.msk [vmem:[#allocation3 + $0x138] sm:$0xff] %vm2968, %v6518
      %6579 = vst.msk [vmem:[#allocation3 + $0x140] sm:$0xff] %vm2968, %v6519
      %6580 = vst.msk [vmem:[#allocation3 + $0x148] sm:$0xff] %vm2968, %v6520
      %6581 = vst.msk [vmem:[#allocation3 + $0x150] sm:$0xff] %vm2968, %v6521
      %6582 = vst.msk [vmem:[#allocation3 + $0x158] sm:$0xff] %vm2968, %v6522
      %6583 = vst.msk [vmem:[#allocation3 + $0x160] sm:$0xff] %vm2968, %v6523
      %6584 = vst.msk [vmem:[#allocation3 + $0x168] sm:$0xff] %vm2968, %v6524
      %6585 = vst.msk [vmem:[#allocation3 + $0x170] sm:$0xff] %vm2968, %v6525
      %6586 = vst.msk [vmem:[#allocation3 + $0x178] sm:$0xff] %vm2968, %v6526
      %6587 = vst.msk [vmem:[#allocation3 + $0x180] sm:$0xff] %vm2968, %v6527
      %6588 = vst.msk [vmem:[#allocation3 + $0x188] sm:$0xff] %vm2968, %v6528
      %6589 = vst.msk [vmem:[#allocation3 + $0x190] sm:$0xff] %vm2968, %v6529
      %6590 = vst.msk [vmem:[#allocation3 + $0x198] sm:$0xff] %vm2968, %v6530
      %6591 = vst.msk [vmem:[#allocation3 + $0x1a0] sm:$0xff] %vm2968, %v6531
      %6592 = vst.msk [vmem:[#allocation3 + $0x1a8] sm:$0xff] %vm2968, %v6532
      %6593 = vst.msk [vmem:[#allocation3 + $0x1b0] sm:$0xff] %vm2968, %v6533
      %6594 = vst.msk [vmem:[#allocation3 + $0x1b8] sm:$0xff] %vm2968, %v6534
      %6595 = vst.msk [vmem:[#allocation3 + $0x1c0] sm:$0xff] %vm2968, %v6535
      %6596 = vst.msk [vmem:[#allocation3 + $0x1c8] sm:$0xff] %vm2968, %v6536
      %6597 = vst.msk [vmem:[#allocation3 + $0x1d0] sm:$0xff] %vm2968, %v6537
      %6598 = vst.msk [vmem:[#allocation3 + $0x1d8] sm:$0xff] %vm2968, %v6538
      %v6599 = vld [vmem:[#allocation3] sm:$0xff]
      %v6600 = vld [vmem:[#allocation3 + $0x8] sm:$0xff]
      %v6601 = vld [vmem:[#allocation3 + $0x10] sm:$0xff]
      %v6602 = vld [vmem:[#allocation3 + $0x18] sm:$0xff]
      %v6603 = vld [vmem:[#allocation3 + $0x20] sm:$0xff]
      %v6604 = vld [vmem:[#allocation3 + $0x28] sm:$0xff]
      %v6605 = vld [vmem:[#allocation3 + $0x30] sm:$0xff]
      %v6606 = vld [vmem:[#allocation3 + $0x38] sm:$0xff]
      %v6607 = vld [vmem:[#allocation3 + $0x50] sm:$0xff]
      %v6608 = vld [vmem:[#allocation3 + $0x58] sm:$0xff]
      %v6609 = vld [vmem:[#allocation3 + $0x60] sm:$0xff]
      %v6610 = vld [vmem:[#allocation3 + $0x68] sm:$0xff]
      %v6611 = vld [vmem:[#allocation3 + $0x70] sm:$0xff]
      %v6612 = vld [vmem:[#allocation3 + $0x78] sm:$0xff]
      %v6613 = vld [vmem:[#allocation3 + $0x80] sm:$0xff]
      %v6614 = vld [vmem:[#allocation3 + $0x88] sm:$0xff]
      %v6615 = vld [vmem:[#allocation3 + $0xa0] sm:$0xff]
      %v6616 = vld [vmem:[#allocation3 + $0xa8] sm:$0xff]
      %v6617 = vld [vmem:[#allocation3 + $0xb0] sm:$0xff]
      %v6618 = vld [vmem:[#allocation3 + $0xb8] sm:$0xff]
      %v6619 = vld [vmem:[#allocation3 + $0xc0] sm:$0xff]
      %v6620 = vld [vmem:[#allocation3 + $0xc8] sm:$0xff]
      %v6621 = vld [vmem:[#allocation3 + $0xd0] sm:$0xff]
      %v6622 = vld [vmem:[#allocation3 + $0xd8] sm:$0xff]
      %v6623 = vld [vmem:[#allocation3 + $0xf0] sm:$0xff]
      %v6624 = vld [vmem:[#allocation3 + $0xf8] sm:$0xff]
      %v6625 = vld [vmem:[#allocation3 + $0x100] sm:$0xff]
      %v6626 = vld [vmem:[#allocation3 + $0x108] sm:$0xff]
      %v6627 = vld [vmem:[#allocation3 + $0x110] sm:$0xff]
      %v6628 = vld [vmem:[#allocation3 + $0x118] sm:$0xff]
      %v6629 = vld [vmem:[#allocation3 + $0x120] sm:$0xff]
      %v6630 = vld [vmem:[#allocation3 + $0x128] sm:$0xff]
      %v6631 = vld [vmem:[%s4 + $0x2] sm:$0x1]
      %v6632 = vperm.slane %v6631, 0
      %v6633 = vmul.f32 %v6599, %v6632
      %v6634 = vmul.f32 %v6600, %v6632
      %v6635 = vmul.f32 %v6601, %v6632
      %v6636 = vmul.f32 %v6602, %v6632
      %v6637 = vmul.f32 %v6603, %v6632
      %v6638 = vmul.f32 %v6604, %v6632
      %v6639 = vmul.f32 %v6605, %v6632
      %v6640 = vmul.f32 %v6606, %v6632
      %v6641 = vmul.f32 %v6607, %v6632
      %v6642 = vmul.f32 %v6608, %v6632
      %v6643 = vmul.f32 %v6609, %v6632
      %v6644 = vmul.f32 %v6610, %v6632
      %v6645 = vmul.f32 %v6611, %v6632
      %v6646 = vmul.f32 %v6612, %v6632
      %v6647 = vmul.f32 %v6613, %v6632
      %v6648 = vmul.f32 %v6614, %v6632
      %v6649 = vmul.f32 %v6615, %v6632
      %v6650 = vmul.f32 %v6616, %v6632
      %v6651 = vmul.f32 %v6617, %v6632
      %v6652 = vmul.f32 %v6618, %v6632
      %v6653 = vmul.f32 %v6619, %v6632
      %v6654 = vmul.f32 %v6620, %v6632
      %v6655 = vmul.f32 %v6621, %v6632
      %v6656 = vmul.f32 %v6622, %v6632
      %v6657 = vmul.f32 %v6623, %v6632
      %v6658 = vmul.f32 %v6624, %v6632
      %v6659 = vmul.f32 %v6625, %v6632
      %v6660 = vmul.f32 %v6626, %v6632
      %v6661 = vmul.f32 %v6627, %v6632
      %v6662 = vmul.f32 %v6628, %v6632
      %v6663 = vmul.f32 %v6629, %v6632
      %v6664 = vmul.f32 %v6630, %v6632
      %v6665 = vld [vmem:[%s4553] sm:$0xff]
      %v6666 = vld [vmem:[%s4553 + $0x8] sm:$0xff]
      %v6667 = vld [vmem:[%s4553 + $0x10] sm:$0xff]
      %v6668 = vld [vmem:[%s4553 + $0x18] sm:$0xff]
      %v6669 = vld [vmem:[%s4553 + $0x20] sm:$0xff]
      %v6670 = vld [vmem:[%s4553 + $0x28] sm:$0xff]
      %v6671 = vld [vmem:[%s4553 + $0x30] sm:$0xff]
      %v6672 = vld [vmem:[%s4553 + $0x38] sm:$0xff]
      %v6673 = vld [vmem:[%s4553 + $0x50] sm:$0xff]
      %v6674 = vld [vmem:[%s4553 + $0x58] sm:$0xff]
      %v6675 = vld [vmem:[%s4553 + $0x60] sm:$0xff]
      %v6676 = vld [vmem:[%s4553 + $0x68] sm:$0xff]
      %v6677 = vld [vmem:[%s4553 + $0x70] sm:$0xff]
      %v6678 = vld [vmem:[%s4553 + $0x78] sm:$0xff]
      %v6679 = vld [vmem:[%s4553 + $0x80] sm:$0xff]
      %v6680 = vld [vmem:[%s4553 + $0x88] sm:$0xff]
      %v6681 = vld [vmem:[%s4553 + $0xa0] sm:$0xff]
      %v6682 = vld [vmem:[%s4553 + $0xa8] sm:$0xff]
      %v6683 = vld [vmem:[%s4553 + $0xb0] sm:$0xff]
      %v6684 = vld [vmem:[%s4553 + $0xb8] sm:$0xff]
      %v6685 = vld [vmem:[%s4553 + $0xc0] sm:$0xff]
      %v6686 = vld [vmem:[%s4553 + $0xc8] sm:$0xff]
      %v6687 = vld [vmem:[%s4553 + $0xd0] sm:$0xff]
      %v6688 = vld [vmem:[%s4553 + $0xd8] sm:$0xff]
      %v6689 = vld [vmem:[%s4553 + $0xf0] sm:$0xff]
      %v6690 = vld [vmem:[%s4553 + $0xf8] sm:$0xff]
      %v6691 = vld [vmem:[%s4553 + $0x100] sm:$0xff]
      %v6692 = vld [vmem:[%s4553 + $0x108] sm:$0xff]
      %v6693 = vld [vmem:[%s4553 + $0x110] sm:$0xff]
      %v6694 = vld [vmem:[%s4553 + $0x118] sm:$0xff]
      %v6695 = vld [vmem:[%s4553 + $0x120] sm:$0xff]
      %v6696 = vld [vmem:[%s4553 + $0x128] sm:$0xff]
      %v6697 = vld [vmem:[%s4 + $0x5] sm:$0x1]
      %v6698 = vperm.slane %v6697, 0
      %v6699 = vmul.f32 %v6665, %v6698
      %v6700 = vmul.f32 %v6666, %v6698
      %v6701 = vmul.f32 %v6667, %v6698
      %v6702 = vmul.f32 %v6668, %v6698
      %v6703 = vmul.f32 %v6669, %v6698
      %v6704 = vmul.f32 %v6670, %v6698
      %v6705 = vmul.f32 %v6671, %v6698
      %v6706 = vmul.f32 %v6672, %v6698
      %v6707 = vmul.f32 %v6673, %v6698
      %v6708 = vmul.f32 %v6674, %v6698
      %v6709 = vmul.f32 %v6675, %v6698
      %v6710 = vmul.f32 %v6676, %v6698
      %v6711 = vmul.f32 %v6677, %v6698
      %v6712 = vmul.f32 %v6678, %v6698
      %v6713 = vmul.f32 %v6679, %v6698
      %v6714 = vmul.f32 %v6680, %v6698
      %v6715 = vmul.f32 %v6681, %v6698
      %v6716 = vmul.f32 %v6682, %v6698
      %v6717 = vmul.f32 %v6683, %v6698
      %v6718 = vmul.f32 %v6684, %v6698
      %v6719 = vmul.f32 %v6685, %v6698
      %v6720 = vmul.f32 %v6686, %v6698
      %v6721 = vmul.f32 %v6687, %v6698
      %v6722 = vmul.f32 %v6688, %v6698
      %v6723 = vmul.f32 %v6689, %v6698
      %v6724 = vmul.f32 %v6690, %v6698
      %v6725 = vmul.f32 %v6691, %v6698
      %v6726 = vmul.f32 %v6692, %v6698
      %v6727 = vmul.f32 %v6693, %v6698
      %v6728 = vmul.f32 %v6694, %v6698
      %v6729 = vmul.f32 %v6695, %v6698
      %v6730 = vmul.f32 %v6696, %v6698
      %v6731 = vadd.f32 %v6633, %v6699
      %v6732 = vadd.f32 %v6634, %v6700
      %v6733 = vadd.f32 %v6635, %v6701
      %v6734 = vadd.f32 %v6636, %v6702
      %v6735 = vadd.f32 %v6637, %v6703
      %v6736 = vadd.f32 %v6638, %v6704
      %v6737 = vadd.f32 %v6639, %v6705
      %v6738 = vadd.f32 %v6640, %v6706
      %v6739 = vadd.f32 %v6641, %v6707
      %v6740 = vadd.f32 %v6642, %v6708
      %v6741 = vadd.f32 %v6643, %v6709
      %v6742 = vadd.f32 %v6644, %v6710
      %v6743 = vadd.f32 %v6645, %v6711
      %v6744 = vadd.f32 %v6646, %v6712
      %v6745 = vadd.f32 %v6647, %v6713
      %v6746 = vadd.f32 %v6648, %v6714
      %v6747 = vadd.f32 %v6649, %v6715
      %v6748 = vadd.f32 %v6650, %v6716
      %v6749 = vadd.f32 %v6651, %v6717
      %v6750 = vadd.f32 %v6652, %v6718
      %v6751 = vadd.f32 %v6653, %v6719
      %v6752 = vadd.f32 %v6654, %v6720
      %v6753 = vadd.f32 %v6655, %v6721
      %v6754 = vadd.f32 %v6656, %v6722
      %v6755 = vadd.f32 %v6657, %v6723
      %v6756 = vadd.f32 %v6658, %v6724
      %v6757 = vadd.f32 %v6659, %v6725
      %v6758 = vadd.f32 %v6660, %v6726
      %v6759 = vadd.f32 %v6661, %v6727
      %v6760 = vadd.f32 %v6662, %v6728
      %v6761 = vadd.f32 %v6663, %v6729
      %v6762 = vadd.f32 %v6664, %v6730
      %v6763 = vld [vmem:[%s4652] sm:$0xff]
      %v6764 = vld [vmem:[%s4652 + $0x8] sm:$0xff]
      %v6765 = vld [vmem:[%s4652 + $0x10] sm:$0xff]
      %v6766 = vld [vmem:[%s4652 + $0x18] sm:$0xff]
      %v6767 = vld [vmem:[%s4652 + $0x20] sm:$0xff]
      %v6768 = vld [vmem:[%s4652 + $0x28] sm:$0xff]
      %v6769 = vld [vmem:[%s4652 + $0x30] sm:$0xff]
      %v6770 = vld [vmem:[%s4652 + $0x38] sm:$0xff]
      %v6771 = vld [vmem:[%s4652 + $0x50] sm:$0xff]
      %v6772 = vld [vmem:[%s4652 + $0x58] sm:$0xff]
      %v6773 = vld [vmem:[%s4652 + $0x60] sm:$0xff]
      %v6774 = vld [vmem:[%s4652 + $0x68] sm:$0xff]
      %v6775 = vld [vmem:[%s4652 + $0x70] sm:$0xff]
      %v6776 = vld [vmem:[%s4652 + $0x78] sm:$0xff]
      %v6777 = vld [vmem:[%s4652 + $0x80] sm:$0xff]
      %v6778 = vld [vmem:[%s4652 + $0x88] sm:$0xff]
      %v6779 = vld [vmem:[%s4652 + $0xa0] sm:$0xff]
      %v6780 = vld [vmem:[%s4652 + $0xa8] sm:$0xff]
      %v6781 = vld [vmem:[%s4652 + $0xb0] sm:$0xff]
      %v6782 = vld [vmem:[%s4652 + $0xb8] sm:$0xff]
      %v6783 = vld [vmem:[%s4652 + $0xc0] sm:$0xff]
      %v6784 = vld [vmem:[%s4652 + $0xc8] sm:$0xff]
      %v6785 = vld [vmem:[%s4652 + $0xd0] sm:$0xff]
      %v6786 = vld [vmem:[%s4652 + $0xd8] sm:$0xff]
      %v6787 = vld [vmem:[%s4652 + $0xf0] sm:$0xff]
      %v6788 = vld [vmem:[%s4652 + $0xf8] sm:$0xff]
      %v6789 = vld [vmem:[%s4652 + $0x100] sm:$0xff]
      %v6790 = vld [vmem:[%s4652 + $0x108] sm:$0xff]
      %v6791 = vld [vmem:[%s4652 + $0x110] sm:$0xff]
      %v6792 = vld [vmem:[%s4652 + $0x118] sm:$0xff]
      %v6793 = vld [vmem:[%s4652 + $0x120] sm:$0xff]
      %v6794 = vld [vmem:[%s4652 + $0x128] sm:$0xff]
      %v6795 = vld [vmem:[%s4 + $0x8] sm:$0x1]
      %v6796 = vperm.slane %v6795, 0
      %v6797 = vmul.f32 %v6763, %v6796
      %v6798 = vmul.f32 %v6764, %v6796
      %v6799 = vmul.f32 %v6765, %v6796
      %v6800 = vmul.f32 %v6766, %v6796
      %v6801 = vmul.f32 %v6767, %v6796
      %v6802 = vmul.f32 %v6768, %v6796
      %v6803 = vmul.f32 %v6769, %v6796
      %v6804 = vmul.f32 %v6770, %v6796
      %v6805 = vmul.f32 %v6771, %v6796
      %v6806 = vmul.f32 %v6772, %v6796
      %v6807 = vmul.f32 %v6773, %v6796
      %v6808 = vmul.f32 %v6774, %v6796
      %v6809 = vmul.f32 %v6775, %v6796
      %v6810 = vmul.f32 %v6776, %v6796
      %v6811 = vmul.f32 %v6777, %v6796
      %v6812 = vmul.f32 %v6778, %v6796
      %v6813 = vmul.f32 %v6779, %v6796
      %v6814 = vmul.f32 %v6780, %v6796
      %v6815 = vmul.f32 %v6781, %v6796
      %v6816 = vmul.f32 %v6782, %v6796
      %v6817 = vmul.f32 %v6783, %v6796
      %v6818 = vmul.f32 %v6784, %v6796
      %v6819 = vmul.f32 %v6785, %v6796
      %v6820 = vmul.f32 %v6786, %v6796
      %v6821 = vmul.f32 %v6787, %v6796
      %v6822 = vmul.f32 %v6788, %v6796
      %v6823 = vmul.f32 %v6789, %v6796
      %v6824 = vmul.f32 %v6790, %v6796
      %v6825 = vmul.f32 %v6791, %v6796
      %v6826 = vmul.f32 %v6792, %v6796
      %v6827 = vmul.f32 %v6793, %v6796
      %v6828 = vmul.f32 %v6794, %v6796
      %v6829 = vadd.f32 %v6731, %v6797
      %v6830 = vadd.f32 %v6732, %v6798
      %v6831 = vadd.f32 %v6733, %v6799
      %v6832 = vadd.f32 %v6734, %v6800
      %v6833 = vadd.f32 %v6735, %v6801
      %v6834 = vadd.f32 %v6736, %v6802
      %v6835 = vadd.f32 %v6737, %v6803
      %v6836 = vadd.f32 %v6738, %v6804
      %v6837 = vadd.f32 %v6739, %v6805
      %v6838 = vadd.f32 %v6740, %v6806
      %v6839 = vadd.f32 %v6741, %v6807
      %v6840 = vadd.f32 %v6742, %v6808
      %v6841 = vadd.f32 %v6743, %v6809
      %v6842 = vadd.f32 %v6744, %v6810
      %v6843 = vadd.f32 %v6745, %v6811
      %v6844 = vadd.f32 %v6746, %v6812
      %v6845 = vadd.f32 %v6747, %v6813
      %v6846 = vadd.f32 %v6748, %v6814
      %v6847 = vadd.f32 %v6749, %v6815
      %v6848 = vadd.f32 %v6750, %v6816
      %v6849 = vadd.f32 %v6751, %v6817
      %v6850 = vadd.f32 %v6752, %v6818
      %v6851 = vadd.f32 %v6753, %v6819
      %v6852 = vadd.f32 %v6754, %v6820
      %v6853 = vadd.f32 %v6755, %v6821
      %v6854 = vadd.f32 %v6756, %v6822
      %v6855 = vadd.f32 %v6757, %v6823
      %v6856 = vadd.f32 %v6758, %v6824
      %v6857 = vadd.f32 %v6759, %v6825
      %v6858 = vadd.f32 %v6760, %v6826
      %v6859 = vadd.f32 %v6761, %v6827
      %v6860 = vadd.f32 %v6762, %v6828
      %v6861 = vld [vmem:[%s4751] sm:$0xff]
      %v6862 = vld [vmem:[%s4751 + $0x8] sm:$0xff]
      %v6863 = vld [vmem:[%s4751 + $0x10] sm:$0xff]
      %v6864 = vld [vmem:[%s4751 + $0x18] sm:$0xff]
      %v6865 = vld [vmem:[%s4751 + $0x20] sm:$0xff]
      %v6866 = vld [vmem:[%s4751 + $0x28] sm:$0xff]
      %v6867 = vld [vmem:[%s4751 + $0x30] sm:$0xff]
      %v6868 = vld [vmem:[%s4751 + $0x38] sm:$0xff]
      %v6869 = vld [vmem:[%s4751 + $0x50] sm:$0xff]
      %v6870 = vld [vmem:[%s4751 + $0x58] sm:$0xff]
      %v6871 = vld [vmem:[%s4751 + $0x60] sm:$0xff]
      %v6872 = vld [vmem:[%s4751 + $0x68] sm:$0xff]
      %v6873 = vld [vmem:[%s4751 + $0x70] sm:$0xff]
      %v6874 = vld [vmem:[%s4751 + $0x78] sm:$0xff]
      %v6875 = vld [vmem:[%s4751 + $0x80] sm:$0xff]
      %v6876 = vld [vmem:[%s4751 + $0x88] sm:$0xff]
      %v6877 = vld [vmem:[%s4751 + $0xa0] sm:$0xff]
      %v6878 = vld [vmem:[%s4751 + $0xa8] sm:$0xff]
      %v6879 = vld [vmem:[%s4751 + $0xb0] sm:$0xff]
      %v6880 = vld [vmem:[%s4751 + $0xb8] sm:$0xff]
      %v6881 = vld [vmem:[%s4751 + $0xc0] sm:$0xff]
      %v6882 = vld [vmem:[%s4751 + $0xc8] sm:$0xff]
      %v6883 = vld [vmem:[%s4751 + $0xd0] sm:$0xff]
      %v6884 = vld [vmem:[%s4751 + $0xd8] sm:$0xff]
      %v6885 = vld [vmem:[%s4751 + $0xf0] sm:$0xff]
      %v6886 = vld [vmem:[%s4751 + $0xf8] sm:$0xff]
      %v6887 = vld [vmem:[%s4751 + $0x100] sm:$0xff]
      %v6888 = vld [vmem:[%s4751 + $0x108] sm:$0xff]
      %v6889 = vld [vmem:[%s4751 + $0x110] sm:$0xff]
      %v6890 = vld [vmem:[%s4751 + $0x118] sm:$0xff]
      %v6891 = vld [vmem:[%s4751 + $0x120] sm:$0xff]
      %v6892 = vld [vmem:[%s4751 + $0x128] sm:$0xff]
      %v6893 = vld [vmem:[%s4 + $0xb] sm:$0x1]
      %v6894 = vperm.slane %v6893, 0
      %v6895 = vmul.f32 %v6861, %v6894
      %v6896 = vmul.f32 %v6862, %v6894
      %v6897 = vmul.f32 %v6863, %v6894
      %v6898 = vmul.f32 %v6864, %v6894
      %v6899 = vmul.f32 %v6865, %v6894
      %v6900 = vmul.f32 %v6866, %v6894
      %v6901 = vmul.f32 %v6867, %v6894
      %v6902 = vmul.f32 %v6868, %v6894
      %v6903 = vmul.f32 %v6869, %v6894
      %v6904 = vmul.f32 %v6870, %v6894
      %v6905 = vmul.f32 %v6871, %v6894
      %v6906 = vmul.f32 %v6872, %v6894
      %v6907 = vmul.f32 %v6873, %v6894
      %v6908 = vmul.f32 %v6874, %v6894
      %v6909 = vmul.f32 %v6875, %v6894
      %v6910 = vmul.f32 %v6876, %v6894
      %v6911 = vmul.f32 %v6877, %v6894
      %v6912 = vmul.f32 %v6878, %v6894
      %v6913 = vmul.f32 %v6879, %v6894
      %v6914 = vmul.f32 %v6880, %v6894
      %v6915 = vmul.f32 %v6881, %v6894
      %v6916 = vmul.f32 %v6882, %v6894
      %v6917 = vmul.f32 %v6883, %v6894
      %v6918 = vmul.f32 %v6884, %v6894
      %v6919 = vmul.f32 %v6885, %v6894
      %v6920 = vmul.f32 %v6886, %v6894
      %v6921 = vmul.f32 %v6887, %v6894
      %v6922 = vmul.f32 %v6888, %v6894
      %v6923 = vmul.f32 %v6889, %v6894
      %v6924 = vmul.f32 %v6890, %v6894
      %v6925 = vmul.f32 %v6891, %v6894
      %v6926 = vmul.f32 %v6892, %v6894
      %v6927 = vadd.f32 %v6829, %v6895
      %v6928 = vadd.f32 %v6830, %v6896
      %v6929 = vadd.f32 %v6831, %v6897
      %v6930 = vadd.f32 %v6832, %v6898
      %v6931 = vadd.f32 %v6833, %v6899
      %v6932 = vadd.f32 %v6834, %v6900
      %v6933 = vadd.f32 %v6835, %v6901
      %v6934 = vadd.f32 %v6836, %v6902
      %v6935 = vadd.f32 %v6837, %v6903
      %v6936 = vadd.f32 %v6838, %v6904
      %v6937 = vadd.f32 %v6839, %v6905
      %v6938 = vadd.f32 %v6840, %v6906
      %v6939 = vadd.f32 %v6841, %v6907
      %v6940 = vadd.f32 %v6842, %v6908
      %v6941 = vadd.f32 %v6843, %v6909
      %v6942 = vadd.f32 %v6844, %v6910
      %v6943 = vadd.f32 %v6845, %v6911
      %v6944 = vadd.f32 %v6846, %v6912
      %v6945 = vadd.f32 %v6847, %v6913
      %v6946 = vadd.f32 %v6848, %v6914
      %v6947 = vadd.f32 %v6849, %v6915
      %v6948 = vadd.f32 %v6850, %v6916
      %v6949 = vadd.f32 %v6851, %v6917
      %v6950 = vadd.f32 %v6852, %v6918
      %v6951 = vadd.f32 %v6853, %v6919
      %v6952 = vadd.f32 %v6854, %v6920
      %v6953 = vadd.f32 %v6855, %v6921
      %v6954 = vadd.f32 %v6856, %v6922
      %v6955 = vadd.f32 %v6857, %v6923
      %v6956 = vadd.f32 %v6858, %v6924
      %v6957 = vadd.f32 %v6859, %v6925
      %v6958 = vadd.f32 %v6860, %v6926
      %v6959 = vld [vmem:[%s4850] sm:$0xff]
      %v6960 = vld [vmem:[%s4850 + $0x8] sm:$0xff]
      %v6961 = vld [vmem:[%s4850 + $0x10] sm:$0xff]
      %v6962 = vld [vmem:[%s4850 + $0x18] sm:$0xff]
      %v6963 = vld [vmem:[%s4850 + $0x20] sm:$0xff]
      %v6964 = vld [vmem:[%s4850 + $0x28] sm:$0xff]
      %v6965 = vld [vmem:[%s4850 + $0x30] sm:$0xff]
      %v6966 = vld [vmem:[%s4850 + $0x38] sm:$0xff]
      %v6967 = vld [vmem:[%s4850 + $0x50] sm:$0xff]
      %v6968 = vld [vmem:[%s4850 + $0x58] sm:$0xff]
      %v6969 = vld [vmem:[%s4850 + $0x60] sm:$0xff]
      %v6970 = vld [vmem:[%s4850 + $0x68] sm:$0xff]
      %v6971 = vld [vmem:[%s4850 + $0x70] sm:$0xff]
      %v6972 = vld [vmem:[%s4850 + $0x78] sm:$0xff]
      %v6973 = vld [vmem:[%s4850 + $0x80] sm:$0xff]
      %v6974 = vld [vmem:[%s4850 + $0x88] sm:$0xff]
      %v6975 = vld [vmem:[%s4850 + $0xa0] sm:$0xff]
      %v6976 = vld [vmem:[%s4850 + $0xa8] sm:$0xff]
      %v6977 = vld [vmem:[%s4850 + $0xb0] sm:$0xff]
      %v6978 = vld [vmem:[%s4850 + $0xb8] sm:$0xff]
      %v6979 = vld [vmem:[%s4850 + $0xc0] sm:$0xff]
      %v6980 = vld [vmem:[%s4850 + $0xc8] sm:$0xff]
      %v6981 = vld [vmem:[%s4850 + $0xd0] sm:$0xff]
      %v6982 = vld [vmem:[%s4850 + $0xd8] sm:$0xff]
      %v6983 = vld [vmem:[%s4850 + $0xf0] sm:$0xff]
      %v6984 = vld [vmem:[%s4850 + $0xf8] sm:$0xff]
      %v6985 = vld [vmem:[%s4850 + $0x100] sm:$0xff]
      %v6986 = vld [vmem:[%s4850 + $0x108] sm:$0xff]
      %v6987 = vld [vmem:[%s4850 + $0x110] sm:$0xff]
      %v6988 = vld [vmem:[%s4850 + $0x118] sm:$0xff]
      %v6989 = vld [vmem:[%s4850 + $0x120] sm:$0xff]
      %v6990 = vld [vmem:[%s4850 + $0x128] sm:$0xff]
      %v6991 = vld [vmem:[%s4 + $0xe] sm:$0x1]
      %v6992 = vperm.slane %v6991, 0
      %v6993 = vmul.f32 %v6959, %v6992
      %v6994 = vmul.f32 %v6960, %v6992
      %v6995 = vmul.f32 %v6961, %v6992
      %v6996 = vmul.f32 %v6962, %v6992
      %v6997 = vmul.f32 %v6963, %v6992
      %v6998 = vmul.f32 %v6964, %v6992
      %v6999 = vmul.f32 %v6965, %v6992
      %v7000 = vmul.f32 %v6966, %v6992
      %v7001 = vmul.f32 %v6967, %v6992
      %v7002 = vmul.f32 %v6968, %v6992
      %v7003 = vmul.f32 %v6969, %v6992
      %v7004 = vmul.f32 %v6970, %v6992
      %v7005 = vmul.f32 %v6971, %v6992
      %v7006 = vmul.f32 %v6972, %v6992
      %v7007 = vmul.f32 %v6973, %v6992
      %v7008 = vmul.f32 %v6974, %v6992
      %v7009 = vmul.f32 %v6975, %v6992
      %v7010 = vmul.f32 %v6976, %v6992
      %v7011 = vmul.f32 %v6977, %v6992
      %v7012 = vmul.f32 %v6978, %v6992
      %v7013 = vmul.f32 %v6979, %v6992
      %v7014 = vmul.f32 %v6980, %v6992
      %v7015 = vmul.f32 %v6981, %v6992
      %v7016 = vmul.f32 %v6982, %v6992
      %v7017 = vmul.f32 %v6983, %v6992
      %v7018 = vmul.f32 %v6984, %v6992
      %v7019 = vmul.f32 %v6985, %v6992
      %v7020 = vmul.f32 %v6986, %v6992
      %v7021 = vmul.f32 %v6987, %v6992
      %v7022 = vmul.f32 %v6988, %v6992
      %v7023 = vmul.f32 %v6989, %v6992
      %v7024 = vmul.f32 %v6990, %v6992
      %v7025 = vadd.f32 %v6927, %v6993
      %v7026 = vadd.f32 %v6928, %v6994
      %v7027 = vadd.f32 %v6929, %v6995
      %v7028 = vadd.f32 %v6930, %v6996
      %v7029 = vadd.f32 %v6931, %v6997
      %v7030 = vadd.f32 %v6932, %v6998
      %v7031 = vadd.f32 %v6933, %v6999
      %v7032 = vadd.f32 %v6934, %v7000
      %v7033 = vadd.f32 %v6935, %v7001
      %v7034 = vadd.f32 %v6936, %v7002
      %v7035 = vadd.f32 %v6937, %v7003
      %v7036 = vadd.f32 %v6938, %v7004
      %v7037 = vadd.f32 %v6939, %v7005
      %v7038 = vadd.f32 %v6940, %v7006
      %v7039 = vadd.f32 %v6941, %v7007
      %v7040 = vadd.f32 %v6942, %v7008
      %v7041 = vadd.f32 %v6943, %v7009
      %v7042 = vadd.f32 %v6944, %v7010
      %v7043 = vadd.f32 %v6945, %v7011
      %v7044 = vadd.f32 %v6946, %v7012
      %v7045 = vadd.f32 %v6947, %v7013
      %v7046 = vadd.f32 %v6948, %v7014
      %v7047 = vadd.f32 %v6949, %v7015
      %v7048 = vadd.f32 %v6950, %v7016
      %v7049 = vadd.f32 %v6951, %v7017
      %v7050 = vadd.f32 %v6952, %v7018
      %v7051 = vadd.f32 %v6953, %v7019
      %v7052 = vadd.f32 %v6954, %v7020
      %v7053 = vadd.f32 %v6955, %v7021
      %v7054 = vadd.f32 %v6956, %v7022
      %v7055 = vadd.f32 %v6957, %v7023
      %v7056 = vadd.f32 %v6958, %v7024
      %v7057 = vld [vmem:[%s4949] sm:$0xff]
      %v7058 = vld [vmem:[%s4949 + $0x8] sm:$0xff]
      %v7059 = vld [vmem:[%s4949 + $0x10] sm:$0xff]
      %v7060 = vld [vmem:[%s4949 + $0x18] sm:$0xff]
      %v7061 = vld [vmem:[%s4949 + $0x20] sm:$0xff]
      %v7062 = vld [vmem:[%s4949 + $0x28] sm:$0xff]
      %v7063 = vld [vmem:[%s4949 + $0x30] sm:$0xff]
      %v7064 = vld [vmem:[%s4949 + $0x38] sm:$0xff]
      %v7065 = vld [vmem:[%s4949 + $0x50] sm:$0xff]
      %v7066 = vld [vmem:[%s4949 + $0x58] sm:$0xff]
      %v7067 = vld [vmem:[%s4949 + $0x60] sm:$0xff]
      %v7068 = vld [vmem:[%s4949 + $0x68] sm:$0xff]
      %v7069 = vld [vmem:[%s4949 + $0x70] sm:$0xff]
      %v7070 = vld [vmem:[%s4949 + $0x78] sm:$0xff]
      %v7071 = vld [vmem:[%s4949 + $0x80] sm:$0xff]
      %v7072 = vld [vmem:[%s4949 + $0x88] sm:$0xff]
      %v7073 = vld [vmem:[%s4949 + $0xa0] sm:$0xff]
      %v7074 = vld [vmem:[%s4949 + $0xa8] sm:$0xff]
      %v7075 = vld [vmem:[%s4949 + $0xb0] sm:$0xff]
      %v7076 = vld [vmem:[%s4949 + $0xb8] sm:$0xff]
      %v7077 = vld [vmem:[%s4949 + $0xc0] sm:$0xff]
      %v7078 = vld [vmem:[%s4949 + $0xc8] sm:$0xff]
      %v7079 = vld [vmem:[%s4949 + $0xd0] sm:$0xff]
      %v7080 = vld [vmem:[%s4949 + $0xd8] sm:$0xff]
      %v7081 = vld [vmem:[%s4949 + $0xf0] sm:$0xff]
      %v7082 = vld [vmem:[%s4949 + $0xf8] sm:$0xff]
      %v7083 = vld [vmem:[%s4949 + $0x100] sm:$0xff]
      %v7084 = vld [vmem:[%s4949 + $0x108] sm:$0xff]
      %v7085 = vld [vmem:[%s4949 + $0x110] sm:$0xff]
      %v7086 = vld [vmem:[%s4949 + $0x118] sm:$0xff]
      %v7087 = vld [vmem:[%s4949 + $0x120] sm:$0xff]
      %v7088 = vld [vmem:[%s4949 + $0x128] sm:$0xff]
      %v7089 = vld [vmem:[%s4 + $0x11] sm:$0x1]
      %v7090 = vperm.slane %v7089, 0
      %v7091 = vmul.f32 %v7057, %v7090
      %v7092 = vmul.f32 %v7058, %v7090
      %v7093 = vmul.f32 %v7059, %v7090
      %v7094 = vmul.f32 %v7060, %v7090
      %v7095 = vmul.f32 %v7061, %v7090
      %v7096 = vmul.f32 %v7062, %v7090
      %v7097 = vmul.f32 %v7063, %v7090
      %v7098 = vmul.f32 %v7064, %v7090
      %v7099 = vmul.f32 %v7065, %v7090
      %v7100 = vmul.f32 %v7066, %v7090
      %v7101 = vmul.f32 %v7067, %v7090
      %v7102 = vmul.f32 %v7068, %v7090
      %v7103 = vmul.f32 %v7069, %v7090
      %v7104 = vmul.f32 %v7070, %v7090
      %v7105 = vmul.f32 %v7071, %v7090
      %v7106 = vmul.f32 %v7072, %v7090
      %v7107 = vmul.f32 %v7073, %v7090
      %v7108 = vmul.f32 %v7074, %v7090
      %v7109 = vmul.f32 %v7075, %v7090
      %v7110 = vmul.f32 %v7076, %v7090
      %v7111 = vmul.f32 %v7077, %v7090
      %v7112 = vmul.f32 %v7078, %v7090
      %v7113 = vmul.f32 %v7079, %v7090
      %v7114 = vmul.f32 %v7080, %v7090
      %v7115 = vmul.f32 %v7081, %v7090
      %v7116 = vmul.f32 %v7082, %v7090
      %v7117 = vmul.f32 %v7083, %v7090
      %v7118 = vmul.f32 %v7084, %v7090
      %v7119 = vmul.f32 %v7085, %v7090
      %v7120 = vmul.f32 %v7086, %v7090
      %v7121 = vmul.f32 %v7087, %v7090
      %v7122 = vmul.f32 %v7088, %v7090
      %v7123 = vadd.f32 %v7025, %v7091
      %v7124 = vadd.f32 %v7026, %v7092
      %v7125 = vadd.f32 %v7027, %v7093
      %v7126 = vadd.f32 %v7028, %v7094
      %v7127 = vadd.f32 %v7029, %v7095
      %v7128 = vadd.f32 %v7030, %v7096
      %v7129 = vadd.f32 %v7031, %v7097
      %v7130 = vadd.f32 %v7032, %v7098
      %v7131 = vadd.f32 %v7033, %v7099
      %v7132 = vadd.f32 %v7034, %v7100
      %v7133 = vadd.f32 %v7035, %v7101
      %v7134 = vadd.f32 %v7036, %v7102
      %v7135 = vadd.f32 %v7037, %v7103
      %v7136 = vadd.f32 %v7038, %v7104
      %v7137 = vadd.f32 %v7039, %v7105
      %v7138 = vadd.f32 %v7040, %v7106
      %v7139 = vadd.f32 %v7041, %v7107
      %v7140 = vadd.f32 %v7042, %v7108
      %v7141 = vadd.f32 %v7043, %v7109
      %v7142 = vadd.f32 %v7044, %v7110
      %v7143 = vadd.f32 %v7045, %v7111
      %v7144 = vadd.f32 %v7046, %v7112
      %v7145 = vadd.f32 %v7047, %v7113
      %v7146 = vadd.f32 %v7048, %v7114
      %v7147 = vadd.f32 %v7049, %v7115
      %v7148 = vadd.f32 %v7050, %v7116
      %v7149 = vadd.f32 %v7051, %v7117
      %v7150 = vadd.f32 %v7052, %v7118
      %v7151 = vadd.f32 %v7053, %v7119
      %v7152 = vadd.f32 %v7054, %v7120
      %v7153 = vadd.f32 %v7055, %v7121
      %v7154 = vadd.f32 %v7056, %v7122
      %v7155 = vld [vmem:[%s5048] sm:$0xff]
      %v7156 = vld [vmem:[%s5048 + $0x8] sm:$0xff]
      %v7157 = vld [vmem:[%s5048 + $0x10] sm:$0xff]
      %v7158 = vld [vmem:[%s5048 + $0x18] sm:$0xff]
      %v7159 = vld [vmem:[%s5048 + $0x20] sm:$0xff]
      %v7160 = vld [vmem:[%s5048 + $0x28] sm:$0xff]
      %v7161 = vld [vmem:[%s5048 + $0x30] sm:$0xff]
      %v7162 = vld [vmem:[%s5048 + $0x38] sm:$0xff]
      %v7163 = vld [vmem:[%s5048 + $0x50] sm:$0xff]
      %v7164 = vld [vmem:[%s5048 + $0x58] sm:$0xff]
      %v7165 = vld [vmem:[%s5048 + $0x60] sm:$0xff]
      %v7166 = vld [vmem:[%s5048 + $0x68] sm:$0xff]
      %v7167 = vld [vmem:[%s5048 + $0x70] sm:$0xff]
      %v7168 = vld [vmem:[%s5048 + $0x78] sm:$0xff]
      %v7169 = vld [vmem:[%s5048 + $0x80] sm:$0xff]
      %v7170 = vld [vmem:[%s5048 + $0x88] sm:$0xff]
      %v7171 = vld [vmem:[%s5048 + $0xa0] sm:$0xff]
      %v7172 = vld [vmem:[%s5048 + $0xa8] sm:$0xff]
      %v7173 = vld [vmem:[%s5048 + $0xb0] sm:$0xff]
      %v7174 = vld [vmem:[%s5048 + $0xb8] sm:$0xff]
      %v7175 = vld [vmem:[%s5048 + $0xc0] sm:$0xff]
      %v7176 = vld [vmem:[%s5048 + $0xc8] sm:$0xff]
      %v7177 = vld [vmem:[%s5048 + $0xd0] sm:$0xff]
      %v7178 = vld [vmem:[%s5048 + $0xd8] sm:$0xff]
      %v7179 = vld [vmem:[%s5048 + $0xf0] sm:$0xff]
      %v7180 = vld [vmem:[%s5048 + $0xf8] sm:$0xff]
      %v7181 = vld [vmem:[%s5048 + $0x100] sm:$0xff]
      %v7182 = vld [vmem:[%s5048 + $0x108] sm:$0xff]
      %v7183 = vld [vmem:[%s5048 + $0x110] sm:$0xff]
      %v7184 = vld [vmem:[%s5048 + $0x118] sm:$0xff]
      %v7185 = vld [vmem:[%s5048 + $0x120] sm:$0xff]
      %v7186 = vld [vmem:[%s5048 + $0x128] sm:$0xff]
      %v7187 = vld [vmem:[%s4 + $0x14] sm:$0x1]
      %v7188 = vperm.slane %v7187, 0
      %v7189 = vmul.f32 %v7155, %v7188
      %v7190 = vmul.f32 %v7156, %v7188
      %v7191 = vmul.f32 %v7157, %v7188
      %v7192 = vmul.f32 %v7158, %v7188
      %v7193 = vmul.f32 %v7159, %v7188
      %v7194 = vmul.f32 %v7160, %v7188
      %v7195 = vmul.f32 %v7161, %v7188
      %v7196 = vmul.f32 %v7162, %v7188
      %v7197 = vmul.f32 %v7163, %v7188
      %v7198 = vmul.f32 %v7164, %v7188
      %v7199 = vmul.f32 %v7165, %v7188
      %v7200 = vmul.f32 %v7166, %v7188
      %v7201 = vmul.f32 %v7167, %v7188
      %v7202 = vmul.f32 %v7168, %v7188
      %v7203 = vmul.f32 %v7169, %v7188
      %v7204 = vmul.f32 %v7170, %v7188
      %v7205 = vmul.f32 %v7171, %v7188
      %v7206 = vmul.f32 %v7172, %v7188
      %v7207 = vmul.f32 %v7173, %v7188
      %v7208 = vmul.f32 %v7174, %v7188
      %v7209 = vmul.f32 %v7175, %v7188
      %v7210 = vmul.f32 %v7176, %v7188
      %v7211 = vmul.f32 %v7177, %v7188
      %v7212 = vmul.f32 %v7178, %v7188
      %v7213 = vmul.f32 %v7179, %v7188
      %v7214 = vmul.f32 %v7180, %v7188
      %v7215 = vmul.f32 %v7181, %v7188
      %v7216 = vmul.f32 %v7182, %v7188
      %v7217 = vmul.f32 %v7183, %v7188
      %v7218 = vmul.f32 %v7184, %v7188
      %v7219 = vmul.f32 %v7185, %v7188
      %v7220 = vmul.f32 %v7186, %v7188
      %v7221 = vadd.f32 %v7123, %v7189
      %v7222 = vadd.f32 %v7124, %v7190
      %v7223 = vadd.f32 %v7125, %v7191
      %v7224 = vadd.f32 %v7126, %v7192
      %v7225 = vadd.f32 %v7127, %v7193
      %v7226 = vadd.f32 %v7128, %v7194
      %v7227 = vadd.f32 %v7129, %v7195
      %v7228 = vadd.f32 %v7130, %v7196
      %v7229 = vadd.f32 %v7131, %v7197
      %v7230 = vadd.f32 %v7132, %v7198
      %v7231 = vadd.f32 %v7133, %v7199
      %v7232 = vadd.f32 %v7134, %v7200
      %v7233 = vadd.f32 %v7135, %v7201
      %v7234 = vadd.f32 %v7136, %v7202
      %v7235 = vadd.f32 %v7137, %v7203
      %v7236 = vadd.f32 %v7138, %v7204
      %v7237 = vadd.f32 %v7139, %v7205
      %v7238 = vadd.f32 %v7140, %v7206
      %v7239 = vadd.f32 %v7141, %v7207
      %v7240 = vadd.f32 %v7142, %v7208
      %v7241 = vadd.f32 %v7143, %v7209
      %v7242 = vadd.f32 %v7144, %v7210
      %v7243 = vadd.f32 %v7145, %v7211
      %v7244 = vadd.f32 %v7146, %v7212
      %v7245 = vadd.f32 %v7147, %v7213
      %v7246 = vadd.f32 %v7148, %v7214
      %v7247 = vadd.f32 %v7149, %v7215
      %v7248 = vadd.f32 %v7150, %v7216
      %v7249 = vadd.f32 %v7151, %v7217
      %v7250 = vadd.f32 %v7152, %v7218
      %v7251 = vadd.f32 %v7153, %v7219
      %v7252 = vadd.f32 %v7154, %v7220
      %v7253 = vld [vmem:[%s5147] sm:$0xff]
      %v7254 = vld [vmem:[%s5147 + $0x8] sm:$0xff]
      %v7255 = vld [vmem:[%s5147 + $0x10] sm:$0xff]
      %v7256 = vld [vmem:[%s5147 + $0x18] sm:$0xff]
      %v7257 = vld [vmem:[%s5147 + $0x20] sm:$0xff]
      %v7258 = vld [vmem:[%s5147 + $0x28] sm:$0xff]
      %v7259 = vld [vmem:[%s5147 + $0x30] sm:$0xff]
      %v7260 = vld [vmem:[%s5147 + $0x38] sm:$0xff]
      %v7261 = vld [vmem:[%s5147 + $0x50] sm:$0xff]
      %v7262 = vld [vmem:[%s5147 + $0x58] sm:$0xff]
      %v7263 = vld [vmem:[%s5147 + $0x60] sm:$0xff]
      %v7264 = vld [vmem:[%s5147 + $0x68] sm:$0xff]
      %v7265 = vld [vmem:[%s5147 + $0x70] sm:$0xff]
      %v7266 = vld [vmem:[%s5147 + $0x78] sm:$0xff]
      %v7267 = vld [vmem:[%s5147 + $0x80] sm:$0xff]
      %v7268 = vld [vmem:[%s5147 + $0x88] sm:$0xff]
      %v7269 = vld [vmem:[%s5147 + $0xa0] sm:$0xff]
      %v7270 = vld [vmem:[%s5147 + $0xa8] sm:$0xff]
      %v7271 = vld [vmem:[%s5147 + $0xb0] sm:$0xff]
      %v7272 = vld [vmem:[%s5147 + $0xb8] sm:$0xff]
      %v7273 = vld [vmem:[%s5147 + $0xc0] sm:$0xff]
      %v7274 = vld [vmem:[%s5147 + $0xc8] sm:$0xff]
      %v7275 = vld [vmem:[%s5147 + $0xd0] sm:$0xff]
      %v7276 = vld [vmem:[%s5147 + $0xd8] sm:$0xff]
      %v7277 = vld [vmem:[%s5147 + $0xf0] sm:$0xff]
      %v7278 = vld [vmem:[%s5147 + $0xf8] sm:$0xff]
      %v7279 = vld [vmem:[%s5147 + $0x100] sm:$0xff]
      %v7280 = vld [vmem:[%s5147 + $0x108] sm:$0xff]
      %v7281 = vld [vmem:[%s5147 + $0x110] sm:$0xff]
      %v7282 = vld [vmem:[%s5147 + $0x118] sm:$0xff]
      %v7283 = vld [vmem:[%s5147 + $0x120] sm:$0xff]
      %v7284 = vld [vmem:[%s5147 + $0x128] sm:$0xff]
      %v7285 = vld [vmem:[%s4 + $0x17] sm:$0x1]
      %v7286 = vperm.slane %v7285, 0
      %v7287 = vmul.f32 %v7253, %v7286
      %v7288 = vmul.f32 %v7254, %v7286
      %v7289 = vmul.f32 %v7255, %v7286
      %v7290 = vmul.f32 %v7256, %v7286
      %v7291 = vmul.f32 %v7257, %v7286
      %v7292 = vmul.f32 %v7258, %v7286
      %v7293 = vmul.f32 %v7259, %v7286
      %v7294 = vmul.f32 %v7260, %v7286
      %v7295 = vmul.f32 %v7261, %v7286
      %v7296 = vmul.f32 %v7262, %v7286
      %v7297 = vmul.f32 %v7263, %v7286
      %v7298 = vmul.f32 %v7264, %v7286
      %v7299 = vmul.f32 %v7265, %v7286
      %v7300 = vmul.f32 %v7266, %v7286
      %v7301 = vmul.f32 %v7267, %v7286
      %v7302 = vmul.f32 %v7268, %v7286
      %v7303 = vmul.f32 %v7269, %v7286
      %v7304 = vmul.f32 %v7270, %v7286
      %v7305 = vmul.f32 %v7271, %v7286
      %v7306 = vmul.f32 %v7272, %v7286
      %v7307 = vmul.f32 %v7273, %v7286
      %v7308 = vmul.f32 %v7274, %v7286
      %v7309 = vmul.f32 %v7275, %v7286
      %v7310 = vmul.f32 %v7276, %v7286
      %v7311 = vmul.f32 %v7277, %v7286
      %v7312 = vmul.f32 %v7278, %v7286
      %v7313 = vmul.f32 %v7279, %v7286
      %v7314 = vmul.f32 %v7280, %v7286
      %v7315 = vmul.f32 %v7281, %v7286
      %v7316 = vmul.f32 %v7282, %v7286
      %v7317 = vmul.f32 %v7283, %v7286
      %v7318 = vmul.f32 %v7284, %v7286
      %v7319 = vadd.f32 %v7221, %v7287
      %v7320 = vadd.f32 %v7222, %v7288
      %v7321 = vadd.f32 %v7223, %v7289
      %v7322 = vadd.f32 %v7224, %v7290
      %v7323 = vadd.f32 %v7225, %v7291
      %v7324 = vadd.f32 %v7226, %v7292
      %v7325 = vadd.f32 %v7227, %v7293
      %v7326 = vadd.f32 %v7228, %v7294
      %v7327 = vadd.f32 %v7229, %v7295
      %v7328 = vadd.f32 %v7230, %v7296
      %v7329 = vadd.f32 %v7231, %v7297
      %v7330 = vadd.f32 %v7232, %v7298
      %v7331 = vadd.f32 %v7233, %v7299
      %v7332 = vadd.f32 %v7234, %v7300
      %v7333 = vadd.f32 %v7235, %v7301
      %v7334 = vadd.f32 %v7236, %v7302
      %v7335 = vadd.f32 %v7237, %v7303
      %v7336 = vadd.f32 %v7238, %v7304
      %v7337 = vadd.f32 %v7239, %v7305
      %v7338 = vadd.f32 %v7240, %v7306
      %v7339 = vadd.f32 %v7241, %v7307
      %v7340 = vadd.f32 %v7242, %v7308
      %v7341 = vadd.f32 %v7243, %v7309
      %v7342 = vadd.f32 %v7244, %v7310
      %v7343 = vadd.f32 %v7245, %v7311
      %v7344 = vadd.f32 %v7246, %v7312
      %v7345 = vadd.f32 %v7247, %v7313
      %v7346 = vadd.f32 %v7248, %v7314
      %v7347 = vadd.f32 %v7249, %v7315
      %v7348 = vadd.f32 %v7250, %v7316
      %v7349 = vadd.f32 %v7251, %v7317
      %v7350 = vadd.f32 %v7252, %v7318
      %v7351 = vld [vmem:[%s5246] sm:$0xff]
      %v7352 = vld [vmem:[%s5246 + $0x8] sm:$0xff]
      %v7353 = vld [vmem:[%s5246 + $0x10] sm:$0xff]
      %v7354 = vld [vmem:[%s5246 + $0x18] sm:$0xff]
      %v7355 = vld [vmem:[%s5246 + $0x20] sm:$0xff]
      %v7356 = vld [vmem:[%s5246 + $0x28] sm:$0xff]
      %v7357 = vld [vmem:[%s5246 + $0x30] sm:$0xff]
      %v7358 = vld [vmem:[%s5246 + $0x38] sm:$0xff]
      %v7359 = vld [vmem:[%s5246 + $0x50] sm:$0xff]
      %v7360 = vld [vmem:[%s5246 + $0x58] sm:$0xff]
      %v7361 = vld [vmem:[%s5246 + $0x60] sm:$0xff]
      %v7362 = vld [vmem:[%s5246 + $0x68] sm:$0xff]
      %v7363 = vld [vmem:[%s5246 + $0x70] sm:$0xff]
      %v7364 = vld [vmem:[%s5246 + $0x78] sm:$0xff]
      %v7365 = vld [vmem:[%s5246 + $0x80] sm:$0xff]
      %v7366 = vld [vmem:[%s5246 + $0x88] sm:$0xff]
      %v7367 = vld [vmem:[%s5246 + $0xa0] sm:$0xff]
      %v7368 = vld [vmem:[%s5246 + $0xa8] sm:$0xff]
      %v7369 = vld [vmem:[%s5246 + $0xb0] sm:$0xff]
      %v7370 = vld [vmem:[%s5246 + $0xb8] sm:$0xff]
      %v7371 = vld [vmem:[%s5246 + $0xc0] sm:$0xff]
      %v7372 = vld [vmem:[%s5246 + $0xc8] sm:$0xff]
      %v7373 = vld [vmem:[%s5246 + $0xd0] sm:$0xff]
      %v7374 = vld [vmem:[%s5246 + $0xd8] sm:$0xff]
      %v7375 = vld [vmem:[%s5246 + $0xf0] sm:$0xff]
      %v7376 = vld [vmem:[%s5246 + $0xf8] sm:$0xff]
      %v7377 = vld [vmem:[%s5246 + $0x100] sm:$0xff]
      %v7378 = vld [vmem:[%s5246 + $0x108] sm:$0xff]
      %v7379 = vld [vmem:[%s5246 + $0x110] sm:$0xff]
      %v7380 = vld [vmem:[%s5246 + $0x118] sm:$0xff]
      %v7381 = vld [vmem:[%s5246 + $0x120] sm:$0xff]
      %v7382 = vld [vmem:[%s5246 + $0x128] sm:$0xff]
      %v7383 = vld [vmem:[%s4 + $0x1a] sm:$0x1]
      %v7384 = vperm.slane %v7383, 0
      %v7385 = vmul.f32 %v7351, %v7384
      %v7386 = vmul.f32 %v7352, %v7384
      %v7387 = vmul.f32 %v7353, %v7384
      %v7388 = vmul.f32 %v7354, %v7384
      %v7389 = vmul.f32 %v7355, %v7384
      %v7390 = vmul.f32 %v7356, %v7384
      %v7391 = vmul.f32 %v7357, %v7384
      %v7392 = vmul.f32 %v7358, %v7384
      %v7393 = vmul.f32 %v7359, %v7384
      %v7394 = vmul.f32 %v7360, %v7384
      %v7395 = vmul.f32 %v7361, %v7384
      %v7396 = vmul.f32 %v7362, %v7384
      %v7397 = vmul.f32 %v7363, %v7384
      %v7398 = vmul.f32 %v7364, %v7384
      %v7399 = vmul.f32 %v7365, %v7384
      %v7400 = vmul.f32 %v7366, %v7384
      %v7401 = vmul.f32 %v7367, %v7384
      %v7402 = vmul.f32 %v7368, %v7384
      %v7403 = vmul.f32 %v7369, %v7384
      %v7404 = vmul.f32 %v7370, %v7384
      %v7405 = vmul.f32 %v7371, %v7384
      %v7406 = vmul.f32 %v7372, %v7384
      %v7407 = vmul.f32 %v7373, %v7384
      %v7408 = vmul.f32 %v7374, %v7384
      %v7409 = vmul.f32 %v7375, %v7384
      %v7410 = vmul.f32 %v7376, %v7384
      %v7411 = vmul.f32 %v7377, %v7384
      %v7412 = vmul.f32 %v7378, %v7384
      %v7413 = vmul.f32 %v7379, %v7384
      %v7414 = vmul.f32 %v7380, %v7384
      %v7415 = vmul.f32 %v7381, %v7384
      %v7416 = vmul.f32 %v7382, %v7384
      %v7417 = vadd.f32 %v7319, %v7385
      %v7418 = vadd.f32 %v7320, %v7386
      %v7419 = vadd.f32 %v7321, %v7387
      %v7420 = vadd.f32 %v7322, %v7388
      %v7421 = vadd.f32 %v7323, %v7389
      %v7422 = vadd.f32 %v7324, %v7390
      %v7423 = vadd.f32 %v7325, %v7391
      %v7424 = vadd.f32 %v7326, %v7392
      %v7425 = vadd.f32 %v7327, %v7393
      %v7426 = vadd.f32 %v7328, %v7394
      %v7427 = vadd.f32 %v7329, %v7395
      %v7428 = vadd.f32 %v7330, %v7396
      %v7429 = vadd.f32 %v7331, %v7397
      %v7430 = vadd.f32 %v7332, %v7398
      %v7431 = vadd.f32 %v7333, %v7399
      %v7432 = vadd.f32 %v7334, %v7400
      %v7433 = vadd.f32 %v7335, %v7401
      %v7434 = vadd.f32 %v7336, %v7402
      %v7435 = vadd.f32 %v7337, %v7403
      %v7436 = vadd.f32 %v7338, %v7404
      %v7437 = vadd.f32 %v7339, %v7405
      %v7438 = vadd.f32 %v7340, %v7406
      %v7439 = vadd.f32 %v7341, %v7407
      %v7440 = vadd.f32 %v7342, %v7408
      %v7441 = vadd.f32 %v7343, %v7409
      %v7442 = vadd.f32 %v7344, %v7410
      %v7443 = vadd.f32 %v7345, %v7411
      %v7444 = vadd.f32 %v7346, %v7412
      %v7445 = vadd.f32 %v7347, %v7413
      %v7446 = vadd.f32 %v7348, %v7414
      %v7447 = vadd.f32 %v7349, %v7415
      %v7448 = vadd.f32 %v7350, %v7416
      %v7449 = vld [vmem:[#allocation4] sm:$0xff]
      %v7450 = vld [vmem:[#allocation4 + $0x8] sm:$0xff]
      %v7451 = vld [vmem:[#allocation4 + $0x10] sm:$0xff]
      %v7452 = vld [vmem:[#allocation4 + $0x18] sm:$0xff]
      %v7453 = vld [vmem:[#allocation4 + $0x20] sm:$0xff]
      %v7454 = vld [vmem:[#allocation4 + $0x28] sm:$0xff]
      %v7455 = vld [vmem:[#allocation4 + $0x30] sm:$0xff]
      %v7456 = vld [vmem:[#allocation4 + $0x38] sm:$0xff]
      %v7457 = vld [vmem:[#allocation4 + $0x40] sm:$0xff]
      %v7458 = vld [vmem:[#allocation4 + $0x48] sm:$0xff]
      %v7459 = vld [vmem:[#allocation4 + $0x50] sm:$0xff]
      %v7460 = vld [vmem:[#allocation4 + $0x58] sm:$0xff]
      %v7461 = vld [vmem:[#allocation4 + $0x60] sm:$0xff]
      %v7462 = vld [vmem:[#allocation4 + $0x68] sm:$0xff]
      %v7463 = vld [vmem:[#allocation4 + $0x70] sm:$0xff]
      %v7464 = vld [vmem:[#allocation4 + $0x78] sm:$0xff]
      %v7465 = vld [vmem:[#allocation4 + $0x80] sm:$0xff]
      %v7466 = vld [vmem:[#allocation4 + $0x88] sm:$0xff]
      %v7467 = vld [vmem:[#allocation4 + $0x90] sm:$0xff]
      %v7468 = vld [vmem:[#allocation4 + $0x98] sm:$0xff]
      %v7469 = vld [vmem:[#allocation4 + $0xa0] sm:$0xff]
      %v7470 = vld [vmem:[#allocation4 + $0xa8] sm:$0xff]
      %v7471 = vld [vmem:[#allocation4 + $0xb0] sm:$0xff]
      %v7472 = vld [vmem:[#allocation4 + $0xb8] sm:$0xff]
      %v7473 = vld [vmem:[#allocation4 + $0xc0] sm:$0xff]
      %v7474 = vld [vmem:[#allocation4 + $0xc8] sm:$0xff]
      %v7475 = vld [vmem:[#allocation4 + $0xd0] sm:$0xff]
      %v7476 = vld [vmem:[#allocation4 + $0xd8] sm:$0xff]
      %v7477 = vld [vmem:[#allocation4 + $0xe0] sm:$0xff]
      %v7478 = vld [vmem:[#allocation4 + $0xe8] sm:$0xff]
      %v7479 = vld [vmem:[#allocation4 + $0xf0] sm:$0xff]
      %v7480 = vld [vmem:[#allocation4 + $0xf8] sm:$0xff]
      %v7481 = vadd.f32 %v7449, %v7417
      %v7482 = vadd.f32 %v7450, %v7418
      %v7483 = vadd.f32 %v7451, %v7419
      %v7484 = vadd.f32 %v7452, %v7420
      %v7485 = vadd.f32 %v7453, %v7421
      %v7486 = vadd.f32 %v7454, %v7422
      %v7487 = vadd.f32 %v7455, %v7423
      %v7488 = vadd.f32 %v7456, %v7424
      %v7489 = vadd.f32 %v7457, %v7425
      %v7490 = vadd.f32 %v7458, %v7426
      %v7491 = vadd.f32 %v7459, %v7427
      %v7492 = vadd.f32 %v7460, %v7428
      %v7493 = vadd.f32 %v7461, %v7429
      %v7494 = vadd.f32 %v7462, %v7430
      %v7495 = vadd.f32 %v7463, %v7431
      %v7496 = vadd.f32 %v7464, %v7432
      %v7497 = vadd.f32 %v7465, %v7433
      %v7498 = vadd.f32 %v7466, %v7434
      %v7499 = vadd.f32 %v7467, %v7435
      %v7500 = vadd.f32 %v7468, %v7436
      %v7501 = vadd.f32 %v7469, %v7437
      %v7502 = vadd.f32 %v7470, %v7438
      %v7503 = vadd.f32 %v7471, %v7439
      %v7504 = vadd.f32 %v7472, %v7440
      %v7505 = vadd.f32 %v7473, %v7441
      %v7506 = vadd.f32 %v7474, %v7442
      %v7507 = vadd.f32 %v7475, %v7443
      %v7508 = vadd.f32 %v7476, %v7444
      %v7509 = vadd.f32 %v7477, %v7445
      %v7510 = vadd.f32 %v7478, %v7446
      %v7511 = vadd.f32 %v7479, %v7447
      %v7512 = vadd.f32 %v7480, %v7448
      %7513 = vst.msk [vmem:[#allocation4] sm:$0xff] %vm2968, %v7481
      %7514 = vst.msk [vmem:[#allocation4 + $0x8] sm:$0xff] %vm2968, %v7482
      %7515 = vst.msk [vmem:[#allocation4 + $0x10] sm:$0xff] %vm2968, %v7483
      %7516 = vst.msk [vmem:[#allocation4 + $0x18] sm:$0xff] %vm2968, %v7484
      %7517 = vst.msk [vmem:[#allocation4 + $0x20] sm:$0xff] %vm2968, %v7485
      %7518 = vst.msk [vmem:[#allocation4 + $0x28] sm:$0xff] %vm2968, %v7486
      %7519 = vst.msk [vmem:[#allocation4 + $0x30] sm:$0xff] %vm2968, %v7487
      %7520 = vst.msk [vmem:[#allocation4 + $0x38] sm:$0xff] %vm2968, %v7488
      %7521 = vst.msk [vmem:[#allocation4 + $0x40] sm:$0xff] %vm2968, %v7489
      %7522 = vst.msk [vmem:[#allocation4 + $0x48] sm:$0xff] %vm2968, %v7490
      %7523 = vst.msk [vmem:[#allocation4 + $0x50] sm:$0xff] %vm2968, %v7491
      %7524 = vst.msk [vmem:[#allocation4 + $0x58] sm:$0xff] %vm2968, %v7492
      %7525 = vst.msk [vmem:[#allocation4 + $0x60] sm:$0xff] %vm2968, %v7493
      %7526 = vst.msk [vmem:[#allocation4 + $0x68] sm:$0xff] %vm2968, %v7494
      %7527 = vst.msk [vmem:[#allocation4 + $0x70] sm:$0xff] %vm2968, %v7495
      %7528 = vst.msk [vmem:[#allocation4 + $0x78] sm:$0xff] %vm2968, %v7496
      %7529 = vst.msk [vmem:[#allocation4 + $0x80] sm:$0xff] %vm2968, %v7497
      %7530 = vst.msk [vmem:[#allocation4 + $0x88] sm:$0xff] %vm2968, %v7498
      %7531 = vst.msk [vmem:[#allocation4 + $0x90] sm:$0xff] %vm2968, %v7499
      %7532 = vst.msk [vmem:[#allocation4 + $0x98] sm:$0xff] %vm2968, %v7500
      %7533 = vst.msk [vmem:[#allocation4 + $0xa0] sm:$0xff] %vm2968, %v7501
      %7534 = vst.msk [vmem:[#allocation4 + $0xa8] sm:$0xff] %vm2968, %v7502
      %7535 = vst.msk [vmem:[#allocation4 + $0xb0] sm:$0xff] %vm2968, %v7503
      %7536 = vst.msk [vmem:[#allocation4 + $0xb8] sm:$0xff] %vm2968, %v7504
      %7537 = vst.msk [vmem:[#allocation4 + $0xc0] sm:$0xff] %vm2968, %v7505
      %7538 = vst.msk [vmem:[#allocation4 + $0xc8] sm:$0xff] %vm2968, %v7506
      %7539 = vst.msk [vmem:[#allocation4 + $0xd0] sm:$0xff] %vm2968, %v7507
      %7540 = vst.msk [vmem:[#allocation4 + $0xd8] sm:$0xff] %vm2968, %v7508
      %7541 = vst.msk [vmem:[#allocation4 + $0xe0] sm:$0xff] %vm2968, %v7509
      %7542 = vst.msk [vmem:[#allocation4 + $0xe8] sm:$0xff] %vm2968, %v7510
      %7543 = vst.msk [vmem:[#allocation4 + $0xf0] sm:$0xff] %vm2968, %v7511
      %7544 = vst.msk [vmem:[#allocation4 + $0xf8] sm:$0xff] %vm2968, %v7512
      %v7545 = vld [vmem:[#allocation4] sm:$0xff]
      %v7546 = vld [vmem:[#allocation4 + $0x8] sm:$0xff]
      %v7547 = vld [vmem:[#allocation4 + $0x10] sm:$0xff]
      %v7548 = vld [vmem:[#allocation4 + $0x18] sm:$0xff]
      %v7549 = vld [vmem:[#allocation4 + $0x20] sm:$0xff]
      %v7550 = vld [vmem:[#allocation4 + $0x28] sm:$0xff]
      %v7551 = vld [vmem:[#allocation4 + $0x30] sm:$0xff]
      %v7552 = vld [vmem:[#allocation4 + $0x38] sm:$0xff]
      %v7553 = vld [vmem:[#allocation4 + $0x40] sm:$0xff]
      %v7554 = vld [vmem:[#allocation4 + $0x48] sm:$0xff]
      %v7555 = vld [vmem:[#allocation4 + $0x50] sm:$0xff]
      %v7556 = vld [vmem:[#allocation4 + $0x58] sm:$0xff]
      %v7557 = vld [vmem:[#allocation4 + $0x60] sm:$0xff]
      %v7558 = vld [vmem:[#allocation4 + $0x68] sm:$0xff]
      %v7559 = vld [vmem:[#allocation4 + $0x70] sm:$0xff]
      %v7560 = vld [vmem:[#allocation4 + $0x78] sm:$0xff]
      %v7561 = vld [vmem:[#allocation4 + $0x80] sm:$0xff]
      %v7562 = vld [vmem:[#allocation4 + $0x88] sm:$0xff]
      %v7563 = vld [vmem:[#allocation4 + $0x90] sm:$0xff]
      %v7564 = vld [vmem:[#allocation4 + $0x98] sm:$0xff]
      %v7565 = vld [vmem:[#allocation4 + $0xa0] sm:$0xff]
      %v7566 = vld [vmem:[#allocation4 + $0xa8] sm:$0xff]
      %v7567 = vld [vmem:[#allocation4 + $0xb0] sm:$0xff]
      %v7568 = vld [vmem:[#allocation4 + $0xb8] sm:$0xff]
      %v7569 = vld [vmem:[#allocation4 + $0xc0] sm:$0xff]
      %v7570 = vld [vmem:[#allocation4 + $0xc8] sm:$0xff]
      %v7571 = vld [vmem:[#allocation4 + $0xd0] sm:$0xff]
      %v7572 = vld [vmem:[#allocation4 + $0xd8] sm:$0xff]
      %v7573 = vld [vmem:[#allocation4 + $0xe0] sm:$0xff]
      %v7574 = vld [vmem:[#allocation4 + $0xe8] sm:$0xff]
      %v7575 = vld [vmem:[#allocation4 + $0xf0] sm:$0xff]
      %v7576 = vld [vmem:[#allocation4 + $0xf8] sm:$0xff]
      %v7577 = vxor.u32 %v7545, 2147483648
      %v7578 = vxor.u32 %v7546, 2147483648
      %v7579 = vxor.u32 %v7547, 2147483648
      %v7580 = vxor.u32 %v7548, 2147483648
      %v7581 = vxor.u32 %v7549, 2147483648
      %v7582 = vxor.u32 %v7550, 2147483648
      %v7583 = vxor.u32 %v7551, 2147483648
      %v7584 = vxor.u32 %v7552, 2147483648
      %v7585 = vxor.u32 %v7553, 2147483648
      %v7586 = vxor.u32 %v7554, 2147483648
      %v7587 = vxor.u32 %v7555, 2147483648
      %v7588 = vxor.u32 %v7556, 2147483648
      %v7589 = vxor.u32 %v7557, 2147483648
      %v7590 = vxor.u32 %v7558, 2147483648
      %v7591 = vxor.u32 %v7559, 2147483648
      %v7592 = vxor.u32 %v7560, 2147483648
      %v7593 = vxor.u32 %v7561, 2147483648
      %v7594 = vxor.u32 %v7562, 2147483648
      %v7595 = vxor.u32 %v7563, 2147483648
      %v7596 = vxor.u32 %v7564, 2147483648
      %v7597 = vxor.u32 %v7565, 2147483648
      %v7598 = vxor.u32 %v7566, 2147483648
      %v7599 = vxor.u32 %v7567, 2147483648
      %v7600 = vxor.u32 %v7568, 2147483648
      %v7601 = vxor.u32 %v7569, 2147483648
      %v7602 = vxor.u32 %v7570, 2147483648
      %v7603 = vxor.u32 %v7571, 2147483648
      %v7604 = vxor.u32 %v7572, 2147483648
      %v7605 = vxor.u32 %v7573, 2147483648
      %v7606 = vxor.u32 %v7574, 2147483648
      %v7607 = vxor.u32 %v7575, 2147483648
      %v7608 = vxor.u32 %v7576, 2147483648
      %v7609 = vmul.f32 %v7577, 1.442695
      %v7610 = vpow.pop %v7609
      %v7611 = vmul.f32 %v7578, 1.442695
      %v7612 = vpow.pop %v7611
      %v7613 = vmul.f32 %v7579, 1.442695
      %v7614 = vpow.pop %v7613
      %v7615 = vmul.f32 %v7580, 1.442695
      %v7616 = vpow.pop %v7615
      %v7617 = vmul.f32 %v7581, 1.442695
      %v7618 = vpow.pop %v7617
      %v7619 = vmul.f32 %v7582, 1.442695
      %v7620 = vpow.pop %v7619
      %v7621 = vmul.f32 %v7583, 1.442695
      %v7622 = vpow.pop %v7621
      %v7623 = vmul.f32 %v7584, 1.442695
      %v7624 = vpow.pop %v7623
      %v7625 = vmul.f32 %v7585, 1.442695
      %v7626 = vpow.pop %v7625
      %v7627 = vmul.f32 %v7586, 1.442695
      %v7628 = vpow.pop %v7627
      %v7629 = vmul.f32 %v7587, 1.442695
      %v7630 = vpow.pop %v7629
      %v7631 = vmul.f32 %v7588, 1.442695
      %v7632 = vpow.pop %v7631
      %v7633 = vmul.f32 %v7589, 1.442695
      %v7634 = vpow.pop %v7633
      %v7635 = vmul.f32 %v7590, 1.442695
      %v7636 = vpow.pop %v7635
      %v7637 = vmul.f32 %v7591, 1.442695
      %v7638 = vpow.pop %v7637
      %v7639 = vmul.f32 %v7592, 1.442695
      %v7640 = vpow.pop %v7639
      %v7641 = vmul.f32 %v7593, 1.442695
      %v7642 = vpow.pop %v7641
      %v7643 = vmul.f32 %v7594, 1.442695
      %v7644 = vpow.pop %v7643
      %v7645 = vmul.f32 %v7595, 1.442695
      %v7646 = vpow.pop %v7645
      %v7647 = vmul.f32 %v7596, 1.442695
      %v7648 = vpow.pop %v7647
      %v7649 = vmul.f32 %v7597, 1.442695
      %v7650 = vpow.pop %v7649
      %v7651 = vmul.f32 %v7598, 1.442695
      %v7652 = vpow.pop %v7651
      %v7653 = vmul.f32 %v7599, 1.442695
      %v7654 = vpow.pop %v7653
      %v7655 = vmul.f32 %v7600, 1.442695
      %v7656 = vpow.pop %v7655
      %v7657 = vmul.f32 %v7601, 1.442695
      %v7658 = vpow.pop %v7657
      %v7659 = vmul.f32 %v7602, 1.442695
      %v7660 = vpow.pop %v7659
      %v7661 = vmul.f32 %v7603, 1.442695
      %v7662 = vpow.pop %v7661
      %v7663 = vmul.f32 %v7604, 1.442695
      %v7664 = vpow.pop %v7663
      %v7665 = vmul.f32 %v7605, 1.442695
      %v7666 = vpow.pop %v7665
      %v7667 = vmul.f32 %v7606, 1.442695
      %v7668 = vpow.pop %v7667
      %v7669 = vmul.f32 %v7607, 1.442695
      %v7670 = vpow.pop %v7669
      %v7671 = vmul.f32 %v7608, 1.442695
      %v7672 = vpow.pop %v7671
      %v7673 = vadd.f32 %v7610, 1.0
      %v7674 = vadd.f32 %v7612, 1.0
      %v7675 = vadd.f32 %v7614, 1.0
      %v7676 = vadd.f32 %v7616, 1.0
      %v7677 = vadd.f32 %v7618, 1.0
      %v7678 = vadd.f32 %v7620, 1.0
      %v7679 = vadd.f32 %v7622, 1.0
      %v7680 = vadd.f32 %v7624, 1.0
      %v7681 = vadd.f32 %v7626, 1.0
      %v7682 = vadd.f32 %v7628, 1.0
      %v7683 = vadd.f32 %v7630, 1.0
      %v7684 = vadd.f32 %v7632, 1.0
      %v7685 = vadd.f32 %v7634, 1.0
      %v7686 = vadd.f32 %v7636, 1.0
      %v7687 = vadd.f32 %v7638, 1.0
      %v7688 = vadd.f32 %v7640, 1.0
      %v7689 = vadd.f32 %v7642, 1.0
      %v7690 = vadd.f32 %v7644, 1.0
      %v7691 = vadd.f32 %v7646, 1.0
      %v7692 = vadd.f32 %v7648, 1.0
      %v7693 = vadd.f32 %v7650, 1.0
      %v7694 = vadd.f32 %v7652, 1.0
      %v7695 = vadd.f32 %v7654, 1.0
      %v7696 = vadd.f32 %v7656, 1.0
      %v7697 = vadd.f32 %v7658, 1.0
      %v7698 = vadd.f32 %v7660, 1.0
      %v7699 = vadd.f32 %v7662, 1.0
      %v7700 = vadd.f32 %v7664, 1.0
      %v7701 = vadd.f32 %v7666, 1.0
      %v7702 = vadd.f32 %v7668, 1.0
      %v7703 = vadd.f32 %v7670, 1.0
      %v7704 = vadd.f32 %v7672, 1.0
      %v7705 = vrcp.pop %v7673
      %v7706 = vmul.f32 %v7673, %v7705
      %v7707 = vsub.f32 1.0, %v7706
      %v7708 = vmul.f32 %v7705, %v7707
      %v7709 = vadd.f32 %v7705, %v7708
      %vm7710 = vweird.f32 %v7673
      %vm7711 = vweird.f32 %v7705
      %vm7712 = vmor %vm7710, %vm7711
      %v7713 = vsel %vm7712, %v7705, %v7709
      %v7714 = vand.u32 2147483647, %v7673
      %vm7715 = vcmp.eq.f32.partialorder %v7714, 8.507059e+37
      %v7716 = vand.u32 %v7673, 2147483648
      %v7717 = vor.u32 1.1754944e-38, %v7716
      %v7718 = vsel %vm7715, %v7717, %v7713
      %v7719 = vmul.f32 1.0, %v7718
      %v7720 = vrcp.pop %v7674
      %v7721 = vmul.f32 %v7674, %v7720
      %v7722 = vsub.f32 1.0, %v7721
      %v7723 = vmul.f32 %v7720, %v7722
      %v7724 = vadd.f32 %v7720, %v7723
      %vm7725 = vweird.f32 %v7674
      %vm7726 = vweird.f32 %v7720
      %vm7727 = vmor %vm7725, %vm7726
      %v7728 = vsel %vm7727, %v7720, %v7724
      %v7729 = vand.u32 2147483647, %v7674
      %vm7730 = vcmp.eq.f32.partialorder %v7729, 8.507059e+37
      %v7731 = vand.u32 %v7674, 2147483648
      %v7732 = vor.u32 1.1754944e-38, %v7731
      %v7733 = vsel %vm7730, %v7732, %v7728
      %v7734 = vmul.f32 1.0, %v7733
      %v7735 = vrcp.pop %v7675
      %v7736 = vmul.f32 %v7675, %v7735
      %v7737 = vsub.f32 1.0, %v7736
      %v7738 = vmul.f32 %v7735, %v7737
      %v7739 = vadd.f32 %v7735, %v7738
      %vm7740 = vweird.f32 %v7675
      %vm7741 = vweird.f32 %v7735
      %vm7742 = vmor %vm7740, %vm7741
      %v7743 = vsel %vm7742, %v7735, %v7739
      %v7744 = vand.u32 2147483647, %v7675
      %vm7745 = vcmp.eq.f32.partialorder %v7744, 8.507059e+37
      %v7746 = vand.u32 %v7675, 2147483648
      %v7747 = vor.u32 1.1754944e-38, %v7746
      %v7748 = vsel %vm7745, %v7747, %v7743
      %v7749 = vmul.f32 1.0, %v7748
      %v7750 = vrcp.pop %v7676
      %v7751 = vmul.f32 %v7676, %v7750
      %v7752 = vsub.f32 1.0, %v7751
      %v7753 = vmul.f32 %v7750, %v7752
      %v7754 = vadd.f32 %v7750, %v7753
      %vm7755 = vweird.f32 %v7676
      %vm7756 = vweird.f32 %v7750
      %vm7757 = vmor %vm7755, %vm7756
      %v7758 = vsel %vm7757, %v7750, %v7754
      %v7759 = vand.u32 2147483647, %v7676
      %vm7760 = vcmp.eq.f32.partialorder %v7759, 8.507059e+37
      %v7761 = vand.u32 %v7676, 2147483648
      %v7762 = vor.u32 1.1754944e-38, %v7761
      %v7763 = vsel %vm7760, %v7762, %v7758
      %v7764 = vmul.f32 1.0, %v7763
      %v7765 = vrcp.pop %v7677
      %v7766 = vmul.f32 %v7677, %v7765
      %v7767 = vsub.f32 1.0, %v7766
      %v7768 = vmul.f32 %v7765, %v7767
      %v7769 = vadd.f32 %v7765, %v7768
      %vm7770 = vweird.f32 %v7677
      %vm7771 = vweird.f32 %v7765
      %vm7772 = vmor %vm7770, %vm7771
      %v7773 = vsel %vm7772, %v7765, %v7769
      %v7774 = vand.u32 2147483647, %v7677
      %vm7775 = vcmp.eq.f32.partialorder %v7774, 8.507059e+37
      %v7776 = vand.u32 %v7677, 2147483648
      %v7777 = vor.u32 1.1754944e-38, %v7776
      %v7778 = vsel %vm7775, %v7777, %v7773
      %v7779 = vmul.f32 1.0, %v7778
      %v7780 = vrcp.pop %v7678
      %v7781 = vmul.f32 %v7678, %v7780
      %v7782 = vsub.f32 1.0, %v7781
      %v7783 = vmul.f32 %v7780, %v7782
      %v7784 = vadd.f32 %v7780, %v7783
      %vm7785 = vweird.f32 %v7678
      %vm7786 = vweird.f32 %v7780
      %vm7787 = vmor %vm7785, %vm7786
      %v7788 = vsel %vm7787, %v7780, %v7784
      %v7789 = vand.u32 2147483647, %v7678
      %vm7790 = vcmp.eq.f32.partialorder %v7789, 8.507059e+37
      %v7791 = vand.u32 %v7678, 2147483648
      %v7792 = vor.u32 1.1754944e-38, %v7791
      %v7793 = vsel %vm7790, %v7792, %v7788
      %v7794 = vmul.f32 1.0, %v7793
      %v7795 = vrcp.pop %v7679
      %v7796 = vmul.f32 %v7679, %v7795
      %v7797 = vsub.f32 1.0, %v7796
      %v7798 = vmul.f32 %v7795, %v7797
      %v7799 = vadd.f32 %v7795, %v7798
      %vm7800 = vweird.f32 %v7679
      %vm7801 = vweird.f32 %v7795
      %vm7802 = vmor %vm7800, %vm7801
      %v7803 = vsel %vm7802, %v7795, %v7799
      %v7804 = vand.u32 2147483647, %v7679
      %vm7805 = vcmp.eq.f32.partialorder %v7804, 8.507059e+37
      %v7806 = vand.u32 %v7679, 2147483648
      %v7807 = vor.u32 1.1754944e-38, %v7806
      %v7808 = vsel %vm7805, %v7807, %v7803
      %v7809 = vmul.f32 1.0, %v7808
      %v7810 = vrcp.pop %v7680
      %v7811 = vmul.f32 %v7680, %v7810
      %v7812 = vsub.f32 1.0, %v7811
      %v7813 = vmul.f32 %v7810, %v7812
      %v7814 = vadd.f32 %v7810, %v7813
      %vm7815 = vweird.f32 %v7680
      %vm7816 = vweird.f32 %v7810
      %vm7817 = vmor %vm7815, %vm7816
      %v7818 = vsel %vm7817, %v7810, %v7814
      %v7819 = vand.u32 2147483647, %v7680
      %vm7820 = vcmp.eq.f32.partialorder %v7819, 8.507059e+37
      %v7821 = vand.u32 %v7680, 2147483648
      %v7822 = vor.u32 1.1754944e-38, %v7821
      %v7823 = vsel %vm7820, %v7822, %v7818
      %v7824 = vmul.f32 1.0, %v7823
      %v7825 = vrcp.pop %v7681
      %v7826 = vmul.f32 %v7681, %v7825
      %v7827 = vsub.f32 1.0, %v7826
      %v7828 = vmul.f32 %v7825, %v7827
      %v7829 = vadd.f32 %v7825, %v7828
      %vm7830 = vweird.f32 %v7681
      %vm7831 = vweird.f32 %v7825
      %vm7832 = vmor %vm7830, %vm7831
      %v7833 = vsel %vm7832, %v7825, %v7829
      %v7834 = vand.u32 2147483647, %v7681
      %vm7835 = vcmp.eq.f32.partialorder %v7834, 8.507059e+37
      %v7836 = vand.u32 %v7681, 2147483648
      %v7837 = vor.u32 1.1754944e-38, %v7836
      %v7838 = vsel %vm7835, %v7837, %v7833
      %v7839 = vmul.f32 1.0, %v7838
      %v7840 = vrcp.pop %v7682
      %v7841 = vmul.f32 %v7682, %v7840
      %v7842 = vsub.f32 1.0, %v7841
      %v7843 = vmul.f32 %v7840, %v7842
      %v7844 = vadd.f32 %v7840, %v7843
      %vm7845 = vweird.f32 %v7682
      %vm7846 = vweird.f32 %v7840
      %vm7847 = vmor %vm7845, %vm7846
      %v7848 = vsel %vm7847, %v7840, %v7844
      %v7849 = vand.u32 2147483647, %v7682
      %vm7850 = vcmp.eq.f32.partialorder %v7849, 8.507059e+37
      %v7851 = vand.u32 %v7682, 2147483648
      %v7852 = vor.u32 1.1754944e-38, %v7851
      %v7853 = vsel %vm7850, %v7852, %v7848
      %v7854 = vmul.f32 1.0, %v7853
      %v7855 = vrcp.pop %v7683
      %v7856 = vmul.f32 %v7683, %v7855
      %v7857 = vsub.f32 1.0, %v7856
      %v7858 = vmul.f32 %v7855, %v7857
      %v7859 = vadd.f32 %v7855, %v7858
      %vm7860 = vweird.f32 %v7683
      %vm7861 = vweird.f32 %v7855
      %vm7862 = vmor %vm7860, %vm7861
      %v7863 = vsel %vm7862, %v7855, %v7859
      %v7864 = vand.u32 2147483647, %v7683
      %vm7865 = vcmp.eq.f32.partialorder %v7864, 8.507059e+37
      %v7866 = vand.u32 %v7683, 2147483648
      %v7867 = vor.u32 1.1754944e-38, %v7866
      %v7868 = vsel %vm7865, %v7867, %v7863
      %v7869 = vmul.f32 1.0, %v7868
      %v7870 = vrcp.pop %v7684
      %v7871 = vmul.f32 %v7684, %v7870
      %v7872 = vsub.f32 1.0, %v7871
      %v7873 = vmul.f32 %v7870, %v7872
      %v7874 = vadd.f32 %v7870, %v7873
      %vm7875 = vweird.f32 %v7684
      %vm7876 = vweird.f32 %v7870
      %vm7877 = vmor %vm7875, %vm7876
      %v7878 = vsel %vm7877, %v7870, %v7874
      %v7879 = vand.u32 2147483647, %v7684
      %vm7880 = vcmp.eq.f32.partialorder %v7879, 8.507059e+37
      %v7881 = vand.u32 %v7684, 2147483648
      %v7882 = vor.u32 1.1754944e-38, %v7881
      %v7883 = vsel %vm7880, %v7882, %v7878
      %v7884 = vmul.f32 1.0, %v7883
      %v7885 = vrcp.pop %v7685
      %v7886 = vmul.f32 %v7685, %v7885
      %v7887 = vsub.f32 1.0, %v7886
      %v7888 = vmul.f32 %v7885, %v7887
      %v7889 = vadd.f32 %v7885, %v7888
      %vm7890 = vweird.f32 %v7685
      %vm7891 = vweird.f32 %v7885
      %vm7892 = vmor %vm7890, %vm7891
      %v7893 = vsel %vm7892, %v7885, %v7889
      %v7894 = vand.u32 2147483647, %v7685
      %vm7895 = vcmp.eq.f32.partialorder %v7894, 8.507059e+37
      %v7896 = vand.u32 %v7685, 2147483648
      %v7897 = vor.u32 1.1754944e-38, %v7896
      %v7898 = vsel %vm7895, %v7897, %v7893
      %v7899 = vmul.f32 1.0, %v7898
      %v7900 = vrcp.pop %v7686
      %v7901 = vmul.f32 %v7686, %v7900
      %v7902 = vsub.f32 1.0, %v7901
      %v7903 = vmul.f32 %v7900, %v7902
      %v7904 = vadd.f32 %v7900, %v7903
      %vm7905 = vweird.f32 %v7686
      %vm7906 = vweird.f32 %v7900
      %vm7907 = vmor %vm7905, %vm7906
      %v7908 = vsel %vm7907, %v7900, %v7904
      %v7909 = vand.u32 2147483647, %v7686
      %vm7910 = vcmp.eq.f32.partialorder %v7909, 8.507059e+37
      %v7911 = vand.u32 %v7686, 2147483648
      %v7912 = vor.u32 1.1754944e-38, %v7911
      %v7913 = vsel %vm7910, %v7912, %v7908
      %v7914 = vmul.f32 1.0, %v7913
      %v7915 = vrcp.pop %v7687
      %v7916 = vmul.f32 %v7687, %v7915
      %v7917 = vsub.f32 1.0, %v7916
      %v7918 = vmul.f32 %v7915, %v7917
      %v7919 = vadd.f32 %v7915, %v7918
      %vm7920 = vweird.f32 %v7687
      %vm7921 = vweird.f32 %v7915
      %vm7922 = vmor %vm7920, %vm7921
      %v7923 = vsel %vm7922, %v7915, %v7919
      %v7924 = vand.u32 2147483647, %v7687
      %vm7925 = vcmp.eq.f32.partialorder %v7924, 8.507059e+37
      %v7926 = vand.u32 %v7687, 2147483648
      %v7927 = vor.u32 1.1754944e-38, %v7926
      %v7928 = vsel %vm7925, %v7927, %v7923
      %v7929 = vmul.f32 1.0, %v7928
      %v7930 = vrcp.pop %v7688
      %v7931 = vmul.f32 %v7688, %v7930
      %v7932 = vsub.f32 1.0, %v7931
      %v7933 = vmul.f32 %v7930, %v7932
      %v7934 = vadd.f32 %v7930, %v7933
      %vm7935 = vweird.f32 %v7688
      %vm7936 = vweird.f32 %v7930
      %vm7937 = vmor %vm7935, %vm7936
      %v7938 = vsel %vm7937, %v7930, %v7934
      %v7939 = vand.u32 2147483647, %v7688
      %vm7940 = vcmp.eq.f32.partialorder %v7939, 8.507059e+37
      %v7941 = vand.u32 %v7688, 2147483648
      %v7942 = vor.u32 1.1754944e-38, %v7941
      %v7943 = vsel %vm7940, %v7942, %v7938
      %v7944 = vmul.f32 1.0, %v7943
      %v7945 = vrcp.pop %v7689
      %v7946 = vmul.f32 %v7689, %v7945
      %v7947 = vsub.f32 1.0, %v7946
      %v7948 = vmul.f32 %v7945, %v7947
      %v7949 = vadd.f32 %v7945, %v7948
      %vm7950 = vweird.f32 %v7689
      %vm7951 = vweird.f32 %v7945
      %vm7952 = vmor %vm7950, %vm7951
      %v7953 = vsel %vm7952, %v7945, %v7949
      %v7954 = vand.u32 2147483647, %v7689
      %vm7955 = vcmp.eq.f32.partialorder %v7954, 8.507059e+37
      %v7956 = vand.u32 %v7689, 2147483648
      %v7957 = vor.u32 1.1754944e-38, %v7956
      %v7958 = vsel %vm7955, %v7957, %v7953
      %v7959 = vmul.f32 1.0, %v7958
      %v7960 = vrcp.pop %v7690
      %v7961 = vmul.f32 %v7690, %v7960
      %v7962 = vsub.f32 1.0, %v7961
      %v7963 = vmul.f32 %v7960, %v7962
      %v7964 = vadd.f32 %v7960, %v7963
      %vm7965 = vweird.f32 %v7690
      %vm7966 = vweird.f32 %v7960
      %vm7967 = vmor %vm7965, %vm7966
      %v7968 = vsel %vm7967, %v7960, %v7964
      %v7969 = vand.u32 2147483647, %v7690
      %vm7970 = vcmp.eq.f32.partialorder %v7969, 8.507059e+37
      %v7971 = vand.u32 %v7690, 2147483648
      %v7972 = vor.u32 1.1754944e-38, %v7971
      %v7973 = vsel %vm7970, %v7972, %v7968
      %v7974 = vmul.f32 1.0, %v7973
      %v7975 = vrcp.pop %v7691
      %v7976 = vmul.f32 %v7691, %v7975
      %v7977 = vsub.f32 1.0, %v7976
      %v7978 = vmul.f32 %v7975, %v7977
      %v7979 = vadd.f32 %v7975, %v7978
      %vm7980 = vweird.f32 %v7691
      %vm7981 = vweird.f32 %v7975
      %vm7982 = vmor %vm7980, %vm7981
      %v7983 = vsel %vm7982, %v7975, %v7979
      %v7984 = vand.u32 2147483647, %v7691
      %vm7985 = vcmp.eq.f32.partialorder %v7984, 8.507059e+37
      %v7986 = vand.u32 %v7691, 2147483648
      %v7987 = vor.u32 1.1754944e-38, %v7986
      %v7988 = vsel %vm7985, %v7987, %v7983
      %v7989 = vmul.f32 1.0, %v7988
      %v7990 = vrcp.pop %v7692
      %v7991 = vmul.f32 %v7692, %v7990
      %v7992 = vsub.f32 1.0, %v7991
      %v7993 = vmul.f32 %v7990, %v7992
      %v7994 = vadd.f32 %v7990, %v7993
      %vm7995 = vweird.f32 %v7692
      %vm7996 = vweird.f32 %v7990
      %vm7997 = vmor %vm7995, %vm7996
      %v7998 = vsel %vm7997, %v7990, %v7994
      %v7999 = vand.u32 2147483647, %v7692
      %vm8000 = vcmp.eq.f32.partialorder %v7999, 8.507059e+37
      %v8001 = vand.u32 %v7692, 2147483648
      %v8002 = vor.u32 1.1754944e-38, %v8001
      %v8003 = vsel %vm8000, %v8002, %v7998
      %v8004 = vmul.f32 1.0, %v8003
      %v8005 = vrcp.pop %v7693
      %v8006 = vmul.f32 %v7693, %v8005
      %v8007 = vsub.f32 1.0, %v8006
      %v8008 = vmul.f32 %v8005, %v8007
      %v8009 = vadd.f32 %v8005, %v8008
      %vm8010 = vweird.f32 %v7693
      %vm8011 = vweird.f32 %v8005
      %vm8012 = vmor %vm8010, %vm8011
      %v8013 = vsel %vm8012, %v8005, %v8009
      %v8014 = vand.u32 2147483647, %v7693
      %vm8015 = vcmp.eq.f32.partialorder %v8014, 8.507059e+37
      %v8016 = vand.u32 %v7693, 2147483648
      %v8017 = vor.u32 1.1754944e-38, %v8016
      %v8018 = vsel %vm8015, %v8017, %v8013
      %v8019 = vmul.f32 1.0, %v8018
      %v8020 = vrcp.pop %v7694
      %v8021 = vmul.f32 %v7694, %v8020
      %v8022 = vsub.f32 1.0, %v8021
      %v8023 = vmul.f32 %v8020, %v8022
      %v8024 = vadd.f32 %v8020, %v8023
      %vm8025 = vweird.f32 %v7694
      %vm8026 = vweird.f32 %v8020
      %vm8027 = vmor %vm8025, %vm8026
      %v8028 = vsel %vm8027, %v8020, %v8024
      %v8029 = vand.u32 2147483647, %v7694
      %vm8030 = vcmp.eq.f32.partialorder %v8029, 8.507059e+37
      %v8031 = vand.u32 %v7694, 2147483648
      %v8032 = vor.u32 1.1754944e-38, %v8031
      %v8033 = vsel %vm8030, %v8032, %v8028
      %v8034 = vmul.f32 1.0, %v8033
      %v8035 = vrcp.pop %v7695
      %v8036 = vmul.f32 %v7695, %v8035
      %v8037 = vsub.f32 1.0, %v8036
      %v8038 = vmul.f32 %v8035, %v8037
      %v8039 = vadd.f32 %v8035, %v8038
      %vm8040 = vweird.f32 %v7695
      %vm8041 = vweird.f32 %v8035
      %vm8042 = vmor %vm8040, %vm8041
      %v8043 = vsel %vm8042, %v8035, %v8039
      %v8044 = vand.u32 2147483647, %v7695
      %vm8045 = vcmp.eq.f32.partialorder %v8044, 8.507059e+37
      %v8046 = vand.u32 %v7695, 2147483648
      %v8047 = vor.u32 1.1754944e-38, %v8046
      %v8048 = vsel %vm8045, %v8047, %v8043
      %v8049 = vmul.f32 1.0, %v8048
      %v8050 = vrcp.pop %v7696
      %v8051 = vmul.f32 %v7696, %v8050
      %v8052 = vsub.f32 1.0, %v8051
      %v8053 = vmul.f32 %v8050, %v8052
      %v8054 = vadd.f32 %v8050, %v8053
      %vm8055 = vweird.f32 %v7696
      %vm8056 = vweird.f32 %v8050
      %vm8057 = vmor %vm8055, %vm8056
      %v8058 = vsel %vm8057, %v8050, %v8054
      %v8059 = vand.u32 2147483647, %v7696
      %vm8060 = vcmp.eq.f32.partialorder %v8059, 8.507059e+37
      %v8061 = vand.u32 %v7696, 2147483648
      %v8062 = vor.u32 1.1754944e-38, %v8061
      %v8063 = vsel %vm8060, %v8062, %v8058
      %v8064 = vmul.f32 1.0, %v8063
      %v8065 = vrcp.pop %v7697
      %v8066 = vmul.f32 %v7697, %v8065
      %v8067 = vsub.f32 1.0, %v8066
      %v8068 = vmul.f32 %v8065, %v8067
      %v8069 = vadd.f32 %v8065, %v8068
      %vm8070 = vweird.f32 %v7697
      %vm8071 = vweird.f32 %v8065
      %vm8072 = vmor %vm8070, %vm8071
      %v8073 = vsel %vm8072, %v8065, %v8069
      %v8074 = vand.u32 2147483647, %v7697
      %vm8075 = vcmp.eq.f32.partialorder %v8074, 8.507059e+37
      %v8076 = vand.u32 %v7697, 2147483648
      %v8077 = vor.u32 1.1754944e-38, %v8076
      %v8078 = vsel %vm8075, %v8077, %v8073
      %v8079 = vmul.f32 1.0, %v8078
      %v8080 = vrcp.pop %v7698
      %v8081 = vmul.f32 %v7698, %v8080
      %v8082 = vsub.f32 1.0, %v8081
      %v8083 = vmul.f32 %v8080, %v8082
      %v8084 = vadd.f32 %v8080, %v8083
      %vm8085 = vweird.f32 %v7698
      %vm8086 = vweird.f32 %v8080
      %vm8087 = vmor %vm8085, %vm8086
      %v8088 = vsel %vm8087, %v8080, %v8084
      %v8089 = vand.u32 2147483647, %v7698
      %vm8090 = vcmp.eq.f32.partialorder %v8089, 8.507059e+37
      %v8091 = vand.u32 %v7698, 2147483648
      %v8092 = vor.u32 1.1754944e-38, %v8091
      %v8093 = vsel %vm8090, %v8092, %v8088
      %v8094 = vmul.f32 1.0, %v8093
      %v8095 = vrcp.pop %v7699
      %v8096 = vmul.f32 %v7699, %v8095
      %v8097 = vsub.f32 1.0, %v8096
      %v8098 = vmul.f32 %v8095, %v8097
      %v8099 = vadd.f32 %v8095, %v8098
      %vm8100 = vweird.f32 %v7699
      %vm8101 = vweird.f32 %v8095
      %vm8102 = vmor %vm8100, %vm8101
      %v8103 = vsel %vm8102, %v8095, %v8099
      %v8104 = vand.u32 2147483647, %v7699
      %vm8105 = vcmp.eq.f32.partialorder %v8104, 8.507059e+37
      %v8106 = vand.u32 %v7699, 2147483648
      %v8107 = vor.u32 1.1754944e-38, %v8106
      %v8108 = vsel %vm8105, %v8107, %v8103
      %v8109 = vmul.f32 1.0, %v8108
      %v8110 = vrcp.pop %v7700
      %v8111 = vmul.f32 %v7700, %v8110
      %v8112 = vsub.f32 1.0, %v8111
      %v8113 = vmul.f32 %v8110, %v8112
      %v8114 = vadd.f32 %v8110, %v8113
      %vm8115 = vweird.f32 %v7700
      %vm8116 = vweird.f32 %v8110
      %vm8117 = vmor %vm8115, %vm8116
      %v8118 = vsel %vm8117, %v8110, %v8114
      %v8119 = vand.u32 2147483647, %v7700
      %vm8120 = vcmp.eq.f32.partialorder %v8119, 8.507059e+37
      %v8121 = vand.u32 %v7700, 2147483648
      %v8122 = vor.u32 1.1754944e-38, %v8121
      %v8123 = vsel %vm8120, %v8122, %v8118
      %v8124 = vmul.f32 1.0, %v8123
      %v8125 = vrcp.pop %v7701
      %v8126 = vmul.f32 %v7701, %v8125
      %v8127 = vsub.f32 1.0, %v8126
      %v8128 = vmul.f32 %v8125, %v8127
      %v8129 = vadd.f32 %v8125, %v8128
      %vm8130 = vweird.f32 %v7701
      %vm8131 = vweird.f32 %v8125
      %vm8132 = vmor %vm8130, %vm8131
      %v8133 = vsel %vm8132, %v8125, %v8129
      %v8134 = vand.u32 2147483647, %v7701
      %vm8135 = vcmp.eq.f32.partialorder %v8134, 8.507059e+37
      %v8136 = vand.u32 %v7701, 2147483648
      %v8137 = vor.u32 1.1754944e-38, %v8136
      %v8138 = vsel %vm8135, %v8137, %v8133
      %v8139 = vmul.f32 1.0, %v8138
      %v8140 = vrcp.pop %v7702
      %v8141 = vmul.f32 %v7702, %v8140
      %v8142 = vsub.f32 1.0, %v8141
      %v8143 = vmul.f32 %v8140, %v8142
      %v8144 = vadd.f32 %v8140, %v8143
      %vm8145 = vweird.f32 %v7702
      %vm8146 = vweird.f32 %v8140
      %vm8147 = vmor %vm8145, %vm8146
      %v8148 = vsel %vm8147, %v8140, %v8144
      %v8149 = vand.u32 2147483647, %v7702
      %vm8150 = vcmp.eq.f32.partialorder %v8149, 8.507059e+37
      %v8151 = vand.u32 %v7702, 2147483648
      %v8152 = vor.u32 1.1754944e-38, %v8151
      %v8153 = vsel %vm8150, %v8152, %v8148
      %v8154 = vmul.f32 1.0, %v8153
      %v8155 = vrcp.pop %v7703
      %v8156 = vmul.f32 %v7703, %v8155
      %v8157 = vsub.f32 1.0, %v8156
      %v8158 = vmul.f32 %v8155, %v8157
      %v8159 = vadd.f32 %v8155, %v8158
      %vm8160 = vweird.f32 %v7703
      %vm8161 = vweird.f32 %v8155
      %vm8162 = vmor %vm8160, %vm8161
      %v8163 = vsel %vm8162, %v8155, %v8159
      %v8164 = vand.u32 2147483647, %v7703
      %vm8165 = vcmp.eq.f32.partialorder %v8164, 8.507059e+37
      %v8166 = vand.u32 %v7703, 2147483648
      %v8167 = vor.u32 1.1754944e-38, %v8166
      %v8168 = vsel %vm8165, %v8167, %v8163
      %v8169 = vmul.f32 1.0, %v8168
      %v8170 = vrcp.pop %v7704
      %v8171 = vmul.f32 %v7704, %v8170
      %v8172 = vsub.f32 1.0, %v8171
      %v8173 = vmul.f32 %v8170, %v8172
      %v8174 = vadd.f32 %v8170, %v8173
      %vm8175 = vweird.f32 %v7704
      %vm8176 = vweird.f32 %v8170
      %vm8177 = vmor %vm8175, %vm8176
      %v8178 = vsel %vm8177, %v8170, %v8174
      %v8179 = vand.u32 2147483647, %v7704
      %vm8180 = vcmp.eq.f32.partialorder %v8179, 8.507059e+37
      %v8181 = vand.u32 %v7704, 2147483648
      %v8182 = vor.u32 1.1754944e-38, %v8181
      %v8183 = vsel %vm8180, %v8182, %v8178
      %v8184 = vmul.f32 1.0, %v8183
      %v8185 = vmul.f32 %v7545, %v7719
      %v8186 = vmul.f32 %v7546, %v7734
      %v8187 = vmul.f32 %v7547, %v7749
      %v8188 = vmul.f32 %v7548, %v7764
      %v8189 = vmul.f32 %v7549, %v7779
      %v8190 = vmul.f32 %v7550, %v7794
      %v8191 = vmul.f32 %v7551, %v7809
      %v8192 = vmul.f32 %v7552, %v7824
      %v8193 = vmul.f32 %v7553, %v7839
      %v8194 = vmul.f32 %v7554, %v7854
      %v8195 = vmul.f32 %v7555, %v7869
      %v8196 = vmul.f32 %v7556, %v7884
      %v8197 = vmul.f32 %v7557, %v7899
      %v8198 = vmul.f32 %v7558, %v7914
      %v8199 = vmul.f32 %v7559, %v7929
      %v8200 = vmul.f32 %v7560, %v7944
      %v8201 = vmul.f32 %v7561, %v7959
      %v8202 = vmul.f32 %v7562, %v7974
      %v8203 = vmul.f32 %v7563, %v7989
      %v8204 = vmul.f32 %v7564, %v8004
      %v8205 = vmul.f32 %v7565, %v8019
      %v8206 = vmul.f32 %v7566, %v8034
      %v8207 = vmul.f32 %v7567, %v8049
      %v8208 = vmul.f32 %v7568, %v8064
      %v8209 = vmul.f32 %v7569, %v8079
      %v8210 = vmul.f32 %v7570, %v8094
      %v8211 = vmul.f32 %v7571, %v8109
      %v8212 = vmul.f32 %v7572, %v8124
      %v8213 = vmul.f32 %v7573, %v8139
      %v8214 = vmul.f32 %v7574, %v8154
      %v8215 = vmul.f32 %v7575, %v8169
      %v8216 = vmul.f32 %v7576, %v8184
      %v8217 = vsel %vm2968, %v8185, 0.0
      %v8218 = vsel %vm2968, %v8186, 0.0
      %v8219 = vadd.f32 %v8217, %v8218
      %v8220 = vsel %vm2968, %v8187, 0.0
      %v8221 = vadd.f32 %v8219, %v8220
      %v8222 = vsel %vm2968, %v8188, 0.0
      %v8223 = vadd.f32 %v8221, %v8222
      %v8224 = vsel %vm2968, %v8189, 0.0
      %v8225 = vadd.f32 %v8223, %v8224
      %v8226 = vsel %vm2968, %v8190, 0.0
      %v8227 = vadd.f32 %v8225, %v8226
      %v8228 = vsel %vm2968, %v8191, 0.0
      %v8229 = vadd.f32 %v8227, %v8228
      %v8230 = vsel %vm2968, %v8192, 0.0
      %v8231 = vadd.f32 %v8229, %v8230
      %v8232 = vsel %vm2968, %v8193, 0.0
      %v8233 = vadd.f32 %v8231, %v8232
      %v8234 = vsel %vm2968, %v8194, 0.0
      %v8235 = vadd.f32 %v8233, %v8234
      %v8236 = vsel %vm2968, %v8195, 0.0
      %v8237 = vadd.f32 %v8235, %v8236
      %v8238 = vsel %vm2968, %v8196, 0.0
      %v8239 = vadd.f32 %v8237, %v8238
      %v8240 = vsel %vm2968, %v8197, 0.0
      %v8241 = vadd.f32 %v8239, %v8240
      %v8242 = vsel %vm2968, %v8198, 0.0
      %v8243 = vadd.f32 %v8241, %v8242
      %v8244 = vsel %vm2968, %v8199, 0.0
      %v8245 = vadd.f32 %v8243, %v8244
      %v8246 = vsel %vm2968, %v8200, 0.0
      %v8247 = vadd.f32 %v8245, %v8246
      %v8248 = vsel %vm2968, %v8201, 0.0
      %v8249 = vadd.f32 %v8247, %v8248
      %v8250 = vsel %vm2968, %v8202, 0.0
      %v8251 = vadd.f32 %v8249, %v8250
      %v8252 = vsel %vm2968, %v8203, 0.0
      %v8253 = vadd.f32 %v8251, %v8252
      %v8254 = vsel %vm2968, %v8204, 0.0
      %v8255 = vadd.f32 %v8253, %v8254
      %v8256 = vsel %vm2968, %v8205, 0.0
      %v8257 = vadd.f32 %v8255, %v8256
      %v8258 = vsel %vm2968, %v8206, 0.0
      %v8259 = vadd.f32 %v8257, %v8258
      %v8260 = vsel %vm2968, %v8207, 0.0
      %v8261 = vadd.f32 %v8259, %v8260
      %v8262 = vsel %vm2968, %v8208, 0.0
      %v8263 = vadd.f32 %v8261, %v8262
      %v8264 = vsel %vm2968, %v8209, 0.0
      %v8265 = vadd.f32 %v8263, %v8264
      %v8266 = vsel %vm2968, %v8210, 0.0
      %v8267 = vadd.f32 %v8265, %v8266
      %v8268 = vsel %vm2968, %v8211, 0.0
      %v8269 = vadd.f32 %v8267, %v8268
      %v8270 = vsel %vm2968, %v8212, 0.0
      %v8271 = vadd.f32 %v8269, %v8270
      %v8272 = vsel %vm2968, %v8213, 0.0
      %v8273 = vadd.f32 %v8271, %v8272
      %v8274 = vsel %vm2968, %v8214, 0.0
      %v8275 = vadd.f32 %v8273, %v8274
      %v8276 = vsel %vm2968, %v8215, 0.0
      %v8277 = vadd.f32 %v8275, %v8276
      %v8278 = vsel %vm2968, %v8216, 0.0
      %v8279 = vadd.f32 %v8277, %v8278
      %v8280 = vrot.slane %v8279, 4
      %v8281 = vadd.f32 %v8279, %v8280
      %v8282 = vrot.slane %v8281, 2
      %v8283 = vadd.f32 %v8281, %v8282
      %v8284 = vrot.slane %v8283, 1
      %v8285 = vadd.f32 %v8283, %v8284
      %8286 = vst.msk [vmem:[%s424] sm:$0xff] %vm2968, %v8285
      %v8287 = vpack.c.bf16 %v8185, %v8185
      %v8288 = vpack.c.bf16 %v8186, %v8186
      %v8289 = vpack.c.bf16 %v8187, %v8187
      %v8290 = vpack.c.bf16 %v8188, %v8188
      %v8291 = vpack.c.bf16 %v8189, %v8189
      %v8292 = vpack.c.bf16 %v8190, %v8190
      %v8293 = vpack.c.bf16 %v8191, %v8191
      %v8294 = vpack.c.bf16 %v8192, %v8192
      %v8295 = vpack.c.bf16 %v8193, %v8193
      %v8296 = vpack.c.bf16 %v8194, %v8194
      %v8297 = vpack.c.bf16 %v8195, %v8195
      %v8298 = vpack.c.bf16 %v8196, %v8196
      %v8299 = vpack.c.bf16 %v8197, %v8197
      %v8300 = vpack.c.bf16 %v8198, %v8198
      %v8301 = vpack.c.bf16 %v8199, %v8199
      %v8302 = vpack.c.bf16 %v8200, %v8200
      %v8303 = vpack.c.bf16 %v8201, %v8201
      %v8304 = vpack.c.bf16 %v8202, %v8202
      %v8305 = vpack.c.bf16 %v8203, %v8203
      %v8306 = vpack.c.bf16 %v8204, %v8204
      %v8307 = vpack.c.bf16 %v8205, %v8205
      %v8308 = vpack.c.bf16 %v8206, %v8206
      %v8309 = vpack.c.bf16 %v8207, %v8207
      %v8310 = vpack.c.bf16 %v8208, %v8208
      %v8311 = vpack.c.bf16 %v8209, %v8209
      %v8312 = vpack.c.bf16 %v8210, %v8210
      %v8313 = vpack.c.bf16 %v8211, %v8211
      %v8314 = vpack.c.bf16 %v8212, %v8212
      %v8315 = vpack.c.bf16 %v8213, %v8213
      %v8316 = vpack.c.bf16 %v8214, %v8214
      %v8317 = vpack.c.bf16 %v8215, %v8215
      %v8318 = vpack.c.bf16 %v8216, %v8216
      %vm8319 = vcmask 60416
      %8320 = vst.msk [vmem:[%s413] sm:$0xf] %vm8319, %v8287
      %8321 = vst.msk [vmem:[%s413 + $0x4] sm:$0xf] %vm8319, %v8288
      %8322 = vst.msk [vmem:[%s413 + $0x8] sm:$0xf] %vm8319, %v8289
      %8323 = vst.msk [vmem:[%s413 + $0xc] sm:$0xf] %vm8319, %v8290
      %8324 = vst.msk [vmem:[%s413 + $0x10] sm:$0xf] %vm8319, %v8291
      %8325 = vst.msk [vmem:[%s413 + $0x14] sm:$0xf] %vm8319, %v8292
      %8326 = vst.msk [vmem:[%s413 + $0x18] sm:$0xf] %vm8319, %v8293
      %8327 = vst.msk [vmem:[%s413 + $0x1c] sm:$0xf] %vm8319, %v8294
      %8328 = vst.msk [vmem:[%s413 + $0x20] sm:$0xf] %vm8319, %v8295
      %8329 = vst.msk [vmem:[%s413 + $0x24] sm:$0xf] %vm8319, %v8296
      %8330 = vst.msk [vmem:[%s413 + $0x28] sm:$0xf] %vm8319, %v8297
      %8331 = vst.msk [vmem:[%s413 + $0x2c] sm:$0xf] %vm8319, %v8298
      %8332 = vst.msk [vmem:[%s413 + $0x30] sm:$0xf] %vm8319, %v8299
      %8333 = vst.msk [vmem:[%s413 + $0x34] sm:$0xf] %vm8319, %v8300
      %8334 = vst.msk [vmem:[%s413 + $0x38] sm:$0xf] %vm8319, %v8301
      %8335 = vst.msk [vmem:[%s413 + $0x3c] sm:$0xf] %vm8319, %v8302
      %8336 = vst.msk [vmem:[%s413 + $0x40] sm:$0xf] %vm8319, %v8303
      %8337 = vst.msk [vmem:[%s413 + $0x44] sm:$0xf] %vm8319, %v8304
      %8338 = vst.msk [vmem:[%s413 + $0x48] sm:$0xf] %vm8319, %v8305
      %8339 = vst.msk [vmem:[%s413 + $0x4c] sm:$0xf] %vm8319, %v8306
      %8340 = vst.msk [vmem:[%s413 + $0x50] sm:$0xf] %vm8319, %v8307
      %8341 = vst.msk [vmem:[%s413 + $0x54] sm:$0xf] %vm8319, %v8308
      %8342 = vst.msk [vmem:[%s413 + $0x58] sm:$0xf] %vm8319, %v8309
      %8343 = vst.msk [vmem:[%s413 + $0x5c] sm:$0xf] %vm8319, %v8310
      %8344 = vst.msk [vmem:[%s413 + $0x60] sm:$0xf] %vm8319, %v8311
      %8345 = vst.msk [vmem:[%s413 + $0x64] sm:$0xf] %vm8319, %v8312
      %8346 = vst.msk [vmem:[%s413 + $0x68] sm:$0xf] %vm8319, %v8313
      %8347 = vst.msk [vmem:[%s413 + $0x6c] sm:$0xf] %vm8319, %v8314
      %8348 = vst.msk [vmem:[%s413 + $0x70] sm:$0xf] %vm8319, %v8315
      %8349 = vst.msk [vmem:[%s413 + $0x74] sm:$0xf] %vm8319, %v8316
      %8350 = vst.msk [vmem:[%s413 + $0x78] sm:$0xf] %vm8319, %v8317
      %8351 = vst.msk [vmem:[%s413 + $0x7c] sm:$0xf] %vm8319, %v8318
      %s8352 = smul.u32 %s23, 2
      %s8353 = sadd.s32 %s8352, %s24
      %s8354 = smul.u32 32, %s8353
      %p8355 = scmp.lt.s32.totalorder %s8354, 127
      %s8356 = scalar_select %p8355, %s8354, 127
      %s8357 = smul.addr %s8356, 4
      %s8358 = scalar_lea.vmem %s6, %s8357
      %p8359 = scmp.lt.s32.totalorder %s23, 1
      %s8360 = scalar_select %p8359, %s23, 1
      %p8361 = scmp.lt.s32.totalorder %s24, 1
      %s8362 = scalar_select %p8361, %s24, 1
      %s8363 = smul.addr %s8360, 2
      %s8364 = sadd.s32 %s8362, %s8363
      %s8365 = smul.addr %s8364, 8
      %s8366 = scalar_lea.vmem %s7, %s8365
      // Predicated region
      $region45: #{mbconv_forward.2} parent=43 // pred_check
        %p8367 = pneg %p197
      $region46: #{mbconv_forward.2} parent=43 // pred_check_branch
        %8369 = sbr.rel (%p8367) target = $region48
      $region47: #{mbconv_forward.2} parent=43 // pred_region
        %s8370 = smul.u32 %s23, 2
        %s8371 = sadd.s32 %s8370, %s24
        %s8372 = smul.u32 32, %s8371
      $region48: #{mbconv_forward.2} parent=43 // pred_fallthru
        _
      // Predicated region
      $region49: #{mbconv_forward.2} parent=43 // pred_check
        %p8373 = pneg %p225
      $region50: #{mbconv_forward.2} parent=43 // pred_check_branch
        %8375 = sbr.rel (%p8373) target = $region52
      $region51: #{mbconv_forward.2} parent=43 // pred_region
        _
      $region52: #{mbconv_forward.2} parent=43 // pred_fallthru
        _
    $region44: #{mbconv_forward.2} parent=5 // pred_fallthru
      _
    %p8376 = scmp.le.s32.totalorder 2, %s14
    // Predicated region
    $region53: #{mbconv_forward.2} parent=5 // pred_check
      %p8377 = pneg %p8376
    $region54: #{mbconv_forward.2} parent=5 // pred_check_branch
      %8379 = sbr.rel (%p8377) target = $region56
    $region55: #{mbconv_forward.2} parent=5 // pred_region
      %s8380 = ssub.s32 %s14, 2
      // Predicated region
      $region57: #{mbconv_forward.2} parent=55 // pred_check
        %p8381 = pneg %p203
      $region58: #{mbconv_forward.2} parent=55 // pred_check_branch
        %8383 = sbr.rel (%p8381) target = $region60
      $region59: #{mbconv_forward.2} parent=55 // pred_region
        %s8384 = smul.u32 %s25, 2
        %s8385 = sadd.s32 %s8384, %s26
        %s8386 = smul.u32 32, %s8385
        %p8387 = scmp.lt.s32.totalorder %s8386, 127
        %s8388 = scalar_select %p8387, %s8386, 127
        %s8389 = smul.addr %s8388, 4
        %s8390 = scalar_lea.vmem %s6, %s8389
      $region60: #{mbconv_forward.2} parent=55 // pred_fallthru
        _
      // Predicated region
      $region61: #{mbconv_forward.2} parent=55 // pred_check
        %p8391 = pneg %p231
      $region62: #{mbconv_forward.2} parent=55 // pred_check_branch
        %8393 = sbr.rel (%p8391) target = $region64
      $region63: #{mbconv_forward.2} parent=55 // pred_region
        %p8394 = scmp.lt.s32.totalorder %s25, 1
        %s8395 = scalar_select %p8394, %s25, 1
        %p8396 = scmp.lt.s32.totalorder %s26, 1
        %s8397 = scalar_select %p8396, %s26, 1
        %s8398 = smul.addr %s8395, 2
        %s8399 = sadd.s32 %s8397, %s8398
        %s8400 = smul.addr %s8399, 8
        %s8401 = scalar_lea.vmem %s7, %s8400
      $region64: #{mbconv_forward.2} parent=55 // pred_fallthru
        _
    $region56: #{mbconv_forward.2} parent=5 // pred_fallthru
      _
  $region6: #{mbconv_forward.2} parent=0 // loop_footer
    %s18 = sadd.s32 1, %s14
  $region7: #{mbconv_forward.2} parent=0 // loop_footer_branch
    %13 = sbr.rel target = $region3
  $region8: #{mbconv_forward.2} parent=0 // loop_exit
    _

</llo_original>
